<compile_context>
chip_gen: v6e
topology: v6e:2x2x1
jax: 0.10.0
libtpu: 0.0.40
codegen_flags: <defaults>
</compile_context>

<pallas_src>
import functools
import math

import jax
import jax.numpy as jnp
from jax import lax
from jax.experimental import pallas as pl
from jax.experimental.pallas import tpu as pltpu


# --------------------------------- kernel -----------------------------------

def decoder_kernel(tgt_ref, qpos_ref, memk_ref, memv_ref,
                   sa_wqk_ref, sa_wv_ref, sa_wo_ref,
                   ca_wq_ref, ca_wk_ref, ca_wv_ref, ca_wo_ref,
                   l1_w_ref, l2_w_ref,
                   sa_bqk_ref, l1_b_ref, b_d_ref, nf_ref,
                   out_ref, *, num_layers, nhead, compute_dtype):
    cdt = jnp.dtype(compute_dtype)
    approx = cdt == jnp.dtype(jnp.bfloat16)
    H = nhead
    Bb, S_t, D = tgt_ref.shape
    S_m = memk_ref.shape[1]
    hd = D // H
    M = Bb * S_t          # batch folded into the matmul M dimension
    Mm = Bb * S_m

    def layernorm(x, g, b, eps=1e-5):
        mu = jnp.mean(x, axis=-1, keepdims=True)
        var = jnp.mean((x - mu) ** 2, axis=-1, keepdims=True)
        return (x - mu) * lax.rsqrt(var + eps) * g + b

    def attend(q2, k2, v2, Sk, wo, bo):
        # q2: [M, D] f32 ; k2, v2: [Bb*Sk, D] f32 ; wo: [D, D] cdt ; bo: [1, D]
        # Split heads only here (static row/lane slices stacked on a leading
        # batch axis) so the FLOP-heavy projections above stay lane-dense.
        def grp(x2, S):
            return jnp.stack(
                [x2[b * S:(b + 1) * S, h * hd:(h + 1) * hd]
                 for b in range(Bb) for h in range(H)], axis=0).astype(cdt)

        q3 = grp(q2, S_t)                       # [Bb*H, S_t, hd]
        k3 = grp(k2, Sk)                        # [Bb*H, Sk,  hd]
        v3 = grp(v2, Sk)
        s = jnp.einsum('gqm,gkm->gqk', q3, k3,
                       preferred_element_type=jnp.float32)      # scale folded in Wq
        s = s - jnp.max(s, axis=-1, keepdims=True)
        e = jnp.exp(s)
        p = e * pl.reciprocal(jnp.sum(e, axis=-1, keepdims=True), approx=approx)
        o = jnp.einsum('gqk,gkm->gqm', p.astype(cdt), v3,
                       preferred_element_type=jnp.float32)      # [Bb*H, S_t, hd]
        # merge heads back to lane-dense [M, D]; output projection fuses the
        # head reduction into one K = D matmul.
        o2 = jnp.concatenate(
            [jnp.concatenate([o[b * H + h] for h in range(H)], axis=-1)
             for b in range(Bb)], axis=0)                        # [M, D] f32
        return jnp.dot(o2.astype(cdt), wo,
                       preferred_element_type=jnp.float32) + bo

    # Flatten batch into M (leading-dim reshape only; lane layout unchanged).
    x = tgt_ref[...].reshape(M, D)              # residual stream, f32
    qp = qpos_ref[...].reshape(M, D)            # f32
    # Cross-attn K/V sources: already pos-added and cast in the wrapper.
    memk2 = memk_ref[...].reshape(Mm, D)        # (mem + pos), compute dtype
    memv2 = memv_ref[...].reshape(Mm, D)        # mem,         compute dtype

    for l in range(num_layers):                 # weights resident; static unroll
        bd = b_d_ref[l]                         # [13, D] f32 packed vectors

        # ---------------- self-attention (fused lane-dense Q/K proj) --------
        qk_in = (x + qp).astype(cdt)
        qk = jnp.dot(qk_in, sa_wqk_ref[l],
                     preferred_element_type=jnp.float32) + sa_bqk_ref[l]  # [M, 2D]
        v = jnp.dot(x.astype(cdt), sa_wv_ref[l],
                    preferred_element_type=jnp.float32) + bd[0:1]         # [M, D]
        sa = attend(qk[:, 0:D], qk[:, D:2 * D], v, S_t,
                    sa_wo_ref[l], bd[1:2])
        x = layernorm(x + sa, bd[7:8], bd[8:9])

        # ---------------- cross-attention ------------------------------------
        q = jnp.dot((x + qp).astype(cdt), ca_wq_ref[l],
                    preferred_element_type=jnp.float32) + bd[2:3]         # [M, D]
        k = jnp.dot(memk2, ca_wk_ref[l],
                    preferred_element_type=jnp.float32) + bd[3:4]         # [Mm, D]
        vv = jnp.dot(memv2, ca_wv_ref[l],
                     preferred_element_type=jnp.float32) + bd[4:5]        # [Mm, D]
        ca = attend(q, k, vv, S_m, ca_wo_ref[l], bd[5:6])
        x = layernorm(x + ca, bd[9:10], bd[10:11])

        # ---------------- feed-forward ----------------------------------------
        h = jnp.maximum(
            jnp.dot(x.astype(cdt), l1_w_ref[l],
                    preferred_element_type=jnp.float32) + l1_b_ref[l], 0.0)
        y = jnp.dot(h.astype(cdt), l2_w_ref[l],
                    preferred_element_type=jnp.float32) + bd[6:7]
        x = layernorm(x + y, bd[11:12], bd[12:13])

    # final decoder norm (self.norm)
    out_ref[...] = layernorm(x, nf_ref[0:1], nf_ref[1:2]).reshape(Bb, S_t, D)


# -------------------------------- wrapper ------------------------------------

_WEIGHT_NAMES = ("sa_wqk", "sa_wv", "sa_wo",
                 "ca_wq", "ca_wk", "ca_wv", "ca_wo",
                 "l1_w", "l2_w",
                 "sa_bqk", "l1_b", "b_d", "nf")


def _pack_params(params, num_layers, nhead, d_model, compute_dtype):
    """Pack PyTorch-style (pre-transposed [in,out]) weights into lane-dense
    kernel layouts; fold the attention scale into the Q projections."""
    L, D, H = num_layers, d_model, nhead
    hd = D // H
    scale = 1.0 / math.sqrt(hd)
    cdt = compute_dtype

    sa_w, sa_b = params["sa_w"], params["sa_b"]   # [L, D, 3D], [L, 1, 3D]
    ca_w, ca_b = params["ca_w"], params["ca_b"]

    sa_wqk = jnp.concatenate([sa_w[:, :, 0:D] * scale, sa_w[:, :, D:2 * D]], -1)
    sa_bqk = jnp.concatenate([sa_b[:, :, 0:D] * scale, sa_b[:, :, D:2 * D]], -1)

    b_d = jnp.concatenate([
        sa_b[:, :, 2 * D:3 * D],            # 0: sa V bias
        params["sa_ob"],                    # 1: sa out bias
        ca_b[:, :, 0:D] * scale,            # 2: ca Q bias (pre-scaled)
        ca_b[:, :, D:2 * D],                # 3: ca K bias
        ca_b[:, :, 2 * D:3 * D],            # 4: ca V bias
        params["ca_ob"],                    # 5: ca out bias
        params["l2_b"],                     # 6: l2 bias
        params["n1_g"], params["n1_b"],     # 7, 8
        params["n2_g"], params["n2_b"],     # 9, 10
        params["n3_g"], params["n3_b"],     # 11, 12
    ], axis=1)                                              # [L, 13, D] f32

    return dict(
        sa_wqk=sa_wqk.astype(cdt),                          # [L, D, 2D]
        sa_wv=sa_w[:, :, 2 * D:3 * D].astype(cdt),          # [L, D, D]
        sa_wo=params["sa_ow"].astype(cdt),                  # [L, D, D]
        ca_wq=(ca_w[:, :, 0:D] * scale).astype(cdt),        # [L, D, D]
        ca_wk=ca_w[:, :, D:2 * D].astype(cdt),
        ca_wv=ca_w[:, :, 2 * D:3 * D].astype(cdt),
        ca_wo=params["ca_ow"].astype(cdt),
        l1_w=params["l1_w"].astype(cdt),                    # [L, D, dff]
        l2_w=params["l2_w"].astype(cdt),                    # [L, dff, D]
        sa_bqk=sa_bqk,                                      # [L, 1, 2D] f32
        l1_b=params["l1_b"],                                # [L, 1, dff] f32
        b_d=b_d,                                            # [L, 13, D] f32
        nf=jnp.concatenate([params["nf_g"], params["nf_b"]], axis=0),  # [2, D]
    )


def _vmem_limit_bytes():
    """Generation-aware scoped-VMEM limit (v7x parts only have 64 MiB)."""
    try:
        cap = pltpu.get_tpu_info().vmem_capacity_bytes
    except Exception:
        kind = ""
        try:
            kind = jax.devices()[0].device_kind.lower()
        except Exception:
            pass
        cap = 64 * 1024 * 1024 if "v7" in kind else 128 * 1024 * 1024
    return min(int(cap * 0.85), 112 * 1024 * 1024)


def transformer_decoder(tgt, memory, query_pos, pos, params, *, num_layers, nhead,
                        compute_dtype=jnp.bfloat16, block_b=1):
    """tgt/query_pos: [B, S_t, D]; memory/pos: [B, S_m, D] (float32).
    (PyTorch/DETR uses [S, B, D]; that transpose belongs to the caller.)"""
    B, S_t, D = tgt.shape
    _, S_m, _ = memory.shape
    assert B % block_b == 0, "block_b must divide the batch size"
    cdt = jnp.dtype(compute_dtype)

    # Pre-add the spatial positional embedding and pre-cast the cross-attn
    # K / V sources in the wrapper (plain XLA): halves their DMA bytes and
    # removes the per-grid-step add / cast / broadcast.
    memk = (memory + pos).astype(cdt)
    memv = memory.astype(cdt)

    packed = _pack_params(params, num_layers, nhead, D, cdt)
    weight_args = [packed[n] for n in _WEIGHT_NAMES]

    def w_spec(a):
        nd = a.ndim
        idx = lambda b, _n=nd: (0,) * _n
        try:
            # grid-invariant resident weights: single-buffer (no double DMA copy)
            return pl.BlockSpec(a.shape, idx, pipeline_mode=pl.Buffered(1))
        except Exception:
            return pl.BlockSpec(a.shape, idx)

    act_t = pl.BlockSpec((block_b, S_t, D), lambda b: (b, 0, 0))
    act_m = pl.BlockSpec((block_b, S_m, D), lambda b: (b, 0, 0))
    in_specs = [act_t, act_t, act_m, act_m] + [w_spec(a) for a in weight_args]

    kernel = functools.partial(decoder_kernel, num_layers=num_layers,
                               nhead=nhead, compute_dtype=cdt)

    return pl.pallas_call(
        kernel,
        out_shape=jax.ShapeDtypeStruct((B, S_t, D), jnp.float32),
        grid=(B // block_b,),
        in_specs=in_specs,
        out_specs=pl.BlockSpec((block_b, S_t, D), lambda b: (b, 0, 0)),
        compiler_params=pltpu.CompilerParams(
            dimension_semantics=("parallel",),
            vmem_limit_bytes=_vmem_limit_bytes()),
    )(tgt, query_pos, memk, memv, *weight_args)


# --------------------------- parameter construction --------------------------

def make_params(key, num_layers, d_model, dff):
    """PyTorch-convention weights ([out,in]) pre-transposed for x @ W form."""
    D, L = d_model, num_layers
    keys = iter(jax.random.split(key, 64))

    def w(shape, scale=0.05):
        return (scale * jax.random.normal(next(keys), shape)).astype(jnp.float32)

    ones = lambda s: jnp.ones(s, jnp.float32)
    zeros = lambda s: jnp.zeros(s, jnp.float32)
    return {
        "sa_w": w((L, D, 3 * D)), "sa_b": w((L, 1, 3 * D), 0.01),
        "sa_ow": w((L, D, D)), "sa_ob": w((L, 1, D), 0.01),
        "ca_w": w((L, D, 3 * D)), "ca_b": w((L, 1, 3 * D), 0.01),
        "ca_ow": w((L, D, D)), "ca_ob": w((L, 1, D), 0.01),
        "l1_w": w((L, D, dff)), "l1_b": w((L, 1, dff), 0.01),
        "l2_w": w((L, dff, D)), "l2_b": w((L, 1, D), 0.01),
        "n1_g": ones((L, 1, D)), "n1_b": zeros((L, 1, D)),
        "n2_g": ones((L, 1, D)), "n2_b": zeros((L, 1, D)),
        "n3_g": ones((L, 1, D)), "n3_b": zeros((L, 1, D)),
        "nf_g": ones((1, D)), "nf_b": zeros((1, D)),
    }


# ------------------------------ pure-JAX reference ---------------------------

def _ref_layernorm(x, g, b, eps=1e-5):
    mu = jnp.mean(x, -1, keepdims=True)
    var = jnp.mean((x - mu) ** 2, -1, keepdims=True)
    return (x - mu) / jnp.sqrt(var + eps) * g + b


def _ref_mha(q_in, k_in, v_in, w_t, b, ow_t, ob, nhead):
    D = q_in.shape[-1]
    hd = D // nhead
    q = q_in @ w_t[:, :D] + b[:, :D]
    k = k_in @ w_t[:, D:2 * D] + b[:, D:2 * D]
    v = v_in @ w_t[:, 2 * D:] + b[:, 2 * D:]
    q = q.reshape(q.shape[0], nhead, hd).transpose(1, 0, 2) / (hd ** 0.5)
    k = k.reshape(k.shape[0], nhead, hd).transpose(1, 0, 2)
    v = v.reshape(v.shape[0], nhead, hd).transpose(1, 0, 2)
    s = jnp.einsum("hqd,hkd->hqk", q, k)
    p = jax.nn.softmax(s, axis=-1)
    o = jnp.einsum("hqk,hkd->hqd", p, v).transpose(1, 0, 2).reshape(-1, D)
    return o @ ow_t + ob


def reference_decoder(tgt, memory, query_pos, pos, params, *, num_layers, nhead):
    def one_batch(x, mem, qp, ps):
        for l in range(num_layers):
            sa = _ref_mha(x + qp, x + qp, x, params["sa_w"][l], params["sa_b"][l],
                          params["sa_ow"][l], params["sa_ob"][l], nhead)
            x = _ref_layernorm(x + sa, params["n1_g"][l], params["n1_b"][l])
            ca = _ref_mha(x + qp, mem + ps, mem, params["ca_w"][l], params["ca_b"][l],
                          params["ca_ow"][l], params["ca_ob"][l], nhead)
            x = _ref_layernorm(x + ca, params["n2_g"][l], params["n2_b"][l])
            h = jax.nn.relu(x @ params["l1_w"][l] + params["l1_b"][l])
            y = h @ params["l2_w"][l] + params["l2_b"][l]
            x = _ref_layernorm(x + y, params["n3_g"][l], params["n3_b"][l])
        return _ref_layernorm(x, params["nf_g"], params["nf_b"])
    return jax.vmap(one_batch)(tgt, memory, query_pos, pos)


# ---------------------------------- main --------------------------------------

if __name__ == "__main__":
    B, S_t, S_m = 2, 8, 16
    D, NHEAD, DFF, L = 32, 4, 64, 2

    key = jax.random.PRNGKey(0)
    k1, k2, k3, k4, kp = jax.random.split(key, 5)
    tgt = jax.random.normal(k1, (B, S_t, D), jnp.float32)        # decoder queries
    memory = jax.random.normal(k2, (B, S_m, D), jnp.float32)     # encoder memory
    query_pos = jax.random.normal(k3, (B, S_t, D), jnp.float32)  # query pos embed
    pos = jax.random.normal(k4, (B, S_m, D), jnp.float32)        # spatial pos embed
    params = make_params(kp, L, D, DFF)

    ref = reference_decoder(tgt, memory, query_pos, pos, params,
                            num_layers=L, nhead=NHEAD)

    # Strict f32 semantics check, 1 batch element / grid step (>=2 parallel steps).
    out_f32 = jax.block_until_ready(transformer_decoder(
        tgt, memory, query_pos, pos, params, num_layers=L, nhead=NHEAD,
        compute_dtype=jnp.float32, block_b=1))
    assert out_f32.shape == (B, S_t, D)
    assert jnp.allclose(out_f32, ref, atol=1e-3, rtol=1e-3), "f32 (block_b=1) mismatch"

    # f32 check with the batch folded into the matmul M dimension (block_b=2).
    out_f32b = jax.block_until_ready(transformer_decoder(
        tgt, memory, query_pos, pos, params, num_layers=L, nhead=NHEAD,
        compute_dtype=jnp.float32, block_b=2))
    assert jnp.allclose(out_f32b, ref, atol=1e-3, rtol=1e-3), "f32 (block_b=2) mismatch"

    # bf16 MXU-operand path (production config for v6e/v7x): looser tolerance.
    out_bf16 = jax.block_until_ready(transformer_decoder(
        tgt, memory, query_pos, pos, params, num_layers=L, nhead=NHEAD,
        compute_dtype=jnp.bfloat16, block_b=1))
    assert out_bf16.shape == (B, S_t, D)
    assert jnp.allclose(out_bf16, ref, atol=3e-2, rtol=3e-2), "bf16 mismatch vs reference"

    print("KERNEL_OK")
</pallas_src>

<mosaic_0001>
module attributes {stable_mosaic.version = 11 : i64} {
  func.func @decoder_kernel(%arg0: i32, %arg1: memref<1x8x32xf32, #tpu.memory_space<vmem>>, %arg2: memref<1x8x32xf32, #tpu.memory_space<vmem>>, %arg3: memref<1x16x32xf32, #tpu.memory_space<vmem>>, %arg4: memref<1x16x32xf32, #tpu.memory_space<vmem>>, %arg5: memref<2x32x64xf32, #tpu.memory_space<vmem>>, %arg6: memref<2x32x32xf32, #tpu.memory_space<vmem>>, %arg7: memref<2x32x32xf32, #tpu.memory_space<vmem>>, %arg8: memref<2x32x32xf32, #tpu.memory_space<vmem>>, %arg9: memref<2x32x32xf32, #tpu.memory_space<vmem>>, %arg10: memref<2x32x32xf32, #tpu.memory_space<vmem>>, %arg11: memref<2x32x32xf32, #tpu.memory_space<vmem>>, %arg12: memref<2x32x64xf32, #tpu.memory_space<vmem>>, %arg13: memref<2x64x32xf32, #tpu.memory_space<vmem>>, %arg14: memref<2x1x64xf32, #tpu.memory_space<vmem>>, %arg15: memref<2x1x64xf32, #tpu.memory_space<vmem>>, %arg16: memref<2x13x32xf32, #tpu.memory_space<vmem>>, %arg17: memref<2x32xf32, #tpu.memory_space<vmem>>, %arg18: memref<1x8x32xf32, #tpu.memory_space<vmem>>) attributes {dimension_semantics = [#tpu.dimension_semantics<parallel>], iteration_bounds = array<i64: 2>, scalar_prefetch = 0 : i64, scratch_operands = 0 : i64, tpu.core_type = #tpu.core_type<tc>, window_params = [{transform_indices = @transform_0, window_bounds = array<i64: 1, 8, 32>}, {transform_indices = @transform_1, window_bounds = array<i64: 1, 8, 32>}, {transform_indices = @transform_2, window_bounds = array<i64: 1, 16, 32>}, {transform_indices = @transform_3, window_bounds = array<i64: 1, 16, 32>}, {pipeline_mode = #tpu.pipeline_mode<synchronous>, transform_indices = @transform_4, window_bounds = array<i64: 2, 32, 64>}, {pipeline_mode = #tpu.pipeline_mode<synchronous>, transform_indices = @transform_5, window_bounds = array<i64: 2, 32, 32>}, {pipeline_mode = #tpu.pipeline_mode<synchronous>, transform_indices = @transform_6, window_bounds = array<i64: 2, 32, 32>}, {pipeline_mode = #tpu.pipeline_mode<synchronous>, transform_indices = @transform_7, window_bounds = array<i64: 2, 32, 32>}, {pipeline_mode = #tpu.pipeline_mode<synchronous>, transform_indices = @transform_8, window_bounds = array<i64: 2, 32, 32>}, {pipeline_mode = #tpu.pipeline_mode<synchronous>, transform_indices = @transform_9, window_bounds = array<i64: 2, 32, 32>}, {pipeline_mode = #tpu.pipeline_mode<synchronous>, transform_indices = @transform_10, window_bounds = array<i64: 2, 32, 32>}, {pipeline_mode = #tpu.pipeline_mode<synchronous>, transform_indices = @transform_11, window_bounds = array<i64: 2, 32, 64>}, {pipeline_mode = #tpu.pipeline_mode<synchronous>, transform_indices = @transform_12, window_bounds = array<i64: 2, 64, 32>}, {pipeline_mode = #tpu.pipeline_mode<synchronous>, transform_indices = @transform_13, window_bounds = array<i64: 2, 1, 64>}, {pipeline_mode = #tpu.pipeline_mode<synchronous>, transform_indices = @transform_14, window_bounds = array<i64: 2, 1, 64>}, {pipeline_mode = #tpu.pipeline_mode<synchronous>, transform_indices = @transform_15, window_bounds = array<i64: 2, 13, 32>}, {pipeline_mode = #tpu.pipeline_mode<synchronous>, transform_indices = @transform_16, window_bounds = array<i64: 2, 32>}, {transform_indices = @transform_17, window_bounds = array<i64: 1, 8, 32>}]} {
    %c0 = arith.constant 0 : index
    %c0_0 = arith.constant 0 : index
    %c0_1 = arith.constant 0 : index
    %0 = vector.load %arg1[%c0, %c0_0, %c0_1] : memref<1x8x32xf32, #tpu.memory_space<vmem>>, vector<1x8x32xf32>
    %1 = vector.shape_cast %0 : vector<1x8x32xf32> to vector<8x32xf32>
    %c0_2 = arith.constant 0 : index
    %c0_3 = arith.constant 0 : index
    %c0_4 = arith.constant 0 : index
    %2 = vector.load %arg2[%c0_2, %c0_3, %c0_4] : memref<1x8x32xf32, #tpu.memory_space<vmem>>, vector<1x8x32xf32>
    %3 = vector.shape_cast %2 : vector<1x8x32xf32> to vector<8x32xf32>
    %c0_5 = arith.constant 0 : index
    %c0_6 = arith.constant 0 : index
    %c0_7 = arith.constant 0 : index
    %4 = vector.load %arg3[%c0_5, %c0_6, %c0_7] : memref<1x16x32xf32, #tpu.memory_space<vmem>>, vector<1x16x32xf32>
    %5 = vector.shape_cast %4 : vector<1x16x32xf32> to vector<16x32xf32>
    %c0_8 = arith.constant 0 : index
    %c0_9 = arith.constant 0 : index
    %c0_10 = arith.constant 0 : index
    %6 = vector.load %arg4[%c0_8, %c0_9, %c0_10] : memref<1x16x32xf32, #tpu.memory_space<vmem>>, vector<1x16x32xf32>
    %7 = vector.shape_cast %6 : vector<1x16x32xf32> to vector<16x32xf32>
    %c0_11 = arith.constant 0 : index
    %c0_12 = arith.constant 0 : index
    %c0_13 = arith.constant 0 : index
    %8 = vector.load %arg16[%c0_11, %c0_12, %c0_13] : memref<2x13x32xf32, #tpu.memory_space<vmem>>, vector<1x13x32xf32>
    %9 = vector.shape_cast %8 : vector<1x13x32xf32> to vector<13x32xf32>
    %10 = arith.addf %1, %3 : vector<8x32xf32>
    %c0_14 = arith.constant 0 : index
    %c0_15 = arith.constant 0 : index
    %c0_16 = arith.constant 0 : index
    %11 = vector.load %arg5[%c0_14, %c0_15, %c0_16] : memref<2x32x64xf32, #tpu.memory_space<vmem>>, vector<1x32x64xf32>
    %12 = vector.shape_cast %11 : vector<1x32x64xf32> to vector<32x64xf32>
    %cst = arith.constant dense<0.000000e+00> : vector<8x64xf32>
    %13 = tpu.matmul %10, %12, %cst {dimension_numbers = #tpu.dot_dimension_numbers<[1], [0], [0], [1], [0, 0, 1, 1], [], []>} : vector<8x32xf32>, vector<32x64xf32>, vector<8x64xf32> -> vector<8x64xf32>
    %c0_17 = arith.constant 0 : index
    %c0_18 = arith.constant 0 : index
    %c0_19 = arith.constant 0 : index
    %14 = vector.load %arg14[%c0_17, %c0_18, %c0_19] : memref<2x1x64xf32, #tpu.memory_space<vmem>>, vector<1x1x64xf32>
    %15 = vector.shape_cast %14 : vector<1x1x64xf32> to vector<1x64xf32>
    %16 = vector.broadcast %15 : vector<1x64xf32> to vector<8x64xf32>
    %17 = arith.addf %13, %16 : vector<8x64xf32>
    %c0_20 = arith.constant 0 : index
    %c0_21 = arith.constant 0 : index
    %c0_22 = arith.constant 0 : index
    %18 = vector.load %arg6[%c0_20, %c0_21, %c0_22] : memref<2x32x32xf32, #tpu.memory_space<vmem>>, vector<1x32x32xf32>
    %19 = vector.shape_cast %18 : vector<1x32x32xf32> to vector<32x32xf32>
    %cst_23 = arith.constant dense<0.000000e+00> : vector<8x32xf32>
    %20 = tpu.matmul %1, %19, %cst_23 {dimension_numbers = #tpu.dot_dimension_numbers<[1], [0], [0], [1], [0, 0, 1, 1], [], []>} : vector<8x32xf32>, vector<32x32xf32>, vector<8x32xf32> -> vector<8x32xf32>
    %21 = vector.extract_strided_slice %9 {offsets = [0, 0], sizes = [1, 32], strides = [1, 1]} : vector<13x32xf32> to vector<1x32xf32>
    %22 = vector.broadcast %21 : vector<1x32xf32> to vector<8x32xf32>
    %23 = arith.addf %20, %22 : vector<8x32xf32>
    %24 = vector.extract_strided_slice %17 {offsets = [0, 0], sizes = [8, 32], strides = [1, 1]} : vector<8x64xf32> to vector<8x32xf32>
    %25 = vector.extract_strided_slice %17 {offsets = [0, 32], sizes = [8, 32], strides = [1, 1]} : vector<8x64xf32> to vector<8x32xf32>
    %c0_24 = arith.constant 0 : index
    %c0_25 = arith.constant 0 : index
    %c0_26 = arith.constant 0 : index
    %26 = vector.load %arg7[%c0_24, %c0_25, %c0_26] : memref<2x32x32xf32, #tpu.memory_space<vmem>>, vector<1x32x32xf32>
    %27 = vector.shape_cast %26 : vector<1x32x32xf32> to vector<32x32xf32>
    %28 = vector.extract_strided_slice %9 {offsets = [1, 0], sizes = [1, 32], strides = [1, 1]} : vector<13x32xf32> to vector<1x32xf32>
    %29 = vector.extract_strided_slice %24 {offsets = [0, 0], sizes = [8, 8], strides = [1, 1]} : vector<8x32xf32> to vector<8x8xf32>
    %30 = vector.extract_strided_slice %24 {offsets = [0, 8], sizes = [8, 8], strides = [1, 1]} : vector<8x32xf32> to vector<8x8xf32>
    %31 = vector.extract_strided_slice %24 {offsets = [0, 16], sizes = [8, 8], strides = [1, 1]} : vector<8x32xf32> to vector<8x8xf32>
    %32 = vector.extract_strided_slice %24 {offsets = [0, 24], sizes = [8, 8], strides = [1, 1]} : vector<8x32xf32> to vector<8x8xf32>
    %33 = vector.shape_cast %29 : vector<8x8xf32> to vector<1x8x8xf32>
    %34 = vector.shape_cast %30 : vector<8x8xf32> to vector<1x8x8xf32>
    %35 = vector.shape_cast %31 : vector<8x8xf32> to vector<1x8x8xf32>
    %36 = vector.shape_cast %32 : vector<8x8xf32> to vector<1x8x8xf32>
    %37 = tpu.concatenate %33, %34, %35, %36 in 0 : vector<1x8x8xf32>, vector<1x8x8xf32>, vector<1x8x8xf32>, vector<1x8x8xf32> -> vector<4x8x8xf32>
    %38 = vector.extract_strided_slice %25 {offsets = [0, 0], sizes = [8, 8], strides = [1, 1]} : vector<8x32xf32> to vector<8x8xf32>
    %39 = vector.extract_strided_slice %25 {offsets = [0, 8], sizes = [8, 8], strides = [1, 1]} : vector<8x32xf32> to vector<8x8xf32>
    %40 = vector.extract_strided_slice %25 {offsets = [0, 16], sizes = [8, 8], strides = [1, 1]} : vector<8x32xf32> to vector<8x8xf32>
    %41 = vector.extract_strided_slice %25 {offsets = [0, 24], sizes = [8, 8], strides = [1, 1]} : vector<8x32xf32> to vector<8x8xf32>
    %42 = vector.shape_cast %38 : vector<8x8xf32> to vector<1x8x8xf32>
    %43 = vector.shape_cast %39 : vector<8x8xf32> to vector<1x8x8xf32>
    %44 = vector.shape_cast %40 : vector<8x8xf32> to vector<1x8x8xf32>
    %45 = vector.shape_cast %41 : vector<8x8xf32> to vector<1x8x8xf32>
    %46 = tpu.concatenate %42, %43, %44, %45 in 0 : vector<1x8x8xf32>, vector<1x8x8xf32>, vector<1x8x8xf32>, vector<1x8x8xf32> -> vector<4x8x8xf32>
    %47 = vector.extract_strided_slice %23 {offsets = [0, 0], sizes = [8, 8], strides = [1, 1]} : vector<8x32xf32> to vector<8x8xf32>
    %48 = vector.extract_strided_slice %23 {offsets = [0, 8], sizes = [8, 8], strides = [1, 1]} : vector<8x32xf32> to vector<8x8xf32>
    %49 = vector.extract_strided_slice %23 {offsets = [0, 16], sizes = [8, 8], strides = [1, 1]} : vector<8x32xf32> to vector<8x8xf32>
    %50 = vector.extract_strided_slice %23 {offsets = [0, 24], sizes = [8, 8], strides = [1, 1]} : vector<8x32xf32> to vector<8x8xf32>
    %51 = vector.shape_cast %47 : vector<8x8xf32> to vector<1x8x8xf32>
    %52 = vector.shape_cast %48 : vector<8x8xf32> to vector<1x8x8xf32>
    %53 = vector.shape_cast %49 : vector<8x8xf32> to vector<1x8x8xf32>
    %54 = vector.shape_cast %50 : vector<8x8xf32> to vector<1x8x8xf32>
    %55 = tpu.concatenate %51, %52, %53, %54 in 0 : vector<1x8x8xf32>, vector<1x8x8xf32>, vector<1x8x8xf32>, vector<1x8x8xf32> -> vector<4x8x8xf32>
    "tpu.trace_start"() <{level = 10 : i32, message = "gqm,gkm->gqk"}> : () -> ()
    %cst_27 = arith.constant dense<0.000000e+00> : vector<4x8x8xf32>
    %56 = tpu.matmul %37, %46, %cst_27 {dimension_numbers = #tpu.dot_dimension_numbers<[2], [2], [1], [1], [0, 0, 0, 1, 1, 1], [0], [0]>} : vector<4x8x8xf32>, vector<4x8x8xf32>, vector<4x8x8xf32> -> vector<4x8x8xf32>
    "tpu.trace_stop"() : () -> ()
    %cst_28 = arith.constant dense<0xFF800000> : vector<4x8xf32>
    %57 = vector.multi_reduction <maximumf>, %56, %cst_28 [2] : vector<4x8x8xf32> to vector<4x8xf32>
    %58 = vector.shape_cast %57 : vector<4x8xf32> to vector<4x8x1xf32>
    %59 = vector.broadcast %58 : vector<4x8x1xf32> to vector<4x8x8xf32>
    %60 = arith.subf %56, %59 : vector<4x8x8xf32>
    %61 = math.exp %60 : vector<4x8x8xf32>
    %cst_29 = arith.constant dense<0.000000e+00> : vector<4x8xf32>
    %62 = vector.multi_reduction <add>, %61, %cst_29 [2] : vector<4x8x8xf32> to vector<4x8xf32>
    %63 = vector.shape_cast %62 : vector<4x8xf32> to vector<4x8x1xf32>
    %64 = tpu.reciprocal %63 : vector<4x8x1xf32> -> vector<4x8x1xf32>
    %65 = vector.broadcast %64 : vector<4x8x1xf32> to vector<4x8x8xf32>
    %66 = arith.mulf %61, %65 : vector<4x8x8xf32>
    "tpu.trace_start"() <{level = 10 : i32, message = "gqk,gkm->gqm"}> : () -> ()
    %cst_30 = arith.constant dense<0.000000e+00> : vector<4x8x8xf32>
    %67 = tpu.matmul %66, %55, %cst_30 {dimension_numbers = #tpu.dot_dimension_numbers<[2], [1], [1], [2], [0, 0, 0, 1, 1, 2], [0], [0]>} : vector<4x8x8xf32>, vector<4x8x8xf32>, vector<4x8x8xf32> -> vector<4x8x8xf32>
    "tpu.trace_stop"() : () -> ()
    %68 = vector.extract_strided_slice %67 {offsets = [0, 0, 0], sizes = [1, 8, 8], strides = [1, 1, 1]} : vector<4x8x8xf32> to vector<1x8x8xf32>
    %69 = vector.shape_cast %68 : vector<1x8x8xf32> to vector<8x8xf32>
    %70 = vector.extract_strided_slice %67 {offsets = [1, 0, 0], sizes = [1, 8, 8], strides = [1, 1, 1]} : vector<4x8x8xf32> to vector<1x8x8xf32>
    %71 = vector.shape_cast %70 : vector<1x8x8xf32> to vector<8x8xf32>
    %72 = vector.extract_strided_slice %67 {offsets = [2, 0, 0], sizes = [1, 8, 8], strides = [1, 1, 1]} : vector<4x8x8xf32> to vector<1x8x8xf32>
    %73 = vector.shape_cast %72 : vector<1x8x8xf32> to vector<8x8xf32>
    %74 = vector.extract_strided_slice %67 {offsets = [3, 0, 0], sizes = [1, 8, 8], strides = [1, 1, 1]} : vector<4x8x8xf32> to vector<1x8x8xf32>
    %75 = vector.shape_cast %74 : vector<1x8x8xf32> to vector<8x8xf32>
    %76 = tpu.concatenate %69, %71, %73, %75 in 1 : vector<8x8xf32>, vector<8x8xf32>, vector<8x8xf32>, vector<8x8xf32> -> vector<8x32xf32>
    %cst_31 = arith.constant dense<0.000000e+00> : vector<8x32xf32>
    %77 = tpu.matmul %76, %27, %cst_31 {dimension_numbers = #tpu.dot_dimension_numbers<[1], [0], [0], [1], [0, 0, 1, 1], [], []>} : vector<8x32xf32>, vector<32x32xf32>, vector<8x32xf32> -> vector<8x32xf32>
    %78 = vector.broadcast %28 : vector<1x32xf32> to vector<8x32xf32>
    %79 = arith.addf %77, %78 : vector<8x32xf32>
    %80 = arith.addf %1, %79 : vector<8x32xf32>
    %81 = vector.extract_strided_slice %9 {offsets = [7, 0], sizes = [1, 32], strides = [1, 1]} : vector<13x32xf32> to vector<1x32xf32>
    %82 = vector.extract_strided_slice %9 {offsets = [8, 0], sizes = [1, 32], strides = [1, 1]} : vector<13x32xf32> to vector<1x32xf32>
    %cst_32 = arith.constant dense<0.000000e+00> : vector<8xf32>
    %83 = vector.multi_reduction <add>, %80, %cst_32 [1] : vector<8x32xf32> to vector<8xf32>
    %84 = vector.shape_cast %83 : vector<8xf32> to vector<8x1xf32>
    %cst_33 = arith.constant 3.200000e+01 : f32
    %85 = vector.broadcast %cst_33 : f32 to vector<8x1xf32>
    %86 = arith.divf %84, %85 : vector<8x1xf32>
    %87 = vector.broadcast %86 : vector<8x1xf32> to vector<8x32xf32>
    %88 = arith.subf %80, %87 : vector<8x32xf32>
    %89 = arith.mulf %88, %88 : vector<8x32xf32>
    %cst_34 = arith.constant dense<0.000000e+00> : vector<8xf32>
    %90 = vector.multi_reduction <add>, %89, %cst_34 [1] : vector<8x32xf32> to vector<8xf32>
    %91 = vector.shape_cast %90 : vector<8xf32> to vector<8x1xf32>
    %cst_35 = arith.constant 3.200000e+01 : f32
    %92 = vector.broadcast %cst_35 : f32 to vector<8x1xf32>
    %93 = arith.divf %91, %92 : vector<8x1xf32>
    %94 = vector.broadcast %86 : vector<8x1xf32> to vector<8x32xf32>
    %95 = arith.subf %80, %94 : vector<8x32xf32>
    %cst_36 = arith.constant 9.99999974E-6 : f32
    %96 = vector.broadcast %cst_36 : f32 to vector<8x1xf32>
    %97 = arith.addf %93, %96 : vector<8x1xf32>
    %98 = math.rsqrt %97 : vector<8x1xf32>
    %99 = vector.broadcast %98 : vector<8x1xf32> to vector<8x32xf32>
    %100 = arith.mulf %95, %99 : vector<8x32xf32>
    %101 = vector.broadcast %81 : vector<1x32xf32> to vector<8x32xf32>
    %102 = arith.mulf %100, %101 : vector<8x32xf32>
    %103 = vector.broadcast %82 : vector<1x32xf32> to vector<8x32xf32>
    %104 = arith.addf %102, %103 : vector<8x32xf32>
    %105 = arith.addf %104, %3 : vector<8x32xf32>
    %c0_37 = arith.constant 0 : index
    %c0_38 = arith.constant 0 : index
    %c0_39 = arith.constant 0 : index
    %106 = vector.load %arg8[%c0_37, %c0_38, %c0_39] : memref<2x32x32xf32, #tpu.memory_space<vmem>>, vector<1x32x32xf32>
    %107 = vector.shape_cast %106 : vector<1x32x32xf32> to vector<32x32xf32>
    %cst_40 = arith.constant dense<0.000000e+00> : vector<8x32xf32>
    %108 = tpu.matmul %105, %107, %cst_40 {dimension_numbers = #tpu.dot_dimension_numbers<[1], [0], [0], [1], [0, 0, 1, 1], [], []>} : vector<8x32xf32>, vector<32x32xf32>, vector<8x32xf32> -> vector<8x32xf32>
    %109 = vector.extract_strided_slice %9 {offsets = [2, 0], sizes = [1, 32], strides = [1, 1]} : vector<13x32xf32> to vector<1x32xf32>
    %110 = vector.broadcast %109 : vector<1x32xf32> to vector<8x32xf32>
    %111 = arith.addf %108, %110 : vector<8x32xf32>
    %c0_41 = arith.constant 0 : index
    %c0_42 = arith.constant 0 : index
    %c0_43 = arith.constant 0 : index
    %112 = vector.load %arg9[%c0_41, %c0_42, %c0_43] : memref<2x32x32xf32, #tpu.memory_space<vmem>>, vector<1x32x32xf32>
    %113 = vector.shape_cast %112 : vector<1x32x32xf32> to vector<32x32xf32>
    %cst_44 = arith.constant dense<0.000000e+00> : vector<16x32xf32>
    %114 = tpu.matmul %5, %113, %cst_44 {dimension_numbers = #tpu.dot_dimension_numbers<[1], [0], [0], [1], [0, 0, 1, 1], [], []>} : vector<16x32xf32>, vector<32x32xf32>, vector<16x32xf32> -> vector<16x32xf32>
    %115 = vector.extract_strided_slice %9 {offsets = [3, 0], sizes = [1, 32], strides = [1, 1]} : vector<13x32xf32> to vector<1x32xf32>
    %116 = vector.broadcast %115 : vector<1x32xf32> to vector<16x32xf32>
    %117 = arith.addf %114, %116 : vector<16x32xf32>
    %c0_45 = arith.constant 0 : index
    %c0_46 = arith.constant 0 : index
    %c0_47 = arith.constant 0 : index
    %118 = vector.load %arg10[%c0_45, %c0_46, %c0_47] : memref<2x32x32xf32, #tpu.memory_space<vmem>>, vector<1x32x32xf32>
    %119 = vector.shape_cast %118 : vector<1x32x32xf32> to vector<32x32xf32>
    %cst_48 = arith.constant dense<0.000000e+00> : vector<16x32xf32>
    %120 = tpu.matmul %7, %119, %cst_48 {dimension_numbers = #tpu.dot_dimension_numbers<[1], [0], [0], [1], [0, 0, 1, 1], [], []>} : vector<16x32xf32>, vector<32x32xf32>, vector<16x32xf32> -> vector<16x32xf32>
    %121 = vector.extract_strided_slice %9 {offsets = [4, 0], sizes = [1, 32], strides = [1, 1]} : vector<13x32xf32> to vector<1x32xf32>
    %122 = vector.broadcast %121 : vector<1x32xf32> to vector<16x32xf32>
    %123 = arith.addf %120, %122 : vector<16x32xf32>
    %c0_49 = arith.constant 0 : index
    %c0_50 = arith.constant 0 : index
    %c0_51 = arith.constant 0 : index
    %124 = vector.load %arg11[%c0_49, %c0_50, %c0_51] : memref<2x32x32xf32, #tpu.memory_space<vmem>>, vector<1x32x32xf32>
    %125 = vector.shape_cast %124 : vector<1x32x32xf32> to vector<32x32xf32>
    %126 = vector.extract_strided_slice %9 {offsets = [5, 0], sizes = [1, 32], strides = [1, 1]} : vector<13x32xf32> to vector<1x32xf32>
    %127 = vector.extract_strided_slice %111 {offsets = [0, 0], sizes = [8, 8], strides = [1, 1]} : vector<8x32xf32> to vector<8x8xf32>
    %128 = vector.extract_strided_slice %111 {offsets = [0, 8], sizes = [8, 8], strides = [1, 1]} : vector<8x32xf32> to vector<8x8xf32>
    %129 = vector.extract_strided_slice %111 {offsets = [0, 16], sizes = [8, 8], strides = [1, 1]} : vector<8x32xf32> to vector<8x8xf32>
    %130 = vector.extract_strided_slice %111 {offsets = [0, 24], sizes = [8, 8], strides = [1, 1]} : vector<8x32xf32> to vector<8x8xf32>
    %131 = vector.shape_cast %127 : vector<8x8xf32> to vector<1x8x8xf32>
    %132 = vector.shape_cast %128 : vector<8x8xf32> to vector<1x8x8xf32>
    %133 = vector.shape_cast %129 : vector<8x8xf32> to vector<1x8x8xf32>
    %134 = vector.shape_cast %130 : vector<8x8xf32> to vector<1x8x8xf32>
    %135 = tpu.concatenate %131, %132, %133, %134 in 0 : vector<1x8x8xf32>, vector<1x8x8xf32>, vector<1x8x8xf32>, vector<1x8x8xf32> -> vector<4x8x8xf32>
    %136 = vector.extract_strided_slice %117 {offsets = [0, 0], sizes = [16, 8], strides = [1, 1]} : vector<16x32xf32> to vector<16x8xf32>
    %137 = vector.extract_strided_slice %117 {offsets = [0, 8], sizes = [16, 8], strides = [1, 1]} : vector<16x32xf32> to vector<16x8xf32>
    %138 = vector.extract_strided_slice %117 {offsets = [0, 16], sizes = [16, 8], strides = [1, 1]} : vector<16x32xf32> to vector<16x8xf32>
    %139 = vector.extract_strided_slice %117 {offsets = [0, 24], sizes = [16, 8], strides = [1, 1]} : vector<16x32xf32> to vector<16x8xf32>
    %140 = vector.shape_cast %136 : vector<16x8xf32> to vector<1x16x8xf32>
    %141 = vector.shape_cast %137 : vector<16x8xf32> to vector<1x16x8xf32>
    %142 = vector.shape_cast %138 : vector<16x8xf32> to vector<1x16x8xf32>
    %143 = vector.shape_cast %139 : vector<16x8xf32> to vector<1x16x8xf32>
    %144 = tpu.concatenate %140, %141, %142, %143 in 0 : vector<1x16x8xf32>, vector<1x16x8xf32>, vector<1x16x8xf32>, vector<1x16x8xf32> -> vector<4x16x8xf32>
    %145 = vector.extract_strided_slice %123 {offsets = [0, 0], sizes = [16, 8], strides = [1, 1]} : vector<16x32xf32> to vector<16x8xf32>
    %146 = vector.extract_strided_slice %123 {offsets = [0, 8], sizes = [16, 8], strides = [1, 1]} : vector<16x32xf32> to vector<16x8xf32>
    %147 = vector.extract_strided_slice %123 {offsets = [0, 16], sizes = [16, 8], strides = [1, 1]} : vector<16x32xf32> to vector<16x8xf32>
    %148 = vector.extract_strided_slice %123 {offsets = [0, 24], sizes = [16, 8], strides = [1, 1]} : vector<16x32xf32> to vector<16x8xf32>
    %149 = vector.shape_cast %145 : vector<16x8xf32> to vector<1x16x8xf32>
    %150 = vector.shape_cast %146 : vector<16x8xf32> to vector<1x16x8xf32>
    %151 = vector.shape_cast %147 : vector<16x8xf32> to vector<1x16x8xf32>
    %152 = vector.shape_cast %148 : vector<16x8xf32> to vector<1x16x8xf32>
    %153 = tpu.concatenate %149, %150, %151, %152 in 0 : vector<1x16x8xf32>, vector<1x16x8xf32>, vector<1x16x8xf32>, vector<1x16x8xf32> -> vector<4x16x8xf32>
    "tpu.trace_start"() <{level = 10 : i32, message = "gqm,gkm->gqk"}> : () -> ()
    %cst_52 = arith.constant dense<0.000000e+00> : vector<4x8x16xf32>
    %154 = tpu.matmul %135, %144, %cst_52 {dimension_numbers = #tpu.dot_dimension_numbers<[2], [2], [1], [1], [0, 0, 0, 1, 1, 1], [0], [0]>} : vector<4x8x8xf32>, vector<4x16x8xf32>, vector<4x8x16xf32> -> vector<4x8x16xf32>
    "tpu.trace_stop"() : () -> ()
    %cst_53 = arith.constant dense<0xFF800000> : vector<4x8xf32>
    %155 = vector.multi_reduction <maximumf>, %154, %cst_53 [2] : vector<4x8x16xf32> to vector<4x8xf32>
    %156 = vector.shape_cast %155 : vector<4x8xf32> to vector<4x8x1xf32>
    %157 = vector.broadcast %156 : vector<4x8x1xf32> to vector<4x8x16xf32>
    %158 = arith.subf %154, %157 : vector<4x8x16xf32>
    %159 = math.exp %158 : vector<4x8x16xf32>
    %cst_54 = arith.constant dense<0.000000e+00> : vector<4x8xf32>
    %160 = vector.multi_reduction <add>, %159, %cst_54 [2] : vector<4x8x16xf32> to vector<4x8xf32>
    %161 = vector.shape_cast %160 : vector<4x8xf32> to vector<4x8x1xf32>
    %162 = tpu.reciprocal %161 : vector<4x8x1xf32> -> vector<4x8x1xf32>
    %163 = vector.broadcast %162 : vector<4x8x1xf32> to vector<4x8x16xf32>
    %164 = arith.mulf %159, %163 : vector<4x8x16xf32>
    "tpu.trace_start"() <{level = 10 : i32, message = "gqk,gkm->gqm"}> : () -> ()
    %cst_55 = arith.constant dense<0.000000e+00> : vector<4x8x8xf32>
    %165 = tpu.matmul %164, %153, %cst_55 {dimension_numbers = #tpu.dot_dimension_numbers<[2], [1], [1], [2], [0, 0, 0, 1, 1, 2], [0], [0]>} : vector<4x8x16xf32>, vector<4x16x8xf32>, vector<4x8x8xf32> -> vector<4x8x8xf32>
    "tpu.trace_stop"() : () -> ()
    %166 = vector.extract_strided_slice %165 {offsets = [0, 0, 0], sizes = [1, 8, 8], strides = [1, 1, 1]} : vector<4x8x8xf32> to vector<1x8x8xf32>
    %167 = vector.shape_cast %166 : vector<1x8x8xf32> to vector<8x8xf32>
    %168 = vector.extract_strided_slice %165 {offsets = [1, 0, 0], sizes = [1, 8, 8], strides = [1, 1, 1]} : vector<4x8x8xf32> to vector<1x8x8xf32>
    %169 = vector.shape_cast %168 : vector<1x8x8xf32> to vector<8x8xf32>
    %170 = vector.extract_strided_slice %165 {offsets = [2, 0, 0], sizes = [1, 8, 8], strides = [1, 1, 1]} : vector<4x8x8xf32> to vector<1x8x8xf32>
    %171 = vector.shape_cast %170 : vector<1x8x8xf32> to vector<8x8xf32>
    %172 = vector.extract_strided_slice %165 {offsets = [3, 0, 0], sizes = [1, 8, 8], strides = [1, 1, 1]} : vector<4x8x8xf32> to vector<1x8x8xf32>
    %173 = vector.shape_cast %172 : vector<1x8x8xf32> to vector<8x8xf32>
    %174 = tpu.concatenate %167, %169, %171, %173 in 1 : vector<8x8xf32>, vector<8x8xf32>, vector<8x8xf32>, vector<8x8xf32> -> vector<8x32xf32>
    %cst_56 = arith.constant dense<0.000000e+00> : vector<8x32xf32>
    %175 = tpu.matmul %174, %125, %cst_56 {dimension_numbers = #tpu.dot_dimension_numbers<[1], [0], [0], [1], [0, 0, 1, 1], [], []>} : vector<8x32xf32>, vector<32x32xf32>, vector<8x32xf32> -> vector<8x32xf32>
    %176 = vector.broadcast %126 : vector<1x32xf32> to vector<8x32xf32>
    %177 = arith.addf %175, %176 : vector<8x32xf32>
    %178 = arith.addf %104, %177 : vector<8x32xf32>
    %179 = vector.extract_strided_slice %9 {offsets = [9, 0], sizes = [1, 32], strides = [1, 1]} : vector<13x32xf32> to vector<1x32xf32>
    %180 = vector.extract_strided_slice %9 {offsets = [10, 0], sizes = [1, 32], strides = [1, 1]} : vector<13x32xf32> to vector<1x32xf32>
    %cst_57 = arith.constant dense<0.000000e+00> : vector<8xf32>
    %181 = vector.multi_reduction <add>, %178, %cst_57 [1] : vector<8x32xf32> to vector<8xf32>
    %182 = vector.shape_cast %181 : vector<8xf32> to vector<8x1xf32>
    %cst_58 = arith.constant 3.200000e+01 : f32
    %183 = vector.broadcast %cst_58 : f32 to vector<8x1xf32>
    %184 = arith.divf %182, %183 : vector<8x1xf32>
    %185 = vector.broadcast %184 : vector<8x1xf32> to vector<8x32xf32>
    %186 = arith.subf %178, %185 : vector<8x32xf32>
    %187 = arith.mulf %186, %186 : vector<8x32xf32>
    %cst_59 = arith.constant dense<0.000000e+00> : vector<8xf32>
    %188 = vector.multi_reduction <add>, %187, %cst_59 [1] : vector<8x32xf32> to vector<8xf32>
    %189 = vector.shape_cast %188 : vector<8xf32> to vector<8x1xf32>
    %cst_60 = arith.constant 3.200000e+01 : f32
    %190 = vector.broadcast %cst_60 : f32 to vector<8x1xf32>
    %191 = arith.divf %189, %190 : vector<8x1xf32>
    %192 = vector.broadcast %184 : vector<8x1xf32> to vector<8x32xf32>
    %193 = arith.subf %178, %192 : vector<8x32xf32>
    %cst_61 = arith.constant 9.99999974E-6 : f32
    %194 = vector.broadcast %cst_61 : f32 to vector<8x1xf32>
    %195 = arith.addf %191, %194 : vector<8x1xf32>
    %196 = math.rsqrt %195 : vector<8x1xf32>
    %197 = vector.broadcast %196 : vector<8x1xf32> to vector<8x32xf32>
    %198 = arith.mulf %193, %197 : vector<8x32xf32>
    %199 = vector.broadcast %179 : vector<1x32xf32> to vector<8x32xf32>
    %200 = arith.mulf %198, %199 : vector<8x32xf32>
    %201 = vector.broadcast %180 : vector<1x32xf32> to vector<8x32xf32>
    %202 = arith.addf %200, %201 : vector<8x32xf32>
    %c0_62 = arith.constant 0 : index
    %c0_63 = arith.constant 0 : index
    %c0_64 = arith.constant 0 : index
    %203 = vector.load %arg12[%c0_62, %c0_63, %c0_64] : memref<2x32x64xf32, #tpu.memory_space<vmem>>, vector<1x32x64xf32>
    %204 = vector.shape_cast %203 : vector<1x32x64xf32> to vector<32x64xf32>
    %cst_65 = arith.constant dense<0.000000e+00> : vector<8x64xf32>
    %205 = tpu.matmul %202, %204, %cst_65 {dimension_numbers = #tpu.dot_dimension_numbers<[1], [0], [0], [1], [0, 0, 1, 1], [], []>} : vector<8x32xf32>, vector<32x64xf32>, vector<8x64xf32> -> vector<8x64xf32>
    %c0_66 = arith.constant 0 : index
    %c0_67 = arith.constant 0 : index
    %c0_68 = arith.constant 0 : index
    %206 = vector.load %arg15[%c0_66, %c0_67, %c0_68] : memref<2x1x64xf32, #tpu.memory_space<vmem>>, vector<1x1x64xf32>
    %207 = vector.shape_cast %206 : vector<1x1x64xf32> to vector<1x64xf32>
    %208 = vector.broadcast %207 : vector<1x64xf32> to vector<8x64xf32>
    %209 = arith.addf %205, %208 : vector<8x64xf32>
    %cst_69 = arith.constant 0.000000e+00 : f32
    %210 = vector.broadcast %cst_69 : f32 to vector<8x64xf32>
    %211 = arith.maximumf %209, %210 : vector<8x64xf32>
    %c0_70 = arith.constant 0 : index
    %c0_71 = arith.constant 0 : index
    %c0_72 = arith.constant 0 : index
    %212 = vector.load %arg13[%c0_70, %c0_71, %c0_72] : memref<2x64x32xf32, #tpu.memory_space<vmem>>, vector<1x64x32xf32>
    %213 = vector.shape_cast %212 : vector<1x64x32xf32> to vector<64x32xf32>
    %cst_73 = arith.constant dense<0.000000e+00> : vector<8x32xf32>
    %214 = tpu.matmul %211, %213, %cst_73 {dimension_numbers = #tpu.dot_dimension_numbers<[1], [0], [0], [1], [0, 0, 1, 1], [], []>} : vector<8x64xf32>, vector<64x32xf32>, vector<8x32xf32> -> vector<8x32xf32>
    %215 = vector.extract_strided_slice %9 {offsets = [6, 0], sizes = [1, 32], strides = [1, 1]} : vector<13x32xf32> to vector<1x32xf32>
    %216 = vector.broadcast %215 : vector<1x32xf32> to vector<8x32xf32>
    %217 = arith.addf %214, %216 : vector<8x32xf32>
    %218 = arith.addf %202, %217 : vector<8x32xf32>
    %219 = vector.extract_strided_slice %9 {offsets = [11, 0], sizes = [1, 32], strides = [1, 1]} : vector<13x32xf32> to vector<1x32xf32>
    %220 = vector.extract_strided_slice %9 {offsets = [12, 0], sizes = [1, 32], strides = [1, 1]} : vector<13x32xf32> to vector<1x32xf32>
    %cst_74 = arith.constant dense<0.000000e+00> : vector<8xf32>
    %221 = vector.multi_reduction <add>, %218, %cst_74 [1] : vector<8x32xf32> to vector<8xf32>
    %222 = vector.shape_cast %221 : vector<8xf32> to vector<8x1xf32>
    %cst_75 = arith.constant 3.200000e+01 : f32
    %223 = vector.broadcast %cst_75 : f32 to vector<8x1xf32>
    %224 = arith.divf %222, %223 : vector<8x1xf32>
    %225 = vector.broadcast %224 : vector<8x1xf32> to vector<8x32xf32>
    %226 = arith.subf %218, %225 : vector<8x32xf32>
    %227 = arith.mulf %226, %226 : vector<8x32xf32>
    %cst_76 = arith.constant dense<0.000000e+00> : vector<8xf32>
    %228 = vector.multi_reduction <add>, %227, %cst_76 [1] : vector<8x32xf32> to vector<8xf32>
    %229 = vector.shape_cast %228 : vector<8xf32> to vector<8x1xf32>
    %cst_77 = arith.constant 3.200000e+01 : f32
    %230 = vector.broadcast %cst_77 : f32 to vector<8x1xf32>
    %231 = arith.divf %229, %230 : vector<8x1xf32>
    %232 = vector.broadcast %224 : vector<8x1xf32> to vector<8x32xf32>
    %233 = arith.subf %218, %232 : vector<8x32xf32>
    %cst_78 = arith.constant 9.99999974E-6 : f32
    %234 = vector.broadcast %cst_78 : f32 to vector<8x1xf32>
    %235 = arith.addf %231, %234 : vector<8x1xf32>
    %236 = math.rsqrt %235 : vector<8x1xf32>
    %237 = vector.broadcast %236 : vector<8x1xf32> to vector<8x32xf32>
    %238 = arith.mulf %233, %237 : vector<8x32xf32>
    %239 = vector.broadcast %219 : vector<1x32xf32> to vector<8x32xf32>
    %240 = arith.mulf %238, %239 : vector<8x32xf32>
    %241 = vector.broadcast %220 : vector<1x32xf32> to vector<8x32xf32>
    %242 = arith.addf %240, %241 : vector<8x32xf32>
    %c1 = arith.constant 1 : index
    %c0_79 = arith.constant 0 : index
    %c0_80 = arith.constant 0 : index
    %243 = vector.load %arg16[%c1, %c0_79, %c0_80] : memref<2x13x32xf32, #tpu.memory_space<vmem>>, vector<1x13x32xf32>
    %244 = vector.shape_cast %243 : vector<1x13x32xf32> to vector<13x32xf32>
    %245 = arith.addf %242, %3 : vector<8x32xf32>
    %c1_81 = arith.constant 1 : index
    %c0_82 = arith.constant 0 : index
    %c0_83 = arith.constant 0 : index
    %246 = vector.load %arg5[%c1_81, %c0_82, %c0_83] : memref<2x32x64xf32, #tpu.memory_space<vmem>>, vector<1x32x64xf32>
    %247 = vector.shape_cast %246 : vector<1x32x64xf32> to vector<32x64xf32>
    %cst_84 = arith.constant dense<0.000000e+00> : vector<8x64xf32>
    %248 = tpu.matmul %245, %247, %cst_84 {dimension_numbers = #tpu.dot_dimension_numbers<[1], [0], [0], [1], [0, 0, 1, 1], [], []>} : vector<8x32xf32>, vector<32x64xf32>, vector<8x64xf32> -> vector<8x64xf32>
    %c1_85 = arith.constant 1 : index
    %c0_86 = arith.constant 0 : index
    %c0_87 = arith.constant 0 : index
    %249 = vector.load %arg14[%c1_85, %c0_86, %c0_87] : memref<2x1x64xf32, #tpu.memory_space<vmem>>, vector<1x1x64xf32>
    %250 = vector.shape_cast %249 : vector<1x1x64xf32> to vector<1x64xf32>
    %251 = vector.broadcast %250 : vector<1x64xf32> to vector<8x64xf32>
    %252 = arith.addf %248, %251 : vector<8x64xf32>
    %c1_88 = arith.constant 1 : index
    %c0_89 = arith.constant 0 : index
    %c0_90 = arith.constant 0 : index
    %253 = vector.load %arg6[%c1_88, %c0_89, %c0_90] : memref<2x32x32xf32, #tpu.memory_space<vmem>>, vector<1x32x32xf32>
    %254 = vector.shape_cast %253 : vector<1x32x32xf32> to vector<32x32xf32>
    %cst_91 = arith.constant dense<0.000000e+00> : vector<8x32xf32>
    %255 = tpu.matmul %242, %254, %cst_91 {dimension_numbers = #tpu.dot_dimension_numbers<[1], [0], [0], [1], [0, 0, 1, 1], [], []>} : vector<8x32xf32>, vector<32x32xf32>, vector<8x32xf32> -> vector<8x32xf32>
    %256 = vector.extract_strided_slice %244 {offsets = [0, 0], sizes = [1, 32], strides = [1, 1]} : vector<13x32xf32> to vector<1x32xf32>
    %257 = vector.broadcast %256 : vector<1x32xf32> to vector<8x32xf32>
    %258 = arith.addf %255, %257 : vector<8x32xf32>
    %259 = vector.extract_strided_slice %252 {offsets = [0, 0], sizes = [8, 32], strides = [1, 1]} : vector<8x64xf32> to vector<8x32xf32>
    %260 = vector.extract_strided_slice %252 {offsets = [0, 32], sizes = [8, 32], strides = [1, 1]} : vector<8x64xf32> to vector<8x32xf32>
    %c1_92 = arith.constant 1 : index
    %c0_93 = arith.constant 0 : index
    %c0_94 = arith.constant 0 : index
    %261 = vector.load %arg7[%c1_92, %c0_93, %c0_94] : memref<2x32x32xf32, #tpu.memory_space<vmem>>, vector<1x32x32xf32>
    %262 = vector.shape_cast %261 : vector<1x32x32xf32> to vector<32x32xf32>
    %263 = vector.extract_strided_slice %244 {offsets = [1, 0], sizes = [1, 32], strides = [1, 1]} : vector<13x32xf32> to vector<1x32xf32>
    %264 = vector.extract_strided_slice %259 {offsets = [0, 0], sizes = [8, 8], strides = [1, 1]} : vector<8x32xf32> to vector<8x8xf32>
    %265 = vector.extract_strided_slice %259 {offsets = [0, 8], sizes = [8, 8], strides = [1, 1]} : vector<8x32xf32> to vector<8x8xf32>
    %266 = vector.extract_strided_slice %259 {offsets = [0, 16], sizes = [8, 8], strides = [1, 1]} : vector<8x32xf32> to vector<8x8xf32>
    %267 = vector.extract_strided_slice %259 {offsets = [0, 24], sizes = [8, 8], strides = [1, 1]} : vector<8x32xf32> to vector<8x8xf32>
    %268 = vector.shape_cast %264 : vector<8x8xf32> to vector<1x8x8xf32>
    %269 = vector.shape_cast %265 : vector<8x8xf32> to vector<1x8x8xf32>
    %270 = vector.shape_cast %266 : vector<8x8xf32> to vector<1x8x8xf32>
    %271 = vector.shape_cast %267 : vector<8x8xf32> to vector<1x8x8xf32>
    %272 = tpu.concatenate %268, %269, %270, %271 in 0 : vector<1x8x8xf32>, vector<1x8x8xf32>, vector<1x8x8xf32>, vector<1x8x8xf32> -> vector<4x8x8xf32>
    %273 = vector.extract_strided_slice %260 {offsets = [0, 0], sizes = [8, 8], strides = [1, 1]} : vector<8x32xf32> to vector<8x8xf32>
    %274 = vector.extract_strided_slice %260 {offsets = [0, 8], sizes = [8, 8], strides = [1, 1]} : vector<8x32xf32> to vector<8x8xf32>
    %275 = vector.extract_strided_slice %260 {offsets = [0, 16], sizes = [8, 8], strides = [1, 1]} : vector<8x32xf32> to vector<8x8xf32>
    %276 = vector.extract_strided_slice %260 {offsets = [0, 24], sizes = [8, 8], strides = [1, 1]} : vector<8x32xf32> to vector<8x8xf32>
    %277 = vector.shape_cast %273 : vector<8x8xf32> to vector<1x8x8xf32>
    %278 = vector.shape_cast %274 : vector<8x8xf32> to vector<1x8x8xf32>
    %279 = vector.shape_cast %275 : vector<8x8xf32> to vector<1x8x8xf32>
    %280 = vector.shape_cast %276 : vector<8x8xf32> to vector<1x8x8xf32>
    %281 = tpu.concatenate %277, %278, %279, %280 in 0 : vector<1x8x8xf32>, vector<1x8x8xf32>, vector<1x8x8xf32>, vector<1x8x8xf32> -> vector<4x8x8xf32>
    %282 = vector.extract_strided_slice %258 {offsets = [0, 0], sizes = [8, 8], strides = [1, 1]} : vector<8x32xf32> to vector<8x8xf32>
    %283 = vector.extract_strided_slice %258 {offsets = [0, 8], sizes = [8, 8], strides = [1, 1]} : vector<8x32xf32> to vector<8x8xf32>
    %284 = vector.extract_strided_slice %258 {offsets = [0, 16], sizes = [8, 8], strides = [1, 1]} : vector<8x32xf32> to vector<8x8xf32>
    %285 = vector.extract_strided_slice %258 {offsets = [0, 24], sizes = [8, 8], strides = [1, 1]} : vector<8x32xf32> to vector<8x8xf32>
    %286 = vector.shape_cast %282 : vector<8x8xf32> to vector<1x8x8xf32>
    %287 = vector.shape_cast %283 : vector<8x8xf32> to vector<1x8x8xf32>
    %288 = vector.shape_cast %284 : vector<8x8xf32> to vector<1x8x8xf32>
    %289 = vector.shape_cast %285 : vector<8x8xf32> to vector<1x8x8xf32>
    %290 = tpu.concatenate %286, %287, %288, %289 in 0 : vector<1x8x8xf32>, vector<1x8x8xf32>, vector<1x8x8xf32>, vector<1x8x8xf32> -> vector<4x8x8xf32>
    "tpu.trace_start"() <{level = 10 : i32, message = "gqm,gkm->gqk"}> : () -> ()
    %cst_95 = arith.constant dense<0.000000e+00> : vector<4x8x8xf32>
    %291 = tpu.matmul %272, %281, %cst_95 {dimension_numbers = #tpu.dot_dimension_numbers<[2], [2], [1], [1], [0, 0, 0, 1, 1, 1], [0], [0]>} : vector<4x8x8xf32>, vector<4x8x8xf32>, vector<4x8x8xf32> -> vector<4x8x8xf32>
    "tpu.trace_stop"() : () -> ()
    %cst_96 = arith.constant dense<0xFF800000> : vector<4x8xf32>
    %292 = vector.multi_reduction <maximumf>, %291, %cst_96 [2] : vector<4x8x8xf32> to vector<4x8xf32>
    %293 = vector.shape_cast %292 : vector<4x8xf32> to vector<4x8x1xf32>
    %294 = vector.broadcast %293 : vector<4x8x1xf32> to vector<4x8x8xf32>
    %295 = arith.subf %291, %294 : vector<4x8x8xf32>
    %296 = math.exp %295 : vector<4x8x8xf32>
    %cst_97 = arith.constant dense<0.000000e+00> : vector<4x8xf32>
    %297 = vector.multi_reduction <add>, %296, %cst_97 [2] : vector<4x8x8xf32> to vector<4x8xf32>
    %298 = vector.shape_cast %297 : vector<4x8xf32> to vector<4x8x1xf32>
    %299 = tpu.reciprocal %298 : vector<4x8x1xf32> -> vector<4x8x1xf32>
    %300 = vector.broadcast %299 : vector<4x8x1xf32> to vector<4x8x8xf32>
    %301 = arith.mulf %296, %300 : vector<4x8x8xf32>
    "tpu.trace_start"() <{level = 10 : i32, message = "gqk,gkm->gqm"}> : () -> ()
    %cst_98 = arith.constant dense<0.000000e+00> : vector<4x8x8xf32>
    %302 = tpu.matmul %301, %290, %cst_98 {dimension_numbers = #tpu.dot_dimension_numbers<[2], [1], [1], [2], [0, 0, 0, 1, 1, 2], [0], [0]>} : vector<4x8x8xf32>, vector<4x8x8xf32>, vector<4x8x8xf32> -> vector<4x8x8xf32>
    "tpu.trace_stop"() : () -> ()
    %303 = vector.extract_strided_slice %302 {offsets = [0, 0, 0], sizes = [1, 8, 8], strides = [1, 1, 1]} : vector<4x8x8xf32> to vector<1x8x8xf32>
    %304 = vector.shape_cast %303 : vector<1x8x8xf32> to vector<8x8xf32>
    %305 = vector.extract_strided_slice %302 {offsets = [1, 0, 0], sizes = [1, 8, 8], strides = [1, 1, 1]} : vector<4x8x8xf32> to vector<1x8x8xf32>
    %306 = vector.shape_cast %305 : vector<1x8x8xf32> to vector<8x8xf32>
    %307 = vector.extract_strided_slice %302 {offsets = [2, 0, 0], sizes = [1, 8, 8], strides = [1, 1, 1]} : vector<4x8x8xf32> to vector<1x8x8xf32>
    %308 = vector.shape_cast %307 : vector<1x8x8xf32> to vector<8x8xf32>
    %309 = vector.extract_strided_slice %302 {offsets = [3, 0, 0], sizes = [1, 8, 8], strides = [1, 1, 1]} : vector<4x8x8xf32> to vector<1x8x8xf32>
    %310 = vector.shape_cast %309 : vector<1x8x8xf32> to vector<8x8xf32>
    %311 = tpu.concatenate %304, %306, %308, %310 in 1 : vector<8x8xf32>, vector<8x8xf32>, vector<8x8xf32>, vector<8x8xf32> -> vector<8x32xf32>
    %cst_99 = arith.constant dense<0.000000e+00> : vector<8x32xf32>
    %312 = tpu.matmul %311, %262, %cst_99 {dimension_numbers = #tpu.dot_dimension_numbers<[1], [0], [0], [1], [0, 0, 1, 1], [], []>} : vector<8x32xf32>, vector<32x32xf32>, vector<8x32xf32> -> vector<8x32xf32>
    %313 = vector.broadcast %263 : vector<1x32xf32> to vector<8x32xf32>
    %314 = arith.addf %312, %313 : vector<8x32xf32>
    %315 = arith.addf %242, %314 : vector<8x32xf32>
    %316 = vector.extract_strided_slice %244 {offsets = [7, 0], sizes = [1, 32], strides = [1, 1]} : vector<13x32xf32> to vector<1x32xf32>
    %317 = vector.extract_strided_slice %244 {offsets = [8, 0], sizes = [1, 32], strides = [1, 1]} : vector<13x32xf32> to vector<1x32xf32>
    %cst_100 = arith.constant dense<0.000000e+00> : vector<8xf32>
    %318 = vector.multi_reduction <add>, %315, %cst_100 [1] : vector<8x32xf32> to vector<8xf32>
    %319 = vector.shape_cast %318 : vector<8xf32> to vector<8x1xf32>
    %cst_101 = arith.constant 3.200000e+01 : f32
    %320 = vector.broadcast %cst_101 : f32 to vector<8x1xf32>
    %321 = arith.divf %319, %320 : vector<8x1xf32>
    %322 = vector.broadcast %321 : vector<8x1xf32> to vector<8x32xf32>
    %323 = arith.subf %315, %322 : vector<8x32xf32>
    %324 = arith.mulf %323, %323 : vector<8x32xf32>
    %cst_102 = arith.constant dense<0.000000e+00> : vector<8xf32>
    %325 = vector.multi_reduction <add>, %324, %cst_102 [1] : vector<8x32xf32> to vector<8xf32>
    %326 = vector.shape_cast %325 : vector<8xf32> to vector<8x1xf32>
    %cst_103 = arith.constant 3.200000e+01 : f32
    %327 = vector.broadcast %cst_103 : f32 to vector<8x1xf32>
    %328 = arith.divf %326, %327 : vector<8x1xf32>
    %329 = vector.broadcast %321 : vector<8x1xf32> to vector<8x32xf32>
    %330 = arith.subf %315, %329 : vector<8x32xf32>
    %cst_104 = arith.constant 9.99999974E-6 : f32
    %331 = vector.broadcast %cst_104 : f32 to vector<8x1xf32>
    %332 = arith.addf %328, %331 : vector<8x1xf32>
    %333 = math.rsqrt %332 : vector<8x1xf32>
    %334 = vector.broadcast %333 : vector<8x1xf32> to vector<8x32xf32>
    %335 = arith.mulf %330, %334 : vector<8x32xf32>
    %336 = vector.broadcast %316 : vector<1x32xf32> to vector<8x32xf32>
    %337 = arith.mulf %335, %336 : vector<8x32xf32>
    %338 = vector.broadcast %317 : vector<1x32xf32> to vector<8x32xf32>
    %339 = arith.addf %337, %338 : vector<8x32xf32>
    %340 = arith.addf %339, %3 : vector<8x32xf32>
    %c1_105 = arith.constant 1 : index
    %c0_106 = arith.constant 0 : index
    %c0_107 = arith.constant 0 : index
    %341 = vector.load %arg8[%c1_105, %c0_106, %c0_107] : memref<2x32x32xf32, #tpu.memory_space<vmem>>, vector<1x32x32xf32>
    %342 = vector.shape_cast %341 : vector<1x32x32xf32> to vector<32x32xf32>
    %cst_108 = arith.constant dense<0.000000e+00> : vector<8x32xf32>
    %343 = tpu.matmul %340, %342, %cst_108 {dimension_numbers = #tpu.dot_dimension_numbers<[1], [0], [0], [1], [0, 0, 1, 1], [], []>} : vector<8x32xf32>, vector<32x32xf32>, vector<8x32xf32> -> vector<8x32xf32>
    %344 = vector.extract_strided_slice %244 {offsets = [2, 0], sizes = [1, 32], strides = [1, 1]} : vector<13x32xf32> to vector<1x32xf32>
    %345 = vector.broadcast %344 : vector<1x32xf32> to vector<8x32xf32>
    %346 = arith.addf %343, %345 : vector<8x32xf32>
    %c1_109 = arith.constant 1 : index
    %c0_110 = arith.constant 0 : index
    %c0_111 = arith.constant 0 : index
    %347 = vector.load %arg9[%c1_109, %c0_110, %c0_111] : memref<2x32x32xf32, #tpu.memory_space<vmem>>, vector<1x32x32xf32>
    %348 = vector.shape_cast %347 : vector<1x32x32xf32> to vector<32x32xf32>
    %cst_112 = arith.constant dense<0.000000e+00> : vector<16x32xf32>
    %349 = tpu.matmul %5, %348, %cst_112 {dimension_numbers = #tpu.dot_dimension_numbers<[1], [0], [0], [1], [0, 0, 1, 1], [], []>} : vector<16x32xf32>, vector<32x32xf32>, vector<16x32xf32> -> vector<16x32xf32>
    %350 = vector.extract_strided_slice %244 {offsets = [3, 0], sizes = [1, 32], strides = [1, 1]} : vector<13x32xf32> to vector<1x32xf32>
    %351 = vector.broadcast %350 : vector<1x32xf32> to vector<16x32xf32>
    %352 = arith.addf %349, %351 : vector<16x32xf32>
    %c1_113 = arith.constant 1 : index
    %c0_114 = arith.constant 0 : index
    %c0_115 = arith.constant 0 : index
    %353 = vector.load %arg10[%c1_113, %c0_114, %c0_115] : memref<2x32x32xf32, #tpu.memory_space<vmem>>, vector<1x32x32xf32>
    %354 = vector.shape_cast %353 : vector<1x32x32xf32> to vector<32x32xf32>
    %cst_116 = arith.constant dense<0.000000e+00> : vector<16x32xf32>
    %355 = tpu.matmul %7, %354, %cst_116 {dimension_numbers = #tpu.dot_dimension_numbers<[1], [0], [0], [1], [0, 0, 1, 1], [], []>} : vector<16x32xf32>, vector<32x32xf32>, vector<16x32xf32> -> vector<16x32xf32>
    %356 = vector.extract_strided_slice %244 {offsets = [4, 0], sizes = [1, 32], strides = [1, 1]} : vector<13x32xf32> to vector<1x32xf32>
    %357 = vector.broadcast %356 : vector<1x32xf32> to vector<16x32xf32>
    %358 = arith.addf %355, %357 : vector<16x32xf32>
    %c1_117 = arith.constant 1 : index
    %c0_118 = arith.constant 0 : index
    %c0_119 = arith.constant 0 : index
    %359 = vector.load %arg11[%c1_117, %c0_118, %c0_119] : memref<2x32x32xf32, #tpu.memory_space<vmem>>, vector<1x32x32xf32>
    %360 = vector.shape_cast %359 : vector<1x32x32xf32> to vector<32x32xf32>
    %361 = vector.extract_strided_slice %244 {offsets = [5, 0], sizes = [1, 32], strides = [1, 1]} : vector<13x32xf32> to vector<1x32xf32>
    %362 = vector.extract_strided_slice %346 {offsets = [0, 0], sizes = [8, 8], strides = [1, 1]} : vector<8x32xf32> to vector<8x8xf32>
    %363 = vector.extract_strided_slice %346 {offsets = [0, 8], sizes = [8, 8], strides = [1, 1]} : vector<8x32xf32> to vector<8x8xf32>
    %364 = vector.extract_strided_slice %346 {offsets = [0, 16], sizes = [8, 8], strides = [1, 1]} : vector<8x32xf32> to vector<8x8xf32>
    %365 = vector.extract_strided_slice %346 {offsets = [0, 24], sizes = [8, 8], strides = [1, 1]} : vector<8x32xf32> to vector<8x8xf32>
    %366 = vector.shape_cast %362 : vector<8x8xf32> to vector<1x8x8xf32>
    %367 = vector.shape_cast %363 : vector<8x8xf32> to vector<1x8x8xf32>
    %368 = vector.shape_cast %364 : vector<8x8xf32> to vector<1x8x8xf32>
    %369 = vector.shape_cast %365 : vector<8x8xf32> to vector<1x8x8xf32>
    %370 = tpu.concatenate %366, %367, %368, %369 in 0 : vector<1x8x8xf32>, vector<1x8x8xf32>, vector<1x8x8xf32>, vector<1x8x8xf32> -> vector<4x8x8xf32>
    %371 = vector.extract_strided_slice %352 {offsets = [0, 0], sizes = [16, 8], strides = [1, 1]} : vector<16x32xf32> to vector<16x8xf32>
    %372 = vector.extract_strided_slice %352 {offsets = [0, 8], sizes = [16, 8], strides = [1, 1]} : vector<16x32xf32> to vector<16x8xf32>
    %373 = vector.extract_strided_slice %352 {offsets = [0, 16], sizes = [16, 8], strides = [1, 1]} : vector<16x32xf32> to vector<16x8xf32>
    %374 = vector.extract_strided_slice %352 {offsets = [0, 24], sizes = [16, 8], strides = [1, 1]} : vector<16x32xf32> to vector<16x8xf32>
    %375 = vector.shape_cast %371 : vector<16x8xf32> to vector<1x16x8xf32>
    %376 = vector.shape_cast %372 : vector<16x8xf32> to vector<1x16x8xf32>
    %377 = vector.shape_cast %373 : vector<16x8xf32> to vector<1x16x8xf32>
    %378 = vector.shape_cast %374 : vector<16x8xf32> to vector<1x16x8xf32>
    %379 = tpu.concatenate %375, %376, %377, %378 in 0 : vector<1x16x8xf32>, vector<1x16x8xf32>, vector<1x16x8xf32>, vector<1x16x8xf32> -> vector<4x16x8xf32>
    %380 = vector.extract_strided_slice %358 {offsets = [0, 0], sizes = [16, 8], strides = [1, 1]} : vector<16x32xf32> to vector<16x8xf32>
    %381 = vector.extract_strided_slice %358 {offsets = [0, 8], sizes = [16, 8], strides = [1, 1]} : vector<16x32xf32> to vector<16x8xf32>
    %382 = vector.extract_strided_slice %358 {offsets = [0, 16], sizes = [16, 8], strides = [1, 1]} : vector<16x32xf32> to vector<16x8xf32>
    %383 = vector.extract_strided_slice %358 {offsets = [0, 24], sizes = [16, 8], strides = [1, 1]} : vector<16x32xf32> to vector<16x8xf32>
    %384 = vector.shape_cast %380 : vector<16x8xf32> to vector<1x16x8xf32>
    %385 = vector.shape_cast %381 : vector<16x8xf32> to vector<1x16x8xf32>
    %386 = vector.shape_cast %382 : vector<16x8xf32> to vector<1x16x8xf32>
    %387 = vector.shape_cast %383 : vector<16x8xf32> to vector<1x16x8xf32>
    %388 = tpu.concatenate %384, %385, %386, %387 in 0 : vector<1x16x8xf32>, vector<1x16x8xf32>, vector<1x16x8xf32>, vector<1x16x8xf32> -> vector<4x16x8xf32>
    "tpu.trace_start"() <{level = 10 : i32, message = "gqm,gkm->gqk"}> : () -> ()
    %cst_120 = arith.constant dense<0.000000e+00> : vector<4x8x16xf32>
    %389 = tpu.matmul %370, %379, %cst_120 {dimension_numbers = #tpu.dot_dimension_numbers<[2], [2], [1], [1], [0, 0, 0, 1, 1, 1], [0], [0]>} : vector<4x8x8xf32>, vector<4x16x8xf32>, vector<4x8x16xf32> -> vector<4x8x16xf32>
    "tpu.trace_stop"() : () -> ()
    %cst_121 = arith.constant dense<0xFF800000> : vector<4x8xf32>
    %390 = vector.multi_reduction <maximumf>, %389, %cst_121 [2] : vector<4x8x16xf32> to vector<4x8xf32>
    %391 = vector.shape_cast %390 : vector<4x8xf32> to vector<4x8x1xf32>
    %392 = vector.broadcast %391 : vector<4x8x1xf32> to vector<4x8x16xf32>
    %393 = arith.subf %389, %392 : vector<4x8x16xf32>
    %394 = math.exp %393 : vector<4x8x16xf32>
    %cst_122 = arith.constant dense<0.000000e+00> : vector<4x8xf32>
    %395 = vector.multi_reduction <add>, %394, %cst_122 [2] : vector<4x8x16xf32> to vector<4x8xf32>
    %396 = vector.shape_cast %395 : vector<4x8xf32> to vector<4x8x1xf32>
    %397 = tpu.reciprocal %396 : vector<4x8x1xf32> -> vector<4x8x1xf32>
    %398 = vector.broadcast %397 : vector<4x8x1xf32> to vector<4x8x16xf32>
    %399 = arith.mulf %394, %398 : vector<4x8x16xf32>
    "tpu.trace_start"() <{level = 10 : i32, message = "gqk,gkm->gqm"}> : () -> ()
    %cst_123 = arith.constant dense<0.000000e+00> : vector<4x8x8xf32>
    %400 = tpu.matmul %399, %388, %cst_123 {dimension_numbers = #tpu.dot_dimension_numbers<[2], [1], [1], [2], [0, 0, 0, 1, 1, 2], [0], [0]>} : vector<4x8x16xf32>, vector<4x16x8xf32>, vector<4x8x8xf32> -> vector<4x8x8xf32>
    "tpu.trace_stop"() : () -> ()
    %401 = vector.extract_strided_slice %400 {offsets = [0, 0, 0], sizes = [1, 8, 8], strides = [1, 1, 1]} : vector<4x8x8xf32> to vector<1x8x8xf32>
    %402 = vector.shape_cast %401 : vector<1x8x8xf32> to vector<8x8xf32>
    %403 = vector.extract_strided_slice %400 {offsets = [1, 0, 0], sizes = [1, 8, 8], strides = [1, 1, 1]} : vector<4x8x8xf32> to vector<1x8x8xf32>
    %404 = vector.shape_cast %403 : vector<1x8x8xf32> to vector<8x8xf32>
    %405 = vector.extract_strided_slice %400 {offsets = [2, 0, 0], sizes = [1, 8, 8], strides = [1, 1, 1]} : vector<4x8x8xf32> to vector<1x8x8xf32>
    %406 = vector.shape_cast %405 : vector<1x8x8xf32> to vector<8x8xf32>
    %407 = vector.extract_strided_slice %400 {offsets = [3, 0, 0], sizes = [1, 8, 8], strides = [1, 1, 1]} : vector<4x8x8xf32> to vector<1x8x8xf32>
    %408 = vector.shape_cast %407 : vector<1x8x8xf32> to vector<8x8xf32>
    %409 = tpu.concatenate %402, %404, %406, %408 in 1 : vector<8x8xf32>, vector<8x8xf32>, vector<8x8xf32>, vector<8x8xf32> -> vector<8x32xf32>
    %cst_124 = arith.constant dense<0.000000e+00> : vector<8x32xf32>
    %410 = tpu.matmul %409, %360, %cst_124 {dimension_numbers = #tpu.dot_dimension_numbers<[1], [0], [0], [1], [0, 0, 1, 1], [], []>} : vector<8x32xf32>, vector<32x32xf32>, vector<8x32xf32> -> vector<8x32xf32>
    %411 = vector.broadcast %361 : vector<1x32xf32> to vector<8x32xf32>
    %412 = arith.addf %410, %411 : vector<8x32xf32>
    %413 = arith.addf %339, %412 : vector<8x32xf32>
    %414 = vector.extract_strided_slice %244 {offsets = [9, 0], sizes = [1, 32], strides = [1, 1]} : vector<13x32xf32> to vector<1x32xf32>
    %415 = vector.extract_strided_slice %244 {offsets = [10, 0], sizes = [1, 32], strides = [1, 1]} : vector<13x32xf32> to vector<1x32xf32>
    %cst_125 = arith.constant dense<0.000000e+00> : vector<8xf32>
    %416 = vector.multi_reduction <add>, %413, %cst_125 [1] : vector<8x32xf32> to vector<8xf32>
    %417 = vector.shape_cast %416 : vector<8xf32> to vector<8x1xf32>
    %cst_126 = arith.constant 3.200000e+01 : f32
    %418 = vector.broadcast %cst_126 : f32 to vector<8x1xf32>
    %419 = arith.divf %417, %418 : vector<8x1xf32>
    %420 = vector.broadcast %419 : vector<8x1xf32> to vector<8x32xf32>
    %421 = arith.subf %413, %420 : vector<8x32xf32>
    %422 = arith.mulf %421, %421 : vector<8x32xf32>
    %cst_127 = arith.constant dense<0.000000e+00> : vector<8xf32>
    %423 = vector.multi_reduction <add>, %422, %cst_127 [1] : vector<8x32xf32> to vector<8xf32>
    %424 = vector.shape_cast %423 : vector<8xf32> to vector<8x1xf32>
    %cst_128 = arith.constant 3.200000e+01 : f32
    %425 = vector.broadcast %cst_128 : f32 to vector<8x1xf32>
    %426 = arith.divf %424, %425 : vector<8x1xf32>
    %427 = vector.broadcast %419 : vector<8x1xf32> to vector<8x32xf32>
    %428 = arith.subf %413, %427 : vector<8x32xf32>
    %cst_129 = arith.constant 9.99999974E-6 : f32
    %429 = vector.broadcast %cst_129 : f32 to vector<8x1xf32>
    %430 = arith.addf %426, %429 : vector<8x1xf32>
    %431 = math.rsqrt %430 : vector<8x1xf32>
    %432 = vector.broadcast %431 : vector<8x1xf32> to vector<8x32xf32>
    %433 = arith.mulf %428, %432 : vector<8x32xf32>
    %434 = vector.broadcast %414 : vector<1x32xf32> to vector<8x32xf32>
    %435 = arith.mulf %433, %434 : vector<8x32xf32>
    %436 = vector.broadcast %415 : vector<1x32xf32> to vector<8x32xf32>
    %437 = arith.addf %435, %436 : vector<8x32xf32>
    %c1_130 = arith.constant 1 : index
    %c0_131 = arith.constant 0 : index
    %c0_132 = arith.constant 0 : index
    %438 = vector.load %arg12[%c1_130, %c0_131, %c0_132] : memref<2x32x64xf32, #tpu.memory_space<vmem>>, vector<1x32x64xf32>
    %439 = vector.shape_cast %438 : vector<1x32x64xf32> to vector<32x64xf32>
    %cst_133 = arith.constant dense<0.000000e+00> : vector<8x64xf32>
    %440 = tpu.matmul %437, %439, %cst_133 {dimension_numbers = #tpu.dot_dimension_numbers<[1], [0], [0], [1], [0, 0, 1, 1], [], []>} : vector<8x32xf32>, vector<32x64xf32>, vector<8x64xf32> -> vector<8x64xf32>
    %c1_134 = arith.constant 1 : index
    %c0_135 = arith.constant 0 : index
    %c0_136 = arith.constant 0 : index
    %441 = vector.load %arg15[%c1_134, %c0_135, %c0_136] : memref<2x1x64xf32, #tpu.memory_space<vmem>>, vector<1x1x64xf32>
    %442 = vector.shape_cast %441 : vector<1x1x64xf32> to vector<1x64xf32>
    %443 = vector.broadcast %442 : vector<1x64xf32> to vector<8x64xf32>
    %444 = arith.addf %440, %443 : vector<8x64xf32>
    %cst_137 = arith.constant 0.000000e+00 : f32
    %445 = vector.broadcast %cst_137 : f32 to vector<8x64xf32>
    %446 = arith.maximumf %444, %445 : vector<8x64xf32>
    %c1_138 = arith.constant 1 : index
    %c0_139 = arith.constant 0 : index
    %c0_140 = arith.constant 0 : index
    %447 = vector.load %arg13[%c1_138, %c0_139, %c0_140] : memref<2x64x32xf32, #tpu.memory_space<vmem>>, vector<1x64x32xf32>
    %448 = vector.shape_cast %447 : vector<1x64x32xf32> to vector<64x32xf32>
    %cst_141 = arith.constant dense<0.000000e+00> : vector<8x32xf32>
    %449 = tpu.matmul %446, %448, %cst_141 {dimension_numbers = #tpu.dot_dimension_numbers<[1], [0], [0], [1], [0, 0, 1, 1], [], []>} : vector<8x64xf32>, vector<64x32xf32>, vector<8x32xf32> -> vector<8x32xf32>
    %450 = vector.extract_strided_slice %244 {offsets = [6, 0], sizes = [1, 32], strides = [1, 1]} : vector<13x32xf32> to vector<1x32xf32>
    %451 = vector.broadcast %450 : vector<1x32xf32> to vector<8x32xf32>
    %452 = arith.addf %449, %451 : vector<8x32xf32>
    %453 = arith.addf %437, %452 : vector<8x32xf32>
    %454 = vector.extract_strided_slice %244 {offsets = [11, 0], sizes = [1, 32], strides = [1, 1]} : vector<13x32xf32> to vector<1x32xf32>
    %455 = vector.extract_strided_slice %244 {offsets = [12, 0], sizes = [1, 32], strides = [1, 1]} : vector<13x32xf32> to vector<1x32xf32>
    %cst_142 = arith.constant dense<0.000000e+00> : vector<8xf32>
    %456 = vector.multi_reduction <add>, %453, %cst_142 [1] : vector<8x32xf32> to vector<8xf32>
    %457 = vector.shape_cast %456 : vector<8xf32> to vector<8x1xf32>
    %cst_143 = arith.constant 3.200000e+01 : f32
    %458 = vector.broadcast %cst_143 : f32 to vector<8x1xf32>
    %459 = arith.divf %457, %458 : vector<8x1xf32>
    %460 = vector.broadcast %459 : vector<8x1xf32> to vector<8x32xf32>
    %461 = arith.subf %453, %460 : vector<8x32xf32>
    %462 = arith.mulf %461, %461 : vector<8x32xf32>
    %cst_144 = arith.constant dense<0.000000e+00> : vector<8xf32>
    %463 = vector.multi_reduction <add>, %462, %cst_144 [1] : vector<8x32xf32> to vector<8xf32>
    %464 = vector.shape_cast %463 : vector<8xf32> to vector<8x1xf32>
    %cst_145 = arith.constant 3.200000e+01 : f32
    %465 = vector.broadcast %cst_145 : f32 to vector<8x1xf32>
    %466 = arith.divf %464, %465 : vector<8x1xf32>
    %467 = vector.broadcast %459 : vector<8x1xf32> to vector<8x32xf32>
    %468 = arith.subf %453, %467 : vector<8x32xf32>
    %cst_146 = arith.constant 9.99999974E-6 : f32
    %469 = vector.broadcast %cst_146 : f32 to vector<8x1xf32>
    %470 = arith.addf %466, %469 : vector<8x1xf32>
    %471 = math.rsqrt %470 : vector<8x1xf32>
    %472 = vector.broadcast %471 : vector<8x1xf32> to vector<8x32xf32>
    %473 = arith.mulf %468, %472 : vector<8x32xf32>
    %474 = vector.broadcast %454 : vector<1x32xf32> to vector<8x32xf32>
    %475 = arith.mulf %473, %474 : vector<8x32xf32>
    %476 = vector.broadcast %455 : vector<1x32xf32> to vector<8x32xf32>
    %477 = arith.addf %475, %476 : vector<8x32xf32>
    %c0_147 = arith.constant 0 : index
    %c0_148 = arith.constant 0 : index
    %478 = vector.load %arg17[%c0_147, %c0_148] : memref<2x32xf32, #tpu.memory_space<vmem>>, vector<1x32xf32>
    %c1_149 = arith.constant 1 : index
    %c0_150 = arith.constant 0 : index
    %479 = vector.load %arg17[%c1_149, %c0_150] : memref<2x32xf32, #tpu.memory_space<vmem>>, vector<1x32xf32>
    %cst_151 = arith.constant dense<0.000000e+00> : vector<8xf32>
    %480 = vector.multi_reduction <add>, %477, %cst_151 [1] : vector<8x32xf32> to vector<8xf32>
    %481 = vector.shape_cast %480 : vector<8xf32> to vector<8x1xf32>
    %cst_152 = arith.constant 3.200000e+01 : f32
    %482 = vector.broadcast %cst_152 : f32 to vector<8x1xf32>
    %483 = arith.divf %481, %482 : vector<8x1xf32>
    %484 = vector.broadcast %483 : vector<8x1xf32> to vector<8x32xf32>
    %485 = arith.subf %477, %484 : vector<8x32xf32>
    %486 = arith.mulf %485, %485 : vector<8x32xf32>
    %cst_153 = arith.constant dense<0.000000e+00> : vector<8xf32>
    %487 = vector.multi_reduction <add>, %486, %cst_153 [1] : vector<8x32xf32> to vector<8xf32>
    %488 = vector.shape_cast %487 : vector<8xf32> to vector<8x1xf32>
    %cst_154 = arith.constant 3.200000e+01 : f32
    %489 = vector.broadcast %cst_154 : f32 to vector<8x1xf32>
    %490 = arith.divf %488, %489 : vector<8x1xf32>
    %491 = vector.broadcast %483 : vector<8x1xf32> to vector<8x32xf32>
    %492 = arith.subf %477, %491 : vector<8x32xf32>
    %cst_155 = arith.constant 9.99999974E-6 : f32
    %493 = vector.broadcast %cst_155 : f32 to vector<8x1xf32>
    %494 = arith.addf %490, %493 : vector<8x1xf32>
    %495 = math.rsqrt %494 : vector<8x1xf32>
    %496 = vector.broadcast %495 : vector<8x1xf32> to vector<8x32xf32>
    %497 = arith.mulf %492, %496 : vector<8x32xf32>
    %498 = vector.broadcast %478 : vector<1x32xf32> to vector<8x32xf32>
    %499 = arith.mulf %497, %498 : vector<8x32xf32>
    %500 = vector.broadcast %479 : vector<1x32xf32> to vector<8x32xf32>
    %501 = arith.addf %499, %500 : vector<8x32xf32>
    %502 = vector.shape_cast %501 : vector<8x32xf32> to vector<1x8x32xf32>
    %c0_156 = arith.constant 0 : index
    %c0_157 = arith.constant 0 : index
    %c0_158 = arith.constant 0 : index
    %503 = vector.load %arg18[%c0_156, %c0_157, %c0_158] : memref<1x8x32xf32, #tpu.memory_space<vmem>>, vector<1x8x32xf32>
    tpu.vector_store %arg18[%c0_156, %c0_157, %c0_158], %502 {strides = array<i32>} : memref<1x8x32xf32, #tpu.memory_space<vmem>>, vector<1x8x32xf32>,
    return
  }
  func.func @transform_0(%arg0: i32) -> (i32, i32, i32) {
    %c0_i32 = arith.constant 0 : i32
    %c0_i32_0 = arith.constant 0 : i32
    %c0_i32_1 = arith.constant 0 : i32
    return %arg0, %c0_i32, %c0_i32_0 : i32, i32, i32
  }
  func.func @transform_1(%arg0: i32) -> (i32, i32, i32) {
    %c0_i32 = arith.constant 0 : i32
    %c0_i32_0 = arith.constant 0 : i32
    %c0_i32_1 = arith.constant 0 : i32
    return %arg0, %c0_i32, %c0_i32_0 : i32, i32, i32
  }
  func.func @transform_2(%arg0: i32) -> (i32, i32, i32) {
    %c0_i32 = arith.constant 0 : i32
    %c0_i32_0 = arith.constant 0 : i32
    %c0_i32_1 = arith.constant 0 : i32
    return %arg0, %c0_i32, %c0_i32_0 : i32, i32, i32
  }
  func.func @transform_3(%arg0: i32) -> (i32, i32, i32) {
    %c0_i32 = arith.constant 0 : i32
    %c0_i32_0 = arith.constant 0 : i32
    %c0_i32_1 = arith.constant 0 : i32
    return %arg0, %c0_i32, %c0_i32_0 : i32, i32, i32
  }
  func.func @transform_4(%arg0: i32) -> (i32, i32, i32) {
    %c0_i32 = arith.constant 0 : i32
    %c0_i32_0 = arith.constant 0 : i32
    %c0_i32_1 = arith.constant 0 : i32
    %c0_i32_2 = arith.constant 0 : i32
    return %c0_i32, %c0_i32_0, %c0_i32_1 : i32, i32, i32
  }
  func.func @transform_5(%arg0: i32) -> (i32, i32, i32) {
    %c0_i32 = arith.constant 0 : i32
    %c0_i32_0 = arith.constant 0 : i32
    %c0_i32_1 = arith.constant 0 : i32
    %c0_i32_2 = arith.constant 0 : i32
    return %c0_i32, %c0_i32_0, %c0_i32_1 : i32, i32, i32
  }
  func.func @transform_6(%arg0: i32) -> (i32, i32, i32) {
    %c0_i32 = arith.constant 0 : i32
    %c0_i32_0 = arith.constant 0 : i32
    %c0_i32_1 = arith.constant 0 : i32
    %c0_i32_2 = arith.constant 0 : i32
    return %c0_i32, %c0_i32_0, %c0_i32_1 : i32, i32, i32
  }
  func.func @transform_7(%arg0: i32) -> (i32, i32, i32) {
    %c0_i32 = arith.constant 0 : i32
    %c0_i32_0 = arith.constant 0 : i32
    %c0_i32_1 = arith.constant 0 : i32
    %c0_i32_2 = arith.constant 0 : i32
    return %c0_i32, %c0_i32_0, %c0_i32_1 : i32, i32, i32
  }
  func.func @transform_8(%arg0: i32) -> (i32, i32, i32) {
    %c0_i32 = arith.constant 0 : i32
    %c0_i32_0 = arith.constant 0 : i32
    %c0_i32_1 = arith.constant 0 : i32
    %c0_i32_2 = arith.constant 0 : i32
    return %c0_i32, %c0_i32_0, %c0_i32_1 : i32, i32, i32
  }
  func.func @transform_9(%arg0: i32) -> (i32, i32, i32) {
    %c0_i32 = arith.constant 0 : i32
    %c0_i32_0 = arith.constant 0 : i32
    %c0_i32_1 = arith.constant 0 : i32
    %c0_i32_2 = arith.constant 0 : i32
    return %c0_i32, %c0_i32_0, %c0_i32_1 : i32, i32, i32
  }
  func.func @transform_10(%arg0: i32) -> (i32, i32, i32) {
    %c0_i32 = arith.constant 0 : i32
    %c0_i32_0 = arith.constant 0 : i32
    %c0_i32_1 = arith.constant 0 : i32
    %c0_i32_2 = arith.constant 0 : i32
    return %c0_i32, %c0_i32_0, %c0_i32_1 : i32, i32, i32
  }
  func.func @transform_11(%arg0: i32) -> (i32, i32, i32) {
    %c0_i32 = arith.constant 0 : i32
    %c0_i32_0 = arith.constant 0 : i32
    %c0_i32_1 = arith.constant 0 : i32
    %c0_i32_2 = arith.constant 0 : i32
    return %c0_i32, %c0_i32_0, %c0_i32_1 : i32, i32, i32
  }
  func.func @transform_12(%arg0: i32) -> (i32, i32, i32) {
    %c0_i32 = arith.constant 0 : i32
    %c0_i32_0 = arith.constant 0 : i32
    %c0_i32_1 = arith.constant 0 : i32
    %c0_i32_2 = arith.constant 0 : i32
    return %c0_i32, %c0_i32_0, %c0_i32_1 : i32, i32, i32
  }
  func.func @transform_13(%arg0: i32) -> (i32, i32, i32) {
    %c0_i32 = arith.constant 0 : i32
    %c0_i32_0 = arith.constant 0 : i32
    %c0_i32_1 = arith.constant 0 : i32
    %c0_i32_2 = arith.constant 0 : i32
    return %c0_i32, %c0_i32_0, %c0_i32_1 : i32, i32, i32
  }
  func.func @transform_14(%arg0: i32) -> (i32, i32, i32) {
    %c0_i32 = arith.constant 0 : i32
    %c0_i32_0 = arith.constant 0 : i32
    %c0_i32_1 = arith.constant 0 : i32
    %c0_i32_2 = arith.constant 0 : i32
    return %c0_i32, %c0_i32_0, %c0_i32_1 : i32, i32, i32
  }
  func.func @transform_15(%arg0: i32) -> (i32, i32, i32) {
    %c0_i32 = arith.constant 0 : i32
    %c0_i32_0 = arith.constant 0 : i32
    %c0_i32_1 = arith.constant 0 : i32
    %c0_i32_2 = arith.constant 0 : i32
    return %c0_i32, %c0_i32_0, %c0_i32_1 : i32, i32, i32
  }
  func.func @transform_16(%arg0: i32) -> (i32, i32) {
    %c0_i32 = arith.constant 0 : i32
    %c0_i32_0 = arith.constant 0 : i32
    %c0_i32_1 = arith.constant 0 : i32
    return %c0_i32, %c0_i32_0 : i32, i32
  }
  func.func @transform_17(%arg0: i32) -> (i32, i32, i32) {
    %c0_i32 = arith.constant 0 : i32
    %c0_i32_0 = arith.constant 0 : i32
    %c0_i32_1 = arith.constant 0 : i32
    return %arg0, %c0_i32, %c0_i32_0 : i32, i32, i32
  }
}

</mosaic_0001>

<llo_original>
// kernel: tpu_custom_call.1
$region0: #{tpu_custom_call.1}
  #allocation0 [shape = 'u32[]', space=smem, size = 0x4, offset = 0x4, fixed_abs, tag = 'smem constant byte address 0x4 - core index']
  #allocation1 [shape = 'u32[144,128]{1,0:T(1,128)}', space=vmem, size = 0x12000, scoped, tag = 'internal scratch']
  %s0 = inlined_call_operand.hbm [shape: f32[2,8,32], index: 0, kind: input, shape index: {}]
  %s1 = inlined_call_operand.hbm [shape: f32[2,8,32], index: 1, kind: input, shape index: {}]
  %s2 = inlined_call_operand.hbm [shape: f32[2,16,32], index: 2, kind: input, shape index: {}]
  %s3 = inlined_call_operand.hbm [shape: f32[2,16,32], index: 3, kind: input, shape index: {}]
  %s4 = inlined_call_operand.vmem [shape: f32[2,32,64], index: 4, kind: input, shape index: {}]
  %s5 = inlined_call_operand.vmem [shape: f32[2,32,32], index: 5, kind: input, shape index: {}]
  %s6 = inlined_call_operand.vmem [shape: f32[2,32,32], index: 6, kind: input, shape index: {}]
  %s7 = inlined_call_operand.vmem [shape: f32[2,32,32], index: 7, kind: input, shape index: {}]
  %s8 = inlined_call_operand.hbm [shape: f32[2,32,32], index: 8, kind: input, shape index: {}]
  %s9 = inlined_call_operand.hbm [shape: f32[2,32,32], index: 9, kind: input, shape index: {}]
  %s10 = inlined_call_operand.hbm [shape: f32[2,32,32], index: 10, kind: input, shape index: {}]
  %s11 = inlined_call_operand.hbm [shape: f32[2,32,64], index: 11, kind: input, shape index: {}]
  %s12 = inlined_call_operand.vmem [shape: f32[2,64,32], index: 12, kind: input, shape index: {}]
  %s13 = inlined_call_operand.vmem [shape: f32[2,1,64], index: 13, kind: input, shape index: {}]
  %s14 = inlined_call_operand.vmem [shape: f32[2,1,64], index: 14, kind: input, shape index: {}]
  %s15 = inlined_call_operand.vmem [shape: f32[2,13,32], index: 15, kind: input, shape index: {}]
  %s16 = inlined_call_operand.vmem [shape: f32[2,32], index: 16, kind: input, shape index: {}]
  %s17 = inlined_call_operand.hbm [shape: f32[2,8,32], index: 17, kind: output, shape index: {}]
  %s18 = sld [smem:[#allocation0]]
  $region133: #{tpu_custom_call.1} parent=0
    _
  %s20 = ssub.s32 1, %s18
  %s21 = scalar_select 0, %s20, %s18
  $region1: #{tpu_custom_call.1} parent=0
    #allocation2 [shape = 'u8[8192]{0}', space=vmem, size = 0x2000, scoped, tag = 'input window, operand 0']
    #allocation3 [shape = 's32[2]{0}', space=sflag, size = 0x8, scoped, tag = 'scoped memory for tpu_custom_call.1']
    #allocation4 [shape = 's32[2]{0}', space=sflag, size = 0x8, scoped, tag = 'scoped memory for tpu_custom_call.1']
    #allocation5 [shape = 'u8[8192]{0}', space=vmem, size = 0x2000, scoped, tag = 'input window, operand 1']
    #allocation6 [shape = 's32[2]{0}', space=sflag, size = 0x8, scoped, tag = 'scoped memory for tpu_custom_call.1']
    #allocation7 [shape = 'u8[16384]{0}', space=vmem, size = 0x4000, scoped, tag = 'input window, operand 2']
    #allocation8 [shape = 'u8[16384]{0}', space=vmem, size = 0x4000, scoped, tag = 'input window, operand 3']
    #allocation9 [shape = 's32[2]{0}', space=sflag, size = 0x8, scoped, tag = 'scoped memory for tpu_custom_call.1']
    #allocation10 [shape = 'u8[32768]{0}', space=vmem, size = 0x8000, scoped, tag = 'input window, operand 8, single buffered']
    #allocation11 [shape = 'u8[32768]{0}', space=vmem, size = 0x8000, scoped, tag = 'input window, operand 9, single buffered']
    #allocation12 [shape = 's32[1]{0}', space=sflag, size = 0x4, scoped, tag = 'scoped memory for tpu_custom_call.1']
    #allocation13 [shape = 'u8[32768]{0}', space=vmem, size = 0x8000, scoped, tag = 'input window, operand 10, single buffered']
    #allocation14 [shape = 'u8[32768]{0}', space=vmem, size = 0x8000, scoped, tag = 'input window, operand 11, single buffered']
    #allocation15 [shape = 's32[1]{0}', space=sflag, size = 0x4, scoped, tag = 'scoped memory for tpu_custom_call.1']
    #allocation16 [shape = 'u8[8192]{0}', space=vmem, size = 0x2000, scoped, tag = 'output window, operand 0']
    %22 = vsyncpa [#allocation3], 0
    %s23 = scalar_lea.sflag [#allocation3], 1
    %24 = vsyncpa %s23, 0
    %25 = vsyncpa [#allocation6], 0
    %s26 = scalar_lea.sflag [#allocation6], 1
    %27 = vsyncpa %s26, 0
    %28 = vsyncpa [#allocation9], 0
    %s29 = scalar_lea.sflag [#allocation9], 1
    %30 = vsyncpa %s29, 0
    %31 = vsyncpa [#allocation12], 0
    %32 = vsyncpa [#allocation15], 0
    %33 = vsyncpa [#allocation4], 0
    %s34 = scalar_lea.sflag [#allocation4], 1
    %35 = vsyncpa %s34, 0
    loop: start=0, step=1, limit=4
    $region2: #{tpu_custom_call.1} parent=1 // loop_pre_header
      _
    $region3: #{tpu_custom_call.1} parent=1 // loop_header
      %s37 = sphi 0, %s41
      %p38 = scmp.ge.s32.totalorder %s37, 4
      %s47 = sphi 0, %s49
      %s50 = sphi 0, %s47
      %s51 = sphi 0, %s50
      %s67 = sphi 0, %s51
      %s73 = sphi 0, %s75
      %s76 = sphi 0, %s73
      %s77 = sphi 0, %s76
      %s93 = sphi 0, %s77
      %s99 = sphi 0, %s101
      %s102 = sphi 0, %s99
      %s103 = sphi 0, %s102
      %s119 = sphi 0, %s103
      %s125 = sphi 0, %s127
      %s128 = sphi 0, %s125
      %s129 = sphi 0, %s128
      %s145 = sphi 0, %s129
      %s149 = sphi 0, %s149
      %s151 = sphi 0, %s149
      %s152 = sphi 0, %s151
      %s166 = sphi 0, %s152
      %s170 = sphi 0, %s170
      %s172 = sphi 0, %s170
      %s173 = sphi 0, %s172
      %s187 = sphi 0, %s173
      %s191 = sphi 0, %s191
      %s193 = sphi 0, %s191
      %s194 = sphi 0, %s193
      %s208 = sphi 0, %s194
      %s212 = sphi 0, %s212
      %s214 = sphi 0, %s212
      %s215 = sphi 0, %s214
      %s229 = sphi 0, %s215
      %s233 = sphi 0, %s233
      %s235 = sphi 0, %s233
      %s236 = sphi 0, %s235
      %s250 = sphi 0, %s236
      %s254 = sphi 0, %s254
      %s256 = sphi 0, %s254
      %s257 = sphi 0, %s256
      %s271 = sphi 0, %s257
      %s275 = sphi 0, %s275
      %s277 = sphi 0, %s275
      %s278 = sphi 0, %s277
      %s292 = sphi 0, %s278
      %s296 = sphi 0, %s296
      %s298 = sphi 0, %s296
      %s299 = sphi 0, %s298
      %s313 = sphi 0, %s299
      %s317 = sphi 0, %s317
      %s319 = sphi 0, %s317
      %s320 = sphi 0, %s319
      %s334 = sphi 0, %s320
      %s338 = sphi 0, %s338
      %s340 = sphi 0, %s338
      %s341 = sphi 0, %s340
      %s355 = sphi 0, %s341
      %s359 = sphi 0, %s359
      %s361 = sphi 0, %s359
      %s362 = sphi 0, %s361
      %s376 = sphi 0, %s362
      %s380 = sphi 0, %s380
      %s382 = sphi 0, %s380
      %s383 = sphi 0, %s382
      %s397 = sphi 0, %s383
      %s401 = sphi 0, %s401
      %s403 = sphi 0, %s401
      %s404 = sphi 0, %s403
      %s418 = sphi 0, %s404
      %s424 = sphi 0, %s426
      %s427 = sphi 0, %s424
      %s428 = sphi 0, %s427
      %s444 = sphi 0, %s428
    $region4: #{tpu_custom_call.1} parent=1 // loop_header_branch
      %40 = sbr.rel (%p38) target = $region8
    $region5: #{tpu_custom_call.1} parent=1 // loop_body
      %s42 = ssub.s32 %s37, 1
      %s43 = ssub.s32 %s37, 2
      %s44 = sadd.s32 %s37, 1
      %s45 = ssub.s32 %s37, %s44
      %p46 = scmp.eq.s32.totalorder %s45, 0
      %s48 = sadd.s32 %s47, 1
      %s49 = scalar_select %p46, %s47, %s48
      %p52 = pneg %p46
      %p53 = scmp.eq.s32.totalorder %s37, 1
      %p54 = por %p52, %p53
      %p55 = scmp.ne.s32.totalorder %s47, %s50
      %p56 = scmp.eq.s32.totalorder %s37, 0
      %p57 = por %p55, %p56
      %p58 = scmp.ne.s32.totalorder %s47, %s50
      %p59 = scmp.eq.s32.totalorder %s42, 1
      %p60 = por %p58, %p59
      %p61 = scmp.ne.s32.totalorder %s50, %s51
      %p62 = scmp.eq.s32.totalorder %s42, 0
      %p63 = por %p61, %p62
      %p64 = scmp.ne.s32.totalorder %s50, %s51
      %p65 = scmp.eq.s32.totalorder %s43, 1
      %p66 = por %p64, %p65
      %p68 = scmp.ne.s32.totalorder %s51, %s67
      %p69 = scmp.eq.s32.totalorder %s43, 0
      %p70 = por %p68, %p69
      %s71 = ssub.s32 %s37, %s44
      %p72 = scmp.eq.s32.totalorder %s71, 0
      %s74 = sadd.s32 %s73, 1
      %s75 = scalar_select %p72, %s73, %s74
      %p78 = pneg %p72
      %p79 = scmp.eq.s32.totalorder %s37, 1
      %p80 = por %p78, %p79
      %p81 = scmp.ne.s32.totalorder %s73, %s76
      %p82 = scmp.eq.s32.totalorder %s37, 0
      %p83 = por %p81, %p82
      %p84 = scmp.ne.s32.totalorder %s73, %s76
      %p85 = scmp.eq.s32.totalorder %s42, 1
      %p86 = por %p84, %p85
      %p87 = scmp.ne.s32.totalorder %s76, %s77
      %p88 = scmp.eq.s32.totalorder %s42, 0
      %p89 = por %p87, %p88
      %p90 = scmp.ne.s32.totalorder %s76, %s77
      %p91 = scmp.eq.s32.totalorder %s43, 1
      %p92 = por %p90, %p91
      %p94 = scmp.ne.s32.totalorder %s77, %s93
      %p95 = scmp.eq.s32.totalorder %s43, 0
      %p96 = por %p94, %p95
      %s97 = ssub.s32 %s37, %s44
      %p98 = scmp.eq.s32.totalorder %s97, 0
      %s100 = sadd.s32 %s99, 1
      %s101 = scalar_select %p98, %s99, %s100
      %p104 = pneg %p98
      %p105 = scmp.eq.s32.totalorder %s37, 1
      %p106 = por %p104, %p105
      %p107 = scmp.ne.s32.totalorder %s99, %s102
      %p108 = scmp.eq.s32.totalorder %s37, 0
      %p109 = por %p107, %p108
      %p110 = scmp.ne.s32.totalorder %s99, %s102
      %p111 = scmp.eq.s32.totalorder %s42, 1
      %p112 = por %p110, %p111
      %p113 = scmp.ne.s32.totalorder %s102, %s103
      %p114 = scmp.eq.s32.totalorder %s42, 0
      %p115 = por %p113, %p114
      %p116 = scmp.ne.s32.totalorder %s102, %s103
      %p117 = scmp.eq.s32.totalorder %s43, 1
      %p118 = por %p116, %p117
      %p120 = scmp.ne.s32.totalorder %s103, %s119
      %p121 = scmp.eq.s32.totalorder %s43, 0
      %p122 = por %p120, %p121
      %s123 = ssub.s32 %s37, %s44
      %p124 = scmp.eq.s32.totalorder %s123, 0
      %s126 = sadd.s32 %s125, 1
      %s127 = scalar_select %p124, %s125, %s126
      %p130 = pneg %p124
      %p131 = scmp.eq.s32.totalorder %s37, 1
      %p132 = por %p130, %p131
      %p133 = scmp.ne.s32.totalorder %s125, %s128
      %p134 = scmp.eq.s32.totalorder %s37, 0
      %p135 = por %p133, %p134
      %p136 = scmp.ne.s32.totalorder %s125, %s128
      %p137 = scmp.eq.s32.totalorder %s42, 1
      %p138 = por %p136, %p137
      %p139 = scmp.ne.s32.totalorder %s128, %s129
      %p140 = scmp.eq.s32.totalorder %s42, 0
      %p141 = por %p139, %p140
      %p142 = scmp.ne.s32.totalorder %s128, %s129
      %p143 = scmp.eq.s32.totalorder %s43, 1
      %p144 = por %p142, %p143
      %p146 = scmp.ne.s32.totalorder %s129, %s145
      %p147 = scmp.eq.s32.totalorder %s43, 0
      %p148 = por %p146, %p147
      %s150 = sadd.s32 %s149, 1
      %p153 = scmp.eq.s32.totalorder %s37, 1
      %p154 = scmp.ne.s32.totalorder %s149, %s151
      %p155 = scmp.eq.s32.totalorder %s37, 0
      %p156 = por %p154, %p155
      %p157 = scmp.ne.s32.totalorder %s149, %s151
      %p158 = scmp.eq.s32.totalorder %s42, 1
      %p159 = por %p157, %p158
      %p160 = scmp.ne.s32.totalorder %s151, %s152
      %p161 = scmp.eq.s32.totalorder %s42, 0
      %p162 = por %p160, %p161
      %p163 = scmp.ne.s32.totalorder %s151, %s152
      %p164 = scmp.eq.s32.totalorder %s43, 1
      %p165 = por %p163, %p164
      %p167 = scmp.ne.s32.totalorder %s152, %s166
      %p168 = scmp.eq.s32.totalorder %s43, 0
      %p169 = por %p167, %p168
      %s171 = sadd.s32 %s170, 1
      %p174 = scmp.eq.s32.totalorder %s37, 1
      %p175 = scmp.ne.s32.totalorder %s170, %s172
      %p176 = scmp.eq.s32.totalorder %s37, 0
      %p177 = por %p175, %p176
      %p178 = scmp.ne.s32.totalorder %s170, %s172
      %p179 = scmp.eq.s32.totalorder %s42, 1
      %p180 = por %p178, %p179
      %p181 = scmp.ne.s32.totalorder %s172, %s173
      %p182 = scmp.eq.s32.totalorder %s42, 0
      %p183 = por %p181, %p182
      %p184 = scmp.ne.s32.totalorder %s172, %s173
      %p185 = scmp.eq.s32.totalorder %s43, 1
      %p186 = por %p184, %p185
      %p188 = scmp.ne.s32.totalorder %s173, %s187
      %p189 = scmp.eq.s32.totalorder %s43, 0
      %p190 = por %p188, %p189
      %s192 = sadd.s32 %s191, 1
      %p195 = scmp.eq.s32.totalorder %s37, 1
      %p196 = scmp.ne.s32.totalorder %s191, %s193
      %p197 = scmp.eq.s32.totalorder %s37, 0
      %p198 = por %p196, %p197
      %p199 = scmp.ne.s32.totalorder %s191, %s193
      %p200 = scmp.eq.s32.totalorder %s42, 1
      %p201 = por %p199, %p200
      %p202 = scmp.ne.s32.totalorder %s193, %s194
      %p203 = scmp.eq.s32.totalorder %s42, 0
      %p204 = por %p202, %p203
      %p205 = scmp.ne.s32.totalorder %s193, %s194
      %p206 = scmp.eq.s32.totalorder %s43, 1
      %p207 = por %p205, %p206
      %p209 = scmp.ne.s32.totalorder %s194, %s208
      %p210 = scmp.eq.s32.totalorder %s43, 0
      %p211 = por %p209, %p210
      %s213 = sadd.s32 %s212, 1
      %p216 = scmp.eq.s32.totalorder %s37, 1
      %p217 = scmp.ne.s32.totalorder %s212, %s214
      %p218 = scmp.eq.s32.totalorder %s37, 0
      %p219 = por %p217, %p218
      %p220 = scmp.ne.s32.totalorder %s212, %s214
      %p221 = scmp.eq.s32.totalorder %s42, 1
      %p222 = por %p220, %p221
      %p223 = scmp.ne.s32.totalorder %s214, %s215
      %p224 = scmp.eq.s32.totalorder %s42, 0
      %p225 = por %p223, %p224
      %p226 = scmp.ne.s32.totalorder %s214, %s215
      %p227 = scmp.eq.s32.totalorder %s43, 1
      %p228 = por %p226, %p227
      %p230 = scmp.ne.s32.totalorder %s215, %s229
      %p231 = scmp.eq.s32.totalorder %s43, 0
      %p232 = por %p230, %p231
      %s234 = sadd.s32 %s233, 1
      %p237 = scmp.eq.s32.totalorder %s37, 1
      %p238 = scmp.ne.s32.totalorder %s233, %s235
      %p239 = scmp.eq.s32.totalorder %s37, 0
      %p240 = por %p238, %p239
      %p241 = scmp.ne.s32.totalorder %s233, %s235
      %p242 = scmp.eq.s32.totalorder %s42, 1
      %p243 = por %p241, %p242
      %p244 = scmp.ne.s32.totalorder %s235, %s236
      %p245 = scmp.eq.s32.totalorder %s42, 0
      %p246 = por %p244, %p245
      %p247 = scmp.ne.s32.totalorder %s235, %s236
      %p248 = scmp.eq.s32.totalorder %s43, 1
      %p249 = por %p247, %p248
      %p251 = scmp.ne.s32.totalorder %s236, %s250
      %p252 = scmp.eq.s32.totalorder %s43, 0
      %p253 = por %p251, %p252
      %s255 = sadd.s32 %s254, 1
      %p258 = scmp.eq.s32.totalorder %s37, 1
      %p259 = scmp.ne.s32.totalorder %s254, %s256
      %p260 = scmp.eq.s32.totalorder %s37, 0
      %p261 = por %p259, %p260
      %p262 = scmp.ne.s32.totalorder %s254, %s256
      %p263 = scmp.eq.s32.totalorder %s42, 1
      %p264 = por %p262, %p263
      %p265 = scmp.ne.s32.totalorder %s256, %s257
      %p266 = scmp.eq.s32.totalorder %s42, 0
      %p267 = por %p265, %p266
      %p268 = scmp.ne.s32.totalorder %s256, %s257
      %p269 = scmp.eq.s32.totalorder %s43, 1
      %p270 = por %p268, %p269
      %p272 = scmp.ne.s32.totalorder %s257, %s271
      %p273 = scmp.eq.s32.totalorder %s43, 0
      %p274 = por %p272, %p273
      %s276 = sadd.s32 %s275, 1
      %p279 = scmp.eq.s32.totalorder %s37, 1
      %p280 = scmp.ne.s32.totalorder %s275, %s277
      %p281 = scmp.eq.s32.totalorder %s37, 0
      %p282 = por %p280, %p281
      %p283 = scmp.ne.s32.totalorder %s275, %s277
      %p284 = scmp.eq.s32.totalorder %s42, 1
      %p285 = por %p283, %p284
      %p286 = scmp.ne.s32.totalorder %s277, %s278
      %p287 = scmp.eq.s32.totalorder %s42, 0
      %p288 = por %p286, %p287
      %p289 = scmp.ne.s32.totalorder %s277, %s278
      %p290 = scmp.eq.s32.totalorder %s43, 1
      %p291 = por %p289, %p290
      %p293 = scmp.ne.s32.totalorder %s278, %s292
      %p294 = scmp.eq.s32.totalorder %s43, 0
      %p295 = por %p293, %p294
      %s297 = sadd.s32 %s296, 1
      %p300 = scmp.eq.s32.totalorder %s37, 1
      %p301 = scmp.ne.s32.totalorder %s296, %s298
      %p302 = scmp.eq.s32.totalorder %s37, 0
      %p303 = por %p301, %p302
      %p304 = scmp.ne.s32.totalorder %s296, %s298
      %p305 = scmp.eq.s32.totalorder %s42, 1
      %p306 = por %p304, %p305
      %p307 = scmp.ne.s32.totalorder %s298, %s299
      %p308 = scmp.eq.s32.totalorder %s42, 0
      %p309 = por %p307, %p308
      %p310 = scmp.ne.s32.totalorder %s298, %s299
      %p311 = scmp.eq.s32.totalorder %s43, 1
      %p312 = por %p310, %p311
      %p314 = scmp.ne.s32.totalorder %s299, %s313
      %p315 = scmp.eq.s32.totalorder %s43, 0
      %p316 = por %p314, %p315
      %s318 = sadd.s32 %s317, 1
      %p321 = scmp.eq.s32.totalorder %s37, 1
      %p322 = scmp.ne.s32.totalorder %s317, %s319
      %p323 = scmp.eq.s32.totalorder %s37, 0
      %p324 = por %p322, %p323
      %p325 = scmp.ne.s32.totalorder %s317, %s319
      %p326 = scmp.eq.s32.totalorder %s42, 1
      %p327 = por %p325, %p326
      %p328 = scmp.ne.s32.totalorder %s319, %s320
      %p329 = scmp.eq.s32.totalorder %s42, 0
      %p330 = por %p328, %p329
      %p331 = scmp.ne.s32.totalorder %s319, %s320
      %p332 = scmp.eq.s32.totalorder %s43, 1
      %p333 = por %p331, %p332
      %p335 = scmp.ne.s32.totalorder %s320, %s334
      %p336 = scmp.eq.s32.totalorder %s43, 0
      %p337 = por %p335, %p336
      %s339 = sadd.s32 %s338, 1
      %p342 = scmp.eq.s32.totalorder %s37, 1
      %p343 = scmp.ne.s32.totalorder %s338, %s340
      %p344 = scmp.eq.s32.totalorder %s37, 0
      %p345 = por %p343, %p344
      %p346 = scmp.ne.s32.totalorder %s338, %s340
      %p347 = scmp.eq.s32.totalorder %s42, 1
      %p348 = por %p346, %p347
      %p349 = scmp.ne.s32.totalorder %s340, %s341
      %p350 = scmp.eq.s32.totalorder %s42, 0
      %p351 = por %p349, %p350
      %p352 = scmp.ne.s32.totalorder %s340, %s341
      %p353 = scmp.eq.s32.totalorder %s43, 1
      %p354 = por %p352, %p353
      %p356 = scmp.ne.s32.totalorder %s341, %s355
      %p357 = scmp.eq.s32.totalorder %s43, 0
      %p358 = por %p356, %p357
      %s360 = sadd.s32 %s359, 1
      %p363 = scmp.eq.s32.totalorder %s37, 1
      %p364 = scmp.ne.s32.totalorder %s359, %s361
      %p365 = scmp.eq.s32.totalorder %s37, 0
      %p366 = por %p364, %p365
      %p367 = scmp.ne.s32.totalorder %s359, %s361
      %p368 = scmp.eq.s32.totalorder %s42, 1
      %p369 = por %p367, %p368
      %p370 = scmp.ne.s32.totalorder %s361, %s362
      %p371 = scmp.eq.s32.totalorder %s42, 0
      %p372 = por %p370, %p371
      %p373 = scmp.ne.s32.totalorder %s361, %s362
      %p374 = scmp.eq.s32.totalorder %s43, 1
      %p375 = por %p373, %p374
      %p377 = scmp.ne.s32.totalorder %s362, %s376
      %p378 = scmp.eq.s32.totalorder %s43, 0
      %p379 = por %p377, %p378
      %s381 = sadd.s32 %s380, 1
      %p384 = scmp.eq.s32.totalorder %s37, 1
      %p385 = scmp.ne.s32.totalorder %s380, %s382
      %p386 = scmp.eq.s32.totalorder %s37, 0
      %p387 = por %p385, %p386
      %p388 = scmp.ne.s32.totalorder %s380, %s382
      %p389 = scmp.eq.s32.totalorder %s42, 1
      %p390 = por %p388, %p389
      %p391 = scmp.ne.s32.totalorder %s382, %s383
      %p392 = scmp.eq.s32.totalorder %s42, 0
      %p393 = por %p391, %p392
      %p394 = scmp.ne.s32.totalorder %s382, %s383
      %p395 = scmp.eq.s32.totalorder %s43, 1
      %p396 = por %p394, %p395
      %p398 = scmp.ne.s32.totalorder %s383, %s397
      %p399 = scmp.eq.s32.totalorder %s43, 0
      %p400 = por %p398, %p399
      %s402 = sadd.s32 %s401, 1
      %p405 = scmp.eq.s32.totalorder %s37, 1
      %p406 = scmp.ne.s32.totalorder %s401, %s403
      %p407 = scmp.eq.s32.totalorder %s37, 0
      %p408 = por %p406, %p407
      %p409 = scmp.ne.s32.totalorder %s401, %s403
      %p410 = scmp.eq.s32.totalorder %s42, 1
      %p411 = por %p409, %p410
      %p412 = scmp.ne.s32.totalorder %s403, %s404
      %p413 = scmp.eq.s32.totalorder %s42, 0
      %p414 = por %p412, %p413
      %p415 = scmp.ne.s32.totalorder %s403, %s404
      %p416 = scmp.eq.s32.totalorder %s43, 1
      %p417 = por %p415, %p416
      %p419 = scmp.ne.s32.totalorder %s404, %s418
      %p420 = scmp.eq.s32.totalorder %s43, 0
      %p421 = por %p419, %p420
      %s422 = ssub.s32 %s37, %s44
      %p423 = scmp.eq.s32.totalorder %s422, 0
      %s425 = sadd.s32 %s424, 1
      %s426 = scalar_select %p423, %s424, %s425
      %p429 = pneg %p423
      %p430 = scmp.eq.s32.totalorder %s37, 1
      %p431 = por %p429, %p430
      %p432 = scmp.ne.s32.totalorder %s424, %s427
      %p433 = scmp.eq.s32.totalorder %s37, 0
      %p434 = por %p432, %p433
      %p435 = scmp.ne.s32.totalorder %s424, %s427
      %p436 = scmp.eq.s32.totalorder %s42, 1
      %p437 = por %p435, %p436
      %p438 = scmp.ne.s32.totalorder %s427, %s428
      %p439 = scmp.eq.s32.totalorder %s42, 0
      %p440 = por %p438, %p439
      %p441 = scmp.ne.s32.totalorder %s427, %s428
      %p442 = scmp.eq.s32.totalorder %s43, 1
      %p443 = por %p441, %p442
      %p445 = scmp.ne.s32.totalorder %s428, %s444
      %p446 = scmp.eq.s32.totalorder %s43, 0
      %p447 = por %p445, %p446
      %p448 = scmp.le.s32.totalorder 1, %s37
      %p449 = scmp.lt.s32.totalorder %s37, 3
      %p450 = pnand %p448, %p449
      %p451 = pneg %p450
      // Predicated region
      $region9: #{tpu_custom_call.1} parent=5 // pred_check
        _
      $region10: #{tpu_custom_call.1} parent=5 // pred_check_branch
        %453 = sbr.rel (%p450) target = $region12
      $region11: #{tpu_custom_call.1} parent=5 // pred_region
        %s454 = ssub.s32 %s37, 1
        // Predicated region
        $region13: #{tpu_custom_call.1} parent=11 // pred_check
          %p455 = pneg %p162
        $region14: #{tpu_custom_call.1} parent=11 // pred_check_branch
          %457 = sbr.rel (%p455) target = $region16
        $region15: #{tpu_custom_call.1} parent=11 // pred_region
          _
        $region16: #{tpu_custom_call.1} parent=11 // pred_fallthru
          _
        // Predicated region
        $region17: #{tpu_custom_call.1} parent=11 // pred_check
          %p458 = pneg %p183
        $region18: #{tpu_custom_call.1} parent=11 // pred_check_branch
          %460 = sbr.rel (%p458) target = $region20
        $region19: #{tpu_custom_call.1} parent=11 // pred_region
          _
        $region20: #{tpu_custom_call.1} parent=11 // pred_fallthru
          _
        // Predicated region
        $region21: #{tpu_custom_call.1} parent=11 // pred_check
          %p461 = pneg %p204
        $region22: #{tpu_custom_call.1} parent=11 // pred_check_branch
          %463 = sbr.rel (%p461) target = $region24
        $region23: #{tpu_custom_call.1} parent=11 // pred_region
          _
        $region24: #{tpu_custom_call.1} parent=11 // pred_fallthru
          _
        // Predicated region
        $region25: #{tpu_custom_call.1} parent=11 // pred_check
          %p464 = pneg %p225
        $region26: #{tpu_custom_call.1} parent=11 // pred_check_branch
          %466 = sbr.rel (%p464) target = $region28
        $region27: #{tpu_custom_call.1} parent=11 // pred_region
          _
        $region28: #{tpu_custom_call.1} parent=11 // pred_fallthru
          _
        // Predicated region
        $region29: #{tpu_custom_call.1} parent=11 // pred_check
          %p467 = pneg %p246
        $region30: #{tpu_custom_call.1} parent=11 // pred_check_branch
          %469 = sbr.rel (%p467) target = $region32
        $region31: #{tpu_custom_call.1} parent=11 // pred_region
          %s471 = ssub.s32 1024, 1024
          %472 = vsyncadd [#allocation9], %s471
          %s473 = sshll.u32 [#allocation10], 4
          %s474 = int_to_ptr.vmem [resolvable:$true] %s473
          %479 = dma.hbm_to_vmem [thread:$0]  %s8, 1024, %s474, [#allocation9], 128, 128, 8
        $region32: #{tpu_custom_call.1} parent=11 // pred_fallthru
          _
        // Predicated region
        $region33: #{tpu_custom_call.1} parent=11 // pred_check
          %p480 = pneg %p267
        $region34: #{tpu_custom_call.1} parent=11 // pred_check_branch
          %482 = sbr.rel (%p480) target = $region36
        $region35: #{tpu_custom_call.1} parent=11 // pred_region
          %s484 = ssub.s32 1024, 1024
          %485 = vsyncadd [#allocation12], %s484
          %s486 = sshll.u32 [#allocation11], 4
          %s487 = int_to_ptr.vmem [resolvable:$true] %s486
          %492 = dma.hbm_to_vmem [thread:$0]  %s9, 1024, %s487, [#allocation12], 128, 128, 8
        $region36: #{tpu_custom_call.1} parent=11 // pred_fallthru
          _
        // Predicated region
        $region37: #{tpu_custom_call.1} parent=11 // pred_check
          %p493 = pneg %p288
        $region38: #{tpu_custom_call.1} parent=11 // pred_check_branch
          %495 = sbr.rel (%p493) target = $region40
        $region39: #{tpu_custom_call.1} parent=11 // pred_region
          %s497 = ssub.s32 1024, 1024
          %498 = vsyncadd [#allocation12], %s497
          %s499 = sshll.u32 [#allocation13], 4
          %s500 = int_to_ptr.vmem [resolvable:$true] %s499
          %505 = dma.hbm_to_vmem [thread:$0]  %s10, 1024, %s500, [#allocation12], 128, 128, 8
        $region40: #{tpu_custom_call.1} parent=11 // pred_fallthru
          _
        // Predicated region
        $region41: #{tpu_custom_call.1} parent=11 // pred_check
          %p506 = pneg %p309
        $region42: #{tpu_custom_call.1} parent=11 // pred_check_branch
          %508 = sbr.rel (%p506) target = $region44
        $region43: #{tpu_custom_call.1} parent=11 // pred_region
          %s510 = ssub.s32 1024, 1024
          %511 = vsyncadd [#allocation15], %s510
          %s512 = sshll.u32 [#allocation14], 4
          %s513 = int_to_ptr.vmem [resolvable:$true] %s512
          %518 = dma.hbm_to_vmem [thread:$0]  %s11, 1024, %s513, [#allocation15], 128, 128, 8
        $region44: #{tpu_custom_call.1} parent=11 // pred_fallthru
          _
        // Predicated region
        $region45: #{tpu_custom_call.1} parent=11 // pred_check
          %p519 = pneg %p330
        $region46: #{tpu_custom_call.1} parent=11 // pred_check_branch
          %521 = sbr.rel (%p519) target = $region48
        $region47: #{tpu_custom_call.1} parent=11 // pred_region
          _
        $region48: #{tpu_custom_call.1} parent=11 // pred_fallthru
          _
        // Predicated region
        $region49: #{tpu_custom_call.1} parent=11 // pred_check
          %p522 = pneg %p351
        $region50: #{tpu_custom_call.1} parent=11 // pred_check_branch
          %524 = sbr.rel (%p522) target = $region52
        $region51: #{tpu_custom_call.1} parent=11 // pred_region
          _
        $region52: #{tpu_custom_call.1} parent=11 // pred_fallthru
          _
        // Predicated region
        $region53: #{tpu_custom_call.1} parent=11 // pred_check
          %p525 = pneg %p372
        $region54: #{tpu_custom_call.1} parent=11 // pred_check_branch
          %527 = sbr.rel (%p525) target = $region56
        $region55: #{tpu_custom_call.1} parent=11 // pred_region
          _
        $region56: #{tpu_custom_call.1} parent=11 // pred_fallthru
          _
        // Predicated region
        $region57: #{tpu_custom_call.1} parent=11 // pred_check
          %p528 = pneg %p393
        $region58: #{tpu_custom_call.1} parent=11 // pred_check_branch
          %530 = sbr.rel (%p528) target = $region60
        $region59: #{tpu_custom_call.1} parent=11 // pred_region
          _
        $region60: #{tpu_custom_call.1} parent=11 // pred_fallthru
          _
        // Predicated region
        $region61: #{tpu_custom_call.1} parent=11 // pred_check
          %p531 = pneg %p414
        $region62: #{tpu_custom_call.1} parent=11 // pred_check_branch
          %533 = sbr.rel (%p531) target = $region64
        $region63: #{tpu_custom_call.1} parent=11 // pred_region
          _
        $region64: #{tpu_custom_call.1} parent=11 // pred_fallthru
          _
      $region12: #{tpu_custom_call.1} parent=5 // pred_fallthru
        _
      %p534 = scmp.lt.s32.totalorder %s37, 2
      // Predicated region
      $region65: #{tpu_custom_call.1} parent=5 // pred_check
        %p535 = pneg %p534
      $region66: #{tpu_custom_call.1} parent=5 // pred_check_branch
        %537 = sbr.rel (%p535) target = $region68
      $region67: #{tpu_custom_call.1} parent=5 // pred_region
        // Predicated region
        $region69: #{tpu_custom_call.1} parent=67 // pred_check
          %p538 = pneg %p57
        $region70: #{tpu_custom_call.1} parent=67 // pred_check_branch
          %540 = sbr.rel (%p538) target = $region72
        $region71: #{tpu_custom_call.1} parent=67 // pred_region
          %s541 = sand.u32 %s47, 1
          %s542 = scalar_lea.sflag [#allocation3], %s541
          %s543 = sand.u32 %s47, 1
          %s544 = smul.addr %s543, 8
          %s545 = scalar_lea.vmem [#allocation2], %s544
          %s547 = ssub.s32 128, 128
          %548 = vsyncadd %s542, %s547
          %s549 = smul.addr %s37, 128
          %s550 = scalar_lea.hbm %s0, %s549
          %s552 = sshll.u32 %s545, 4
          %s553 = int_to_ptr.vmem [resolvable:$true] %s552
          %555 = dma.hbm_to_vmem [thread:$0]  %s550, 128, %s553, %s542
        $region72: #{tpu_custom_call.1} parent=67 // pred_fallthru
          _
        // Predicated region
        $region73: #{tpu_custom_call.1} parent=67 // pred_check
          %p556 = pneg %p83
        $region74: #{tpu_custom_call.1} parent=67 // pred_check_branch
          %558 = sbr.rel (%p556) target = $region76
        $region75: #{tpu_custom_call.1} parent=67 // pred_region
          %s559 = sand.u32 %s37, 1
          %s560 = scalar_lea.sflag [#allocation6], %s559
          %s561 = sand.u32 %s73, 1
          %s562 = smul.addr %s561, 8
          %s563 = scalar_lea.vmem [#allocation5], %s562
          %s565 = ssub.s32 128, 128
          %566 = vsyncadd %s560, %s565
          %s567 = smul.addr %s37, 128
          %s568 = scalar_lea.hbm %s1, %s567
          %s570 = sshll.u32 %s563, 4
          %s571 = int_to_ptr.vmem [resolvable:$true] %s570
          %573 = dma.hbm_to_vmem [thread:$0]  %s568, 128, %s571, %s560
        $region76: #{tpu_custom_call.1} parent=67 // pred_fallthru
          _
        // Predicated region
        $region77: #{tpu_custom_call.1} parent=67 // pred_check
          %p574 = pneg %p109
        $region78: #{tpu_custom_call.1} parent=67 // pred_check_branch
          %576 = sbr.rel (%p574) target = $region80
        $region79: #{tpu_custom_call.1} parent=67 // pred_region
          %s577 = sand.u32 %s37, 1
          %s578 = scalar_lea.sflag [#allocation6], %s577
          %s579 = sand.u32 %s99, 1
          %s580 = smul.addr %s579, 16
          %s581 = scalar_lea.vmem [#allocation7], %s580
          %s583 = ssub.s32 256, 256
          %584 = vsyncadd %s578, %s583
          %s585 = smul.addr %s37, 2
          %s586 = smul.addr %s585, 128
          %s587 = scalar_lea.hbm %s2, %s586
          %s588 = sshll.u32 %s581, 4
          %s589 = int_to_ptr.vmem [resolvable:$true] %s588
          %594 = dma.hbm_to_vmem [thread:$0]  %s587, 256, %s589, %s578, 128, 128, 8
        $region80: #{tpu_custom_call.1} parent=67 // pred_fallthru
          _
        // Predicated region
        $region81: #{tpu_custom_call.1} parent=67 // pred_check
          %p595 = pneg %p135
        $region82: #{tpu_custom_call.1} parent=67 // pred_check_branch
          %597 = sbr.rel (%p595) target = $region84
        $region83: #{tpu_custom_call.1} parent=67 // pred_region
          %s598 = sand.u32 %s37, 1
          %s599 = scalar_lea.sflag [#allocation9], %s598
          %s600 = sand.u32 %s125, 1
          %s601 = smul.addr %s600, 16
          %s602 = scalar_lea.vmem [#allocation8], %s601
          %s604 = ssub.s32 256, 256
          %605 = vsyncadd %s599, %s604
          %s606 = smul.addr %s37, 2
          %s607 = smul.addr %s606, 128
          %s608 = scalar_lea.hbm %s3, %s607
          %s609 = sshll.u32 %s602, 4
          %s610 = int_to_ptr.vmem [resolvable:$true] %s609
          %615 = dma.hbm_to_vmem [thread:$0]  %s608, 256, %s610, %s599, 128, 128, 8
        $region84: #{tpu_custom_call.1} parent=67 // pred_fallthru
          _
      $region68: #{tpu_custom_call.1} parent=5 // pred_fallthru
        _
      %p616 = scmp.le.s32.totalorder 1, %s37
      %p617 = scmp.lt.s32.totalorder %s37, 3
      %p618 = pnand %p616, %p617
      %p619 = pneg %p618
      // Predicated region
      $region85: #{tpu_custom_call.1} parent=5 // pred_check
        _
      $region86: #{tpu_custom_call.1} parent=5 // pred_check_branch
        %621 = sbr.rel (%p618) target = $region88
      $region87: #{tpu_custom_call.1} parent=5 // pred_region
        %s622 = ssub.s32 %s37, 1
        %s623 = sand.u32 %s50, 1
        %s624 = scalar_lea.sflag [#allocation3], %s623
        %s625 = sand.u32 %s50, 1
        %s626 = smul.addr %s625, 8
        %s627 = scalar_lea.vmem [#allocation2], %s626
        // Predicated region
        $region89: #{tpu_custom_call.1} parent=87 // pred_check
          %p628 = pneg %p63
        $region90: #{tpu_custom_call.1} parent=87 // pred_check_branch
          %630 = sbr.rel (%p628) target = $region92
        $region91: #{tpu_custom_call.1} parent=87 // pred_region
          %631 = dma.done %s624, 128
        $region92: #{tpu_custom_call.1} parent=87 // pred_fallthru
          _
        %s632 = sand.u32 %s42, 1
        %s633 = scalar_lea.sflag [#allocation6], %s632
        %s634 = sand.u32 %s76, 1
        %s635 = smul.addr %s634, 8
        %s636 = scalar_lea.vmem [#allocation5], %s635
        // Predicated region
        $region93: #{tpu_custom_call.1} parent=87 // pred_check
          %p637 = pneg %p89
        $region94: #{tpu_custom_call.1} parent=87 // pred_check_branch
          %639 = sbr.rel (%p637) target = $region96
        $region95: #{tpu_custom_call.1} parent=87 // pred_region
          %640 = dma.done %s633, 128
        $region96: #{tpu_custom_call.1} parent=87 // pred_fallthru
          _
        %s641 = sand.u32 %s42, 1
        %s642 = scalar_lea.sflag [#allocation6], %s641
        %s643 = sand.u32 %s102, 1
        %s644 = smul.addr %s643, 16
        %s645 = scalar_lea.vmem [#allocation7], %s644
        // Predicated region
        $region97: #{tpu_custom_call.1} parent=87 // pred_check
          %p646 = pneg %p115
        $region98: #{tpu_custom_call.1} parent=87 // pred_check_branch
          %648 = sbr.rel (%p646) target = $region100
        $region99: #{tpu_custom_call.1} parent=87 // pred_region
          %649 = dma.done %s642, 256
        $region100: #{tpu_custom_call.1} parent=87 // pred_fallthru
          _
        %s650 = sand.u32 %s42, 1
        %s651 = scalar_lea.sflag [#allocation9], %s650
        %s652 = sand.u32 %s128, 1
        %s653 = smul.addr %s652, 16
        %s654 = scalar_lea.vmem [#allocation8], %s653
        // Predicated region
        $region101: #{tpu_custom_call.1} parent=87 // pred_check
          %p655 = pneg %p141
        $region102: #{tpu_custom_call.1} parent=87 // pred_check_branch
          %657 = sbr.rel (%p655) target = $region104
        $region103: #{tpu_custom_call.1} parent=87 // pred_region
          %658 = dma.done %s651, 256
        $region104: #{tpu_custom_call.1} parent=87 // pred_fallthru
          _
        // Predicated region
        $region105: #{tpu_custom_call.1} parent=87 // pred_check
          %p659 = pneg %p246
        $region106: #{tpu_custom_call.1} parent=87 // pred_check_branch
          %661 = sbr.rel (%p659) target = $region108
        $region107: #{tpu_custom_call.1} parent=87 // pred_region
          %662 = dma.done [#allocation9], 1024
        $region108: #{tpu_custom_call.1} parent=87 // pred_fallthru
          _
        // Predicated region
        $region109: #{tpu_custom_call.1} parent=87 // pred_check
          %p663 = pneg %p267
        $region110: #{tpu_custom_call.1} parent=87 // pred_check_branch
          %665 = sbr.rel (%p663) target = $region112
        $region111: #{tpu_custom_call.1} parent=87 // pred_region
          %666 = dma.done [#allocation12], 1024
        $region112: #{tpu_custom_call.1} parent=87 // pred_fallthru
          _
        // Predicated region
        $region113: #{tpu_custom_call.1} parent=87 // pred_check
          %p667 = pneg %p288
        $region114: #{tpu_custom_call.1} parent=87 // pred_check_branch
          %669 = sbr.rel (%p667) target = $region116
        $region115: #{tpu_custom_call.1} parent=87 // pred_region
          %670 = dma.done [#allocation12], 1024
        $region116: #{tpu_custom_call.1} parent=87 // pred_fallthru
          _
        // Predicated region
        $region117: #{tpu_custom_call.1} parent=87 // pred_check
          %p671 = pneg %p309
        $region118: #{tpu_custom_call.1} parent=87 // pred_check_branch
          %673 = sbr.rel (%p671) target = $region120
        $region119: #{tpu_custom_call.1} parent=87 // pred_region
          %674 = dma.done [#allocation15], 1024
        $region120: #{tpu_custom_call.1} parent=87 // pred_fallthru
          _
        %s675 = sand.u32 %s50, 1
        %s676 = scalar_lea.sflag [#allocation3], %s675
        %s677 = sand.u32 %s50, 1
        %s678 = smul.addr %s677, 8
        %s679 = scalar_lea.vmem [#allocation2], %s678
        %p680 = pneg %p63
        %p681 = pneg %p60
        %s682 = sand.u32 %s42, 1
        %s683 = scalar_lea.sflag [#allocation6], %s682
        %s684 = sand.u32 %s76, 1
        %s685 = smul.addr %s684, 8
        %s686 = scalar_lea.vmem [#allocation5], %s685
        %p687 = pneg %p89
        %p688 = pneg %p86
        %s689 = sand.u32 %s42, 1
        %s690 = scalar_lea.sflag [#allocation6], %s689
        %s691 = sand.u32 %s102, 1
        %s692 = smul.addr %s691, 16
        %s693 = scalar_lea.vmem [#allocation7], %s692
        %p694 = pneg %p115
        %p695 = pneg %p112
        %s696 = sand.u32 %s42, 1
        %s697 = scalar_lea.sflag [#allocation9], %s696
        %s698 = sand.u32 %s128, 1
        %s699 = smul.addr %s698, 16
        %s700 = scalar_lea.vmem [#allocation8], %s699
        %p701 = pneg %p141
        %p702 = pneg %p138
        %p703 = pneg %p162
        %p704 = pneg %p159
        %p705 = pneg %p183
        %p706 = pneg %p180
        %p707 = pneg %p204
        %p708 = pneg %p201
        %p709 = pneg %p225
        %p710 = pneg %p222
        %p711 = pneg %p246
        %p712 = pneg %p243
        %p713 = pneg %p267
        %p714 = pneg %p264
        %p715 = pneg %p288
        %p716 = pneg %p285
        %p717 = pneg %p309
        %p718 = pneg %p306
        %p719 = pneg %p330
        %p720 = pneg %p327
        %p721 = pneg %p351
        %p722 = pneg %p348
        %p723 = pneg %p372
        %p724 = pneg %p369
        %p725 = pneg %p393
        %p726 = pneg %p390
        %p727 = pneg %p414
        %p728 = pneg %p411
        %p729 = pneg %p440
        %p730 = pneg %p437
        %s731 = sand.u32 %s427, 1
        %s732 = scalar_lea.sflag [#allocation4], %s731
        %s733 = sand.u32 %s427, 1
        %s734 = smul.addr %s733, 8
        %s735 = scalar_lea.vmem [#allocation16], %s734
        %v736 = vld [vmem:[%s627] sm:$0xff]
        %v737 = vld [vmem:[%s636] sm:$0xff]
        %v738 = vld [vmem:[%s645] sm:$0xff]
        %v739 = vld [vmem:[%s645 + $0x8] sm:$0xff]
        %v740 = vld [vmem:[%s654] sm:$0xff]
        %v741 = vld [vmem:[%s654 + $0x8] sm:$0xff]
        %v742 = vld [vmem:[%s15] sm:$0xff]
        %v743 = vld [vmem:[%s15 + $0x8] sm:$0x1f]
        %v744 = vadd.f32 %v736, %v737
        %v745 = vld [vmem:[%s4] sm:$0xff]
        %v746 = vld [vmem:[%s4 + $0x8] sm:$0xff]
        %v747 = vld [vmem:[%s4 + $0x10] sm:$0xff]
        %v748 = vld [vmem:[%s4 + $0x18] sm:$0xff]
        %v749 = vld [vmem:[%s13] sm:$0x1]
        %v751 = vlaneseq
        %v752 = vshrl.u32 %v751, 7
        %v753 = vsub.s32 0, %v752
        %v754 = vrot.slane %v749, %v753
        %vm756 = vcmask 261120
        %v758 = vsel %vm756, %v744, 0
        %760 = vmatprep.subr.mxu0 0.0
        %761 = vmatpush1.msra.mxu0 0.0
        %762 = vmatprep.subr.mxu0 0.0
        %763 = vmatpush1.msra.mxu0 0.0
        %764 = vmatprep.subr.mxu0 0.0
        %765 = vmatpush1.msra.mxu0 0.0
        %766 = vmatprep.subr.mxu0 0.0
        %767 = vmatpush1.msra.mxu0 0.0
        %768 = vmatprep.subr.mxu0 0.0
        %769 = vmatpush1.msra.mxu0 0.0
        %770 = vmatprep.subr.mxu0 0.0
        %771 = vmatpush1.msra.mxu0 0.0
        %772 = vmatprep.subr.mxu0 0.0
        %773 = vmatpush1.msra.mxu0 0.0
        %774 = vmatprep.subr.mxu0 0.0
        %775 = vmatpush1.msra.mxu0 0.0
        %776 = vmatprep.subr.mxu0 0.0
        %777 = vmatpush1.msra.mxu0 0.0
        %778 = vmatprep.subr.mxu0 0.0
        %779 = vmatpush1.msra.mxu0 0.0
        %780 = vmatprep.subr.mxu0 0.0
        %781 = vmatpush1.msra.mxu0 0.0
        %782 = vmatprep.subr.mxu0 0.0
        %783 = vmatpush1.msra.mxu0 0.0
        %784 = vmatprep.subr.mxu0 0.0
        %785 = vmatpush1.msra.mxu0 %v748
        %786 = vmatprep.subr.mxu0 0.0
        %787 = vmatpush1.msra.mxu0 %v747
        %788 = vmatprep.subr.mxu0 0.0
        %789 = vmatpush1.msra.mxu0 %v746
        %790 = vmatprep.subr.mxu0 0.0
        %791 = vmatpush1.msra.mxu0 %v745
        %792 = vmatprep.subr.mxu0 0.0
        %793 = vmatpush2.msra.mxu0 0.0
        %794 = vmatprep.subr.mxu0 0.0
        %795 = vmatpush2.msra.mxu0 0.0
        %796 = vmatprep.subr.mxu0 0.0
        %797 = vmatpush2.msra.mxu0 0.0
        %798 = vmatprep.subr.mxu0 0.0
        %799 = vmatpush2.msra.mxu0 0.0
        %800 = vmatprep.subr.mxu0 0.0
        %801 = vmatpush2.msra.mxu0 0.0
        %802 = vmatprep.subr.mxu0 0.0
        %803 = vmatpush2.msra.mxu0 0.0
        %804 = vmatprep.subr.mxu0 0.0
        %805 = vmatpush2.msra.mxu0 0.0
        %806 = vmatprep.subr.mxu0 0.0
        %807 = vmatpush2.msra.mxu0 0.0
        %808 = vmatprep.subr.mxu0 0.0
        %809 = vmatpush2.msra.mxu0 0.0
        %810 = vmatprep.subr.mxu0 0.0
        %811 = vmatpush2.msra.mxu0 0.0
        %812 = vmatprep.subr.mxu0 0.0
        %813 = vmatpush2.msra.mxu0 0.0
        %814 = vmatprep.subr.mxu0 0.0
        %815 = vmatpush2.msra.mxu0 0.0
        %816 = vmatprep.subr.mxu0 0.0
        %817 = vmatpush2.msra.mxu0 0.0
        %818 = vmatprep.subr.mxu0 0.0
        %819 = vmatpush2.msra.mxu0 0.0
        %820 = vmatprep.subr.mxu0 0.0
        %821 = vmatpush2.msra.mxu0 0.0
        %822 = vmatprep.subr.mxu0 0.0
        %823 = vmatpush2.msra.mxu0 0.0
        %824 = vmatprep.mubr.f32.mxu0 0.0
        %825 = vmatmul.mubr.f32.gmra.mxu0 %v758
        %v826 = vpop.f32.mrf.mxu0
        %v827 = vadd.f32 %v754, %v826
        %v828 = vpop.f32.mrf.mxu0
        %829 = vdwg.mxu0
        %v830 = vld [vmem:[%s5] sm:$0xff]
        %v831 = vld [vmem:[%s5 + $0x8] sm:$0xff]
        %v832 = vld [vmem:[%s5 + $0x10] sm:$0xff]
        %v833 = vld [vmem:[%s5 + $0x18] sm:$0xff]
        %v834 = vlaneseq
        %v835 = vshrl.u32 %v834, 7
        %v836 = vsub.s32 0, %v835
        %v837 = vrot.slane %v742, %v836
        %v839 = vsel %vm756, %v736, 0
        %841 = vmatprep.subr.mxu0 0.0
        %842 = vmatpush1.msra.mxu0 0.0
        %843 = vmatprep.subr.mxu0 0.0
        %844 = vmatpush1.msra.mxu0 0.0
        %845 = vmatprep.subr.mxu0 0.0
        %846 = vmatpush1.msra.mxu0 0.0
        %847 = vmatprep.subr.mxu0 0.0
        %848 = vmatpush1.msra.mxu0 0.0
        %849 = vmatprep.subr.mxu0 0.0
        %850 = vmatpush1.msra.mxu0 0.0
        %851 = vmatprep.subr.mxu0 0.0
        %852 = vmatpush1.msra.mxu0 0.0
        %853 = vmatprep.subr.mxu0 0.0
        %854 = vmatpush1.msra.mxu0 0.0
        %855 = vmatprep.subr.mxu0 0.0
        %856 = vmatpush1.msra.mxu0 0.0
        %857 = vmatprep.subr.mxu0 0.0
        %858 = vmatpush1.msra.mxu0 0.0
        %859 = vmatprep.subr.mxu0 0.0
        %860 = vmatpush1.msra.mxu0 0.0
        %861 = vmatprep.subr.mxu0 0.0
        %862 = vmatpush1.msra.mxu0 0.0
        %863 = vmatprep.subr.mxu0 0.0
        %864 = vmatpush1.msra.mxu0 0.0
        %865 = vmatprep.subr.mxu0 0.0
        %866 = vmatpush1.msra.mxu0 %v833
        %867 = vmatprep.subr.mxu0 0.0
        %868 = vmatpush1.msra.mxu0 %v832
        %869 = vmatprep.subr.mxu0 0.0
        %870 = vmatpush1.msra.mxu0 %v831
        %871 = vmatprep.subr.mxu0 0.0
        %872 = vmatpush1.msra.mxu0 %v830
        %873 = vmatprep.subr.mxu0 0.0
        %874 = vmatpush2.msra.mxu0 0.0
        %875 = vmatprep.subr.mxu0 0.0
        %876 = vmatpush2.msra.mxu0 0.0
        %877 = vmatprep.subr.mxu0 0.0
        %878 = vmatpush2.msra.mxu0 0.0
        %879 = vmatprep.subr.mxu0 0.0
        %880 = vmatpush2.msra.mxu0 0.0
        %881 = vmatprep.subr.mxu0 0.0
        %882 = vmatpush2.msra.mxu0 0.0
        %883 = vmatprep.subr.mxu0 0.0
        %884 = vmatpush2.msra.mxu0 0.0
        %885 = vmatprep.subr.mxu0 0.0
        %886 = vmatpush2.msra.mxu0 0.0
        %887 = vmatprep.subr.mxu0 0.0
        %888 = vmatpush2.msra.mxu0 0.0
        %889 = vmatprep.subr.mxu0 0.0
        %890 = vmatpush2.msra.mxu0 0.0
        %891 = vmatprep.subr.mxu0 0.0
        %892 = vmatpush2.msra.mxu0 0.0
        %893 = vmatprep.subr.mxu0 0.0
        %894 = vmatpush2.msra.mxu0 0.0
        %895 = vmatprep.subr.mxu0 0.0
        %896 = vmatpush2.msra.mxu0 0.0
        %897 = vmatprep.subr.mxu0 0.0
        %898 = vmatpush2.msra.mxu0 0.0
        %899 = vmatprep.subr.mxu0 0.0
        %900 = vmatpush2.msra.mxu0 0.0
        %901 = vmatprep.subr.mxu0 0.0
        %902 = vmatpush2.msra.mxu0 0.0
        %903 = vmatprep.subr.mxu0 0.0
        %904 = vmatpush2.msra.mxu0 0.0
        %905 = vmatprep.mubr.f32.mxu0 0.0
        %906 = vmatmul.mubr.f32.gmra.mxu0 %v839
        %v907 = vpop.f32.mrf.mxu0
        %v908 = vadd.f32 %v837, %v907
        %v909 = vpop.f32.mrf.mxu0
        %910 = vdwg.mxu0
        %v911 = vld [vmem:[%s6] sm:$0xff]
        %v912 = vld [vmem:[%s6 + $0x8] sm:$0xff]
        %v913 = vld [vmem:[%s6 + $0x10] sm:$0xff]
        %v914 = vld [vmem:[%s6 + $0x18] sm:$0xff]
        %916 = vrot.lane.b32.xlu0 %v827, 120
        %v917 = vpop.permute.xlu0 %916
        %918 = vrot.lane.b32.xlu0 %v827, 112
        %v919 = vpop.permute.xlu0 %918
        %920 = vrot.lane.b32.xlu0 %v827, 104
        %v921 = vpop.permute.xlu0 %920
        %923 = vrot.lane.b32.xlu0 %v908, 120
        %v924 = vpop.permute.xlu0 %923
        %926 = vrot.lane.b32.xlu0 %v908, 112
        %v927 = vpop.permute.xlu0 %926
        %929 = vrot.lane.b32.xlu0 %v908, 104
        %v930 = vpop.permute.xlu0 %929
        %932 = vrot.lane.b32.xlu0 %v827, 96
        %v933 = vpop.permute.xlu0 %932
        %vm934 = vcmask 64512
        %v935 = vsel %vm934, %v827, 0
        %v937 = vsel %vm934, %v933, 0
        %939 = vmatprep.subr.mxu0 0.0
        %940 = vmatpush1.xpose.msra.mxu0 0.0
        %941 = vmatprep.subr.mxu0 0.0
        %942 = vmatpush1.xpose.msra.mxu0 0.0
        %943 = vmatprep.subr.mxu0 0.0
        %944 = vmatpush1.xpose.msra.mxu0 0.0
        %945 = vmatprep.subr.mxu0 0.0
        %946 = vmatpush1.xpose.msra.mxu0 0.0
        %947 = vmatprep.subr.mxu0 0.0
        %948 = vmatpush1.xpose.msra.mxu0 0.0
        %949 = vmatprep.subr.mxu0 0.0
        %950 = vmatpush1.xpose.msra.mxu0 0.0
        %951 = vmatprep.subr.mxu0 0.0
        %952 = vmatpush1.xpose.msra.mxu0 0.0
        %953 = vmatprep.subr.mxu0 0.0
        %954 = vmatpush1.xpose.msra.mxu0 0.0
        %955 = vmatprep.subr.mxu0 0.0
        %956 = vmatpush1.xpose.msra.mxu0 0.0
        %957 = vmatprep.subr.mxu0 0.0
        %958 = vmatpush1.xpose.msra.mxu0 0.0
        %959 = vmatprep.subr.mxu0 0.0
        %960 = vmatpush1.xpose.msra.mxu0 0.0
        %961 = vmatprep.subr.mxu0 0.0
        %962 = vmatpush1.xpose.msra.mxu0 0.0
        %963 = vmatprep.subr.mxu0 0.0
        %964 = vmatpush1.xpose.msra.mxu0 0.0
        %965 = vmatprep.subr.mxu0 0.0
        %966 = vmatpush1.xpose.msra.mxu0 0.0
        %967 = vmatprep.subr.mxu0 0.0
        %968 = vmatpush1.xpose.msra.mxu0 0.0
        %969 = vmatprep.subr.mxu0 0.0
        %970 = vmatpush1.xpose.msra.mxu0 %v937
        %971 = vmatprep.subr.mxu0 0.0
        %972 = vmatpush2.xpose.msra.mxu0 0.0
        %973 = vmatprep.subr.mxu0 0.0
        %974 = vmatpush2.xpose.msra.mxu0 0.0
        %975 = vmatprep.subr.mxu0 0.0
        %976 = vmatpush2.xpose.msra.mxu0 0.0
        %977 = vmatprep.subr.mxu0 0.0
        %978 = vmatpush2.xpose.msra.mxu0 0.0
        %979 = vmatprep.subr.mxu0 0.0
        %980 = vmatpush2.xpose.msra.mxu0 0.0
        %981 = vmatprep.subr.mxu0 0.0
        %982 = vmatpush2.xpose.msra.mxu0 0.0
        %983 = vmatprep.subr.mxu0 0.0
        %984 = vmatpush2.xpose.msra.mxu0 0.0
        %985 = vmatprep.subr.mxu0 0.0
        %986 = vmatpush2.xpose.msra.mxu0 0.0
        %987 = vmatprep.subr.mxu0 0.0
        %988 = vmatpush2.xpose.msra.mxu0 0.0
        %989 = vmatprep.subr.mxu0 0.0
        %990 = vmatpush2.xpose.msra.mxu0 0.0
        %991 = vmatprep.subr.mxu0 0.0
        %992 = vmatpush2.xpose.msra.mxu0 0.0
        %993 = vmatprep.subr.mxu0 0.0
        %994 = vmatpush2.xpose.msra.mxu0 0.0
        %995 = vmatprep.subr.mxu0 0.0
        %996 = vmatpush2.xpose.msra.mxu0 0.0
        %997 = vmatprep.subr.mxu0 0.0
        %998 = vmatpush2.xpose.msra.mxu0 0.0
        %999 = vmatprep.subr.mxu0 0.0
        %1000 = vmatpush2.xpose.msra.mxu0 0.0
        %1001 = vmatprep.subr.mxu0 0.0
        %1002 = vmatpush2.xpose.msra.mxu0 0.0
        %1003 = vmatprep.mubr.f32.mxu0 0.0
        %1004 = vmatmul.mubr.f32.gmra.mxu0 %v935
        %v1005 = vpop.f32.mrf.mxu0
        %v1006 = vadd.f32 0.0, %v1005
        %v1007 = vpop.f32.mrf.mxu0
        %1008 = vdwg.mxu0
        %1009 = vrot.lane.b32.xlu0 %v917, 96
        %v1010 = vpop.permute.xlu0 %1009
        %v1011 = vsel %vm934, %v917, 0
        %v1013 = vsel %vm934, %v1010, 0
        %1015 = vmatprep.subr.mxu0 0.0
        %1016 = vmatpush1.xpose.msra.mxu0 0.0
        %1017 = vmatprep.subr.mxu0 0.0
        %1018 = vmatpush1.xpose.msra.mxu0 0.0
        %1019 = vmatprep.subr.mxu0 0.0
        %1020 = vmatpush1.xpose.msra.mxu0 0.0
        %1021 = vmatprep.subr.mxu0 0.0
        %1022 = vmatpush1.xpose.msra.mxu0 0.0
        %1023 = vmatprep.subr.mxu0 0.0
        %1024 = vmatpush1.xpose.msra.mxu0 0.0
        %1025 = vmatprep.subr.mxu0 0.0
        %1026 = vmatpush1.xpose.msra.mxu0 0.0
        %1027 = vmatprep.subr.mxu0 0.0
        %1028 = vmatpush1.xpose.msra.mxu0 0.0
        %1029 = vmatprep.subr.mxu0 0.0
        %1030 = vmatpush1.xpose.msra.mxu0 0.0
        %1031 = vmatprep.subr.mxu0 0.0
        %1032 = vmatpush1.xpose.msra.mxu0 0.0
        %1033 = vmatprep.subr.mxu0 0.0
        %1034 = vmatpush1.xpose.msra.mxu0 0.0
        %1035 = vmatprep.subr.mxu0 0.0
        %1036 = vmatpush1.xpose.msra.mxu0 0.0
        %1037 = vmatprep.subr.mxu0 0.0
        %1038 = vmatpush1.xpose.msra.mxu0 0.0
        %1039 = vmatprep.subr.mxu0 0.0
        %1040 = vmatpush1.xpose.msra.mxu0 0.0
        %1041 = vmatprep.subr.mxu0 0.0
        %1042 = vmatpush1.xpose.msra.mxu0 0.0
        %1043 = vmatprep.subr.mxu0 0.0
        %1044 = vmatpush1.xpose.msra.mxu0 0.0
        %1045 = vmatprep.subr.mxu0 0.0
        %1046 = vmatpush1.xpose.msra.mxu0 %v1013
        %1047 = vmatprep.subr.mxu0 0.0
        %1048 = vmatpush2.xpose.msra.mxu0 0.0
        %1049 = vmatprep.subr.mxu0 0.0
        %1050 = vmatpush2.xpose.msra.mxu0 0.0
        %1051 = vmatprep.subr.mxu0 0.0
        %1052 = vmatpush2.xpose.msra.mxu0 0.0
        %1053 = vmatprep.subr.mxu0 0.0
        %1054 = vmatpush2.xpose.msra.mxu0 0.0
        %1055 = vmatprep.subr.mxu0 0.0
        %1056 = vmatpush2.xpose.msra.mxu0 0.0
        %1057 = vmatprep.subr.mxu0 0.0
        %1058 = vmatpush2.xpose.msra.mxu0 0.0
        %1059 = vmatprep.subr.mxu0 0.0
        %1060 = vmatpush2.xpose.msra.mxu0 0.0
        %1061 = vmatprep.subr.mxu0 0.0
        %1062 = vmatpush2.xpose.msra.mxu0 0.0
        %1063 = vmatprep.subr.mxu0 0.0
        %1064 = vmatpush2.xpose.msra.mxu0 0.0
        %1065 = vmatprep.subr.mxu0 0.0
        %1066 = vmatpush2.xpose.msra.mxu0 0.0
        %1067 = vmatprep.subr.mxu0 0.0
        %1068 = vmatpush2.xpose.msra.mxu0 0.0
        %1069 = vmatprep.subr.mxu0 0.0
        %1070 = vmatpush2.xpose.msra.mxu0 0.0
        %1071 = vmatprep.subr.mxu0 0.0
        %1072 = vmatpush2.xpose.msra.mxu0 0.0
        %1073 = vmatprep.subr.mxu0 0.0
        %1074 = vmatpush2.xpose.msra.mxu0 0.0
        %1075 = vmatprep.subr.mxu0 0.0
        %1076 = vmatpush2.xpose.msra.mxu0 0.0
        %1077 = vmatprep.subr.mxu0 0.0
        %1078 = vmatpush2.xpose.msra.mxu0 0.0
        %1079 = vmatprep.mubr.f32.mxu0 0.0
        %1080 = vmatmul.mubr.f32.gmra.mxu0 %v1011
        %v1081 = vpop.f32.mrf.mxu0
        %v1082 = vadd.f32 0.0, %v1081
        %v1083 = vpop.f32.mrf.mxu0
        %1084 = vdwg.mxu0
        %1085 = vrot.lane.b32.xlu0 %v919, 96
        %v1086 = vpop.permute.xlu0 %1085
        %v1087 = vsel %vm934, %v919, 0
        %v1089 = vsel %vm934, %v1086, 0
        %1091 = vmatprep.subr.mxu0 0.0
        %1092 = vmatpush1.xpose.msra.mxu0 0.0
        %1093 = vmatprep.subr.mxu0 0.0
        %1094 = vmatpush1.xpose.msra.mxu0 0.0
        %1095 = vmatprep.subr.mxu0 0.0
        %1096 = vmatpush1.xpose.msra.mxu0 0.0
        %1097 = vmatprep.subr.mxu0 0.0
        %1098 = vmatpush1.xpose.msra.mxu0 0.0
        %1099 = vmatprep.subr.mxu0 0.0
        %1100 = vmatpush1.xpose.msra.mxu0 0.0
        %1101 = vmatprep.subr.mxu0 0.0
        %1102 = vmatpush1.xpose.msra.mxu0 0.0
        %1103 = vmatprep.subr.mxu0 0.0
        %1104 = vmatpush1.xpose.msra.mxu0 0.0
        %1105 = vmatprep.subr.mxu0 0.0
        %1106 = vmatpush1.xpose.msra.mxu0 0.0
        %1107 = vmatprep.subr.mxu0 0.0
        %1108 = vmatpush1.xpose.msra.mxu0 0.0
        %1109 = vmatprep.subr.mxu0 0.0
        %1110 = vmatpush1.xpose.msra.mxu0 0.0
        %1111 = vmatprep.subr.mxu0 0.0
        %1112 = vmatpush1.xpose.msra.mxu0 0.0
        %1113 = vmatprep.subr.mxu0 0.0
        %1114 = vmatpush1.xpose.msra.mxu0 0.0
        %1115 = vmatprep.subr.mxu0 0.0
        %1116 = vmatpush1.xpose.msra.mxu0 0.0
        %1117 = vmatprep.subr.mxu0 0.0
        %1118 = vmatpush1.xpose.msra.mxu0 0.0
        %1119 = vmatprep.subr.mxu0 0.0
        %1120 = vmatpush1.xpose.msra.mxu0 0.0
        %1121 = vmatprep.subr.mxu0 0.0
        %1122 = vmatpush1.xpose.msra.mxu0 %v1089
        %1123 = vmatprep.subr.mxu0 0.0
        %1124 = vmatpush2.xpose.msra.mxu0 0.0
        %1125 = vmatprep.subr.mxu0 0.0
        %1126 = vmatpush2.xpose.msra.mxu0 0.0
        %1127 = vmatprep.subr.mxu0 0.0
        %1128 = vmatpush2.xpose.msra.mxu0 0.0
        %1129 = vmatprep.subr.mxu0 0.0
        %1130 = vmatpush2.xpose.msra.mxu0 0.0
        %1131 = vmatprep.subr.mxu0 0.0
        %1132 = vmatpush2.xpose.msra.mxu0 0.0
        %1133 = vmatprep.subr.mxu0 0.0
        %1134 = vmatpush2.xpose.msra.mxu0 0.0
        %1135 = vmatprep.subr.mxu0 0.0
        %1136 = vmatpush2.xpose.msra.mxu0 0.0
        %1137 = vmatprep.subr.mxu0 0.0
        %1138 = vmatpush2.xpose.msra.mxu0 0.0
        %1139 = vmatprep.subr.mxu0 0.0
        %1140 = vmatpush2.xpose.msra.mxu0 0.0
        %1141 = vmatprep.subr.mxu0 0.0
        %1142 = vmatpush2.xpose.msra.mxu0 0.0
        %1143 = vmatprep.subr.mxu0 0.0
        %1144 = vmatpush2.xpose.msra.mxu0 0.0
        %1145 = vmatprep.subr.mxu0 0.0
        %1146 = vmatpush2.xpose.msra.mxu0 0.0
        %1147 = vmatprep.subr.mxu0 0.0
        %1148 = vmatpush2.xpose.msra.mxu0 0.0
        %1149 = vmatprep.subr.mxu0 0.0
        %1150 = vmatpush2.xpose.msra.mxu0 0.0
        %1151 = vmatprep.subr.mxu0 0.0
        %1152 = vmatpush2.xpose.msra.mxu0 0.0
        %1153 = vmatprep.subr.mxu0 0.0
        %1154 = vmatpush2.xpose.msra.mxu0 0.0
        %1155 = vmatprep.mubr.f32.mxu0 0.0
        %1156 = vmatmul.mubr.f32.gmra.mxu0 %v1087
        %v1157 = vpop.f32.mrf.mxu0
        %v1158 = vadd.f32 0.0, %v1157
        %v1159 = vpop.f32.mrf.mxu0
        %1160 = vdwg.mxu0
        %1161 = vrot.lane.b32.xlu0 %v921, 96
        %v1162 = vpop.permute.xlu0 %1161
        %v1163 = vsel %vm934, %v921, 0
        %v1165 = vsel %vm934, %v1162, 0
        %1167 = vmatprep.subr.mxu0 0.0
        %1168 = vmatpush1.xpose.msra.mxu0 0.0
        %1169 = vmatprep.subr.mxu0 0.0
        %1170 = vmatpush1.xpose.msra.mxu0 0.0
        %1171 = vmatprep.subr.mxu0 0.0
        %1172 = vmatpush1.xpose.msra.mxu0 0.0
        %1173 = vmatprep.subr.mxu0 0.0
        %1174 = vmatpush1.xpose.msra.mxu0 0.0
        %1175 = vmatprep.subr.mxu0 0.0
        %1176 = vmatpush1.xpose.msra.mxu0 0.0
        %1177 = vmatprep.subr.mxu0 0.0
        %1178 = vmatpush1.xpose.msra.mxu0 0.0
        %1179 = vmatprep.subr.mxu0 0.0
        %1180 = vmatpush1.xpose.msra.mxu0 0.0
        %1181 = vmatprep.subr.mxu0 0.0
        %1182 = vmatpush1.xpose.msra.mxu0 0.0
        %1183 = vmatprep.subr.mxu0 0.0
        %1184 = vmatpush1.xpose.msra.mxu0 0.0
        %1185 = vmatprep.subr.mxu0 0.0
        %1186 = vmatpush1.xpose.msra.mxu0 0.0
        %1187 = vmatprep.subr.mxu0 0.0
        %1188 = vmatpush1.xpose.msra.mxu0 0.0
        %1189 = vmatprep.subr.mxu0 0.0
        %1190 = vmatpush1.xpose.msra.mxu0 0.0
        %1191 = vmatprep.subr.mxu0 0.0
        %1192 = vmatpush1.xpose.msra.mxu0 0.0
        %1193 = vmatprep.subr.mxu0 0.0
        %1194 = vmatpush1.xpose.msra.mxu0 0.0
        %1195 = vmatprep.subr.mxu0 0.0
        %1196 = vmatpush1.xpose.msra.mxu0 0.0
        %1197 = vmatprep.subr.mxu0 0.0
        %1198 = vmatpush1.xpose.msra.mxu0 %v1165
        %1199 = vmatprep.subr.mxu0 0.0
        %1200 = vmatpush2.xpose.msra.mxu0 0.0
        %1201 = vmatprep.subr.mxu0 0.0
        %1202 = vmatpush2.xpose.msra.mxu0 0.0
        %1203 = vmatprep.subr.mxu0 0.0
        %1204 = vmatpush2.xpose.msra.mxu0 0.0
        %1205 = vmatprep.subr.mxu0 0.0
        %1206 = vmatpush2.xpose.msra.mxu0 0.0
        %1207 = vmatprep.subr.mxu0 0.0
        %1208 = vmatpush2.xpose.msra.mxu0 0.0
        %1209 = vmatprep.subr.mxu0 0.0
        %1210 = vmatpush2.xpose.msra.mxu0 0.0
        %1211 = vmatprep.subr.mxu0 0.0
        %1212 = vmatpush2.xpose.msra.mxu0 0.0
        %1213 = vmatprep.subr.mxu0 0.0
        %1214 = vmatpush2.xpose.msra.mxu0 0.0
        %1215 = vmatprep.subr.mxu0 0.0
        %1216 = vmatpush2.xpose.msra.mxu0 0.0
        %1217 = vmatprep.subr.mxu0 0.0
        %1218 = vmatpush2.xpose.msra.mxu0 0.0
        %1219 = vmatprep.subr.mxu0 0.0
        %1220 = vmatpush2.xpose.msra.mxu0 0.0
        %1221 = vmatprep.subr.mxu0 0.0
        %1222 = vmatpush2.xpose.msra.mxu0 0.0
        %1223 = vmatprep.subr.mxu0 0.0
        %1224 = vmatpush2.xpose.msra.mxu0 0.0
        %1225 = vmatprep.subr.mxu0 0.0
        %1226 = vmatpush2.xpose.msra.mxu0 0.0
        %1227 = vmatprep.subr.mxu0 0.0
        %1228 = vmatpush2.xpose.msra.mxu0 0.0
        %1229 = vmatprep.subr.mxu0 0.0
        %1230 = vmatpush2.xpose.msra.mxu0 0.0
        %1231 = vmatprep.mubr.f32.mxu0 0.0
        %1232 = vmatmul.mubr.f32.gmra.mxu0 %v1163
        %v1233 = vpop.f32.mrf.mxu0
        %v1234 = vadd.f32 0.0, %v1233
        %v1235 = vpop.f32.mrf.mxu0
        %1236 = vdwg.mxu0
        %v1237 = vsel %vm934, %v1006, -inf
        %1238 = vmax.xlane.f32.xlu0 %v1237
        %v1239 = vpop.xlane.xlu0 %1238
        %v1240 = vsel %vm934, %v1082, -inf
        %1241 = vmax.xlane.f32.xlu0 %v1240
        %v1242 = vpop.xlane.xlu0 %1241
        %v1243 = vsel %vm934, %v1158, -inf
        %1244 = vmax.xlane.f32.xlu0 %v1243
        %v1245 = vpop.xlane.xlu0 %1244
        %v1246 = vsel %vm934, %v1234, -inf
        %1247 = vmax.xlane.f32.xlu0 %v1246
        %v1248 = vpop.xlane.xlu0 %1247
        %v1249 = vsub.f32 %v1006, %v1239
        %v1250 = vsub.f32 %v1082, %v1242
        %v1251 = vsub.f32 %v1158, %v1245
        %v1252 = vsub.f32 %v1234, %v1248
        %v1253 = vmul.f32 %v1249, 1.442695
        %v1254 = vpow.pop %v1253
        %v1255 = vmul.f32 %v1250, 1.442695
        %v1256 = vpow.pop %v1255
        %v1257 = vmul.f32 %v1251, 1.442695
        %v1258 = vpow.pop %v1257
        %v1259 = vmul.f32 %v1252, 1.442695
        %v1260 = vpow.pop %v1259
        %v1261 = vsel %vm934, %v1254, 0.0
        %1262 = vadd.xlane.f32.xlu0 %v1261
        %v1263 = vpop.xlane.xlu0 %1262
        %v1264 = vsel %vm934, %v1256, 0.0
        %1265 = vadd.xlane.f32.xlu0 %v1264
        %v1266 = vpop.xlane.xlu0 %1265
        %v1267 = vsel %vm934, %v1258, 0.0
        %1268 = vadd.xlane.f32.xlu0 %v1267
        %v1269 = vpop.xlane.xlu0 %1268
        %v1270 = vsel %vm934, %v1260, 0.0
        %1271 = vadd.xlane.f32.xlu0 %v1270
        %v1272 = vpop.xlane.xlu0 %1271
        %v1273 = vrcp.pop %v1263
        %v1274 = vrcp.pop %v1266
        %v1275 = vrcp.pop %v1269
        %v1276 = vrcp.pop %v1272
        %v1277 = vmul.f32 %v1254, %v1273
        %v1278 = vmul.f32 %v1256, %v1274
        %v1279 = vmul.f32 %v1258, %v1275
        %v1280 = vmul.f32 %v1260, %v1276
        %v1282 = vsel %vm934, %v1277, 0
        %1284 = vmatprep.subr.mxu0 0.0
        %1285 = vmatpush1.msra.mxu0 0.0
        %1286 = vmatprep.subr.mxu0 0.0
        %1287 = vmatpush1.msra.mxu0 0.0
        %1288 = vmatprep.subr.mxu0 0.0
        %1289 = vmatpush1.msra.mxu0 0.0
        %1290 = vmatprep.subr.mxu0 0.0
        %1291 = vmatpush1.msra.mxu0 0.0
        %1292 = vmatprep.subr.mxu0 0.0
        %1293 = vmatpush1.msra.mxu0 0.0
        %1294 = vmatprep.subr.mxu0 0.0
        %1295 = vmatpush1.msra.mxu0 0.0
        %1296 = vmatprep.subr.mxu0 0.0
        %1297 = vmatpush1.msra.mxu0 0.0
        %1298 = vmatprep.subr.mxu0 0.0
        %1299 = vmatpush1.msra.mxu0 0.0
        %1300 = vmatprep.subr.mxu0 0.0
        %1301 = vmatpush1.msra.mxu0 0.0
        %1302 = vmatprep.subr.mxu0 0.0
        %1303 = vmatpush1.msra.mxu0 0.0
        %1304 = vmatprep.subr.mxu0 0.0
        %1305 = vmatpush1.msra.mxu0 0.0
        %1306 = vmatprep.subr.mxu0 0.0
        %1307 = vmatpush1.msra.mxu0 0.0
        %1308 = vmatprep.subr.mxu0 0.0
        %1309 = vmatpush1.msra.mxu0 0.0
        %1310 = vmatprep.subr.mxu0 0.0
        %1311 = vmatpush1.msra.mxu0 0.0
        %1312 = vmatprep.subr.mxu0 0.0
        %1313 = vmatpush1.msra.mxu0 0.0
        %1314 = vmatprep.subr.mxu0 0.0
        %1315 = vmatpush1.msra.mxu0 %v908
        %1316 = vmatprep.subr.mxu0 0.0
        %1317 = vmatpush2.msra.mxu0 0.0
        %1318 = vmatprep.subr.mxu0 0.0
        %1319 = vmatpush2.msra.mxu0 0.0
        %1320 = vmatprep.subr.mxu0 0.0
        %1321 = vmatpush2.msra.mxu0 0.0
        %1322 = vmatprep.subr.mxu0 0.0
        %1323 = vmatpush2.msra.mxu0 0.0
        %1324 = vmatprep.subr.mxu0 0.0
        %1325 = vmatpush2.msra.mxu0 0.0
        %1326 = vmatprep.subr.mxu0 0.0
        %1327 = vmatpush2.msra.mxu0 0.0
        %1328 = vmatprep.subr.mxu0 0.0
        %1329 = vmatpush2.msra.mxu0 0.0
        %1330 = vmatprep.subr.mxu0 0.0
        %1331 = vmatpush2.msra.mxu0 0.0
        %1332 = vmatprep.subr.mxu0 0.0
        %1333 = vmatpush2.msra.mxu0 0.0
        %1334 = vmatprep.subr.mxu0 0.0
        %1335 = vmatpush2.msra.mxu0 0.0
        %1336 = vmatprep.subr.mxu0 0.0
        %1337 = vmatpush2.msra.mxu0 0.0
        %1338 = vmatprep.subr.mxu0 0.0
        %1339 = vmatpush2.msra.mxu0 0.0
        %1340 = vmatprep.subr.mxu0 0.0
        %1341 = vmatpush2.msra.mxu0 0.0
        %1342 = vmatprep.subr.mxu0 0.0
        %1343 = vmatpush2.msra.mxu0 0.0
        %1344 = vmatprep.subr.mxu0 0.0
        %1345 = vmatpush2.msra.mxu0 0.0
        %1346 = vmatprep.subr.mxu0 0.0
        %1347 = vmatpush2.msra.mxu0 0.0
        %1348 = vmatprep.mubr.f32.mxu0 0.0
        %1349 = vmatmul.mubr.f32.gmra.mxu0 %v1282
        %v1350 = vpop.f32.mrf.mxu0
        %v1351 = vadd.f32 0.0, %v1350
        %v1352 = vpop.f32.mrf.mxu0
        %1353 = vdwg.mxu0
        %v1355 = vsel %vm934, %v1278, 0
        %1357 = vmatprep.subr.mxu0 0.0
        %1358 = vmatpush1.msra.mxu0 0.0
        %1359 = vmatprep.subr.mxu0 0.0
        %1360 = vmatpush1.msra.mxu0 0.0
        %1361 = vmatprep.subr.mxu0 0.0
        %1362 = vmatpush1.msra.mxu0 0.0
        %1363 = vmatprep.subr.mxu0 0.0
        %1364 = vmatpush1.msra.mxu0 0.0
        %1365 = vmatprep.subr.mxu0 0.0
        %1366 = vmatpush1.msra.mxu0 0.0
        %1367 = vmatprep.subr.mxu0 0.0
        %1368 = vmatpush1.msra.mxu0 0.0
        %1369 = vmatprep.subr.mxu0 0.0
        %1370 = vmatpush1.msra.mxu0 0.0
        %1371 = vmatprep.subr.mxu0 0.0
        %1372 = vmatpush1.msra.mxu0 0.0
        %1373 = vmatprep.subr.mxu0 0.0
        %1374 = vmatpush1.msra.mxu0 0.0
        %1375 = vmatprep.subr.mxu0 0.0
        %1376 = vmatpush1.msra.mxu0 0.0
        %1377 = vmatprep.subr.mxu0 0.0
        %1378 = vmatpush1.msra.mxu0 0.0
        %1379 = vmatprep.subr.mxu0 0.0
        %1380 = vmatpush1.msra.mxu0 0.0
        %1381 = vmatprep.subr.mxu0 0.0
        %1382 = vmatpush1.msra.mxu0 0.0
        %1383 = vmatprep.subr.mxu0 0.0
        %1384 = vmatpush1.msra.mxu0 0.0
        %1385 = vmatprep.subr.mxu0 0.0
        %1386 = vmatpush1.msra.mxu0 0.0
        %1387 = vmatprep.subr.mxu0 0.0
        %1388 = vmatpush1.msra.mxu0 %v924
        %1389 = vmatprep.subr.mxu0 0.0
        %1390 = vmatpush2.msra.mxu0 0.0
        %1391 = vmatprep.subr.mxu0 0.0
        %1392 = vmatpush2.msra.mxu0 0.0
        %1393 = vmatprep.subr.mxu0 0.0
        %1394 = vmatpush2.msra.mxu0 0.0
        %1395 = vmatprep.subr.mxu0 0.0
        %1396 = vmatpush2.msra.mxu0 0.0
        %1397 = vmatprep.subr.mxu0 0.0
        %1398 = vmatpush2.msra.mxu0 0.0
        %1399 = vmatprep.subr.mxu0 0.0
        %1400 = vmatpush2.msra.mxu0 0.0
        %1401 = vmatprep.subr.mxu0 0.0
        %1402 = vmatpush2.msra.mxu0 0.0
        %1403 = vmatprep.subr.mxu0 0.0
        %1404 = vmatpush2.msra.mxu0 0.0
        %1405 = vmatprep.subr.mxu0 0.0
        %1406 = vmatpush2.msra.mxu0 0.0
        %1407 = vmatprep.subr.mxu0 0.0
        %1408 = vmatpush2.msra.mxu0 0.0
        %1409 = vmatprep.subr.mxu0 0.0
        %1410 = vmatpush2.msra.mxu0 0.0
        %1411 = vmatprep.subr.mxu0 0.0
        %1412 = vmatpush2.msra.mxu0 0.0
        %1413 = vmatprep.subr.mxu0 0.0
        %1414 = vmatpush2.msra.mxu0 0.0
        %1415 = vmatprep.subr.mxu0 0.0
        %1416 = vmatpush2.msra.mxu0 0.0
        %1417 = vmatprep.subr.mxu0 0.0
        %1418 = vmatpush2.msra.mxu0 0.0
        %1419 = vmatprep.subr.mxu0 0.0
        %1420 = vmatpush2.msra.mxu0 0.0
        %1421 = vmatprep.mubr.f32.mxu0 0.0
        %1422 = vmatmul.mubr.f32.gmra.mxu0 %v1355
        %v1423 = vpop.f32.mrf.mxu0
        %v1424 = vadd.f32 0.0, %v1423
        %v1425 = vpop.f32.mrf.mxu0
        %1426 = vdwg.mxu0
        %v1428 = vsel %vm934, %v1279, 0
        %1430 = vmatprep.subr.mxu0 0.0
        %1431 = vmatpush1.msra.mxu0 0.0
        %1432 = vmatprep.subr.mxu0 0.0
        %1433 = vmatpush1.msra.mxu0 0.0
        %1434 = vmatprep.subr.mxu0 0.0
        %1435 = vmatpush1.msra.mxu0 0.0
        %1436 = vmatprep.subr.mxu0 0.0
        %1437 = vmatpush1.msra.mxu0 0.0
        %1438 = vmatprep.subr.mxu0 0.0
        %1439 = vmatpush1.msra.mxu0 0.0
        %1440 = vmatprep.subr.mxu0 0.0
        %1441 = vmatpush1.msra.mxu0 0.0
        %1442 = vmatprep.subr.mxu0 0.0
        %1443 = vmatpush1.msra.mxu0 0.0
        %1444 = vmatprep.subr.mxu0 0.0
        %1445 = vmatpush1.msra.mxu0 0.0
        %1446 = vmatprep.subr.mxu0 0.0
        %1447 = vmatpush1.msra.mxu0 0.0
        %1448 = vmatprep.subr.mxu0 0.0
        %1449 = vmatpush1.msra.mxu0 0.0
        %1450 = vmatprep.subr.mxu0 0.0
        %1451 = vmatpush1.msra.mxu0 0.0
        %1452 = vmatprep.subr.mxu0 0.0
        %1453 = vmatpush1.msra.mxu0 0.0
        %1454 = vmatprep.subr.mxu0 0.0
        %1455 = vmatpush1.msra.mxu0 0.0
        %1456 = vmatprep.subr.mxu0 0.0
        %1457 = vmatpush1.msra.mxu0 0.0
        %1458 = vmatprep.subr.mxu0 0.0
        %1459 = vmatpush1.msra.mxu0 0.0
        %1460 = vmatprep.subr.mxu0 0.0
        %1461 = vmatpush1.msra.mxu0 %v927
        %1462 = vmatprep.subr.mxu0 0.0
        %1463 = vmatpush2.msra.mxu0 0.0
        %1464 = vmatprep.subr.mxu0 0.0
        %1465 = vmatpush2.msra.mxu0 0.0
        %1466 = vmatprep.subr.mxu0 0.0
        %1467 = vmatpush2.msra.mxu0 0.0
        %1468 = vmatprep.subr.mxu0 0.0
        %1469 = vmatpush2.msra.mxu0 0.0
        %1470 = vmatprep.subr.mxu0 0.0
        %1471 = vmatpush2.msra.mxu0 0.0
        %1472 = vmatprep.subr.mxu0 0.0
        %1473 = vmatpush2.msra.mxu0 0.0
        %1474 = vmatprep.subr.mxu0 0.0
        %1475 = vmatpush2.msra.mxu0 0.0
        %1476 = vmatprep.subr.mxu0 0.0
        %1477 = vmatpush2.msra.mxu0 0.0
        %1478 = vmatprep.subr.mxu0 0.0
        %1479 = vmatpush2.msra.mxu0 0.0
        %1480 = vmatprep.subr.mxu0 0.0
        %1481 = vmatpush2.msra.mxu0 0.0
        %1482 = vmatprep.subr.mxu0 0.0
        %1483 = vmatpush2.msra.mxu0 0.0
        %1484 = vmatprep.subr.mxu0 0.0
        %1485 = vmatpush2.msra.mxu0 0.0
        %1486 = vmatprep.subr.mxu0 0.0
        %1487 = vmatpush2.msra.mxu0 0.0
        %1488 = vmatprep.subr.mxu0 0.0
        %1489 = vmatpush2.msra.mxu0 0.0
        %1490 = vmatprep.subr.mxu0 0.0
        %1491 = vmatpush2.msra.mxu0 0.0
        %1492 = vmatprep.subr.mxu0 0.0
        %1493 = vmatpush2.msra.mxu0 0.0
        %1494 = vmatprep.mubr.f32.mxu0 0.0
        %1495 = vmatmul.mubr.f32.gmra.mxu0 %v1428
        %v1496 = vpop.f32.mrf.mxu0
        %v1497 = vadd.f32 0.0, %v1496
        %v1498 = vpop.f32.mrf.mxu0
        %1499 = vdwg.mxu0
        %v1501 = vsel %vm934, %v1280, 0
        %1503 = vmatprep.subr.mxu0 0.0
        %1504 = vmatpush1.msra.mxu0 0.0
        %1505 = vmatprep.subr.mxu0 0.0
        %1506 = vmatpush1.msra.mxu0 0.0
        %1507 = vmatprep.subr.mxu0 0.0
        %1508 = vmatpush1.msra.mxu0 0.0
        %1509 = vmatprep.subr.mxu0 0.0
        %1510 = vmatpush1.msra.mxu0 0.0
        %1511 = vmatprep.subr.mxu0 0.0
        %1512 = vmatpush1.msra.mxu0 0.0
        %1513 = vmatprep.subr.mxu0 0.0
        %1514 = vmatpush1.msra.mxu0 0.0
        %1515 = vmatprep.subr.mxu0 0.0
        %1516 = vmatpush1.msra.mxu0 0.0
        %1517 = vmatprep.subr.mxu0 0.0
        %1518 = vmatpush1.msra.mxu0 0.0
        %1519 = vmatprep.subr.mxu0 0.0
        %1520 = vmatpush1.msra.mxu0 0.0
        %1521 = vmatprep.subr.mxu0 0.0
        %1522 = vmatpush1.msra.mxu0 0.0
        %1523 = vmatprep.subr.mxu0 0.0
        %1524 = vmatpush1.msra.mxu0 0.0
        %1525 = vmatprep.subr.mxu0 0.0
        %1526 = vmatpush1.msra.mxu0 0.0
        %1527 = vmatprep.subr.mxu0 0.0
        %1528 = vmatpush1.msra.mxu0 0.0
        %1529 = vmatprep.subr.mxu0 0.0
        %1530 = vmatpush1.msra.mxu0 0.0
        %1531 = vmatprep.subr.mxu0 0.0
        %1532 = vmatpush1.msra.mxu0 0.0
        %1533 = vmatprep.subr.mxu0 0.0
        %1534 = vmatpush1.msra.mxu0 %v930
        %1535 = vmatprep.subr.mxu0 0.0
        %1536 = vmatpush2.msra.mxu0 0.0
        %1537 = vmatprep.subr.mxu0 0.0
        %1538 = vmatpush2.msra.mxu0 0.0
        %1539 = vmatprep.subr.mxu0 0.0
        %1540 = vmatpush2.msra.mxu0 0.0
        %1541 = vmatprep.subr.mxu0 0.0
        %1542 = vmatpush2.msra.mxu0 0.0
        %1543 = vmatprep.subr.mxu0 0.0
        %1544 = vmatpush2.msra.mxu0 0.0
        %1545 = vmatprep.subr.mxu0 0.0
        %1546 = vmatpush2.msra.mxu0 0.0
        %1547 = vmatprep.subr.mxu0 0.0
        %1548 = vmatpush2.msra.mxu0 0.0
        %1549 = vmatprep.subr.mxu0 0.0
        %1550 = vmatpush2.msra.mxu0 0.0
        %1551 = vmatprep.subr.mxu0 0.0
        %1552 = vmatpush2.msra.mxu0 0.0
        %1553 = vmatprep.subr.mxu0 0.0
        %1554 = vmatpush2.msra.mxu0 0.0
        %1555 = vmatprep.subr.mxu0 0.0
        %1556 = vmatpush2.msra.mxu0 0.0
        %1557 = vmatprep.subr.mxu0 0.0
        %1558 = vmatpush2.msra.mxu0 0.0
        %1559 = vmatprep.subr.mxu0 0.0
        %1560 = vmatpush2.msra.mxu0 0.0
        %1561 = vmatprep.subr.mxu0 0.0
        %1562 = vmatpush2.msra.mxu0 0.0
        %1563 = vmatprep.subr.mxu0 0.0
        %1564 = vmatpush2.msra.mxu0 0.0
        %1565 = vmatprep.subr.mxu0 0.0
        %1566 = vmatpush2.msra.mxu0 0.0
        %1567 = vmatprep.mubr.f32.mxu0 0.0
        %1568 = vmatmul.mubr.f32.gmra.mxu0 %v1501
        %v1569 = vpop.f32.mrf.mxu0
        %v1570 = vadd.f32 0.0, %v1569
        %v1571 = vpop.f32.mrf.mxu0
        %1572 = vdwg.mxu0
        %1574 = vrot.lane.b32.xlu0 %v1424, 8
        %v1575 = vpop.permute.xlu0 %1574
        %1578 = vrot.lane.b32.xlu0 %v1497, 16
        %v1579 = vpop.permute.xlu0 %1578
        %1582 = vrot.lane.b32.xlu0 %v1570, 24
        %v1583 = vpop.permute.xlu0 %1582
        %v1585 = vsel %vm934, %v1351, %v1575
        %vm1586 = vcmask 130048
        %v1587 = vsel %vm1586, %v1585, %v1579
        %vm1588 = vcmask 195584
        %v1589 = vsel %vm1588, %v1587, %v1583
        %v1590 = vlaneseq
        %v1591 = vshrl.u32 %v1590, 7
        %v1592 = vsub.s32 1, %v1591
        %v1593 = vrot.slane %v742, %v1592
        %v1595 = vsel %vm756, %v1589, 0
        %1597 = vmatprep.subr.mxu0 0.0
        %1598 = vmatpush1.msra.mxu0 0.0
        %1599 = vmatprep.subr.mxu0 0.0
        %1600 = vmatpush1.msra.mxu0 0.0
        %1601 = vmatprep.subr.mxu0 0.0
        %1602 = vmatpush1.msra.mxu0 0.0
        %1603 = vmatprep.subr.mxu0 0.0
        %1604 = vmatpush1.msra.mxu0 0.0
        %1605 = vmatprep.subr.mxu0 0.0
        %1606 = vmatpush1.msra.mxu0 0.0
        %1607 = vmatprep.subr.mxu0 0.0
        %1608 = vmatpush1.msra.mxu0 0.0
        %1609 = vmatprep.subr.mxu0 0.0
        %1610 = vmatpush1.msra.mxu0 0.0
        %1611 = vmatprep.subr.mxu0 0.0
        %1612 = vmatpush1.msra.mxu0 0.0
        %1613 = vmatprep.subr.mxu0 0.0
        %1614 = vmatpush1.msra.mxu0 0.0
        %1615 = vmatprep.subr.mxu0 0.0
        %1616 = vmatpush1.msra.mxu0 0.0
        %1617 = vmatprep.subr.mxu0 0.0
        %1618 = vmatpush1.msra.mxu0 0.0
        %1619 = vmatprep.subr.mxu0 0.0
        %1620 = vmatpush1.msra.mxu0 0.0
        %1621 = vmatprep.subr.mxu0 0.0
        %1622 = vmatpush1.msra.mxu0 %v914
        %1623 = vmatprep.subr.mxu0 0.0
        %1624 = vmatpush1.msra.mxu0 %v913
        %1625 = vmatprep.subr.mxu0 0.0
        %1626 = vmatpush1.msra.mxu0 %v912
        %1627 = vmatprep.subr.mxu0 0.0
        %1628 = vmatpush1.msra.mxu0 %v911
        %1629 = vmatprep.subr.mxu0 0.0
        %1630 = vmatpush2.msra.mxu0 0.0
        %1631 = vmatprep.subr.mxu0 0.0
        %1632 = vmatpush2.msra.mxu0 0.0
        %1633 = vmatprep.subr.mxu0 0.0
        %1634 = vmatpush2.msra.mxu0 0.0
        %1635 = vmatprep.subr.mxu0 0.0
        %1636 = vmatpush2.msra.mxu0 0.0
        %1637 = vmatprep.subr.mxu0 0.0
        %1638 = vmatpush2.msra.mxu0 0.0
        %1639 = vmatprep.subr.mxu0 0.0
        %1640 = vmatpush2.msra.mxu0 0.0
        %1641 = vmatprep.subr.mxu0 0.0
        %1642 = vmatpush2.msra.mxu0 0.0
        %1643 = vmatprep.subr.mxu0 0.0
        %1644 = vmatpush2.msra.mxu0 0.0
        %1645 = vmatprep.subr.mxu0 0.0
        %1646 = vmatpush2.msra.mxu0 0.0
        %1647 = vmatprep.subr.mxu0 0.0
        %1648 = vmatpush2.msra.mxu0 0.0
        %1649 = vmatprep.subr.mxu0 0.0
        %1650 = vmatpush2.msra.mxu0 0.0
        %1651 = vmatprep.subr.mxu0 0.0
        %1652 = vmatpush2.msra.mxu0 0.0
        %1653 = vmatprep.subr.mxu0 0.0
        %1654 = vmatpush2.msra.mxu0 0.0
        %1655 = vmatprep.subr.mxu0 0.0
        %1656 = vmatpush2.msra.mxu0 0.0
        %1657 = vmatprep.subr.mxu0 0.0
        %1658 = vmatpush2.msra.mxu0 0.0
        %1659 = vmatprep.subr.mxu0 0.0
        %1660 = vmatpush2.msra.mxu0 0.0
        %1661 = vmatprep.mubr.f32.mxu0 0.0
        %1662 = vmatmul.mubr.f32.gmra.mxu0 %v1595
        %v1663 = vpop.f32.mrf.mxu0
        %v1664 = vadd.f32 %v1593, %v1663
        %v1665 = vpop.f32.mrf.mxu0
        %1666 = vdwg.mxu0
        %v1667 = vadd.f32 %v736, %v1664
        %v1668 = vsel %vm756, %v1667, 0.0
        %1669 = vadd.xlane.f32.xlu0 %v1668
        %v1670 = vpop.xlane.xlu0 %1669
        %v1671 = vrcp.pop 32.0
        %v1672 = vmul.f32 %v1670, %v1671
        %v1673 = vsub.f32 %v1667, %v1672
        %v1674 = vmul.f32 %v1673, %v1673
        %v1675 = vsel %vm756, %v1674, 0.0
        %1676 = vadd.xlane.f32.xlu0 %v1675
        %v1677 = vpop.xlane.xlu0 %1676
        %v1678 = vmul.f32 %v1677, %v1671
        %v1679 = vadd.f32 %v1678, 1e-05
        %v1680 = vrsqrt.pop %v1679
        %v1681 = vmul.f32 %v1673, %v1680
        %v1682 = vlaneseq
        %v1683 = vshrl.u32 %v1682, 7
        %v1684 = vsub.s32 7, %v1683
        %v1685 = vrot.slane %v742, %v1684
        %v1686 = vmul.f32 %v1681, %v1685
        %v1687 = vlaneseq
        %v1688 = vshrl.u32 %v1687, 7
        %v1689 = vsub.s32 0, %v1688
        %v1690 = vrot.slane %v743, %v1689
        %v1691 = vadd.f32 %v1686, %v1690
        %v1692 = vadd.f32 %v1691, %v737
        %v1693 = vld [vmem:[%s7] sm:$0xff]
        %v1694 = vld [vmem:[%s7 + $0x8] sm:$0xff]
        %v1695 = vld [vmem:[%s7 + $0x10] sm:$0xff]
        %v1696 = vld [vmem:[%s7 + $0x18] sm:$0xff]
        %v1697 = vlaneseq
        %v1698 = vshrl.u32 %v1697, 7
        %v1699 = vsub.s32 2, %v1698
        %v1700 = vrot.slane %v742, %v1699
        %v1702 = vsel %vm756, %v1692, 0
        %1704 = vmatprep.subr.mxu0 0.0
        %1705 = vmatpush1.msra.mxu0 0.0
        %1706 = vmatprep.subr.mxu0 0.0
        %1707 = vmatpush1.msra.mxu0 0.0
        %1708 = vmatprep.subr.mxu0 0.0
        %1709 = vmatpush1.msra.mxu0 0.0
        %1710 = vmatprep.subr.mxu0 0.0
        %1711 = vmatpush1.msra.mxu0 0.0
        %1712 = vmatprep.subr.mxu0 0.0
        %1713 = vmatpush1.msra.mxu0 0.0
        %1714 = vmatprep.subr.mxu0 0.0
        %1715 = vmatpush1.msra.mxu0 0.0
        %1716 = vmatprep.subr.mxu0 0.0
        %1717 = vmatpush1.msra.mxu0 0.0
        %1718 = vmatprep.subr.mxu0 0.0
        %1719 = vmatpush1.msra.mxu0 0.0
        %1720 = vmatprep.subr.mxu0 0.0
        %1721 = vmatpush1.msra.mxu0 0.0
        %1722 = vmatprep.subr.mxu0 0.0
        %1723 = vmatpush1.msra.mxu0 0.0
        %1724 = vmatprep.subr.mxu0 0.0
        %1725 = vmatpush1.msra.mxu0 0.0
        %1726 = vmatprep.subr.mxu0 0.0
        %1727 = vmatpush1.msra.mxu0 0.0
        %1728 = vmatprep.subr.mxu0 0.0
        %1729 = vmatpush1.msra.mxu0 %v1696
        %1730 = vmatprep.subr.mxu0 0.0
        %1731 = vmatpush1.msra.mxu0 %v1695
        %1732 = vmatprep.subr.mxu0 0.0
        %1733 = vmatpush1.msra.mxu0 %v1694
        %1734 = vmatprep.subr.mxu0 0.0
        %1735 = vmatpush1.msra.mxu0 %v1693
        %1736 = vmatprep.subr.mxu0 0.0
        %1737 = vmatpush2.msra.mxu0 0.0
        %1738 = vmatprep.subr.mxu0 0.0
        %1739 = vmatpush2.msra.mxu0 0.0
        %1740 = vmatprep.subr.mxu0 0.0
        %1741 = vmatpush2.msra.mxu0 0.0
        %1742 = vmatprep.subr.mxu0 0.0
        %1743 = vmatpush2.msra.mxu0 0.0
        %1744 = vmatprep.subr.mxu0 0.0
        %1745 = vmatpush2.msra.mxu0 0.0
        %1746 = vmatprep.subr.mxu0 0.0
        %1747 = vmatpush2.msra.mxu0 0.0
        %1748 = vmatprep.subr.mxu0 0.0
        %1749 = vmatpush2.msra.mxu0 0.0
        %1750 = vmatprep.subr.mxu0 0.0
        %1751 = vmatpush2.msra.mxu0 0.0
        %1752 = vmatprep.subr.mxu0 0.0
        %1753 = vmatpush2.msra.mxu0 0.0
        %1754 = vmatprep.subr.mxu0 0.0
        %1755 = vmatpush2.msra.mxu0 0.0
        %1756 = vmatprep.subr.mxu0 0.0
        %1757 = vmatpush2.msra.mxu0 0.0
        %1758 = vmatprep.subr.mxu0 0.0
        %1759 = vmatpush2.msra.mxu0 0.0
        %1760 = vmatprep.subr.mxu0 0.0
        %1761 = vmatpush2.msra.mxu0 0.0
        %1762 = vmatprep.subr.mxu0 0.0
        %1763 = vmatpush2.msra.mxu0 0.0
        %1764 = vmatprep.subr.mxu0 0.0
        %1765 = vmatpush2.msra.mxu0 0.0
        %1766 = vmatprep.subr.mxu0 0.0
        %1767 = vmatpush2.msra.mxu0 0.0
        %1768 = vmatprep.mubr.f32.mxu0 0.0
        %1769 = vmatmul.mubr.f32.gmra.mxu0 %v1702
        %v1770 = vpop.f32.mrf.mxu0
        %v1771 = vadd.f32 %v1700, %v1770
        %v1772 = vpop.f32.mrf.mxu0
        %1773 = vdwg.mxu0
        %v1774 = vld [vmem:[#allocation10] sm:$0xff]
        %v1775 = vld [vmem:[#allocation10 + $0x8] sm:$0xff]
        %v1776 = vld [vmem:[#allocation10 + $0x10] sm:$0xff]
        %v1777 = vld [vmem:[#allocation10 + $0x18] sm:$0xff]
        %v1778 = vlaneseq
        %v1779 = vshrl.u32 %v1778, 7
        %v1780 = vsub.s32 3, %v1779
        %v1781 = vrot.slane %v742, %v1780
        %v1783 = vsel %vm756, %v738, 0
        %v1786 = vsel %vm756, %v739, 0
        %1788 = vmatprep.subr.mxu0 0.0
        %1789 = vmatpush1.msra.mxu0 0.0
        %1790 = vmatprep.subr.mxu0 0.0
        %1791 = vmatpush1.msra.mxu0 0.0
        %1792 = vmatprep.subr.mxu0 0.0
        %1793 = vmatpush1.msra.mxu0 0.0
        %1794 = vmatprep.subr.mxu0 0.0
        %1795 = vmatpush1.msra.mxu0 0.0
        %1796 = vmatprep.subr.mxu0 0.0
        %1797 = vmatpush1.msra.mxu0 0.0
        %1798 = vmatprep.subr.mxu0 0.0
        %1799 = vmatpush1.msra.mxu0 0.0
        %1800 = vmatprep.subr.mxu0 0.0
        %1801 = vmatpush1.msra.mxu0 0.0
        %1802 = vmatprep.subr.mxu0 0.0
        %1803 = vmatpush1.msra.mxu0 0.0
        %1804 = vmatprep.subr.mxu0 0.0
        %1805 = vmatpush1.msra.mxu0 0.0
        %1806 = vmatprep.subr.mxu0 0.0
        %1807 = vmatpush1.msra.mxu0 0.0
        %1808 = vmatprep.subr.mxu0 0.0
        %1809 = vmatpush1.msra.mxu0 0.0
        %1810 = vmatprep.subr.mxu0 0.0
        %1811 = vmatpush1.msra.mxu0 0.0
        %1812 = vmatprep.subr.mxu0 0.0
        %1813 = vmatpush1.msra.mxu0 %v1777
        %1814 = vmatprep.subr.mxu0 0.0
        %1815 = vmatpush1.msra.mxu0 %v1776
        %1816 = vmatprep.subr.mxu0 0.0
        %1817 = vmatpush1.msra.mxu0 %v1775
        %1818 = vmatprep.subr.mxu0 0.0
        %1819 = vmatpush1.msra.mxu0 %v1774
        %1820 = vmatprep.subr.mxu0 0.0
        %1821 = vmatpush2.msra.mxu0 0.0
        %1822 = vmatprep.subr.mxu0 0.0
        %1823 = vmatpush2.msra.mxu0 0.0
        %1824 = vmatprep.subr.mxu0 0.0
        %1825 = vmatpush2.msra.mxu0 0.0
        %1826 = vmatprep.subr.mxu0 0.0
        %1827 = vmatpush2.msra.mxu0 0.0
        %1828 = vmatprep.subr.mxu0 0.0
        %1829 = vmatpush2.msra.mxu0 0.0
        %1830 = vmatprep.subr.mxu0 0.0
        %1831 = vmatpush2.msra.mxu0 0.0
        %1832 = vmatprep.subr.mxu0 0.0
        %1833 = vmatpush2.msra.mxu0 0.0
        %1834 = vmatprep.subr.mxu0 0.0
        %1835 = vmatpush2.msra.mxu0 0.0
        %1836 = vmatprep.subr.mxu0 0.0
        %1837 = vmatpush2.msra.mxu0 0.0
        %1838 = vmatprep.subr.mxu0 0.0
        %1839 = vmatpush2.msra.mxu0 0.0
        %1840 = vmatprep.subr.mxu0 0.0
        %1841 = vmatpush2.msra.mxu0 0.0
        %1842 = vmatprep.subr.mxu0 0.0
        %1843 = vmatpush2.msra.mxu0 0.0
        %1844 = vmatprep.subr.mxu0 0.0
        %1845 = vmatpush2.msra.mxu0 0.0
        %1846 = vmatprep.subr.mxu0 0.0
        %1847 = vmatpush2.msra.mxu0 0.0
        %1848 = vmatprep.subr.mxu0 0.0
        %1849 = vmatpush2.msra.mxu0 0.0
        %1850 = vmatprep.subr.mxu0 0.0
        %1851 = vmatpush2.msra.mxu0 0.0
        %1852 = vmatprep.mubr.f32.mxu0 0.0
        %1853 = vmatmul.mubr.f32.gmra.mxu0 %v1783
        %v1854 = vpop.f32.mrf.mxu0
        %v1855 = vadd.f32 %v1781, %v1854
        %v1856 = vpop.f32.mrf.mxu0
        %1857 = vmatprep.mubr.f32.mxu0 0.0
        %1858 = vmatmul.mubr.f32.gmra.mxu0 %v1786
        %v1859 = vpop.f32.mrf.mxu0
        %v1860 = vadd.f32 %v1781, %v1859
        %v1861 = vpop.f32.mrf.mxu0
        %1862 = vdwg.mxu0
        %v1863 = vld [vmem:[#allocation11] sm:$0xff]
        %v1864 = vld [vmem:[#allocation11 + $0x8] sm:$0xff]
        %v1865 = vld [vmem:[#allocation11 + $0x10] sm:$0xff]
        %v1866 = vld [vmem:[#allocation11 + $0x18] sm:$0xff]
        %v1867 = vlaneseq
        %v1868 = vshrl.u32 %v1867, 7
        %v1869 = vsub.s32 4, %v1868
        %v1870 = vrot.slane %v742, %v1869
        %v1872 = vsel %vm756, %v740, 0
        %v1875 = vsel %vm756, %v741, 0
        %1877 = vmatprep.subr.mxu0 0.0
        %1878 = vmatpush1.msra.mxu0 0.0
        %1879 = vmatprep.subr.mxu0 0.0
        %1880 = vmatpush1.msra.mxu0 0.0
        %1881 = vmatprep.subr.mxu0 0.0
        %1882 = vmatpush1.msra.mxu0 0.0
        %1883 = vmatprep.subr.mxu0 0.0
        %1884 = vmatpush1.msra.mxu0 0.0
        %1885 = vmatprep.subr.mxu0 0.0
        %1886 = vmatpush1.msra.mxu0 0.0
        %1887 = vmatprep.subr.mxu0 0.0
        %1888 = vmatpush1.msra.mxu0 0.0
        %1889 = vmatprep.subr.mxu0 0.0
        %1890 = vmatpush1.msra.mxu0 0.0
        %1891 = vmatprep.subr.mxu0 0.0
        %1892 = vmatpush1.msra.mxu0 0.0
        %1893 = vmatprep.subr.mxu0 0.0
        %1894 = vmatpush1.msra.mxu0 0.0
        %1895 = vmatprep.subr.mxu0 0.0
        %1896 = vmatpush1.msra.mxu0 0.0
        %1897 = vmatprep.subr.mxu0 0.0
        %1898 = vmatpush1.msra.mxu0 0.0
        %1899 = vmatprep.subr.mxu0 0.0
        %1900 = vmatpush1.msra.mxu0 0.0
        %1901 = vmatprep.subr.mxu0 0.0
        %1902 = vmatpush1.msra.mxu0 %v1866
        %1903 = vmatprep.subr.mxu0 0.0
        %1904 = vmatpush1.msra.mxu0 %v1865
        %1905 = vmatprep.subr.mxu0 0.0
        %1906 = vmatpush1.msra.mxu0 %v1864
        %1907 = vmatprep.subr.mxu0 0.0
        %1908 = vmatpush1.msra.mxu0 %v1863
        %1909 = vmatprep.subr.mxu0 0.0
        %1910 = vmatpush2.msra.mxu0 0.0
        %1911 = vmatprep.subr.mxu0 0.0
        %1912 = vmatpush2.msra.mxu0 0.0
        %1913 = vmatprep.subr.mxu0 0.0
        %1914 = vmatpush2.msra.mxu0 0.0
        %1915 = vmatprep.subr.mxu0 0.0
        %1916 = vmatpush2.msra.mxu0 0.0
        %1917 = vmatprep.subr.mxu0 0.0
        %1918 = vmatpush2.msra.mxu0 0.0
        %1919 = vmatprep.subr.mxu0 0.0
        %1920 = vmatpush2.msra.mxu0 0.0
        %1921 = vmatprep.subr.mxu0 0.0
        %1922 = vmatpush2.msra.mxu0 0.0
        %1923 = vmatprep.subr.mxu0 0.0
        %1924 = vmatpush2.msra.mxu0 0.0
        %1925 = vmatprep.subr.mxu0 0.0
        %1926 = vmatpush2.msra.mxu0 0.0
        %1927 = vmatprep.subr.mxu0 0.0
        %1928 = vmatpush2.msra.mxu0 0.0
        %1929 = vmatprep.subr.mxu0 0.0
        %1930 = vmatpush2.msra.mxu0 0.0
        %1931 = vmatprep.subr.mxu0 0.0
        %1932 = vmatpush2.msra.mxu0 0.0
        %1933 = vmatprep.subr.mxu0 0.0
        %1934 = vmatpush2.msra.mxu0 0.0
        %1935 = vmatprep.subr.mxu0 0.0
        %1936 = vmatpush2.msra.mxu0 0.0
        %1937 = vmatprep.subr.mxu0 0.0
        %1938 = vmatpush2.msra.mxu0 0.0
        %1939 = vmatprep.subr.mxu0 0.0
        %1940 = vmatpush2.msra.mxu0 0.0
        %1941 = vmatprep.mubr.f32.mxu0 0.0
        %1942 = vmatmul.mubr.f32.gmra.mxu0 %v1872
        %v1943 = vpop.f32.mrf.mxu0
        %v1944 = vadd.f32 %v1870, %v1943
        %v1945 = vpop.f32.mrf.mxu0
        %1946 = vmatprep.mubr.f32.mxu0 0.0
        %1947 = vmatmul.mubr.f32.gmra.mxu0 %v1875
        %v1948 = vpop.f32.mrf.mxu0
        %v1949 = vadd.f32 %v1870, %v1948
        %v1950 = vpop.f32.mrf.mxu0
        %1951 = vdwg.mxu0
        %v1952 = vld [vmem:[#allocation13] sm:$0xff]
        %v1953 = vld [vmem:[#allocation13 + $0x8] sm:$0xff]
        %v1954 = vld [vmem:[#allocation13 + $0x10] sm:$0xff]
        %v1955 = vld [vmem:[#allocation13 + $0x18] sm:$0xff]
        %1957 = vrot.lane.b32.xlu0 %v1771, 120
        %v1958 = vpop.permute.xlu0 %1957
        %1959 = vrot.lane.b32.xlu0 %v1771, 112
        %v1960 = vpop.permute.xlu0 %1959
        %1961 = vrot.lane.b32.xlu0 %v1771, 104
        %v1962 = vpop.permute.xlu0 %1961
        %1965 = vrot.lane.b32.xlu0 %v1855, 120
        %v1966 = vpop.permute.xlu0 %1965
        %1967 = vrot.lane.b32.xlu0 %v1860, 120
        %v1968 = vpop.permute.xlu0 %1967
        %1969 = vrot.lane.b32.xlu0 %v1855, 112
        %v1970 = vpop.permute.xlu0 %1969
        %1971 = vrot.lane.b32.xlu0 %v1860, 112
        %v1972 = vpop.permute.xlu0 %1971
        %1973 = vrot.lane.b32.xlu0 %v1855, 104
        %v1974 = vpop.permute.xlu0 %1973
        %1975 = vrot.lane.b32.xlu0 %v1860, 104
        %v1976 = vpop.permute.xlu0 %1975
        %1979 = vrot.lane.b32.xlu0 %v1944, 120
        %v1980 = vpop.permute.xlu0 %1979
        %1981 = vrot.lane.b32.xlu0 %v1949, 120
        %v1982 = vpop.permute.xlu0 %1981
        %1985 = vrot.lane.b32.xlu0 %v1944, 112
        %v1986 = vpop.permute.xlu0 %1985
        %1987 = vrot.lane.b32.xlu0 %v1949, 112
        %v1988 = vpop.permute.xlu0 %1987
        %1991 = vrot.lane.b32.xlu0 %v1944, 104
        %v1992 = vpop.permute.xlu0 %1991
        %1993 = vrot.lane.b32.xlu0 %v1949, 104
        %v1994 = vpop.permute.xlu0 %1993
        %v1997 = vsel %vm934, %v1771, 0
        %v1999 = vsel %vm934, %v1855, 0
        %v2001 = vsel %vm934, %v1860, 0
        %2003 = vmatprep.subr.mxu0 0.0
        %2004 = vmatpush1.xpose.msra.mxu0 0.0
        %2005 = vmatprep.subr.mxu0 0.0
        %2006 = vmatpush1.xpose.msra.mxu0 0.0
        %2007 = vmatprep.subr.mxu0 0.0
        %2008 = vmatpush1.xpose.msra.mxu0 0.0
        %2009 = vmatprep.subr.mxu0 0.0
        %2010 = vmatpush1.xpose.msra.mxu0 0.0
        %2011 = vmatprep.subr.mxu0 0.0
        %2012 = vmatpush1.xpose.msra.mxu0 0.0
        %2013 = vmatprep.subr.mxu0 0.0
        %2014 = vmatpush1.xpose.msra.mxu0 0.0
        %2015 = vmatprep.subr.mxu0 0.0
        %2016 = vmatpush1.xpose.msra.mxu0 0.0
        %2017 = vmatprep.subr.mxu0 0.0
        %2018 = vmatpush1.xpose.msra.mxu0 0.0
        %2019 = vmatprep.subr.mxu0 0.0
        %2020 = vmatpush1.xpose.msra.mxu0 0.0
        %2021 = vmatprep.subr.mxu0 0.0
        %2022 = vmatpush1.xpose.msra.mxu0 0.0
        %2023 = vmatprep.subr.mxu0 0.0
        %2024 = vmatpush1.xpose.msra.mxu0 0.0
        %2025 = vmatprep.subr.mxu0 0.0
        %2026 = vmatpush1.xpose.msra.mxu0 0.0
        %2027 = vmatprep.subr.mxu0 0.0
        %2028 = vmatpush1.xpose.msra.mxu0 0.0
        %2029 = vmatprep.subr.mxu0 0.0
        %2030 = vmatpush1.xpose.msra.mxu0 0.0
        %2031 = vmatprep.subr.mxu0 0.0
        %2032 = vmatpush1.xpose.msra.mxu0 %v2001
        %2033 = vmatprep.subr.mxu0 0.0
        %2034 = vmatpush1.xpose.msra.mxu0 %v1999
        %2035 = vmatprep.subr.mxu0 0.0
        %2036 = vmatpush2.xpose.msra.mxu0 0.0
        %2037 = vmatprep.subr.mxu0 0.0
        %2038 = vmatpush2.xpose.msra.mxu0 0.0
        %2039 = vmatprep.subr.mxu0 0.0
        %2040 = vmatpush2.xpose.msra.mxu0 0.0
        %2041 = vmatprep.subr.mxu0 0.0
        %2042 = vmatpush2.xpose.msra.mxu0 0.0
        %2043 = vmatprep.subr.mxu0 0.0
        %2044 = vmatpush2.xpose.msra.mxu0 0.0
        %2045 = vmatprep.subr.mxu0 0.0
        %2046 = vmatpush2.xpose.msra.mxu0 0.0
        %2047 = vmatprep.subr.mxu0 0.0
        %2048 = vmatpush2.xpose.msra.mxu0 0.0
        %2049 = vmatprep.subr.mxu0 0.0
        %2050 = vmatpush2.xpose.msra.mxu0 0.0
        %2051 = vmatprep.subr.mxu0 0.0
        %2052 = vmatpush2.xpose.msra.mxu0 0.0
        %2053 = vmatprep.subr.mxu0 0.0
        %2054 = vmatpush2.xpose.msra.mxu0 0.0
        %2055 = vmatprep.subr.mxu0 0.0
        %2056 = vmatpush2.xpose.msra.mxu0 0.0
        %2057 = vmatprep.subr.mxu0 0.0
        %2058 = vmatpush2.xpose.msra.mxu0 0.0
        %2059 = vmatprep.subr.mxu0 0.0
        %2060 = vmatpush2.xpose.msra.mxu0 0.0
        %2061 = vmatprep.subr.mxu0 0.0
        %2062 = vmatpush2.xpose.msra.mxu0 0.0
        %2063 = vmatprep.subr.mxu0 0.0
        %2064 = vmatpush2.xpose.msra.mxu0 0.0
        %2065 = vmatprep.subr.mxu0 0.0
        %2066 = vmatpush2.xpose.msra.mxu0 0.0
        %2067 = vmatprep.mubr.f32.mxu0 0.0
        %2068 = vmatmul.mubr.f32.gmra.mxu0 %v1997
        %v2069 = vpop.f32.mrf.mxu0
        %v2070 = vadd.f32 0.0, %v2069
        %v2071 = vpop.f32.mrf.mxu0
        %2072 = vdwg.mxu0
        %v2073 = vsel %vm934, %v1958, 0
        %v2075 = vsel %vm934, %v1966, 0
        %v2077 = vsel %vm934, %v1968, 0
        %2079 = vmatprep.subr.mxu0 0.0
        %2080 = vmatpush1.xpose.msra.mxu0 0.0
        %2081 = vmatprep.subr.mxu0 0.0
        %2082 = vmatpush1.xpose.msra.mxu0 0.0
        %2083 = vmatprep.subr.mxu0 0.0
        %2084 = vmatpush1.xpose.msra.mxu0 0.0
        %2085 = vmatprep.subr.mxu0 0.0
        %2086 = vmatpush1.xpose.msra.mxu0 0.0
        %2087 = vmatprep.subr.mxu0 0.0
        %2088 = vmatpush1.xpose.msra.mxu0 0.0
        %2089 = vmatprep.subr.mxu0 0.0
        %2090 = vmatpush1.xpose.msra.mxu0 0.0
        %2091 = vmatprep.subr.mxu0 0.0
        %2092 = vmatpush1.xpose.msra.mxu0 0.0
        %2093 = vmatprep.subr.mxu0 0.0
        %2094 = vmatpush1.xpose.msra.mxu0 0.0
        %2095 = vmatprep.subr.mxu0 0.0
        %2096 = vmatpush1.xpose.msra.mxu0 0.0
        %2097 = vmatprep.subr.mxu0 0.0
        %2098 = vmatpush1.xpose.msra.mxu0 0.0
        %2099 = vmatprep.subr.mxu0 0.0
        %2100 = vmatpush1.xpose.msra.mxu0 0.0
        %2101 = vmatprep.subr.mxu0 0.0
        %2102 = vmatpush1.xpose.msra.mxu0 0.0
        %2103 = vmatprep.subr.mxu0 0.0
        %2104 = vmatpush1.xpose.msra.mxu0 0.0
        %2105 = vmatprep.subr.mxu0 0.0
        %2106 = vmatpush1.xpose.msra.mxu0 0.0
        %2107 = vmatprep.subr.mxu0 0.0
        %2108 = vmatpush1.xpose.msra.mxu0 %v2077
        %2109 = vmatprep.subr.mxu0 0.0
        %2110 = vmatpush1.xpose.msra.mxu0 %v2075
        %2111 = vmatprep.subr.mxu0 0.0
        %2112 = vmatpush2.xpose.msra.mxu0 0.0
        %2113 = vmatprep.subr.mxu0 0.0
        %2114 = vmatpush2.xpose.msra.mxu0 0.0
        %2115 = vmatprep.subr.mxu0 0.0
        %2116 = vmatpush2.xpose.msra.mxu0 0.0
        %2117 = vmatprep.subr.mxu0 0.0
        %2118 = vmatpush2.xpose.msra.mxu0 0.0
        %2119 = vmatprep.subr.mxu0 0.0
        %2120 = vmatpush2.xpose.msra.mxu0 0.0
        %2121 = vmatprep.subr.mxu0 0.0
        %2122 = vmatpush2.xpose.msra.mxu0 0.0
        %2123 = vmatprep.subr.mxu0 0.0
        %2124 = vmatpush2.xpose.msra.mxu0 0.0
        %2125 = vmatprep.subr.mxu0 0.0
        %2126 = vmatpush2.xpose.msra.mxu0 0.0
        %2127 = vmatprep.subr.mxu0 0.0
        %2128 = vmatpush2.xpose.msra.mxu0 0.0
        %2129 = vmatprep.subr.mxu0 0.0
        %2130 = vmatpush2.xpose.msra.mxu0 0.0
        %2131 = vmatprep.subr.mxu0 0.0
        %2132 = vmatpush2.xpose.msra.mxu0 0.0
        %2133 = vmatprep.subr.mxu0 0.0
        %2134 = vmatpush2.xpose.msra.mxu0 0.0
        %2135 = vmatprep.subr.mxu0 0.0
        %2136 = vmatpush2.xpose.msra.mxu0 0.0
        %2137 = vmatprep.subr.mxu0 0.0
        %2138 = vmatpush2.xpose.msra.mxu0 0.0
        %2139 = vmatprep.subr.mxu0 0.0
        %2140 = vmatpush2.xpose.msra.mxu0 0.0
        %2141 = vmatprep.subr.mxu0 0.0
        %2142 = vmatpush2.xpose.msra.mxu0 0.0
        %2143 = vmatprep.mubr.f32.mxu0 0.0
        %2144 = vmatmul.mubr.f32.gmra.mxu0 %v2073
        %v2145 = vpop.f32.mrf.mxu0
        %v2146 = vadd.f32 0.0, %v2145
        %v2147 = vpop.f32.mrf.mxu0
        %2148 = vdwg.mxu0
        %v2149 = vsel %vm934, %v1960, 0
        %v2151 = vsel %vm934, %v1970, 0
        %v2153 = vsel %vm934, %v1972, 0
        %2155 = vmatprep.subr.mxu0 0.0
        %2156 = vmatpush1.xpose.msra.mxu0 0.0
        %2157 = vmatprep.subr.mxu0 0.0
        %2158 = vmatpush1.xpose.msra.mxu0 0.0
        %2159 = vmatprep.subr.mxu0 0.0
        %2160 = vmatpush1.xpose.msra.mxu0 0.0
        %2161 = vmatprep.subr.mxu0 0.0
        %2162 = vmatpush1.xpose.msra.mxu0 0.0
        %2163 = vmatprep.subr.mxu0 0.0
        %2164 = vmatpush1.xpose.msra.mxu0 0.0
        %2165 = vmatprep.subr.mxu0 0.0
        %2166 = vmatpush1.xpose.msra.mxu0 0.0
        %2167 = vmatprep.subr.mxu0 0.0
        %2168 = vmatpush1.xpose.msra.mxu0 0.0
        %2169 = vmatprep.subr.mxu0 0.0
        %2170 = vmatpush1.xpose.msra.mxu0 0.0
        %2171 = vmatprep.subr.mxu0 0.0
        %2172 = vmatpush1.xpose.msra.mxu0 0.0
        %2173 = vmatprep.subr.mxu0 0.0
        %2174 = vmatpush1.xpose.msra.mxu0 0.0
        %2175 = vmatprep.subr.mxu0 0.0
        %2176 = vmatpush1.xpose.msra.mxu0 0.0
        %2177 = vmatprep.subr.mxu0 0.0
        %2178 = vmatpush1.xpose.msra.mxu0 0.0
        %2179 = vmatprep.subr.mxu0 0.0
        %2180 = vmatpush1.xpose.msra.mxu0 0.0
        %2181 = vmatprep.subr.mxu0 0.0
        %2182 = vmatpush1.xpose.msra.mxu0 0.0
        %2183 = vmatprep.subr.mxu0 0.0
        %2184 = vmatpush1.xpose.msra.mxu0 %v2153
        %2185 = vmatprep.subr.mxu0 0.0
        %2186 = vmatpush1.xpose.msra.mxu0 %v2151
        %2187 = vmatprep.subr.mxu0 0.0
        %2188 = vmatpush2.xpose.msra.mxu0 0.0
        %2189 = vmatprep.subr.mxu0 0.0
        %2190 = vmatpush2.xpose.msra.mxu0 0.0
        %2191 = vmatprep.subr.mxu0 0.0
        %2192 = vmatpush2.xpose.msra.mxu0 0.0
        %2193 = vmatprep.subr.mxu0 0.0
        %2194 = vmatpush2.xpose.msra.mxu0 0.0
        %2195 = vmatprep.subr.mxu0 0.0
        %2196 = vmatpush2.xpose.msra.mxu0 0.0
        %2197 = vmatprep.subr.mxu0 0.0
        %2198 = vmatpush2.xpose.msra.mxu0 0.0
        %2199 = vmatprep.subr.mxu0 0.0
        %2200 = vmatpush2.xpose.msra.mxu0 0.0
        %2201 = vmatprep.subr.mxu0 0.0
        %2202 = vmatpush2.xpose.msra.mxu0 0.0
        %2203 = vmatprep.subr.mxu0 0.0
        %2204 = vmatpush2.xpose.msra.mxu0 0.0
        %2205 = vmatprep.subr.mxu0 0.0
        %2206 = vmatpush2.xpose.msra.mxu0 0.0
        %2207 = vmatprep.subr.mxu0 0.0
        %2208 = vmatpush2.xpose.msra.mxu0 0.0
        %2209 = vmatprep.subr.mxu0 0.0
        %2210 = vmatpush2.xpose.msra.mxu0 0.0
        %2211 = vmatprep.subr.mxu0 0.0
        %2212 = vmatpush2.xpose.msra.mxu0 0.0
        %2213 = vmatprep.subr.mxu0 0.0
        %2214 = vmatpush2.xpose.msra.mxu0 0.0
        %2215 = vmatprep.subr.mxu0 0.0
        %2216 = vmatpush2.xpose.msra.mxu0 0.0
        %2217 = vmatprep.subr.mxu0 0.0
        %2218 = vmatpush2.xpose.msra.mxu0 0.0
        %2219 = vmatprep.mubr.f32.mxu0 0.0
        %2220 = vmatmul.mubr.f32.gmra.mxu0 %v2149
        %v2221 = vpop.f32.mrf.mxu0
        %v2222 = vadd.f32 0.0, %v2221
        %v2223 = vpop.f32.mrf.mxu0
        %2224 = vdwg.mxu0
        %v2225 = vsel %vm934, %v1962, 0
        %v2227 = vsel %vm934, %v1974, 0
        %v2229 = vsel %vm934, %v1976, 0
        %2231 = vmatprep.subr.mxu0 0.0
        %2232 = vmatpush1.xpose.msra.mxu0 0.0
        %2233 = vmatprep.subr.mxu0 0.0
        %2234 = vmatpush1.xpose.msra.mxu0 0.0
        %2235 = vmatprep.subr.mxu0 0.0
        %2236 = vmatpush1.xpose.msra.mxu0 0.0
        %2237 = vmatprep.subr.mxu0 0.0
        %2238 = vmatpush1.xpose.msra.mxu0 0.0
        %2239 = vmatprep.subr.mxu0 0.0
        %2240 = vmatpush1.xpose.msra.mxu0 0.0
        %2241 = vmatprep.subr.mxu0 0.0
        %2242 = vmatpush1.xpose.msra.mxu0 0.0
        %2243 = vmatprep.subr.mxu0 0.0
        %2244 = vmatpush1.xpose.msra.mxu0 0.0
        %2245 = vmatprep.subr.mxu0 0.0
        %2246 = vmatpush1.xpose.msra.mxu0 0.0
        %2247 = vmatprep.subr.mxu0 0.0
        %2248 = vmatpush1.xpose.msra.mxu0 0.0
        %2249 = vmatprep.subr.mxu0 0.0
        %2250 = vmatpush1.xpose.msra.mxu0 0.0
        %2251 = vmatprep.subr.mxu0 0.0
        %2252 = vmatpush1.xpose.msra.mxu0 0.0
        %2253 = vmatprep.subr.mxu0 0.0
        %2254 = vmatpush1.xpose.msra.mxu0 0.0
        %2255 = vmatprep.subr.mxu0 0.0
        %2256 = vmatpush1.xpose.msra.mxu0 0.0
        %2257 = vmatprep.subr.mxu0 0.0
        %2258 = vmatpush1.xpose.msra.mxu0 0.0
        %2259 = vmatprep.subr.mxu0 0.0
        %2260 = vmatpush1.xpose.msra.mxu0 %v2229
        %2261 = vmatprep.subr.mxu0 0.0
        %2262 = vmatpush1.xpose.msra.mxu0 %v2227
        %2263 = vmatprep.subr.mxu0 0.0
        %2264 = vmatpush2.xpose.msra.mxu0 0.0
        %2265 = vmatprep.subr.mxu0 0.0
        %2266 = vmatpush2.xpose.msra.mxu0 0.0
        %2267 = vmatprep.subr.mxu0 0.0
        %2268 = vmatpush2.xpose.msra.mxu0 0.0
        %2269 = vmatprep.subr.mxu0 0.0
        %2270 = vmatpush2.xpose.msra.mxu0 0.0
        %2271 = vmatprep.subr.mxu0 0.0
        %2272 = vmatpush2.xpose.msra.mxu0 0.0
        %2273 = vmatprep.subr.mxu0 0.0
        %2274 = vmatpush2.xpose.msra.mxu0 0.0
        %2275 = vmatprep.subr.mxu0 0.0
        %2276 = vmatpush2.xpose.msra.mxu0 0.0
        %2277 = vmatprep.subr.mxu0 0.0
        %2278 = vmatpush2.xpose.msra.mxu0 0.0
        %2279 = vmatprep.subr.mxu0 0.0
        %2280 = vmatpush2.xpose.msra.mxu0 0.0
        %2281 = vmatprep.subr.mxu0 0.0
        %2282 = vmatpush2.xpose.msra.mxu0 0.0
        %2283 = vmatprep.subr.mxu0 0.0
        %2284 = vmatpush2.xpose.msra.mxu0 0.0
        %2285 = vmatprep.subr.mxu0 0.0
        %2286 = vmatpush2.xpose.msra.mxu0 0.0
        %2287 = vmatprep.subr.mxu0 0.0
        %2288 = vmatpush2.xpose.msra.mxu0 0.0
        %2289 = vmatprep.subr.mxu0 0.0
        %2290 = vmatpush2.xpose.msra.mxu0 0.0
        %2291 = vmatprep.subr.mxu0 0.0
        %2292 = vmatpush2.xpose.msra.mxu0 0.0
        %2293 = vmatprep.subr.mxu0 0.0
        %2294 = vmatpush2.xpose.msra.mxu0 0.0
        %2295 = vmatprep.mubr.f32.mxu0 0.0
        %2296 = vmatmul.mubr.f32.gmra.mxu0 %v2225
        %v2297 = vpop.f32.mrf.mxu0
        %v2298 = vadd.f32 0.0, %v2297
        %v2299 = vpop.f32.mrf.mxu0
        %2300 = vdwg.mxu0
        %v2301 = vsel %vm1586, %v2070, -inf
        %2302 = vmax.xlane.f32.xlu0 %v2301
        %v2303 = vpop.xlane.xlu0 %2302
        %v2304 = vsel %vm1586, %v2146, -inf
        %2305 = vmax.xlane.f32.xlu0 %v2304
        %v2306 = vpop.xlane.xlu0 %2305
        %v2307 = vsel %vm1586, %v2222, -inf
        %2308 = vmax.xlane.f32.xlu0 %v2307
        %v2309 = vpop.xlane.xlu0 %2308
        %v2310 = vsel %vm1586, %v2298, -inf
        %2311 = vmax.xlane.f32.xlu0 %v2310
        %v2312 = vpop.xlane.xlu0 %2311
        %v2313 = vsub.f32 %v2070, %v2303
        %v2314 = vsub.f32 %v2146, %v2306
        %v2315 = vsub.f32 %v2222, %v2309
        %v2316 = vsub.f32 %v2298, %v2312
        %v2317 = vmul.f32 %v2313, 1.442695
        %v2318 = vpow.pop %v2317
        %v2319 = vmul.f32 %v2314, 1.442695
        %v2320 = vpow.pop %v2319
        %v2321 = vmul.f32 %v2315, 1.442695
        %v2322 = vpow.pop %v2321
        %v2323 = vmul.f32 %v2316, 1.442695
        %v2324 = vpow.pop %v2323
        %v2325 = vsel %vm1586, %v2318, 0.0
        %2326 = vadd.xlane.f32.xlu0 %v2325
        %v2327 = vpop.xlane.xlu0 %2326
        %v2328 = vsel %vm1586, %v2320, 0.0
        %2329 = vadd.xlane.f32.xlu0 %v2328
        %v2330 = vpop.xlane.xlu0 %2329
        %v2331 = vsel %vm1586, %v2322, 0.0
        %2332 = vadd.xlane.f32.xlu0 %v2331
        %v2333 = vpop.xlane.xlu0 %2332
        %v2334 = vsel %vm1586, %v2324, 0.0
        %2335 = vadd.xlane.f32.xlu0 %v2334
        %v2336 = vpop.xlane.xlu0 %2335
        %v2337 = vrcp.pop %v2327
        %v2338 = vrcp.pop %v2330
        %v2339 = vrcp.pop %v2333
        %v2340 = vrcp.pop %v2336
        %v2341 = vmul.f32 %v2318, %v2337
        %v2342 = vmul.f32 %v2320, %v2338
        %v2343 = vmul.f32 %v2322, %v2339
        %v2344 = vmul.f32 %v2324, %v2340
        %v2346 = vsel %vm1586, %v2341, 0
        %2348 = vmatprep.subr.mxu0 0.0
        %2349 = vmatpush1.msra.mxu0 0.0
        %2350 = vmatprep.subr.mxu0 0.0
        %2351 = vmatpush1.msra.mxu0 0.0
        %2352 = vmatprep.subr.mxu0 0.0
        %2353 = vmatpush1.msra.mxu0 0.0
        %2354 = vmatprep.subr.mxu0 0.0
        %2355 = vmatpush1.msra.mxu0 0.0
        %2356 = vmatprep.subr.mxu0 0.0
        %2357 = vmatpush1.msra.mxu0 0.0
        %2358 = vmatprep.subr.mxu0 0.0
        %2359 = vmatpush1.msra.mxu0 0.0
        %2360 = vmatprep.subr.mxu0 0.0
        %2361 = vmatpush1.msra.mxu0 0.0
        %2362 = vmatprep.subr.mxu0 0.0
        %2363 = vmatpush1.msra.mxu0 0.0
        %2364 = vmatprep.subr.mxu0 0.0
        %2365 = vmatpush1.msra.mxu0 0.0
        %2366 = vmatprep.subr.mxu0 0.0
        %2367 = vmatpush1.msra.mxu0 0.0
        %2368 = vmatprep.subr.mxu0 0.0
        %2369 = vmatpush1.msra.mxu0 0.0
        %2370 = vmatprep.subr.mxu0 0.0
        %2371 = vmatpush1.msra.mxu0 0.0
        %2372 = vmatprep.subr.mxu0 0.0
        %2373 = vmatpush1.msra.mxu0 0.0
        %2374 = vmatprep.subr.mxu0 0.0
        %2375 = vmatpush1.msra.mxu0 0.0
        %2376 = vmatprep.subr.mxu0 0.0
        %2377 = vmatpush1.msra.mxu0 %v1949
        %2378 = vmatprep.subr.mxu0 0.0
        %2379 = vmatpush1.msra.mxu0 %v1944
        %2380 = vmatprep.subr.mxu0 0.0
        %2381 = vmatpush2.msra.mxu0 0.0
        %2382 = vmatprep.subr.mxu0 0.0
        %2383 = vmatpush2.msra.mxu0 0.0
        %2384 = vmatprep.subr.mxu0 0.0
        %2385 = vmatpush2.msra.mxu0 0.0
        %2386 = vmatprep.subr.mxu0 0.0
        %2387 = vmatpush2.msra.mxu0 0.0
        %2388 = vmatprep.subr.mxu0 0.0
        %2389 = vmatpush2.msra.mxu0 0.0
        %2390 = vmatprep.subr.mxu0 0.0
        %2391 = vmatpush2.msra.mxu0 0.0
        %2392 = vmatprep.subr.mxu0 0.0
        %2393 = vmatpush2.msra.mxu0 0.0
        %2394 = vmatprep.subr.mxu0 0.0
        %2395 = vmatpush2.msra.mxu0 0.0
        %2396 = vmatprep.subr.mxu0 0.0
        %2397 = vmatpush2.msra.mxu0 0.0
        %2398 = vmatprep.subr.mxu0 0.0
        %2399 = vmatpush2.msra.mxu0 0.0
        %2400 = vmatprep.subr.mxu0 0.0
        %2401 = vmatpush2.msra.mxu0 0.0
        %2402 = vmatprep.subr.mxu0 0.0
        %2403 = vmatpush2.msra.mxu0 0.0
        %2404 = vmatprep.subr.mxu0 0.0
        %2405 = vmatpush2.msra.mxu0 0.0
        %2406 = vmatprep.subr.mxu0 0.0
        %2407 = vmatpush2.msra.mxu0 0.0
        %2408 = vmatprep.subr.mxu0 0.0
        %2409 = vmatpush2.msra.mxu0 0.0
        %2410 = vmatprep.subr.mxu0 0.0
        %2411 = vmatpush2.msra.mxu0 0.0
        %2412 = vmatprep.mubr.f32.mxu0 0.0
        %2413 = vmatmul.mubr.f32.gmra.mxu0 %v2346
        %v2414 = vpop.f32.mrf.mxu0
        %v2415 = vadd.f32 0.0, %v2414
        %v2416 = vpop.f32.mrf.mxu0
        %2417 = vdwg.mxu0
        %v2419 = vsel %vm1586, %v2342, 0
        %2421 = vmatprep.subr.mxu0 0.0
        %2422 = vmatpush1.msra.mxu0 0.0
        %2423 = vmatprep.subr.mxu0 0.0
        %2424 = vmatpush1.msra.mxu0 0.0
        %2425 = vmatprep.subr.mxu0 0.0
        %2426 = vmatpush1.msra.mxu0 0.0
        %2427 = vmatprep.subr.mxu0 0.0
        %2428 = vmatpush1.msra.mxu0 0.0
        %2429 = vmatprep.subr.mxu0 0.0
        %2430 = vmatpush1.msra.mxu0 0.0
        %2431 = vmatprep.subr.mxu0 0.0
        %2432 = vmatpush1.msra.mxu0 0.0
        %2433 = vmatprep.subr.mxu0 0.0
        %2434 = vmatpush1.msra.mxu0 0.0
        %2435 = vmatprep.subr.mxu0 0.0
        %2436 = vmatpush1.msra.mxu0 0.0
        %2437 = vmatprep.subr.mxu0 0.0
        %2438 = vmatpush1.msra.mxu0 0.0
        %2439 = vmatprep.subr.mxu0 0.0
        %2440 = vmatpush1.msra.mxu0 0.0
        %2441 = vmatprep.subr.mxu0 0.0
        %2442 = vmatpush1.msra.mxu0 0.0
        %2443 = vmatprep.subr.mxu0 0.0
        %2444 = vmatpush1.msra.mxu0 0.0
        %2445 = vmatprep.subr.mxu0 0.0
        %2446 = vmatpush1.msra.mxu0 0.0
        %2447 = vmatprep.subr.mxu0 0.0
        %2448 = vmatpush1.msra.mxu0 0.0
        %2449 = vmatprep.subr.mxu0 0.0
        %2450 = vmatpush1.msra.mxu0 %v1982
        %2451 = vmatprep.subr.mxu0 0.0
        %2452 = vmatpush1.msra.mxu0 %v1980
        %2453 = vmatprep.subr.mxu0 0.0
        %2454 = vmatpush2.msra.mxu0 0.0
        %2455 = vmatprep.subr.mxu0 0.0
        %2456 = vmatpush2.msra.mxu0 0.0
        %2457 = vmatprep.subr.mxu0 0.0
        %2458 = vmatpush2.msra.mxu0 0.0
        %2459 = vmatprep.subr.mxu0 0.0
        %2460 = vmatpush2.msra.mxu0 0.0
        %2461 = vmatprep.subr.mxu0 0.0
        %2462 = vmatpush2.msra.mxu0 0.0
        %2463 = vmatprep.subr.mxu0 0.0
        %2464 = vmatpush2.msra.mxu0 0.0
        %2465 = vmatprep.subr.mxu0 0.0
        %2466 = vmatpush2.msra.mxu0 0.0
        %2467 = vmatprep.subr.mxu0 0.0
        %2468 = vmatpush2.msra.mxu0 0.0
        %2469 = vmatprep.subr.mxu0 0.0
        %2470 = vmatpush2.msra.mxu0 0.0
        %2471 = vmatprep.subr.mxu0 0.0
        %2472 = vmatpush2.msra.mxu0 0.0
        %2473 = vmatprep.subr.mxu0 0.0
        %2474 = vmatpush2.msra.mxu0 0.0
        %2475 = vmatprep.subr.mxu0 0.0
        %2476 = vmatpush2.msra.mxu0 0.0
        %2477 = vmatprep.subr.mxu0 0.0
        %2478 = vmatpush2.msra.mxu0 0.0
        %2479 = vmatprep.subr.mxu0 0.0
        %2480 = vmatpush2.msra.mxu0 0.0
        %2481 = vmatprep.subr.mxu0 0.0
        %2482 = vmatpush2.msra.mxu0 0.0
        %2483 = vmatprep.subr.mxu0 0.0
        %2484 = vmatpush2.msra.mxu0 0.0
        %2485 = vmatprep.mubr.f32.mxu0 0.0
        %2486 = vmatmul.mubr.f32.gmra.mxu0 %v2419
        %v2487 = vpop.f32.mrf.mxu0
        %v2488 = vadd.f32 0.0, %v2487
        %v2489 = vpop.f32.mrf.mxu0
        %2490 = vdwg.mxu0
        %v2492 = vsel %vm1586, %v2343, 0
        %2494 = vmatprep.subr.mxu0 0.0
        %2495 = vmatpush1.msra.mxu0 0.0
        %2496 = vmatprep.subr.mxu0 0.0
        %2497 = vmatpush1.msra.mxu0 0.0
        %2498 = vmatprep.subr.mxu0 0.0
        %2499 = vmatpush1.msra.mxu0 0.0
        %2500 = vmatprep.subr.mxu0 0.0
        %2501 = vmatpush1.msra.mxu0 0.0
        %2502 = vmatprep.subr.mxu0 0.0
        %2503 = vmatpush1.msra.mxu0 0.0
        %2504 = vmatprep.subr.mxu0 0.0
        %2505 = vmatpush1.msra.mxu0 0.0
        %2506 = vmatprep.subr.mxu0 0.0
        %2507 = vmatpush1.msra.mxu0 0.0
        %2508 = vmatprep.subr.mxu0 0.0
        %2509 = vmatpush1.msra.mxu0 0.0
        %2510 = vmatprep.subr.mxu0 0.0
        %2511 = vmatpush1.msra.mxu0 0.0
        %2512 = vmatprep.subr.mxu0 0.0
        %2513 = vmatpush1.msra.mxu0 0.0
        %2514 = vmatprep.subr.mxu0 0.0
        %2515 = vmatpush1.msra.mxu0 0.0
        %2516 = vmatprep.subr.mxu0 0.0
        %2517 = vmatpush1.msra.mxu0 0.0
        %2518 = vmatprep.subr.mxu0 0.0
        %2519 = vmatpush1.msra.mxu0 0.0
        %2520 = vmatprep.subr.mxu0 0.0
        %2521 = vmatpush1.msra.mxu0 0.0
        %2522 = vmatprep.subr.mxu0 0.0
        %2523 = vmatpush1.msra.mxu0 %v1988
        %2524 = vmatprep.subr.mxu0 0.0
        %2525 = vmatpush1.msra.mxu0 %v1986
        %2526 = vmatprep.subr.mxu0 0.0
        %2527 = vmatpush2.msra.mxu0 0.0
        %2528 = vmatprep.subr.mxu0 0.0
        %2529 = vmatpush2.msra.mxu0 0.0
        %2530 = vmatprep.subr.mxu0 0.0
        %2531 = vmatpush2.msra.mxu0 0.0
        %2532 = vmatprep.subr.mxu0 0.0
        %2533 = vmatpush2.msra.mxu0 0.0
        %2534 = vmatprep.subr.mxu0 0.0
        %2535 = vmatpush2.msra.mxu0 0.0
        %2536 = vmatprep.subr.mxu0 0.0
        %2537 = vmatpush2.msra.mxu0 0.0
        %2538 = vmatprep.subr.mxu0 0.0
        %2539 = vmatpush2.msra.mxu0 0.0
        %2540 = vmatprep.subr.mxu0 0.0
        %2541 = vmatpush2.msra.mxu0 0.0
        %2542 = vmatprep.subr.mxu0 0.0
        %2543 = vmatpush2.msra.mxu0 0.0
        %2544 = vmatprep.subr.mxu0 0.0
        %2545 = vmatpush2.msra.mxu0 0.0
        %2546 = vmatprep.subr.mxu0 0.0
        %2547 = vmatpush2.msra.mxu0 0.0
        %2548 = vmatprep.subr.mxu0 0.0
        %2549 = vmatpush2.msra.mxu0 0.0
        %2550 = vmatprep.subr.mxu0 0.0
        %2551 = vmatpush2.msra.mxu0 0.0
        %2552 = vmatprep.subr.mxu0 0.0
        %2553 = vmatpush2.msra.mxu0 0.0
        %2554 = vmatprep.subr.mxu0 0.0
        %2555 = vmatpush2.msra.mxu0 0.0
        %2556 = vmatprep.subr.mxu0 0.0
        %2557 = vmatpush2.msra.mxu0 0.0
        %2558 = vmatprep.mubr.f32.mxu0 0.0
        %2559 = vmatmul.mubr.f32.gmra.mxu0 %v2492
        %v2560 = vpop.f32.mrf.mxu0
        %v2561 = vadd.f32 0.0, %v2560
        %v2562 = vpop.f32.mrf.mxu0
        %2563 = vdwg.mxu0
        %v2565 = vsel %vm1586, %v2344, 0
        %2567 = vmatprep.subr.mxu0 0.0
        %2568 = vmatpush1.msra.mxu0 0.0
        %2569 = vmatprep.subr.mxu0 0.0
        %2570 = vmatpush1.msra.mxu0 0.0
        %2571 = vmatprep.subr.mxu0 0.0
        %2572 = vmatpush1.msra.mxu0 0.0
        %2573 = vmatprep.subr.mxu0 0.0
        %2574 = vmatpush1.msra.mxu0 0.0
        %2575 = vmatprep.subr.mxu0 0.0
        %2576 = vmatpush1.msra.mxu0 0.0
        %2577 = vmatprep.subr.mxu0 0.0
        %2578 = vmatpush1.msra.mxu0 0.0
        %2579 = vmatprep.subr.mxu0 0.0
        %2580 = vmatpush1.msra.mxu0 0.0
        %2581 = vmatprep.subr.mxu0 0.0
        %2582 = vmatpush1.msra.mxu0 0.0
        %2583 = vmatprep.subr.mxu0 0.0
        %2584 = vmatpush1.msra.mxu0 0.0
        %2585 = vmatprep.subr.mxu0 0.0
        %2586 = vmatpush1.msra.mxu0 0.0
        %2587 = vmatprep.subr.mxu0 0.0
        %2588 = vmatpush1.msra.mxu0 0.0
        %2589 = vmatprep.subr.mxu0 0.0
        %2590 = vmatpush1.msra.mxu0 0.0
        %2591 = vmatprep.subr.mxu0 0.0
        %2592 = vmatpush1.msra.mxu0 0.0
        %2593 = vmatprep.subr.mxu0 0.0
        %2594 = vmatpush1.msra.mxu0 0.0
        %2595 = vmatprep.subr.mxu0 0.0
        %2596 = vmatpush1.msra.mxu0 %v1994
        %2597 = vmatprep.subr.mxu0 0.0
        %2598 = vmatpush1.msra.mxu0 %v1992
        %2599 = vmatprep.subr.mxu0 0.0
        %2600 = vmatpush2.msra.mxu0 0.0
        %2601 = vmatprep.subr.mxu0 0.0
        %2602 = vmatpush2.msra.mxu0 0.0
        %2603 = vmatprep.subr.mxu0 0.0
        %2604 = vmatpush2.msra.mxu0 0.0
        %2605 = vmatprep.subr.mxu0 0.0
        %2606 = vmatpush2.msra.mxu0 0.0
        %2607 = vmatprep.subr.mxu0 0.0
        %2608 = vmatpush2.msra.mxu0 0.0
        %2609 = vmatprep.subr.mxu0 0.0
        %2610 = vmatpush2.msra.mxu0 0.0
        %2611 = vmatprep.subr.mxu0 0.0
        %2612 = vmatpush2.msra.mxu0 0.0
        %2613 = vmatprep.subr.mxu0 0.0
        %2614 = vmatpush2.msra.mxu0 0.0
        %2615 = vmatprep.subr.mxu0 0.0
        %2616 = vmatpush2.msra.mxu0 0.0
        %2617 = vmatprep.subr.mxu0 0.0
        %2618 = vmatpush2.msra.mxu0 0.0
        %2619 = vmatprep.subr.mxu0 0.0
        %2620 = vmatpush2.msra.mxu0 0.0
        %2621 = vmatprep.subr.mxu0 0.0
        %2622 = vmatpush2.msra.mxu0 0.0
        %2623 = vmatprep.subr.mxu0 0.0
        %2624 = vmatpush2.msra.mxu0 0.0
        %2625 = vmatprep.subr.mxu0 0.0
        %2626 = vmatpush2.msra.mxu0 0.0
        %2627 = vmatprep.subr.mxu0 0.0
        %2628 = vmatpush2.msra.mxu0 0.0
        %2629 = vmatprep.subr.mxu0 0.0
        %2630 = vmatpush2.msra.mxu0 0.0
        %2631 = vmatprep.mubr.f32.mxu0 0.0
        %2632 = vmatmul.mubr.f32.gmra.mxu0 %v2565
        %v2633 = vpop.f32.mrf.mxu0
        %v2634 = vadd.f32 0.0, %v2633
        %v2635 = vpop.f32.mrf.mxu0
        %2636 = vdwg.mxu0
        %2638 = vrot.lane.b32.xlu0 %v2488, 8
        %v2639 = vpop.permute.xlu0 %2638
        %2642 = vrot.lane.b32.xlu0 %v2561, 16
        %v2643 = vpop.permute.xlu0 %2642
        %2646 = vrot.lane.b32.xlu0 %v2634, 24
        %v2647 = vpop.permute.xlu0 %2646
        %v2649 = vsel %vm934, %v2415, %v2639
        %v2650 = vsel %vm1586, %v2649, %v2643
        %v2651 = vsel %vm1588, %v2650, %v2647
        %v2652 = vlaneseq
        %v2653 = vshrl.u32 %v2652, 7
        %v2654 = vsub.s32 5, %v2653
        %v2655 = vrot.slane %v742, %v2654
        %v2657 = vsel %vm756, %v2651, 0
        %2659 = vmatprep.subr.mxu0 0.0
        %2660 = vmatpush1.msra.mxu0 0.0
        %2661 = vmatprep.subr.mxu0 0.0
        %2662 = vmatpush1.msra.mxu0 0.0
        %2663 = vmatprep.subr.mxu0 0.0
        %2664 = vmatpush1.msra.mxu0 0.0
        %2665 = vmatprep.subr.mxu0 0.0
        %2666 = vmatpush1.msra.mxu0 0.0
        %2667 = vmatprep.subr.mxu0 0.0
        %2668 = vmatpush1.msra.mxu0 0.0
        %2669 = vmatprep.subr.mxu0 0.0
        %2670 = vmatpush1.msra.mxu0 0.0
        %2671 = vmatprep.subr.mxu0 0.0
        %2672 = vmatpush1.msra.mxu0 0.0
        %2673 = vmatprep.subr.mxu0 0.0
        %2674 = vmatpush1.msra.mxu0 0.0
        %2675 = vmatprep.subr.mxu0 0.0
        %2676 = vmatpush1.msra.mxu0 0.0
        %2677 = vmatprep.subr.mxu0 0.0
        %2678 = vmatpush1.msra.mxu0 0.0
        %2679 = vmatprep.subr.mxu0 0.0
        %2680 = vmatpush1.msra.mxu0 0.0
        %2681 = vmatprep.subr.mxu0 0.0
        %2682 = vmatpush1.msra.mxu0 0.0
        %2683 = vmatprep.subr.mxu0 0.0
        %2684 = vmatpush1.msra.mxu0 %v1955
        %2685 = vmatprep.subr.mxu0 0.0
        %2686 = vmatpush1.msra.mxu0 %v1954
        %2687 = vmatprep.subr.mxu0 0.0
        %2688 = vmatpush1.msra.mxu0 %v1953
        %2689 = vmatprep.subr.mxu0 0.0
        %2690 = vmatpush1.msra.mxu0 %v1952
        %2691 = vmatprep.subr.mxu0 0.0
        %2692 = vmatpush2.msra.mxu0 0.0
        %2693 = vmatprep.subr.mxu0 0.0
        %2694 = vmatpush2.msra.mxu0 0.0
        %2695 = vmatprep.subr.mxu0 0.0
        %2696 = vmatpush2.msra.mxu0 0.0
        %2697 = vmatprep.subr.mxu0 0.0
        %2698 = vmatpush2.msra.mxu0 0.0
        %2699 = vmatprep.subr.mxu0 0.0
        %2700 = vmatpush2.msra.mxu0 0.0
        %2701 = vmatprep.subr.mxu0 0.0
        %2702 = vmatpush2.msra.mxu0 0.0
        %2703 = vmatprep.subr.mxu0 0.0
        %2704 = vmatpush2.msra.mxu0 0.0
        %2705 = vmatprep.subr.mxu0 0.0
        %2706 = vmatpush2.msra.mxu0 0.0
        %2707 = vmatprep.subr.mxu0 0.0
        %2708 = vmatpush2.msra.mxu0 0.0
        %2709 = vmatprep.subr.mxu0 0.0
        %2710 = vmatpush2.msra.mxu0 0.0
        %2711 = vmatprep.subr.mxu0 0.0
        %2712 = vmatpush2.msra.mxu0 0.0
        %2713 = vmatprep.subr.mxu0 0.0
        %2714 = vmatpush2.msra.mxu0 0.0
        %2715 = vmatprep.subr.mxu0 0.0
        %2716 = vmatpush2.msra.mxu0 0.0
        %2717 = vmatprep.subr.mxu0 0.0
        %2718 = vmatpush2.msra.mxu0 0.0
        %2719 = vmatprep.subr.mxu0 0.0
        %2720 = vmatpush2.msra.mxu0 0.0
        %2721 = vmatprep.subr.mxu0 0.0
        %2722 = vmatpush2.msra.mxu0 0.0
        %2723 = vmatprep.mubr.f32.mxu0 0.0
        %2724 = vmatmul.mubr.f32.gmra.mxu0 %v2657
        %v2725 = vpop.f32.mrf.mxu0
        %v2726 = vadd.f32 %v2655, %v2725
        %v2727 = vpop.f32.mrf.mxu0
        %2728 = vdwg.mxu0
        %v2729 = vadd.f32 %v1691, %v2726
        %v2730 = vsel %vm756, %v2729, 0.0
        %2731 = vadd.xlane.f32.xlu0 %v2730
        %v2732 = vpop.xlane.xlu0 %2731
        %v2733 = vmul.f32 %v2732, %v1671
        %v2734 = vsub.f32 %v2729, %v2733
        %v2735 = vmul.f32 %v2734, %v2734
        %v2736 = vsel %vm756, %v2735, 0.0
        %2737 = vadd.xlane.f32.xlu0 %v2736
        %v2738 = vpop.xlane.xlu0 %2737
        %v2739 = vmul.f32 %v2738, %v1671
        %v2740 = vadd.f32 %v2739, 1e-05
        %v2741 = vrsqrt.pop %v2740
        %v2742 = vmul.f32 %v2734, %v2741
        %v2743 = vlaneseq
        %v2744 = vshrl.u32 %v2743, 7
        %v2745 = vsub.s32 1, %v2744
        %v2746 = vrot.slane %v743, %v2745
        %v2747 = vmul.f32 %v2742, %v2746
        %v2748 = vlaneseq
        %v2749 = vshrl.u32 %v2748, 7
        %v2750 = vsub.s32 2, %v2749
        %v2751 = vrot.slane %v743, %v2750
        %v2752 = vadd.f32 %v2747, %v2751
        %v2753 = vld [vmem:[#allocation14] sm:$0xff]
        %v2754 = vld [vmem:[#allocation14 + $0x8] sm:$0xff]
        %v2755 = vld [vmem:[#allocation14 + $0x10] sm:$0xff]
        %v2756 = vld [vmem:[#allocation14 + $0x18] sm:$0xff]
        %v2757 = vld [vmem:[%s14] sm:$0x1]
        %v2759 = vlaneseq
        %v2760 = vshrl.u32 %v2759, 7
        %v2761 = vsub.s32 0, %v2760
        %v2762 = vrot.slane %v2757, %v2761
        %v2765 = vsel %vm756, %v2752, 0
        %2767 = vmatprep.subr.mxu0 0.0
        %2768 = vmatpush1.msra.mxu0 0.0
        %2769 = vmatprep.subr.mxu0 0.0
        %2770 = vmatpush1.msra.mxu0 0.0
        %2771 = vmatprep.subr.mxu0 0.0
        %2772 = vmatpush1.msra.mxu0 0.0
        %2773 = vmatprep.subr.mxu0 0.0
        %2774 = vmatpush1.msra.mxu0 0.0
        %2775 = vmatprep.subr.mxu0 0.0
        %2776 = vmatpush1.msra.mxu0 0.0
        %2777 = vmatprep.subr.mxu0 0.0
        %2778 = vmatpush1.msra.mxu0 0.0
        %2779 = vmatprep.subr.mxu0 0.0
        %2780 = vmatpush1.msra.mxu0 0.0
        %2781 = vmatprep.subr.mxu0 0.0
        %2782 = vmatpush1.msra.mxu0 0.0
        %2783 = vmatprep.subr.mxu0 0.0
        %2784 = vmatpush1.msra.mxu0 0.0
        %2785 = vmatprep.subr.mxu0 0.0
        %2786 = vmatpush1.msra.mxu0 0.0
        %2787 = vmatprep.subr.mxu0 0.0
        %2788 = vmatpush1.msra.mxu0 0.0
        %2789 = vmatprep.subr.mxu0 0.0
        %2790 = vmatpush1.msra.mxu0 0.0
        %2791 = vmatprep.subr.mxu0 0.0
        %2792 = vmatpush1.msra.mxu0 %v2756
        %2793 = vmatprep.subr.mxu0 0.0
        %2794 = vmatpush1.msra.mxu0 %v2755
        %2795 = vmatprep.subr.mxu0 0.0
        %2796 = vmatpush1.msra.mxu0 %v2754
        %2797 = vmatprep.subr.mxu0 0.0
        %2798 = vmatpush1.msra.mxu0 %v2753
        %2799 = vmatprep.subr.mxu0 0.0
        %2800 = vmatpush2.msra.mxu0 0.0
        %2801 = vmatprep.subr.mxu0 0.0
        %2802 = vmatpush2.msra.mxu0 0.0
        %2803 = vmatprep.subr.mxu0 0.0
        %2804 = vmatpush2.msra.mxu0 0.0
        %2805 = vmatprep.subr.mxu0 0.0
        %2806 = vmatpush2.msra.mxu0 0.0
        %2807 = vmatprep.subr.mxu0 0.0
        %2808 = vmatpush2.msra.mxu0 0.0
        %2809 = vmatprep.subr.mxu0 0.0
        %2810 = vmatpush2.msra.mxu0 0.0
        %2811 = vmatprep.subr.mxu0 0.0
        %2812 = vmatpush2.msra.mxu0 0.0
        %2813 = vmatprep.subr.mxu0 0.0
        %2814 = vmatpush2.msra.mxu0 0.0
        %2815 = vmatprep.subr.mxu0 0.0
        %2816 = vmatpush2.msra.mxu0 0.0
        %2817 = vmatprep.subr.mxu0 0.0
        %2818 = vmatpush2.msra.mxu0 0.0
        %2819 = vmatprep.subr.mxu0 0.0
        %2820 = vmatpush2.msra.mxu0 0.0
        %2821 = vmatprep.subr.mxu0 0.0
        %2822 = vmatpush2.msra.mxu0 0.0
        %2823 = vmatprep.subr.mxu0 0.0
        %2824 = vmatpush2.msra.mxu0 0.0
        %2825 = vmatprep.subr.mxu0 0.0
        %2826 = vmatpush2.msra.mxu0 0.0
        %2827 = vmatprep.subr.mxu0 0.0
        %2828 = vmatpush2.msra.mxu0 0.0
        %2829 = vmatprep.subr.mxu0 0.0
        %2830 = vmatpush2.msra.mxu0 0.0
        %2831 = vmatprep.mubr.f32.mxu0 0.0
        %2832 = vmatmul.mubr.f32.gmra.mxu0 %v2765
        %v2833 = vpop.f32.mrf.mxu0
        %v2834 = vadd.f32 %v2762, %v2833
        %v2835 = vpop.f32.mrf.mxu0
        %2836 = vdwg.mxu0
        %v2837 = vmax.f32 %v2834, 0.0
        %v2838 = vld [vmem:[%s12] sm:$0xff]
        %v2839 = vld [vmem:[%s12 + $0x8] sm:$0xff]
        %v2840 = vld [vmem:[%s12 + $0x10] sm:$0xff]
        %v2841 = vld [vmem:[%s12 + $0x18] sm:$0xff]
        %v2842 = vld [vmem:[%s12 + $0x20] sm:$0xff]
        %v2843 = vld [vmem:[%s12 + $0x28] sm:$0xff]
        %v2844 = vld [vmem:[%s12 + $0x30] sm:$0xff]
        %v2845 = vld [vmem:[%s12 + $0x38] sm:$0xff]
        %v2846 = vlaneseq
        %v2847 = vshrl.u32 %v2846, 7
        %v2848 = vsub.s32 6, %v2847
        %v2849 = vrot.slane %v742, %v2848
        %vm2850 = vcmask 523264
        %v2852 = vsel %vm2850, %v2837, 0
        %2854 = vmatprep.subr.mxu0 0.0
        %2855 = vmatpush1.msra.mxu0 0.0
        %2856 = vmatprep.subr.mxu0 0.0
        %2857 = vmatpush1.msra.mxu0 0.0
        %2858 = vmatprep.subr.mxu0 0.0
        %2859 = vmatpush1.msra.mxu0 0.0
        %2860 = vmatprep.subr.mxu0 0.0
        %2861 = vmatpush1.msra.mxu0 0.0
        %2862 = vmatprep.subr.mxu0 0.0
        %2863 = vmatpush1.msra.mxu0 0.0
        %2864 = vmatprep.subr.mxu0 0.0
        %2865 = vmatpush1.msra.mxu0 0.0
        %2866 = vmatprep.subr.mxu0 0.0
        %2867 = vmatpush1.msra.mxu0 0.0
        %2868 = vmatprep.subr.mxu0 0.0
        %2869 = vmatpush1.msra.mxu0 0.0
        %2870 = vmatprep.subr.mxu0 0.0
        %2871 = vmatpush1.msra.mxu0 %v2845
        %2872 = vmatprep.subr.mxu0 0.0
        %2873 = vmatpush1.msra.mxu0 %v2844
        %2874 = vmatprep.subr.mxu0 0.0
        %2875 = vmatpush1.msra.mxu0 %v2843
        %2876 = vmatprep.subr.mxu0 0.0
        %2877 = vmatpush1.msra.mxu0 %v2842
        %2878 = vmatprep.subr.mxu0 0.0
        %2879 = vmatpush1.msra.mxu0 %v2841
        %2880 = vmatprep.subr.mxu0 0.0
        %2881 = vmatpush1.msra.mxu0 %v2840
        %2882 = vmatprep.subr.mxu0 0.0
        %2883 = vmatpush1.msra.mxu0 %v2839
        %2884 = vmatprep.subr.mxu0 0.0
        %2885 = vmatpush1.msra.mxu0 %v2838
        %2886 = vmatprep.subr.mxu0 0.0
        %2887 = vmatpush2.msra.mxu0 0.0
        %2888 = vmatprep.subr.mxu0 0.0
        %2889 = vmatpush2.msra.mxu0 0.0
        %2890 = vmatprep.subr.mxu0 0.0
        %2891 = vmatpush2.msra.mxu0 0.0
        %2892 = vmatprep.subr.mxu0 0.0
        %2893 = vmatpush2.msra.mxu0 0.0
        %2894 = vmatprep.subr.mxu0 0.0
        %2895 = vmatpush2.msra.mxu0 0.0
        %2896 = vmatprep.subr.mxu0 0.0
        %2897 = vmatpush2.msra.mxu0 0.0
        %2898 = vmatprep.subr.mxu0 0.0
        %2899 = vmatpush2.msra.mxu0 0.0
        %2900 = vmatprep.subr.mxu0 0.0
        %2901 = vmatpush2.msra.mxu0 0.0
        %2902 = vmatprep.subr.mxu0 0.0
        %2903 = vmatpush2.msra.mxu0 0.0
        %2904 = vmatprep.subr.mxu0 0.0
        %2905 = vmatpush2.msra.mxu0 0.0
        %2906 = vmatprep.subr.mxu0 0.0
        %2907 = vmatpush2.msra.mxu0 0.0
        %2908 = vmatprep.subr.mxu0 0.0
        %2909 = vmatpush2.msra.mxu0 0.0
        %2910 = vmatprep.subr.mxu0 0.0
        %2911 = vmatpush2.msra.mxu0 0.0
        %2912 = vmatprep.subr.mxu0 0.0
        %2913 = vmatpush2.msra.mxu0 0.0
        %2914 = vmatprep.subr.mxu0 0.0
        %2915 = vmatpush2.msra.mxu0 0.0
        %2916 = vmatprep.subr.mxu0 0.0
        %2917 = vmatpush2.msra.mxu0 0.0
        %2918 = vmatprep.mubr.f32.mxu0 0.0
        %2919 = vmatmul.mubr.f32.gmra.mxu0 %v2852
        %v2920 = vpop.f32.mrf.mxu0
        %v2921 = vadd.f32 %v2849, %v2920
        %v2922 = vpop.f32.mrf.mxu0
        %2923 = vdwg.mxu0
        %v2924 = vadd.f32 %v2752, %v2921
        %v2925 = vsel %vm756, %v2924, 0.0
        %2926 = vadd.xlane.f32.xlu0 %v2925
        %v2927 = vpop.xlane.xlu0 %2926
        %v2928 = vmul.f32 %v2927, %v1671
        %v2929 = vsub.f32 %v2924, %v2928
        %v2930 = vmul.f32 %v2929, %v2929
        %v2931 = vsel %vm756, %v2930, 0.0
        %2932 = vadd.xlane.f32.xlu0 %v2931
        %v2933 = vpop.xlane.xlu0 %2932
        %v2934 = vmul.f32 %v2933, %v1671
        %v2935 = vadd.f32 %v2934, 1e-05
        %v2936 = vrsqrt.pop %v2935
        %v2937 = vmul.f32 %v2929, %v2936
        %v2938 = vlaneseq
        %v2939 = vshrl.u32 %v2938, 7
        %v2940 = vsub.s32 3, %v2939
        %v2941 = vrot.slane %v743, %v2940
        %v2942 = vmul.f32 %v2937, %v2941
        %v2943 = vlaneseq
        %v2944 = vshrl.u32 %v2943, 7
        %v2945 = vsub.s32 4, %v2944
        %v2946 = vrot.slane %v743, %v2945
        %v2947 = vadd.f32 %v2942, %v2946
        %s2948 = scalar_lea.vmem %s15, 16
        %v2949 = vld [vmem:[%s2948] sm:$0xff]
        %v2950 = vld [vmem:[%s2948 + $0x8] sm:$0x1f]
        %v2951 = vadd.f32 %v2947, %v737
        %s2952 = scalar_lea.vmem %s4, 32
        %v2953 = vld [vmem:[%s2952] sm:$0xff]
        %v2954 = vld [vmem:[%s2952 + $0x8] sm:$0xff]
        %v2955 = vld [vmem:[%s2952 + $0x10] sm:$0xff]
        %v2956 = vld [vmem:[%s2952 + $0x18] sm:$0xff]
        %s2957 = scalar_lea.vmem %s13, 1
        %v2958 = vld [vmem:[%s2957] sm:$0x1]
        %v2960 = vlaneseq
        %v2961 = vshrl.u32 %v2960, 7
        %v2962 = vsub.s32 0, %v2961
        %v2963 = vrot.slane %v2958, %v2962
        %v2966 = vsel %vm756, %v2951, 0
        %2968 = vmatprep.subr.mxu0 0.0
        %2969 = vmatpush1.msra.mxu0 0.0
        %2970 = vmatprep.subr.mxu0 0.0
        %2971 = vmatpush1.msra.mxu0 0.0
        %2972 = vmatprep.subr.mxu0 0.0
        %2973 = vmatpush1.msra.mxu0 0.0
        %2974 = vmatprep.subr.mxu0 0.0
        %2975 = vmatpush1.msra.mxu0 0.0
        %2976 = vmatprep.subr.mxu0 0.0
        %2977 = vmatpush1.msra.mxu0 0.0
        %2978 = vmatprep.subr.mxu0 0.0
        %2979 = vmatpush1.msra.mxu0 0.0
        %2980 = vmatprep.subr.mxu0 0.0
        %2981 = vmatpush1.msra.mxu0 0.0
        %2982 = vmatprep.subr.mxu0 0.0
        %2983 = vmatpush1.msra.mxu0 0.0
        %2984 = vmatprep.subr.mxu0 0.0
        %2985 = vmatpush1.msra.mxu0 0.0
        %2986 = vmatprep.subr.mxu0 0.0
        %2987 = vmatpush1.msra.mxu0 0.0
        %2988 = vmatprep.subr.mxu0 0.0
        %2989 = vmatpush1.msra.mxu0 0.0
        %2990 = vmatprep.subr.mxu0 0.0
        %2991 = vmatpush1.msra.mxu0 0.0
        %2992 = vmatprep.subr.mxu0 0.0
        %2993 = vmatpush1.msra.mxu0 %v2956
        %2994 = vmatprep.subr.mxu0 0.0
        %2995 = vmatpush1.msra.mxu0 %v2955
        %2996 = vmatprep.subr.mxu0 0.0
        %2997 = vmatpush1.msra.mxu0 %v2954
        %2998 = vmatprep.subr.mxu0 0.0
        %2999 = vmatpush1.msra.mxu0 %v2953
        %3000 = vmatprep.subr.mxu0 0.0
        %3001 = vmatpush2.msra.mxu0 0.0
        %3002 = vmatprep.subr.mxu0 0.0
        %3003 = vmatpush2.msra.mxu0 0.0
        %3004 = vmatprep.subr.mxu0 0.0
        %3005 = vmatpush2.msra.mxu0 0.0
        %3006 = vmatprep.subr.mxu0 0.0
        %3007 = vmatpush2.msra.mxu0 0.0
        %3008 = vmatprep.subr.mxu0 0.0
        %3009 = vmatpush2.msra.mxu0 0.0
        %3010 = vmatprep.subr.mxu0 0.0
        %3011 = vmatpush2.msra.mxu0 0.0
        %3012 = vmatprep.subr.mxu0 0.0
        %3013 = vmatpush2.msra.mxu0 0.0
        %3014 = vmatprep.subr.mxu0 0.0
        %3015 = vmatpush2.msra.mxu0 0.0
        %3016 = vmatprep.subr.mxu0 0.0
        %3017 = vmatpush2.msra.mxu0 0.0
        %3018 = vmatprep.subr.mxu0 0.0
        %3019 = vmatpush2.msra.mxu0 0.0
        %3020 = vmatprep.subr.mxu0 0.0
        %3021 = vmatpush2.msra.mxu0 0.0
        %3022 = vmatprep.subr.mxu0 0.0
        %3023 = vmatpush2.msra.mxu0 0.0
        %3024 = vmatprep.subr.mxu0 0.0
        %3025 = vmatpush2.msra.mxu0 0.0
        %3026 = vmatprep.subr.mxu0 0.0
        %3027 = vmatpush2.msra.mxu0 0.0
        %3028 = vmatprep.subr.mxu0 0.0
        %3029 = vmatpush2.msra.mxu0 0.0
        %3030 = vmatprep.subr.mxu0 0.0
        %3031 = vmatpush2.msra.mxu0 0.0
        %3032 = vmatprep.mubr.f32.mxu0 0.0
        %3033 = vmatmul.mubr.f32.gmra.mxu0 %v2966
        %v3034 = vpop.f32.mrf.mxu0
        %v3035 = vadd.f32 %v2963, %v3034
        %v3036 = vpop.f32.mrf.mxu0
        %3037 = vdwg.mxu0
        %s3038 = scalar_lea.vmem %s5, 32
        %v3039 = vld [vmem:[%s3038] sm:$0xff]
        %v3040 = vld [vmem:[%s3038 + $0x8] sm:$0xff]
        %v3041 = vld [vmem:[%s3038 + $0x10] sm:$0xff]
        %v3042 = vld [vmem:[%s3038 + $0x18] sm:$0xff]
        %v3043 = vlaneseq
        %v3044 = vshrl.u32 %v3043, 7
        %v3045 = vsub.s32 0, %v3044
        %v3046 = vrot.slane %v2949, %v3045
        %v3048 = vsel %vm756, %v2947, 0
        %3050 = vmatprep.subr.mxu0 0.0
        %3051 = vmatpush1.msra.mxu0 0.0
        %3052 = vmatprep.subr.mxu0 0.0
        %3053 = vmatpush1.msra.mxu0 0.0
        %3054 = vmatprep.subr.mxu0 0.0
        %3055 = vmatpush1.msra.mxu0 0.0
        %3056 = vmatprep.subr.mxu0 0.0
        %3057 = vmatpush1.msra.mxu0 0.0
        %3058 = vmatprep.subr.mxu0 0.0
        %3059 = vmatpush1.msra.mxu0 0.0
        %3060 = vmatprep.subr.mxu0 0.0
        %3061 = vmatpush1.msra.mxu0 0.0
        %3062 = vmatprep.subr.mxu0 0.0
        %3063 = vmatpush1.msra.mxu0 0.0
        %3064 = vmatprep.subr.mxu0 0.0
        %3065 = vmatpush1.msra.mxu0 0.0
        %3066 = vmatprep.subr.mxu0 0.0
        %3067 = vmatpush1.msra.mxu0 0.0
        %3068 = vmatprep.subr.mxu0 0.0
        %3069 = vmatpush1.msra.mxu0 0.0
        %3070 = vmatprep.subr.mxu0 0.0
        %3071 = vmatpush1.msra.mxu0 0.0
        %3072 = vmatprep.subr.mxu0 0.0
        %3073 = vmatpush1.msra.mxu0 0.0
        %3074 = vmatprep.subr.mxu0 0.0
        %3075 = vmatpush1.msra.mxu0 %v3042
        %3076 = vmatprep.subr.mxu0 0.0
        %3077 = vmatpush1.msra.mxu0 %v3041
        %3078 = vmatprep.subr.mxu0 0.0
        %3079 = vmatpush1.msra.mxu0 %v3040
        %3080 = vmatprep.subr.mxu0 0.0
        %3081 = vmatpush1.msra.mxu0 %v3039
        %3082 = vmatprep.subr.mxu0 0.0
        %3083 = vmatpush2.msra.mxu0 0.0
        %3084 = vmatprep.subr.mxu0 0.0
        %3085 = vmatpush2.msra.mxu0 0.0
        %3086 = vmatprep.subr.mxu0 0.0
        %3087 = vmatpush2.msra.mxu0 0.0
        %3088 = vmatprep.subr.mxu0 0.0
        %3089 = vmatpush2.msra.mxu0 0.0
        %3090 = vmatprep.subr.mxu0 0.0
        %3091 = vmatpush2.msra.mxu0 0.0
        %3092 = vmatprep.subr.mxu0 0.0
        %3093 = vmatpush2.msra.mxu0 0.0
        %3094 = vmatprep.subr.mxu0 0.0
        %3095 = vmatpush2.msra.mxu0 0.0
        %3096 = vmatprep.subr.mxu0 0.0
        %3097 = vmatpush2.msra.mxu0 0.0
        %3098 = vmatprep.subr.mxu0 0.0
        %3099 = vmatpush2.msra.mxu0 0.0
        %3100 = vmatprep.subr.mxu0 0.0
        %3101 = vmatpush2.msra.mxu0 0.0
        %3102 = vmatprep.subr.mxu0 0.0
        %3103 = vmatpush2.msra.mxu0 0.0
        %3104 = vmatprep.subr.mxu0 0.0
        %3105 = vmatpush2.msra.mxu0 0.0
        %3106 = vmatprep.subr.mxu0 0.0
        %3107 = vmatpush2.msra.mxu0 0.0
        %3108 = vmatprep.subr.mxu0 0.0
        %3109 = vmatpush2.msra.mxu0 0.0
        %3110 = vmatprep.subr.mxu0 0.0
        %3111 = vmatpush2.msra.mxu0 0.0
        %3112 = vmatprep.subr.mxu0 0.0
        %3113 = vmatpush2.msra.mxu0 0.0
        %3114 = vmatprep.mubr.f32.mxu0 0.0
        %3115 = vmatmul.mubr.f32.gmra.mxu0 %v3048
        %v3116 = vpop.f32.mrf.mxu0
        %v3117 = vadd.f32 %v3046, %v3116
        %v3118 = vpop.f32.mrf.mxu0
        %3119 = vdwg.mxu0
        %s3120 = scalar_lea.vmem %s6, 32
        %v3121 = vld [vmem:[%s3120] sm:$0xff]
        %v3122 = vld [vmem:[%s3120 + $0x8] sm:$0xff]
        %v3123 = vld [vmem:[%s3120 + $0x10] sm:$0xff]
        %v3124 = vld [vmem:[%s3120 + $0x18] sm:$0xff]
        %3126 = vrot.lane.b32.xlu0 %v3035, 120
        %v3127 = vpop.permute.xlu0 %3126
        %3128 = vrot.lane.b32.xlu0 %v3035, 112
        %v3129 = vpop.permute.xlu0 %3128
        %3130 = vrot.lane.b32.xlu0 %v3035, 104
        %v3131 = vpop.permute.xlu0 %3130
        %3133 = vrot.lane.b32.xlu0 %v3117, 120
        %v3134 = vpop.permute.xlu0 %3133
        %3136 = vrot.lane.b32.xlu0 %v3117, 112
        %v3137 = vpop.permute.xlu0 %3136
        %3139 = vrot.lane.b32.xlu0 %v3117, 104
        %v3140 = vpop.permute.xlu0 %3139
        %3142 = vrot.lane.b32.xlu0 %v3035, 96
        %v3143 = vpop.permute.xlu0 %3142
        %v3144 = vsel %vm934, %v3035, 0
        %v3146 = vsel %vm934, %v3143, 0
        %3148 = vmatprep.subr.mxu0 0.0
        %3149 = vmatpush1.xpose.msra.mxu0 0.0
        %3150 = vmatprep.subr.mxu0 0.0
        %3151 = vmatpush1.xpose.msra.mxu0 0.0
        %3152 = vmatprep.subr.mxu0 0.0
        %3153 = vmatpush1.xpose.msra.mxu0 0.0
        %3154 = vmatprep.subr.mxu0 0.0
        %3155 = vmatpush1.xpose.msra.mxu0 0.0
        %3156 = vmatprep.subr.mxu0 0.0
        %3157 = vmatpush1.xpose.msra.mxu0 0.0
        %3158 = vmatprep.subr.mxu0 0.0
        %3159 = vmatpush1.xpose.msra.mxu0 0.0
        %3160 = vmatprep.subr.mxu0 0.0
        %3161 = vmatpush1.xpose.msra.mxu0 0.0
        %3162 = vmatprep.subr.mxu0 0.0
        %3163 = vmatpush1.xpose.msra.mxu0 0.0
        %3164 = vmatprep.subr.mxu0 0.0
        %3165 = vmatpush1.xpose.msra.mxu0 0.0
        %3166 = vmatprep.subr.mxu0 0.0
        %3167 = vmatpush1.xpose.msra.mxu0 0.0
        %3168 = vmatprep.subr.mxu0 0.0
        %3169 = vmatpush1.xpose.msra.mxu0 0.0
        %3170 = vmatprep.subr.mxu0 0.0
        %3171 = vmatpush1.xpose.msra.mxu0 0.0
        %3172 = vmatprep.subr.mxu0 0.0
        %3173 = vmatpush1.xpose.msra.mxu0 0.0
        %3174 = vmatprep.subr.mxu0 0.0
        %3175 = vmatpush1.xpose.msra.mxu0 0.0
        %3176 = vmatprep.subr.mxu0 0.0
        %3177 = vmatpush1.xpose.msra.mxu0 0.0
        %3178 = vmatprep.subr.mxu0 0.0
        %3179 = vmatpush1.xpose.msra.mxu0 %v3146
        %3180 = vmatprep.subr.mxu0 0.0
        %3181 = vmatpush2.xpose.msra.mxu0 0.0
        %3182 = vmatprep.subr.mxu0 0.0
        %3183 = vmatpush2.xpose.msra.mxu0 0.0
        %3184 = vmatprep.subr.mxu0 0.0
        %3185 = vmatpush2.xpose.msra.mxu0 0.0
        %3186 = vmatprep.subr.mxu0 0.0
        %3187 = vmatpush2.xpose.msra.mxu0 0.0
        %3188 = vmatprep.subr.mxu0 0.0
        %3189 = vmatpush2.xpose.msra.mxu0 0.0
        %3190 = vmatprep.subr.mxu0 0.0
        %3191 = vmatpush2.xpose.msra.mxu0 0.0
        %3192 = vmatprep.subr.mxu0 0.0
        %3193 = vmatpush2.xpose.msra.mxu0 0.0
        %3194 = vmatprep.subr.mxu0 0.0
        %3195 = vmatpush2.xpose.msra.mxu0 0.0
        %3196 = vmatprep.subr.mxu0 0.0
        %3197 = vmatpush2.xpose.msra.mxu0 0.0
        %3198 = vmatprep.subr.mxu0 0.0
        %3199 = vmatpush2.xpose.msra.mxu0 0.0
        %3200 = vmatprep.subr.mxu0 0.0
        %3201 = vmatpush2.xpose.msra.mxu0 0.0
        %3202 = vmatprep.subr.mxu0 0.0
        %3203 = vmatpush2.xpose.msra.mxu0 0.0
        %3204 = vmatprep.subr.mxu0 0.0
        %3205 = vmatpush2.xpose.msra.mxu0 0.0
        %3206 = vmatprep.subr.mxu0 0.0
        %3207 = vmatpush2.xpose.msra.mxu0 0.0
        %3208 = vmatprep.subr.mxu0 0.0
        %3209 = vmatpush2.xpose.msra.mxu0 0.0
        %3210 = vmatprep.subr.mxu0 0.0
        %3211 = vmatpush2.xpose.msra.mxu0 0.0
        %3212 = vmatprep.mubr.f32.mxu0 0.0
        %3213 = vmatmul.mubr.f32.gmra.mxu0 %v3144
        %v3214 = vpop.f32.mrf.mxu0
        %v3215 = vadd.f32 0.0, %v3214
        %v3216 = vpop.f32.mrf.mxu0
        %3217 = vdwg.mxu0
        %3218 = vrot.lane.b32.xlu0 %v3127, 96
        %v3219 = vpop.permute.xlu0 %3218
        %v3220 = vsel %vm934, %v3127, 0
        %v3222 = vsel %vm934, %v3219, 0
        %3224 = vmatprep.subr.mxu0 0.0
        %3225 = vmatpush1.xpose.msra.mxu0 0.0
        %3226 = vmatprep.subr.mxu0 0.0
        %3227 = vmatpush1.xpose.msra.mxu0 0.0
        %3228 = vmatprep.subr.mxu0 0.0
        %3229 = vmatpush1.xpose.msra.mxu0 0.0
        %3230 = vmatprep.subr.mxu0 0.0
        %3231 = vmatpush1.xpose.msra.mxu0 0.0
        %3232 = vmatprep.subr.mxu0 0.0
        %3233 = vmatpush1.xpose.msra.mxu0 0.0
        %3234 = vmatprep.subr.mxu0 0.0
        %3235 = vmatpush1.xpose.msra.mxu0 0.0
        %3236 = vmatprep.subr.mxu0 0.0
        %3237 = vmatpush1.xpose.msra.mxu0 0.0
        %3238 = vmatprep.subr.mxu0 0.0
        %3239 = vmatpush1.xpose.msra.mxu0 0.0
        %3240 = vmatprep.subr.mxu0 0.0
        %3241 = vmatpush1.xpose.msra.mxu0 0.0
        %3242 = vmatprep.subr.mxu0 0.0
        %3243 = vmatpush1.xpose.msra.mxu0 0.0
        %3244 = vmatprep.subr.mxu0 0.0
        %3245 = vmatpush1.xpose.msra.mxu0 0.0
        %3246 = vmatprep.subr.mxu0 0.0
        %3247 = vmatpush1.xpose.msra.mxu0 0.0
        %3248 = vmatprep.subr.mxu0 0.0
        %3249 = vmatpush1.xpose.msra.mxu0 0.0
        %3250 = vmatprep.subr.mxu0 0.0
        %3251 = vmatpush1.xpose.msra.mxu0 0.0
        %3252 = vmatprep.subr.mxu0 0.0
        %3253 = vmatpush1.xpose.msra.mxu0 0.0
        %3254 = vmatprep.subr.mxu0 0.0
        %3255 = vmatpush1.xpose.msra.mxu0 %v3222
        %3256 = vmatprep.subr.mxu0 0.0
        %3257 = vmatpush2.xpose.msra.mxu0 0.0
        %3258 = vmatprep.subr.mxu0 0.0
        %3259 = vmatpush2.xpose.msra.mxu0 0.0
        %3260 = vmatprep.subr.mxu0 0.0
        %3261 = vmatpush2.xpose.msra.mxu0 0.0
        %3262 = vmatprep.subr.mxu0 0.0
        %3263 = vmatpush2.xpose.msra.mxu0 0.0
        %3264 = vmatprep.subr.mxu0 0.0
        %3265 = vmatpush2.xpose.msra.mxu0 0.0
        %3266 = vmatprep.subr.mxu0 0.0
        %3267 = vmatpush2.xpose.msra.mxu0 0.0
        %3268 = vmatprep.subr.mxu0 0.0
        %3269 = vmatpush2.xpose.msra.mxu0 0.0
        %3270 = vmatprep.subr.mxu0 0.0
        %3271 = vmatpush2.xpose.msra.mxu0 0.0
        %3272 = vmatprep.subr.mxu0 0.0
        %3273 = vmatpush2.xpose.msra.mxu0 0.0
        %3274 = vmatprep.subr.mxu0 0.0
        %3275 = vmatpush2.xpose.msra.mxu0 0.0
        %3276 = vmatprep.subr.mxu0 0.0
        %3277 = vmatpush2.xpose.msra.mxu0 0.0
        %3278 = vmatprep.subr.mxu0 0.0
        %3279 = vmatpush2.xpose.msra.mxu0 0.0
        %3280 = vmatprep.subr.mxu0 0.0
        %3281 = vmatpush2.xpose.msra.mxu0 0.0
        %3282 = vmatprep.subr.mxu0 0.0
        %3283 = vmatpush2.xpose.msra.mxu0 0.0
        %3284 = vmatprep.subr.mxu0 0.0
        %3285 = vmatpush2.xpose.msra.mxu0 0.0
        %3286 = vmatprep.subr.mxu0 0.0
        %3287 = vmatpush2.xpose.msra.mxu0 0.0
        %3288 = vmatprep.mubr.f32.mxu0 0.0
        %3289 = vmatmul.mubr.f32.gmra.mxu0 %v3220
        %v3290 = vpop.f32.mrf.mxu0
        %v3291 = vadd.f32 0.0, %v3290
        %v3292 = vpop.f32.mrf.mxu0
        %3293 = vdwg.mxu0
        %3294 = vrot.lane.b32.xlu0 %v3129, 96
        %v3295 = vpop.permute.xlu0 %3294
        %v3296 = vsel %vm934, %v3129, 0
        %v3298 = vsel %vm934, %v3295, 0
        %3300 = vmatprep.subr.mxu0 0.0
        %3301 = vmatpush1.xpose.msra.mxu0 0.0
        %3302 = vmatprep.subr.mxu0 0.0
        %3303 = vmatpush1.xpose.msra.mxu0 0.0
        %3304 = vmatprep.subr.mxu0 0.0
        %3305 = vmatpush1.xpose.msra.mxu0 0.0
        %3306 = vmatprep.subr.mxu0 0.0
        %3307 = vmatpush1.xpose.msra.mxu0 0.0
        %3308 = vmatprep.subr.mxu0 0.0
        %3309 = vmatpush1.xpose.msra.mxu0 0.0
        %3310 = vmatprep.subr.mxu0 0.0
        %3311 = vmatpush1.xpose.msra.mxu0 0.0
        %3312 = vmatprep.subr.mxu0 0.0
        %3313 = vmatpush1.xpose.msra.mxu0 0.0
        %3314 = vmatprep.subr.mxu0 0.0
        %3315 = vmatpush1.xpose.msra.mxu0 0.0
        %3316 = vmatprep.subr.mxu0 0.0
        %3317 = vmatpush1.xpose.msra.mxu0 0.0
        %3318 = vmatprep.subr.mxu0 0.0
        %3319 = vmatpush1.xpose.msra.mxu0 0.0
        %3320 = vmatprep.subr.mxu0 0.0
        %3321 = vmatpush1.xpose.msra.mxu0 0.0
        %3322 = vmatprep.subr.mxu0 0.0
        %3323 = vmatpush1.xpose.msra.mxu0 0.0
        %3324 = vmatprep.subr.mxu0 0.0
        %3325 = vmatpush1.xpose.msra.mxu0 0.0
        %3326 = vmatprep.subr.mxu0 0.0
        %3327 = vmatpush1.xpose.msra.mxu0 0.0
        %3328 = vmatprep.subr.mxu0 0.0
        %3329 = vmatpush1.xpose.msra.mxu0 0.0
        %3330 = vmatprep.subr.mxu0 0.0
        %3331 = vmatpush1.xpose.msra.mxu0 %v3298
        %3332 = vmatprep.subr.mxu0 0.0
        %3333 = vmatpush2.xpose.msra.mxu0 0.0
        %3334 = vmatprep.subr.mxu0 0.0
        %3335 = vmatpush2.xpose.msra.mxu0 0.0
        %3336 = vmatprep.subr.mxu0 0.0
        %3337 = vmatpush2.xpose.msra.mxu0 0.0
        %3338 = vmatprep.subr.mxu0 0.0
        %3339 = vmatpush2.xpose.msra.mxu0 0.0
        %3340 = vmatprep.subr.mxu0 0.0
        %3341 = vmatpush2.xpose.msra.mxu0 0.0
        %3342 = vmatprep.subr.mxu0 0.0
        %3343 = vmatpush2.xpose.msra.mxu0 0.0
        %3344 = vmatprep.subr.mxu0 0.0
        %3345 = vmatpush2.xpose.msra.mxu0 0.0
        %3346 = vmatprep.subr.mxu0 0.0
        %3347 = vmatpush2.xpose.msra.mxu0 0.0
        %3348 = vmatprep.subr.mxu0 0.0
        %3349 = vmatpush2.xpose.msra.mxu0 0.0
        %3350 = vmatprep.subr.mxu0 0.0
        %3351 = vmatpush2.xpose.msra.mxu0 0.0
        %3352 = vmatprep.subr.mxu0 0.0
        %3353 = vmatpush2.xpose.msra.mxu0 0.0
        %3354 = vmatprep.subr.mxu0 0.0
        %3355 = vmatpush2.xpose.msra.mxu0 0.0
        %3356 = vmatprep.subr.mxu0 0.0
        %3357 = vmatpush2.xpose.msra.mxu0 0.0
        %3358 = vmatprep.subr.mxu0 0.0
        %3359 = vmatpush2.xpose.msra.mxu0 0.0
        %3360 = vmatprep.subr.mxu0 0.0
        %3361 = vmatpush2.xpose.msra.mxu0 0.0
        %3362 = vmatprep.subr.mxu0 0.0
        %3363 = vmatpush2.xpose.msra.mxu0 0.0
        %3364 = vmatprep.mubr.f32.mxu0 0.0
        %3365 = vmatmul.mubr.f32.gmra.mxu0 %v3296
        %v3366 = vpop.f32.mrf.mxu0
        %v3367 = vadd.f32 0.0, %v3366
        %v3368 = vpop.f32.mrf.mxu0
        %3369 = vdwg.mxu0
        %3370 = vrot.lane.b32.xlu0 %v3131, 96
        %v3371 = vpop.permute.xlu0 %3370
        %v3372 = vsel %vm934, %v3131, 0
        %v3374 = vsel %vm934, %v3371, 0
        %3376 = vmatprep.subr.mxu0 0.0
        %3377 = vmatpush1.xpose.msra.mxu0 0.0
        %3378 = vmatprep.subr.mxu0 0.0
        %3379 = vmatpush1.xpose.msra.mxu0 0.0
        %3380 = vmatprep.subr.mxu0 0.0
        %3381 = vmatpush1.xpose.msra.mxu0 0.0
        %3382 = vmatprep.subr.mxu0 0.0
        %3383 = vmatpush1.xpose.msra.mxu0 0.0
        %3384 = vmatprep.subr.mxu0 0.0
        %3385 = vmatpush1.xpose.msra.mxu0 0.0
        %3386 = vmatprep.subr.mxu0 0.0
        %3387 = vmatpush1.xpose.msra.mxu0 0.0
        %3388 = vmatprep.subr.mxu0 0.0
        %3389 = vmatpush1.xpose.msra.mxu0 0.0
        %3390 = vmatprep.subr.mxu0 0.0
        %3391 = vmatpush1.xpose.msra.mxu0 0.0
        %3392 = vmatprep.subr.mxu0 0.0
        %3393 = vmatpush1.xpose.msra.mxu0 0.0
        %3394 = vmatprep.subr.mxu0 0.0
        %3395 = vmatpush1.xpose.msra.mxu0 0.0
        %3396 = vmatprep.subr.mxu0 0.0
        %3397 = vmatpush1.xpose.msra.mxu0 0.0
        %3398 = vmatprep.subr.mxu0 0.0
        %3399 = vmatpush1.xpose.msra.mxu0 0.0
        %3400 = vmatprep.subr.mxu0 0.0
        %3401 = vmatpush1.xpose.msra.mxu0 0.0
        %3402 = vmatprep.subr.mxu0 0.0
        %3403 = vmatpush1.xpose.msra.mxu0 0.0
        %3404 = vmatprep.subr.mxu0 0.0
        %3405 = vmatpush1.xpose.msra.mxu0 0.0
        %3406 = vmatprep.subr.mxu0 0.0
        %3407 = vmatpush1.xpose.msra.mxu0 %v3374
        %3408 = vmatprep.subr.mxu0 0.0
        %3409 = vmatpush2.xpose.msra.mxu0 0.0
        %3410 = vmatprep.subr.mxu0 0.0
        %3411 = vmatpush2.xpose.msra.mxu0 0.0
        %3412 = vmatprep.subr.mxu0 0.0
        %3413 = vmatpush2.xpose.msra.mxu0 0.0
        %3414 = vmatprep.subr.mxu0 0.0
        %3415 = vmatpush2.xpose.msra.mxu0 0.0
        %3416 = vmatprep.subr.mxu0 0.0
        %3417 = vmatpush2.xpose.msra.mxu0 0.0
        %3418 = vmatprep.subr.mxu0 0.0
        %3419 = vmatpush2.xpose.msra.mxu0 0.0
        %3420 = vmatprep.subr.mxu0 0.0
        %3421 = vmatpush2.xpose.msra.mxu0 0.0
        %3422 = vmatprep.subr.mxu0 0.0
        %3423 = vmatpush2.xpose.msra.mxu0 0.0
        %3424 = vmatprep.subr.mxu0 0.0
        %3425 = vmatpush2.xpose.msra.mxu0 0.0
        %3426 = vmatprep.subr.mxu0 0.0
        %3427 = vmatpush2.xpose.msra.mxu0 0.0
        %3428 = vmatprep.subr.mxu0 0.0
        %3429 = vmatpush2.xpose.msra.mxu0 0.0
        %3430 = vmatprep.subr.mxu0 0.0
        %3431 = vmatpush2.xpose.msra.mxu0 0.0
        %3432 = vmatprep.subr.mxu0 0.0
        %3433 = vmatpush2.xpose.msra.mxu0 0.0
        %3434 = vmatprep.subr.mxu0 0.0
        %3435 = vmatpush2.xpose.msra.mxu0 0.0
        %3436 = vmatprep.subr.mxu0 0.0
        %3437 = vmatpush2.xpose.msra.mxu0 0.0
        %3438 = vmatprep.subr.mxu0 0.0
        %3439 = vmatpush2.xpose.msra.mxu0 0.0
        %3440 = vmatprep.mubr.f32.mxu0 0.0
        %3441 = vmatmul.mubr.f32.gmra.mxu0 %v3372
        %v3442 = vpop.f32.mrf.mxu0
        %v3443 = vadd.f32 0.0, %v3442
        %v3444 = vpop.f32.mrf.mxu0
        %3445 = vdwg.mxu0
        %v3446 = vsel %vm934, %v3215, -inf
        %3447 = vmax.xlane.f32.xlu0 %v3446
        %v3448 = vpop.xlane.xlu0 %3447
        %v3449 = vsel %vm934, %v3291, -inf
        %3450 = vmax.xlane.f32.xlu0 %v3449
        %v3451 = vpop.xlane.xlu0 %3450
        %v3452 = vsel %vm934, %v3367, -inf
        %3453 = vmax.xlane.f32.xlu0 %v3452
        %v3454 = vpop.xlane.xlu0 %3453
        %v3455 = vsel %vm934, %v3443, -inf
        %3456 = vmax.xlane.f32.xlu0 %v3455
        %v3457 = vpop.xlane.xlu0 %3456
        %v3458 = vsub.f32 %v3215, %v3448
        %v3459 = vsub.f32 %v3291, %v3451
        %v3460 = vsub.f32 %v3367, %v3454
        %v3461 = vsub.f32 %v3443, %v3457
        %v3462 = vmul.f32 %v3458, 1.442695
        %v3463 = vpow.pop %v3462
        %v3464 = vmul.f32 %v3459, 1.442695
        %v3465 = vpow.pop %v3464
        %v3466 = vmul.f32 %v3460, 1.442695
        %v3467 = vpow.pop %v3466
        %v3468 = vmul.f32 %v3461, 1.442695
        %v3469 = vpow.pop %v3468
        %v3470 = vsel %vm934, %v3463, 0.0
        %3471 = vadd.xlane.f32.xlu0 %v3470
        %v3472 = vpop.xlane.xlu0 %3471
        %v3473 = vsel %vm934, %v3465, 0.0
        %3474 = vadd.xlane.f32.xlu0 %v3473
        %v3475 = vpop.xlane.xlu0 %3474
        %v3476 = vsel %vm934, %v3467, 0.0
        %3477 = vadd.xlane.f32.xlu0 %v3476
        %v3478 = vpop.xlane.xlu0 %3477
        %v3479 = vsel %vm934, %v3469, 0.0
        %3480 = vadd.xlane.f32.xlu0 %v3479
        %v3481 = vpop.xlane.xlu0 %3480
        %v3482 = vrcp.pop %v3472
        %v3483 = vrcp.pop %v3475
        %v3484 = vrcp.pop %v3478
        %v3485 = vrcp.pop %v3481
        %v3486 = vmul.f32 %v3463, %v3482
        %v3487 = vmul.f32 %v3465, %v3483
        %v3488 = vmul.f32 %v3467, %v3484
        %v3489 = vmul.f32 %v3469, %v3485
        %v3491 = vsel %vm934, %v3486, 0
        %3493 = vmatprep.subr.mxu0 0.0
        %3494 = vmatpush1.msra.mxu0 0.0
        %3495 = vmatprep.subr.mxu0 0.0
        %3496 = vmatpush1.msra.mxu0 0.0
        %3497 = vmatprep.subr.mxu0 0.0
        %3498 = vmatpush1.msra.mxu0 0.0
        %3499 = vmatprep.subr.mxu0 0.0
        %3500 = vmatpush1.msra.mxu0 0.0
        %3501 = vmatprep.subr.mxu0 0.0
        %3502 = vmatpush1.msra.mxu0 0.0
        %3503 = vmatprep.subr.mxu0 0.0
        %3504 = vmatpush1.msra.mxu0 0.0
        %3505 = vmatprep.subr.mxu0 0.0
        %3506 = vmatpush1.msra.mxu0 0.0
        %3507 = vmatprep.subr.mxu0 0.0
        %3508 = vmatpush1.msra.mxu0 0.0
        %3509 = vmatprep.subr.mxu0 0.0
        %3510 = vmatpush1.msra.mxu0 0.0
        %3511 = vmatprep.subr.mxu0 0.0
        %3512 = vmatpush1.msra.mxu0 0.0
        %3513 = vmatprep.subr.mxu0 0.0
        %3514 = vmatpush1.msra.mxu0 0.0
        %3515 = vmatprep.subr.mxu0 0.0
        %3516 = vmatpush1.msra.mxu0 0.0
        %3517 = vmatprep.subr.mxu0 0.0
        %3518 = vmatpush1.msra.mxu0 0.0
        %3519 = vmatprep.subr.mxu0 0.0
        %3520 = vmatpush1.msra.mxu0 0.0
        %3521 = vmatprep.subr.mxu0 0.0
        %3522 = vmatpush1.msra.mxu0 0.0
        %3523 = vmatprep.subr.mxu0 0.0
        %3524 = vmatpush1.msra.mxu0 %v3117
        %3525 = vmatprep.subr.mxu0 0.0
        %3526 = vmatpush2.msra.mxu0 0.0
        %3527 = vmatprep.subr.mxu0 0.0
        %3528 = vmatpush2.msra.mxu0 0.0
        %3529 = vmatprep.subr.mxu0 0.0
        %3530 = vmatpush2.msra.mxu0 0.0
        %3531 = vmatprep.subr.mxu0 0.0
        %3532 = vmatpush2.msra.mxu0 0.0
        %3533 = vmatprep.subr.mxu0 0.0
        %3534 = vmatpush2.msra.mxu0 0.0
        %3535 = vmatprep.subr.mxu0 0.0
        %3536 = vmatpush2.msra.mxu0 0.0
        %3537 = vmatprep.subr.mxu0 0.0
        %3538 = vmatpush2.msra.mxu0 0.0
        %3539 = vmatprep.subr.mxu0 0.0
        %3540 = vmatpush2.msra.mxu0 0.0
        %3541 = vmatprep.subr.mxu0 0.0
        %3542 = vmatpush2.msra.mxu0 0.0
        %3543 = vmatprep.subr.mxu0 0.0
        %3544 = vmatpush2.msra.mxu0 0.0
        %3545 = vmatprep.subr.mxu0 0.0
        %3546 = vmatpush2.msra.mxu0 0.0
        %3547 = vmatprep.subr.mxu0 0.0
        %3548 = vmatpush2.msra.mxu0 0.0
        %3549 = vmatprep.subr.mxu0 0.0
        %3550 = vmatpush2.msra.mxu0 0.0
        %3551 = vmatprep.subr.mxu0 0.0
        %3552 = vmatpush2.msra.mxu0 0.0
        %3553 = vmatprep.subr.mxu0 0.0
        %3554 = vmatpush2.msra.mxu0 0.0
        %3555 = vmatprep.subr.mxu0 0.0
        %3556 = vmatpush2.msra.mxu0 0.0
        %3557 = vmatprep.mubr.f32.mxu0 0.0
        %3558 = vmatmul.mubr.f32.gmra.mxu0 %v3491
        %v3559 = vpop.f32.mrf.mxu0
        %v3560 = vadd.f32 0.0, %v3559
        %v3561 = vpop.f32.mrf.mxu0
        %3562 = vdwg.mxu0
        %v3564 = vsel %vm934, %v3487, 0
        %3566 = vmatprep.subr.mxu0 0.0
        %3567 = vmatpush1.msra.mxu0 0.0
        %3568 = vmatprep.subr.mxu0 0.0
        %3569 = vmatpush1.msra.mxu0 0.0
        %3570 = vmatprep.subr.mxu0 0.0
        %3571 = vmatpush1.msra.mxu0 0.0
        %3572 = vmatprep.subr.mxu0 0.0
        %3573 = vmatpush1.msra.mxu0 0.0
        %3574 = vmatprep.subr.mxu0 0.0
        %3575 = vmatpush1.msra.mxu0 0.0
        %3576 = vmatprep.subr.mxu0 0.0
        %3577 = vmatpush1.msra.mxu0 0.0
        %3578 = vmatprep.subr.mxu0 0.0
        %3579 = vmatpush1.msra.mxu0 0.0
        %3580 = vmatprep.subr.mxu0 0.0
        %3581 = vmatpush1.msra.mxu0 0.0
        %3582 = vmatprep.subr.mxu0 0.0
        %3583 = vmatpush1.msra.mxu0 0.0
        %3584 = vmatprep.subr.mxu0 0.0
        %3585 = vmatpush1.msra.mxu0 0.0
        %3586 = vmatprep.subr.mxu0 0.0
        %3587 = vmatpush1.msra.mxu0 0.0
        %3588 = vmatprep.subr.mxu0 0.0
        %3589 = vmatpush1.msra.mxu0 0.0
        %3590 = vmatprep.subr.mxu0 0.0
        %3591 = vmatpush1.msra.mxu0 0.0
        %3592 = vmatprep.subr.mxu0 0.0
        %3593 = vmatpush1.msra.mxu0 0.0
        %3594 = vmatprep.subr.mxu0 0.0
        %3595 = vmatpush1.msra.mxu0 0.0
        %3596 = vmatprep.subr.mxu0 0.0
        %3597 = vmatpush1.msra.mxu0 %v3134
        %3598 = vmatprep.subr.mxu0 0.0
        %3599 = vmatpush2.msra.mxu0 0.0
        %3600 = vmatprep.subr.mxu0 0.0
        %3601 = vmatpush2.msra.mxu0 0.0
        %3602 = vmatprep.subr.mxu0 0.0
        %3603 = vmatpush2.msra.mxu0 0.0
        %3604 = vmatprep.subr.mxu0 0.0
        %3605 = vmatpush2.msra.mxu0 0.0
        %3606 = vmatprep.subr.mxu0 0.0
        %3607 = vmatpush2.msra.mxu0 0.0
        %3608 = vmatprep.subr.mxu0 0.0
        %3609 = vmatpush2.msra.mxu0 0.0
        %3610 = vmatprep.subr.mxu0 0.0
        %3611 = vmatpush2.msra.mxu0 0.0
        %3612 = vmatprep.subr.mxu0 0.0
        %3613 = vmatpush2.msra.mxu0 0.0
        %3614 = vmatprep.subr.mxu0 0.0
        %3615 = vmatpush2.msra.mxu0 0.0
        %3616 = vmatprep.subr.mxu0 0.0
        %3617 = vmatpush2.msra.mxu0 0.0
        %3618 = vmatprep.subr.mxu0 0.0
        %3619 = vmatpush2.msra.mxu0 0.0
        %3620 = vmatprep.subr.mxu0 0.0
        %3621 = vmatpush2.msra.mxu0 0.0
        %3622 = vmatprep.subr.mxu0 0.0
        %3623 = vmatpush2.msra.mxu0 0.0
        %3624 = vmatprep.subr.mxu0 0.0
        %3625 = vmatpush2.msra.mxu0 0.0
        %3626 = vmatprep.subr.mxu0 0.0
        %3627 = vmatpush2.msra.mxu0 0.0
        %3628 = vmatprep.subr.mxu0 0.0
        %3629 = vmatpush2.msra.mxu0 0.0
        %3630 = vmatprep.mubr.f32.mxu0 0.0
        %3631 = vmatmul.mubr.f32.gmra.mxu0 %v3564
        %v3632 = vpop.f32.mrf.mxu0
        %v3633 = vadd.f32 0.0, %v3632
        %v3634 = vpop.f32.mrf.mxu0
        %3635 = vdwg.mxu0
        %v3637 = vsel %vm934, %v3488, 0
        %3639 = vmatprep.subr.mxu0 0.0
        %3640 = vmatpush1.msra.mxu0 0.0
        %3641 = vmatprep.subr.mxu0 0.0
        %3642 = vmatpush1.msra.mxu0 0.0
        %3643 = vmatprep.subr.mxu0 0.0
        %3644 = vmatpush1.msra.mxu0 0.0
        %3645 = vmatprep.subr.mxu0 0.0
        %3646 = vmatpush1.msra.mxu0 0.0
        %3647 = vmatprep.subr.mxu0 0.0
        %3648 = vmatpush1.msra.mxu0 0.0
        %3649 = vmatprep.subr.mxu0 0.0
        %3650 = vmatpush1.msra.mxu0 0.0
        %3651 = vmatprep.subr.mxu0 0.0
        %3652 = vmatpush1.msra.mxu0 0.0
        %3653 = vmatprep.subr.mxu0 0.0
        %3654 = vmatpush1.msra.mxu0 0.0
        %3655 = vmatprep.subr.mxu0 0.0
        %3656 = vmatpush1.msra.mxu0 0.0
        %3657 = vmatprep.subr.mxu0 0.0
        %3658 = vmatpush1.msra.mxu0 0.0
        %3659 = vmatprep.subr.mxu0 0.0
        %3660 = vmatpush1.msra.mxu0 0.0
        %3661 = vmatprep.subr.mxu0 0.0
        %3662 = vmatpush1.msra.mxu0 0.0
        %3663 = vmatprep.subr.mxu0 0.0
        %3664 = vmatpush1.msra.mxu0 0.0
        %3665 = vmatprep.subr.mxu0 0.0
        %3666 = vmatpush1.msra.mxu0 0.0
        %3667 = vmatprep.subr.mxu0 0.0
        %3668 = vmatpush1.msra.mxu0 0.0
        %3669 = vmatprep.subr.mxu0 0.0
        %3670 = vmatpush1.msra.mxu0 %v3137
        %3671 = vmatprep.subr.mxu0 0.0
        %3672 = vmatpush2.msra.mxu0 0.0
        %3673 = vmatprep.subr.mxu0 0.0
        %3674 = vmatpush2.msra.mxu0 0.0
        %3675 = vmatprep.subr.mxu0 0.0
        %3676 = vmatpush2.msra.mxu0 0.0
        %3677 = vmatprep.subr.mxu0 0.0
        %3678 = vmatpush2.msra.mxu0 0.0
        %3679 = vmatprep.subr.mxu0 0.0
        %3680 = vmatpush2.msra.mxu0 0.0
        %3681 = vmatprep.subr.mxu0 0.0
        %3682 = vmatpush2.msra.mxu0 0.0
        %3683 = vmatprep.subr.mxu0 0.0
        %3684 = vmatpush2.msra.mxu0 0.0
        %3685 = vmatprep.subr.mxu0 0.0
        %3686 = vmatpush2.msra.mxu0 0.0
        %3687 = vmatprep.subr.mxu0 0.0
        %3688 = vmatpush2.msra.mxu0 0.0
        %3689 = vmatprep.subr.mxu0 0.0
        %3690 = vmatpush2.msra.mxu0 0.0
        %3691 = vmatprep.subr.mxu0 0.0
        %3692 = vmatpush2.msra.mxu0 0.0
        %3693 = vmatprep.subr.mxu0 0.0
        %3694 = vmatpush2.msra.mxu0 0.0
        %3695 = vmatprep.subr.mxu0 0.0
        %3696 = vmatpush2.msra.mxu0 0.0
        %3697 = vmatprep.subr.mxu0 0.0
        %3698 = vmatpush2.msra.mxu0 0.0
        %3699 = vmatprep.subr.mxu0 0.0
        %3700 = vmatpush2.msra.mxu0 0.0
        %3701 = vmatprep.subr.mxu0 0.0
        %3702 = vmatpush2.msra.mxu0 0.0
        %3703 = vmatprep.mubr.f32.mxu0 0.0
        %3704 = vmatmul.mubr.f32.gmra.mxu0 %v3637
        %v3705 = vpop.f32.mrf.mxu0
        %v3706 = vadd.f32 0.0, %v3705
        %v3707 = vpop.f32.mrf.mxu0
        %3708 = vdwg.mxu0
        %v3710 = vsel %vm934, %v3489, 0
        %3712 = vmatprep.subr.mxu0 0.0
        %3713 = vmatpush1.msra.mxu0 0.0
        %3714 = vmatprep.subr.mxu0 0.0
        %3715 = vmatpush1.msra.mxu0 0.0
        %3716 = vmatprep.subr.mxu0 0.0
        %3717 = vmatpush1.msra.mxu0 0.0
        %3718 = vmatprep.subr.mxu0 0.0
        %3719 = vmatpush1.msra.mxu0 0.0
        %3720 = vmatprep.subr.mxu0 0.0
        %3721 = vmatpush1.msra.mxu0 0.0
        %3722 = vmatprep.subr.mxu0 0.0
        %3723 = vmatpush1.msra.mxu0 0.0
        %3724 = vmatprep.subr.mxu0 0.0
        %3725 = vmatpush1.msra.mxu0 0.0
        %3726 = vmatprep.subr.mxu0 0.0
        %3727 = vmatpush1.msra.mxu0 0.0
        %3728 = vmatprep.subr.mxu0 0.0
        %3729 = vmatpush1.msra.mxu0 0.0
        %3730 = vmatprep.subr.mxu0 0.0
        %3731 = vmatpush1.msra.mxu0 0.0
        %3732 = vmatprep.subr.mxu0 0.0
        %3733 = vmatpush1.msra.mxu0 0.0
        %3734 = vmatprep.subr.mxu0 0.0
        %3735 = vmatpush1.msra.mxu0 0.0
        %3736 = vmatprep.subr.mxu0 0.0
        %3737 = vmatpush1.msra.mxu0 0.0
        %3738 = vmatprep.subr.mxu0 0.0
        %3739 = vmatpush1.msra.mxu0 0.0
        %3740 = vmatprep.subr.mxu0 0.0
        %3741 = vmatpush1.msra.mxu0 0.0
        %3742 = vmatprep.subr.mxu0 0.0
        %3743 = vmatpush1.msra.mxu0 %v3140
        %3744 = vmatprep.subr.mxu0 0.0
        %3745 = vmatpush2.msra.mxu0 0.0
        %3746 = vmatprep.subr.mxu0 0.0
        %3747 = vmatpush2.msra.mxu0 0.0
        %3748 = vmatprep.subr.mxu0 0.0
        %3749 = vmatpush2.msra.mxu0 0.0
        %3750 = vmatprep.subr.mxu0 0.0
        %3751 = vmatpush2.msra.mxu0 0.0
        %3752 = vmatprep.subr.mxu0 0.0
        %3753 = vmatpush2.msra.mxu0 0.0
        %3754 = vmatprep.subr.mxu0 0.0
        %3755 = vmatpush2.msra.mxu0 0.0
        %3756 = vmatprep.subr.mxu0 0.0
        %3757 = vmatpush2.msra.mxu0 0.0
        %3758 = vmatprep.subr.mxu0 0.0
        %3759 = vmatpush2.msra.mxu0 0.0
        %3760 = vmatprep.subr.mxu0 0.0
        %3761 = vmatpush2.msra.mxu0 0.0
        %3762 = vmatprep.subr.mxu0 0.0
        %3763 = vmatpush2.msra.mxu0 0.0
        %3764 = vmatprep.subr.mxu0 0.0
        %3765 = vmatpush2.msra.mxu0 0.0
        %3766 = vmatprep.subr.mxu0 0.0
        %3767 = vmatpush2.msra.mxu0 0.0
        %3768 = vmatprep.subr.mxu0 0.0
        %3769 = vmatpush2.msra.mxu0 0.0
        %3770 = vmatprep.subr.mxu0 0.0
        %3771 = vmatpush2.msra.mxu0 0.0
        %3772 = vmatprep.subr.mxu0 0.0
        %3773 = vmatpush2.msra.mxu0 0.0
        %3774 = vmatprep.subr.mxu0 0.0
        %3775 = vmatpush2.msra.mxu0 0.0
        %3776 = vmatprep.mubr.f32.mxu0 0.0
        %3777 = vmatmul.mubr.f32.gmra.mxu0 %v3710
        %v3778 = vpop.f32.mrf.mxu0
        %v3779 = vadd.f32 0.0, %v3778
        %v3780 = vpop.f32.mrf.mxu0
        %3781 = vdwg.mxu0
        %3783 = vrot.lane.b32.xlu0 %v3633, 8
        %v3784 = vpop.permute.xlu0 %3783
        %3787 = vrot.lane.b32.xlu0 %v3706, 16
        %v3788 = vpop.permute.xlu0 %3787
        %3791 = vrot.lane.b32.xlu0 %v3779, 24
        %v3792 = vpop.permute.xlu0 %3791
        %v3794 = vsel %vm934, %v3560, %v3784
        %v3795 = vsel %vm1586, %v3794, %v3788
        %v3796 = vsel %vm1588, %v3795, %v3792
        %v3797 = vlaneseq
        %v3798 = vshrl.u32 %v3797, 7
        %v3799 = vsub.s32 1, %v3798
        %v3800 = vrot.slane %v2949, %v3799
        %v3802 = vsel %vm756, %v3796, 0
        %3804 = vmatprep.subr.mxu0 0.0
        %3805 = vmatpush1.msra.mxu0 0.0
        %3806 = vmatprep.subr.mxu0 0.0
        %3807 = vmatpush1.msra.mxu0 0.0
        %3808 = vmatprep.subr.mxu0 0.0
        %3809 = vmatpush1.msra.mxu0 0.0
        %3810 = vmatprep.subr.mxu0 0.0
        %3811 = vmatpush1.msra.mxu0 0.0
        %3812 = vmatprep.subr.mxu0 0.0
        %3813 = vmatpush1.msra.mxu0 0.0
        %3814 = vmatprep.subr.mxu0 0.0
        %3815 = vmatpush1.msra.mxu0 0.0
        %3816 = vmatprep.subr.mxu0 0.0
        %3817 = vmatpush1.msra.mxu0 0.0
        %3818 = vmatprep.subr.mxu0 0.0
        %3819 = vmatpush1.msra.mxu0 0.0
        %3820 = vmatprep.subr.mxu0 0.0
        %3821 = vmatpush1.msra.mxu0 0.0
        %3822 = vmatprep.subr.mxu0 0.0
        %3823 = vmatpush1.msra.mxu0 0.0
        %3824 = vmatprep.subr.mxu0 0.0
        %3825 = vmatpush1.msra.mxu0 0.0
        %3826 = vmatprep.subr.mxu0 0.0
        %3827 = vmatpush1.msra.mxu0 0.0
        %3828 = vmatprep.subr.mxu0 0.0
        %3829 = vmatpush1.msra.mxu0 %v3124
        %3830 = vmatprep.subr.mxu0 0.0
        %3831 = vmatpush1.msra.mxu0 %v3123
        %3832 = vmatprep.subr.mxu0 0.0
        %3833 = vmatpush1.msra.mxu0 %v3122
        %3834 = vmatprep.subr.mxu0 0.0
        %3835 = vmatpush1.msra.mxu0 %v3121
        %3836 = vmatprep.subr.mxu0 0.0
        %3837 = vmatpush2.msra.mxu0 0.0
        %3838 = vmatprep.subr.mxu0 0.0
        %3839 = vmatpush2.msra.mxu0 0.0
        %3840 = vmatprep.subr.mxu0 0.0
        %3841 = vmatpush2.msra.mxu0 0.0
        %3842 = vmatprep.subr.mxu0 0.0
        %3843 = vmatpush2.msra.mxu0 0.0
        %3844 = vmatprep.subr.mxu0 0.0
        %3845 = vmatpush2.msra.mxu0 0.0
        %3846 = vmatprep.subr.mxu0 0.0
        %3847 = vmatpush2.msra.mxu0 0.0
        %3848 = vmatprep.subr.mxu0 0.0
        %3849 = vmatpush2.msra.mxu0 0.0
        %3850 = vmatprep.subr.mxu0 0.0
        %3851 = vmatpush2.msra.mxu0 0.0
        %3852 = vmatprep.subr.mxu0 0.0
        %3853 = vmatpush2.msra.mxu0 0.0
        %3854 = vmatprep.subr.mxu0 0.0
        %3855 = vmatpush2.msra.mxu0 0.0
        %3856 = vmatprep.subr.mxu0 0.0
        %3857 = vmatpush2.msra.mxu0 0.0
        %3858 = vmatprep.subr.mxu0 0.0
        %3859 = vmatpush2.msra.mxu0 0.0
        %3860 = vmatprep.subr.mxu0 0.0
        %3861 = vmatpush2.msra.mxu0 0.0
        %3862 = vmatprep.subr.mxu0 0.0
        %3863 = vmatpush2.msra.mxu0 0.0
        %3864 = vmatprep.subr.mxu0 0.0
        %3865 = vmatpush2.msra.mxu0 0.0
        %3866 = vmatprep.subr.mxu0 0.0
        %3867 = vmatpush2.msra.mxu0 0.0
        %3868 = vmatprep.mubr.f32.mxu0 0.0
        %3869 = vmatmul.mubr.f32.gmra.mxu0 %v3802
        %v3870 = vpop.f32.mrf.mxu0
        %v3871 = vadd.f32 %v3800, %v3870
        %v3872 = vpop.f32.mrf.mxu0
        %3873 = vdwg.mxu0
        %v3874 = vadd.f32 %v2947, %v3871
        %v3875 = vsel %vm756, %v3874, 0.0
        %3876 = vadd.xlane.f32.xlu0 %v3875
        %v3877 = vpop.xlane.xlu0 %3876
        %v3878 = vmul.f32 %v3877, %v1671
        %v3879 = vsub.f32 %v3874, %v3878
        %v3880 = vmul.f32 %v3879, %v3879
        %v3881 = vsel %vm756, %v3880, 0.0
        %3882 = vadd.xlane.f32.xlu0 %v3881
        %v3883 = vpop.xlane.xlu0 %3882
        %v3884 = vmul.f32 %v3883, %v1671
        %v3885 = vadd.f32 %v3884, 1e-05
        %v3886 = vrsqrt.pop %v3885
        %v3887 = vmul.f32 %v3879, %v3886
        %v3888 = vlaneseq
        %v3889 = vshrl.u32 %v3888, 7
        %v3890 = vsub.s32 7, %v3889
        %v3891 = vrot.slane %v2949, %v3890
        %v3892 = vmul.f32 %v3887, %v3891
        %v3893 = vlaneseq
        %v3894 = vshrl.u32 %v3893, 7
        %v3895 = vsub.s32 0, %v3894
        %v3896 = vrot.slane %v2950, %v3895
        %v3897 = vadd.f32 %v3892, %v3896
        %v3898 = vadd.f32 %v3897, %v737
        %s3899 = scalar_lea.vmem %s7, 32
        %v3900 = vld [vmem:[%s3899] sm:$0xff]
        %v3901 = vld [vmem:[%s3899 + $0x8] sm:$0xff]
        %v3902 = vld [vmem:[%s3899 + $0x10] sm:$0xff]
        %v3903 = vld [vmem:[%s3899 + $0x18] sm:$0xff]
        %v3904 = vlaneseq
        %v3905 = vshrl.u32 %v3904, 7
        %v3906 = vsub.s32 2, %v3905
        %v3907 = vrot.slane %v2949, %v3906
        %v3909 = vsel %vm756, %v3898, 0
        %3911 = vmatprep.subr.mxu0 0.0
        %3912 = vmatpush1.msra.mxu0 0.0
        %3913 = vmatprep.subr.mxu0 0.0
        %3914 = vmatpush1.msra.mxu0 0.0
        %3915 = vmatprep.subr.mxu0 0.0
        %3916 = vmatpush1.msra.mxu0 0.0
        %3917 = vmatprep.subr.mxu0 0.0
        %3918 = vmatpush1.msra.mxu0 0.0
        %3919 = vmatprep.subr.mxu0 0.0
        %3920 = vmatpush1.msra.mxu0 0.0
        %3921 = vmatprep.subr.mxu0 0.0
        %3922 = vmatpush1.msra.mxu0 0.0
        %3923 = vmatprep.subr.mxu0 0.0
        %3924 = vmatpush1.msra.mxu0 0.0
        %3925 = vmatprep.subr.mxu0 0.0
        %3926 = vmatpush1.msra.mxu0 0.0
        %3927 = vmatprep.subr.mxu0 0.0
        %3928 = vmatpush1.msra.mxu0 0.0
        %3929 = vmatprep.subr.mxu0 0.0
        %3930 = vmatpush1.msra.mxu0 0.0
        %3931 = vmatprep.subr.mxu0 0.0
        %3932 = vmatpush1.msra.mxu0 0.0
        %3933 = vmatprep.subr.mxu0 0.0
        %3934 = vmatpush1.msra.mxu0 0.0
        %3935 = vmatprep.subr.mxu0 0.0
        %3936 = vmatpush1.msra.mxu0 %v3903
        %3937 = vmatprep.subr.mxu0 0.0
        %3938 = vmatpush1.msra.mxu0 %v3902
        %3939 = vmatprep.subr.mxu0 0.0
        %3940 = vmatpush1.msra.mxu0 %v3901
        %3941 = vmatprep.subr.mxu0 0.0
        %3942 = vmatpush1.msra.mxu0 %v3900
        %3943 = vmatprep.subr.mxu0 0.0
        %3944 = vmatpush2.msra.mxu0 0.0
        %3945 = vmatprep.subr.mxu0 0.0
        %3946 = vmatpush2.msra.mxu0 0.0
        %3947 = vmatprep.subr.mxu0 0.0
        %3948 = vmatpush2.msra.mxu0 0.0
        %3949 = vmatprep.subr.mxu0 0.0
        %3950 = vmatpush2.msra.mxu0 0.0
        %3951 = vmatprep.subr.mxu0 0.0
        %3952 = vmatpush2.msra.mxu0 0.0
        %3953 = vmatprep.subr.mxu0 0.0
        %3954 = vmatpush2.msra.mxu0 0.0
        %3955 = vmatprep.subr.mxu0 0.0
        %3956 = vmatpush2.msra.mxu0 0.0
        %3957 = vmatprep.subr.mxu0 0.0
        %3958 = vmatpush2.msra.mxu0 0.0
        %3959 = vmatprep.subr.mxu0 0.0
        %3960 = vmatpush2.msra.mxu0 0.0
        %3961 = vmatprep.subr.mxu0 0.0
        %3962 = vmatpush2.msra.mxu0 0.0
        %3963 = vmatprep.subr.mxu0 0.0
        %3964 = vmatpush2.msra.mxu0 0.0
        %3965 = vmatprep.subr.mxu0 0.0
        %3966 = vmatpush2.msra.mxu0 0.0
        %3967 = vmatprep.subr.mxu0 0.0
        %3968 = vmatpush2.msra.mxu0 0.0
        %3969 = vmatprep.subr.mxu0 0.0
        %3970 = vmatpush2.msra.mxu0 0.0
        %3971 = vmatprep.subr.mxu0 0.0
        %3972 = vmatpush2.msra.mxu0 0.0
        %3973 = vmatprep.subr.mxu0 0.0
        %3974 = vmatpush2.msra.mxu0 0.0
        %3975 = vmatprep.mubr.f32.mxu0 0.0
        %3976 = vmatmul.mubr.f32.gmra.mxu0 %v3909
        %v3977 = vpop.f32.mrf.mxu0
        %v3978 = vadd.f32 %v3907, %v3977
        %v3979 = vpop.f32.mrf.mxu0
        %3980 = vdwg.mxu0
        %s3981 = scalar_lea.vmem [#allocation10], 32
        %v3982 = vld [vmem:[%s3981] sm:$0xff]
        %v3983 = vld [vmem:[%s3981 + $0x8] sm:$0xff]
        %v3984 = vld [vmem:[%s3981 + $0x10] sm:$0xff]
        %v3985 = vld [vmem:[%s3981 + $0x18] sm:$0xff]
        %v3986 = vlaneseq
        %v3987 = vshrl.u32 %v3986, 7
        %v3988 = vsub.s32 3, %v3987
        %v3989 = vrot.slane %v2949, %v3988
        %3990 = vmatprep.subr.mxu0 0.0
        %3991 = vmatpush1.msra.mxu0 0.0
        %3992 = vmatprep.subr.mxu0 0.0
        %3993 = vmatpush1.msra.mxu0 0.0
        %3994 = vmatprep.subr.mxu0 0.0
        %3995 = vmatpush1.msra.mxu0 0.0
        %3996 = vmatprep.subr.mxu0 0.0
        %3997 = vmatpush1.msra.mxu0 0.0
        %3998 = vmatprep.subr.mxu0 0.0
        %3999 = vmatpush1.msra.mxu0 0.0
        %4000 = vmatprep.subr.mxu0 0.0
        %4001 = vmatpush1.msra.mxu0 0.0
        %4002 = vmatprep.subr.mxu0 0.0
        %4003 = vmatpush1.msra.mxu0 0.0
        %4004 = vmatprep.subr.mxu0 0.0
        %4005 = vmatpush1.msra.mxu0 0.0
        %4006 = vmatprep.subr.mxu0 0.0
        %4007 = vmatpush1.msra.mxu0 0.0
        %4008 = vmatprep.subr.mxu0 0.0
        %4009 = vmatpush1.msra.mxu0 0.0
        %4010 = vmatprep.subr.mxu0 0.0
        %4011 = vmatpush1.msra.mxu0 0.0
        %4012 = vmatprep.subr.mxu0 0.0
        %4013 = vmatpush1.msra.mxu0 0.0
        %4014 = vmatprep.subr.mxu0 0.0
        %4015 = vmatpush1.msra.mxu0 %v3985
        %4016 = vmatprep.subr.mxu0 0.0
        %4017 = vmatpush1.msra.mxu0 %v3984
        %4018 = vmatprep.subr.mxu0 0.0
        %4019 = vmatpush1.msra.mxu0 %v3983
        %4020 = vmatprep.subr.mxu0 0.0
        %4021 = vmatpush1.msra.mxu0 %v3982
        %4022 = vmatprep.subr.mxu0 0.0
        %4023 = vmatpush2.msra.mxu0 0.0
        %4024 = vmatprep.subr.mxu0 0.0
        %4025 = vmatpush2.msra.mxu0 0.0
        %4026 = vmatprep.subr.mxu0 0.0
        %4027 = vmatpush2.msra.mxu0 0.0
        %4028 = vmatprep.subr.mxu0 0.0
        %4029 = vmatpush2.msra.mxu0 0.0
        %4030 = vmatprep.subr.mxu0 0.0
        %4031 = vmatpush2.msra.mxu0 0.0
        %4032 = vmatprep.subr.mxu0 0.0
        %4033 = vmatpush2.msra.mxu0 0.0
        %4034 = vmatprep.subr.mxu0 0.0
        %4035 = vmatpush2.msra.mxu0 0.0
        %4036 = vmatprep.subr.mxu0 0.0
        %4037 = vmatpush2.msra.mxu0 0.0
        %4038 = vmatprep.subr.mxu0 0.0
        %4039 = vmatpush2.msra.mxu0 0.0
        %4040 = vmatprep.subr.mxu0 0.0
        %4041 = vmatpush2.msra.mxu0 0.0
        %4042 = vmatprep.subr.mxu0 0.0
        %4043 = vmatpush2.msra.mxu0 0.0
        %4044 = vmatprep.subr.mxu0 0.0
        %4045 = vmatpush2.msra.mxu0 0.0
        %4046 = vmatprep.subr.mxu0 0.0
        %4047 = vmatpush2.msra.mxu0 0.0
        %4048 = vmatprep.subr.mxu0 0.0
        %4049 = vmatpush2.msra.mxu0 0.0
        %4050 = vmatprep.subr.mxu0 0.0
        %4051 = vmatpush2.msra.mxu0 0.0
        %4052 = vmatprep.subr.mxu0 0.0
        %4053 = vmatpush2.msra.mxu0 0.0
        %4054 = vmatprep.mubr.f32.mxu0 0.0
        %4055 = vmatmul.mubr.f32.gmra.mxu0 %v1783
        %v4056 = vpop.f32.mrf.mxu0
        %v4057 = vadd.f32 %v3989, %v4056
        %v4058 = vpop.f32.mrf.mxu0
        %4059 = vmatprep.mubr.f32.mxu0 0.0
        %4060 = vmatmul.mubr.f32.gmra.mxu0 %v1786
        %v4061 = vpop.f32.mrf.mxu0
        %v4062 = vadd.f32 %v3989, %v4061
        %v4063 = vpop.f32.mrf.mxu0
        %4064 = vdwg.mxu0
        %s4065 = scalar_lea.vmem [#allocation11], 32
        %v4066 = vld [vmem:[%s4065] sm:$0xff]
        %v4067 = vld [vmem:[%s4065 + $0x8] sm:$0xff]
        %v4068 = vld [vmem:[%s4065 + $0x10] sm:$0xff]
        %v4069 = vld [vmem:[%s4065 + $0x18] sm:$0xff]
        %v4070 = vlaneseq
        %v4071 = vshrl.u32 %v4070, 7
        %v4072 = vsub.s32 4, %v4071
        %v4073 = vrot.slane %v2949, %v4072
        %4074 = vmatprep.subr.mxu0 0.0
        %4075 = vmatpush1.msra.mxu0 0.0
        %4076 = vmatprep.subr.mxu0 0.0
        %4077 = vmatpush1.msra.mxu0 0.0
        %4078 = vmatprep.subr.mxu0 0.0
        %4079 = vmatpush1.msra.mxu0 0.0
        %4080 = vmatprep.subr.mxu0 0.0
        %4081 = vmatpush1.msra.mxu0 0.0
        %4082 = vmatprep.subr.mxu0 0.0
        %4083 = vmatpush1.msra.mxu0 0.0
        %4084 = vmatprep.subr.mxu0 0.0
        %4085 = vmatpush1.msra.mxu0 0.0
        %4086 = vmatprep.subr.mxu0 0.0
        %4087 = vmatpush1.msra.mxu0 0.0
        %4088 = vmatprep.subr.mxu0 0.0
        %4089 = vmatpush1.msra.mxu0 0.0
        %4090 = vmatprep.subr.mxu0 0.0
        %4091 = vmatpush1.msra.mxu0 0.0
        %4092 = vmatprep.subr.mxu0 0.0
        %4093 = vmatpush1.msra.mxu0 0.0
        %4094 = vmatprep.subr.mxu0 0.0
        %4095 = vmatpush1.msra.mxu0 0.0
        %4096 = vmatprep.subr.mxu0 0.0
        %4097 = vmatpush1.msra.mxu0 0.0
        %4098 = vmatprep.subr.mxu0 0.0
        %4099 = vmatpush1.msra.mxu0 %v4069
        %4100 = vmatprep.subr.mxu0 0.0
        %4101 = vmatpush1.msra.mxu0 %v4068
        %4102 = vmatprep.subr.mxu0 0.0
        %4103 = vmatpush1.msra.mxu0 %v4067
        %4104 = vmatprep.subr.mxu0 0.0
        %4105 = vmatpush1.msra.mxu0 %v4066
        %4106 = vmatprep.subr.mxu0 0.0
        %4107 = vmatpush2.msra.mxu0 0.0
        %4108 = vmatprep.subr.mxu0 0.0
        %4109 = vmatpush2.msra.mxu0 0.0
        %4110 = vmatprep.subr.mxu0 0.0
        %4111 = vmatpush2.msra.mxu0 0.0
        %4112 = vmatprep.subr.mxu0 0.0
        %4113 = vmatpush2.msra.mxu0 0.0
        %4114 = vmatprep.subr.mxu0 0.0
        %4115 = vmatpush2.msra.mxu0 0.0
        %4116 = vmatprep.subr.mxu0 0.0
        %4117 = vmatpush2.msra.mxu0 0.0
        %4118 = vmatprep.subr.mxu0 0.0
        %4119 = vmatpush2.msra.mxu0 0.0
        %4120 = vmatprep.subr.mxu0 0.0
        %4121 = vmatpush2.msra.mxu0 0.0
        %4122 = vmatprep.subr.mxu0 0.0
        %4123 = vmatpush2.msra.mxu0 0.0
        %4124 = vmatprep.subr.mxu0 0.0
        %4125 = vmatpush2.msra.mxu0 0.0
        %4126 = vmatprep.subr.mxu0 0.0
        %4127 = vmatpush2.msra.mxu0 0.0
        %4128 = vmatprep.subr.mxu0 0.0
        %4129 = vmatpush2.msra.mxu0 0.0
        %4130 = vmatprep.subr.mxu0 0.0
        %4131 = vmatpush2.msra.mxu0 0.0
        %4132 = vmatprep.subr.mxu0 0.0
        %4133 = vmatpush2.msra.mxu0 0.0
        %4134 = vmatprep.subr.mxu0 0.0
        %4135 = vmatpush2.msra.mxu0 0.0
        %4136 = vmatprep.subr.mxu0 0.0
        %4137 = vmatpush2.msra.mxu0 0.0
        %4138 = vmatprep.mubr.f32.mxu0 0.0
        %4139 = vmatmul.mubr.f32.gmra.mxu0 %v1872
        %v4140 = vpop.f32.mrf.mxu0
        %v4141 = vadd.f32 %v4073, %v4140
        %v4142 = vpop.f32.mrf.mxu0
        %4143 = vmatprep.mubr.f32.mxu0 0.0
        %4144 = vmatmul.mubr.f32.gmra.mxu0 %v1875
        %v4145 = vpop.f32.mrf.mxu0
        %v4146 = vadd.f32 %v4073, %v4145
        %v4147 = vpop.f32.mrf.mxu0
        %4148 = vdwg.mxu0
        %s4149 = scalar_lea.vmem [#allocation13], 32
        %v4150 = vld [vmem:[%s4149] sm:$0xff]
        %v4151 = vld [vmem:[%s4149 + $0x8] sm:$0xff]
        %v4152 = vld [vmem:[%s4149 + $0x10] sm:$0xff]
        %v4153 = vld [vmem:[%s4149 + $0x18] sm:$0xff]
        %4155 = vrot.lane.b32.xlu0 %v3978, 120
        %v4156 = vpop.permute.xlu0 %4155
        %4157 = vrot.lane.b32.xlu0 %v3978, 112
        %v4158 = vpop.permute.xlu0 %4157
        %4159 = vrot.lane.b32.xlu0 %v3978, 104
        %v4160 = vpop.permute.xlu0 %4159
        %4163 = vrot.lane.b32.xlu0 %v4057, 120
        %v4164 = vpop.permute.xlu0 %4163
        %4165 = vrot.lane.b32.xlu0 %v4062, 120
        %v4166 = vpop.permute.xlu0 %4165
        %4167 = vrot.lane.b32.xlu0 %v4057, 112
        %v4168 = vpop.permute.xlu0 %4167
        %4169 = vrot.lane.b32.xlu0 %v4062, 112
        %v4170 = vpop.permute.xlu0 %4169
        %4171 = vrot.lane.b32.xlu0 %v4057, 104
        %v4172 = vpop.permute.xlu0 %4171
        %4173 = vrot.lane.b32.xlu0 %v4062, 104
        %v4174 = vpop.permute.xlu0 %4173
        %4177 = vrot.lane.b32.xlu0 %v4141, 120
        %v4178 = vpop.permute.xlu0 %4177
        %4179 = vrot.lane.b32.xlu0 %v4146, 120
        %v4180 = vpop.permute.xlu0 %4179
        %4183 = vrot.lane.b32.xlu0 %v4141, 112
        %v4184 = vpop.permute.xlu0 %4183
        %4185 = vrot.lane.b32.xlu0 %v4146, 112
        %v4186 = vpop.permute.xlu0 %4185
        %4189 = vrot.lane.b32.xlu0 %v4141, 104
        %v4190 = vpop.permute.xlu0 %4189
        %4191 = vrot.lane.b32.xlu0 %v4146, 104
        %v4192 = vpop.permute.xlu0 %4191
        %v4195 = vsel %vm934, %v3978, 0
        %v4197 = vsel %vm934, %v4057, 0
        %v4199 = vsel %vm934, %v4062, 0
        %4201 = vmatprep.subr.mxu0 0.0
        %4202 = vmatpush1.xpose.msra.mxu0 0.0
        %4203 = vmatprep.subr.mxu0 0.0
        %4204 = vmatpush1.xpose.msra.mxu0 0.0
        %4205 = vmatprep.subr.mxu0 0.0
        %4206 = vmatpush1.xpose.msra.mxu0 0.0
        %4207 = vmatprep.subr.mxu0 0.0
        %4208 = vmatpush1.xpose.msra.mxu0 0.0
        %4209 = vmatprep.subr.mxu0 0.0
        %4210 = vmatpush1.xpose.msra.mxu0 0.0
        %4211 = vmatprep.subr.mxu0 0.0
        %4212 = vmatpush1.xpose.msra.mxu0 0.0
        %4213 = vmatprep.subr.mxu0 0.0
        %4214 = vmatpush1.xpose.msra.mxu0 0.0
        %4215 = vmatprep.subr.mxu0 0.0
        %4216 = vmatpush1.xpose.msra.mxu0 0.0
        %4217 = vmatprep.subr.mxu0 0.0
        %4218 = vmatpush1.xpose.msra.mxu0 0.0
        %4219 = vmatprep.subr.mxu0 0.0
        %4220 = vmatpush1.xpose.msra.mxu0 0.0
        %4221 = vmatprep.subr.mxu0 0.0
        %4222 = vmatpush1.xpose.msra.mxu0 0.0
        %4223 = vmatprep.subr.mxu0 0.0
        %4224 = vmatpush1.xpose.msra.mxu0 0.0
        %4225 = vmatprep.subr.mxu0 0.0
        %4226 = vmatpush1.xpose.msra.mxu0 0.0
        %4227 = vmatprep.subr.mxu0 0.0
        %4228 = vmatpush1.xpose.msra.mxu0 0.0
        %4229 = vmatprep.subr.mxu0 0.0
        %4230 = vmatpush1.xpose.msra.mxu0 %v4199
        %4231 = vmatprep.subr.mxu0 0.0
        %4232 = vmatpush1.xpose.msra.mxu0 %v4197
        %4233 = vmatprep.subr.mxu0 0.0
        %4234 = vmatpush2.xpose.msra.mxu0 0.0
        %4235 = vmatprep.subr.mxu0 0.0
        %4236 = vmatpush2.xpose.msra.mxu0 0.0
        %4237 = vmatprep.subr.mxu0 0.0
        %4238 = vmatpush2.xpose.msra.mxu0 0.0
        %4239 = vmatprep.subr.mxu0 0.0
        %4240 = vmatpush2.xpose.msra.mxu0 0.0
        %4241 = vmatprep.subr.mxu0 0.0
        %4242 = vmatpush2.xpose.msra.mxu0 0.0
        %4243 = vmatprep.subr.mxu0 0.0
        %4244 = vmatpush2.xpose.msra.mxu0 0.0
        %4245 = vmatprep.subr.mxu0 0.0
        %4246 = vmatpush2.xpose.msra.mxu0 0.0
        %4247 = vmatprep.subr.mxu0 0.0
        %4248 = vmatpush2.xpose.msra.mxu0 0.0
        %4249 = vmatprep.subr.mxu0 0.0
        %4250 = vmatpush2.xpose.msra.mxu0 0.0
        %4251 = vmatprep.subr.mxu0 0.0
        %4252 = vmatpush2.xpose.msra.mxu0 0.0
        %4253 = vmatprep.subr.mxu0 0.0
        %4254 = vmatpush2.xpose.msra.mxu0 0.0
        %4255 = vmatprep.subr.mxu0 0.0
        %4256 = vmatpush2.xpose.msra.mxu0 0.0
        %4257 = vmatprep.subr.mxu0 0.0
        %4258 = vmatpush2.xpose.msra.mxu0 0.0
        %4259 = vmatprep.subr.mxu0 0.0
        %4260 = vmatpush2.xpose.msra.mxu0 0.0
        %4261 = vmatprep.subr.mxu0 0.0
        %4262 = vmatpush2.xpose.msra.mxu0 0.0
        %4263 = vmatprep.subr.mxu0 0.0
        %4264 = vmatpush2.xpose.msra.mxu0 0.0
        %4265 = vmatprep.mubr.f32.mxu0 0.0
        %4266 = vmatmul.mubr.f32.gmra.mxu0 %v4195
        %v4267 = vpop.f32.mrf.mxu0
        %v4268 = vadd.f32 0.0, %v4267
        %v4269 = vpop.f32.mrf.mxu0
        %4270 = vdwg.mxu0
        %v4271 = vsel %vm934, %v4156, 0
        %v4273 = vsel %vm934, %v4164, 0
        %v4275 = vsel %vm934, %v4166, 0
        %4277 = vmatprep.subr.mxu0 0.0
        %4278 = vmatpush1.xpose.msra.mxu0 0.0
        %4279 = vmatprep.subr.mxu0 0.0
        %4280 = vmatpush1.xpose.msra.mxu0 0.0
        %4281 = vmatprep.subr.mxu0 0.0
        %4282 = vmatpush1.xpose.msra.mxu0 0.0
        %4283 = vmatprep.subr.mxu0 0.0
        %4284 = vmatpush1.xpose.msra.mxu0 0.0
        %4285 = vmatprep.subr.mxu0 0.0
        %4286 = vmatpush1.xpose.msra.mxu0 0.0
        %4287 = vmatprep.subr.mxu0 0.0
        %4288 = vmatpush1.xpose.msra.mxu0 0.0
        %4289 = vmatprep.subr.mxu0 0.0
        %4290 = vmatpush1.xpose.msra.mxu0 0.0
        %4291 = vmatprep.subr.mxu0 0.0
        %4292 = vmatpush1.xpose.msra.mxu0 0.0
        %4293 = vmatprep.subr.mxu0 0.0
        %4294 = vmatpush1.xpose.msra.mxu0 0.0
        %4295 = vmatprep.subr.mxu0 0.0
        %4296 = vmatpush1.xpose.msra.mxu0 0.0
        %4297 = vmatprep.subr.mxu0 0.0
        %4298 = vmatpush1.xpose.msra.mxu0 0.0
        %4299 = vmatprep.subr.mxu0 0.0
        %4300 = vmatpush1.xpose.msra.mxu0 0.0
        %4301 = vmatprep.subr.mxu0 0.0
        %4302 = vmatpush1.xpose.msra.mxu0 0.0
        %4303 = vmatprep.subr.mxu0 0.0
        %4304 = vmatpush1.xpose.msra.mxu0 0.0
        %4305 = vmatprep.subr.mxu0 0.0
        %4306 = vmatpush1.xpose.msra.mxu0 %v4275
        %4307 = vmatprep.subr.mxu0 0.0
        %4308 = vmatpush1.xpose.msra.mxu0 %v4273
        %4309 = vmatprep.subr.mxu0 0.0
        %4310 = vmatpush2.xpose.msra.mxu0 0.0
        %4311 = vmatprep.subr.mxu0 0.0
        %4312 = vmatpush2.xpose.msra.mxu0 0.0
        %4313 = vmatprep.subr.mxu0 0.0
        %4314 = vmatpush2.xpose.msra.mxu0 0.0
        %4315 = vmatprep.subr.mxu0 0.0
        %4316 = vmatpush2.xpose.msra.mxu0 0.0
        %4317 = vmatprep.subr.mxu0 0.0
        %4318 = vmatpush2.xpose.msra.mxu0 0.0
        %4319 = vmatprep.subr.mxu0 0.0
        %4320 = vmatpush2.xpose.msra.mxu0 0.0
        %4321 = vmatprep.subr.mxu0 0.0
        %4322 = vmatpush2.xpose.msra.mxu0 0.0
        %4323 = vmatprep.subr.mxu0 0.0
        %4324 = vmatpush2.xpose.msra.mxu0 0.0
        %4325 = vmatprep.subr.mxu0 0.0
        %4326 = vmatpush2.xpose.msra.mxu0 0.0
        %4327 = vmatprep.subr.mxu0 0.0
        %4328 = vmatpush2.xpose.msra.mxu0 0.0
        %4329 = vmatprep.subr.mxu0 0.0
        %4330 = vmatpush2.xpose.msra.mxu0 0.0
        %4331 = vmatprep.subr.mxu0 0.0
        %4332 = vmatpush2.xpose.msra.mxu0 0.0
        %4333 = vmatprep.subr.mxu0 0.0
        %4334 = vmatpush2.xpose.msra.mxu0 0.0
        %4335 = vmatprep.subr.mxu0 0.0
        %4336 = vmatpush2.xpose.msra.mxu0 0.0
        %4337 = vmatprep.subr.mxu0 0.0
        %4338 = vmatpush2.xpose.msra.mxu0 0.0
        %4339 = vmatprep.subr.mxu0 0.0
        %4340 = vmatpush2.xpose.msra.mxu0 0.0
        %4341 = vmatprep.mubr.f32.mxu0 0.0
        %4342 = vmatmul.mubr.f32.gmra.mxu0 %v4271
        %v4343 = vpop.f32.mrf.mxu0
        %v4344 = vadd.f32 0.0, %v4343
        %v4345 = vpop.f32.mrf.mxu0
        %4346 = vdwg.mxu0
        %v4347 = vsel %vm934, %v4158, 0
        %v4349 = vsel %vm934, %v4168, 0
        %v4351 = vsel %vm934, %v4170, 0
        %4353 = vmatprep.subr.mxu0 0.0
        %4354 = vmatpush1.xpose.msra.mxu0 0.0
        %4355 = vmatprep.subr.mxu0 0.0
        %4356 = vmatpush1.xpose.msra.mxu0 0.0
        %4357 = vmatprep.subr.mxu0 0.0
        %4358 = vmatpush1.xpose.msra.mxu0 0.0
        %4359 = vmatprep.subr.mxu0 0.0
        %4360 = vmatpush1.xpose.msra.mxu0 0.0
        %4361 = vmatprep.subr.mxu0 0.0
        %4362 = vmatpush1.xpose.msra.mxu0 0.0
        %4363 = vmatprep.subr.mxu0 0.0
        %4364 = vmatpush1.xpose.msra.mxu0 0.0
        %4365 = vmatprep.subr.mxu0 0.0
        %4366 = vmatpush1.xpose.msra.mxu0 0.0
        %4367 = vmatprep.subr.mxu0 0.0
        %4368 = vmatpush1.xpose.msra.mxu0 0.0
        %4369 = vmatprep.subr.mxu0 0.0
        %4370 = vmatpush1.xpose.msra.mxu0 0.0
        %4371 = vmatprep.subr.mxu0 0.0
        %4372 = vmatpush1.xpose.msra.mxu0 0.0
        %4373 = vmatprep.subr.mxu0 0.0
        %4374 = vmatpush1.xpose.msra.mxu0 0.0
        %4375 = vmatprep.subr.mxu0 0.0
        %4376 = vmatpush1.xpose.msra.mxu0 0.0
        %4377 = vmatprep.subr.mxu0 0.0
        %4378 = vmatpush1.xpose.msra.mxu0 0.0
        %4379 = vmatprep.subr.mxu0 0.0
        %4380 = vmatpush1.xpose.msra.mxu0 0.0
        %4381 = vmatprep.subr.mxu0 0.0
        %4382 = vmatpush1.xpose.msra.mxu0 %v4351
        %4383 = vmatprep.subr.mxu0 0.0
        %4384 = vmatpush1.xpose.msra.mxu0 %v4349
        %4385 = vmatprep.subr.mxu0 0.0
        %4386 = vmatpush2.xpose.msra.mxu0 0.0
        %4387 = vmatprep.subr.mxu0 0.0
        %4388 = vmatpush2.xpose.msra.mxu0 0.0
        %4389 = vmatprep.subr.mxu0 0.0
        %4390 = vmatpush2.xpose.msra.mxu0 0.0
        %4391 = vmatprep.subr.mxu0 0.0
        %4392 = vmatpush2.xpose.msra.mxu0 0.0
        %4393 = vmatprep.subr.mxu0 0.0
        %4394 = vmatpush2.xpose.msra.mxu0 0.0
        %4395 = vmatprep.subr.mxu0 0.0
        %4396 = vmatpush2.xpose.msra.mxu0 0.0
        %4397 = vmatprep.subr.mxu0 0.0
        %4398 = vmatpush2.xpose.msra.mxu0 0.0
        %4399 = vmatprep.subr.mxu0 0.0
        %4400 = vmatpush2.xpose.msra.mxu0 0.0
        %4401 = vmatprep.subr.mxu0 0.0
        %4402 = vmatpush2.xpose.msra.mxu0 0.0
        %4403 = vmatprep.subr.mxu0 0.0
        %4404 = vmatpush2.xpose.msra.mxu0 0.0
        %4405 = vmatprep.subr.mxu0 0.0
        %4406 = vmatpush2.xpose.msra.mxu0 0.0
        %4407 = vmatprep.subr.mxu0 0.0
        %4408 = vmatpush2.xpose.msra.mxu0 0.0
        %4409 = vmatprep.subr.mxu0 0.0
        %4410 = vmatpush2.xpose.msra.mxu0 0.0
        %4411 = vmatprep.subr.mxu0 0.0
        %4412 = vmatpush2.xpose.msra.mxu0 0.0
        %4413 = vmatprep.subr.mxu0 0.0
        %4414 = vmatpush2.xpose.msra.mxu0 0.0
        %4415 = vmatprep.subr.mxu0 0.0
        %4416 = vmatpush2.xpose.msra.mxu0 0.0
        %4417 = vmatprep.mubr.f32.mxu0 0.0
        %4418 = vmatmul.mubr.f32.gmra.mxu0 %v4347
        %v4419 = vpop.f32.mrf.mxu0
        %v4420 = vadd.f32 0.0, %v4419
        %v4421 = vpop.f32.mrf.mxu0
        %4422 = vdwg.mxu0
        %v4423 = vsel %vm934, %v4160, 0
        %v4425 = vsel %vm934, %v4172, 0
        %v4427 = vsel %vm934, %v4174, 0
        %4429 = vmatprep.subr.mxu0 0.0
        %4430 = vmatpush1.xpose.msra.mxu0 0.0
        %4431 = vmatprep.subr.mxu0 0.0
        %4432 = vmatpush1.xpose.msra.mxu0 0.0
        %4433 = vmatprep.subr.mxu0 0.0
        %4434 = vmatpush1.xpose.msra.mxu0 0.0
        %4435 = vmatprep.subr.mxu0 0.0
        %4436 = vmatpush1.xpose.msra.mxu0 0.0
        %4437 = vmatprep.subr.mxu0 0.0
        %4438 = vmatpush1.xpose.msra.mxu0 0.0
        %4439 = vmatprep.subr.mxu0 0.0
        %4440 = vmatpush1.xpose.msra.mxu0 0.0
        %4441 = vmatprep.subr.mxu0 0.0
        %4442 = vmatpush1.xpose.msra.mxu0 0.0
        %4443 = vmatprep.subr.mxu0 0.0
        %4444 = vmatpush1.xpose.msra.mxu0 0.0
        %4445 = vmatprep.subr.mxu0 0.0
        %4446 = vmatpush1.xpose.msra.mxu0 0.0
        %4447 = vmatprep.subr.mxu0 0.0
        %4448 = vmatpush1.xpose.msra.mxu0 0.0
        %4449 = vmatprep.subr.mxu0 0.0
        %4450 = vmatpush1.xpose.msra.mxu0 0.0
        %4451 = vmatprep.subr.mxu0 0.0
        %4452 = vmatpush1.xpose.msra.mxu0 0.0
        %4453 = vmatprep.subr.mxu0 0.0
        %4454 = vmatpush1.xpose.msra.mxu0 0.0
        %4455 = vmatprep.subr.mxu0 0.0
        %4456 = vmatpush1.xpose.msra.mxu0 0.0
        %4457 = vmatprep.subr.mxu0 0.0
        %4458 = vmatpush1.xpose.msra.mxu0 %v4427
        %4459 = vmatprep.subr.mxu0 0.0
        %4460 = vmatpush1.xpose.msra.mxu0 %v4425
        %4461 = vmatprep.subr.mxu0 0.0
        %4462 = vmatpush2.xpose.msra.mxu0 0.0
        %4463 = vmatprep.subr.mxu0 0.0
        %4464 = vmatpush2.xpose.msra.mxu0 0.0
        %4465 = vmatprep.subr.mxu0 0.0
        %4466 = vmatpush2.xpose.msra.mxu0 0.0
        %4467 = vmatprep.subr.mxu0 0.0
        %4468 = vmatpush2.xpose.msra.mxu0 0.0
        %4469 = vmatprep.subr.mxu0 0.0
        %4470 = vmatpush2.xpose.msra.mxu0 0.0
        %4471 = vmatprep.subr.mxu0 0.0
        %4472 = vmatpush2.xpose.msra.mxu0 0.0
        %4473 = vmatprep.subr.mxu0 0.0
        %4474 = vmatpush2.xpose.msra.mxu0 0.0
        %4475 = vmatprep.subr.mxu0 0.0
        %4476 = vmatpush2.xpose.msra.mxu0 0.0
        %4477 = vmatprep.subr.mxu0 0.0
        %4478 = vmatpush2.xpose.msra.mxu0 0.0
        %4479 = vmatprep.subr.mxu0 0.0
        %4480 = vmatpush2.xpose.msra.mxu0 0.0
        %4481 = vmatprep.subr.mxu0 0.0
        %4482 = vmatpush2.xpose.msra.mxu0 0.0
        %4483 = vmatprep.subr.mxu0 0.0
        %4484 = vmatpush2.xpose.msra.mxu0 0.0
        %4485 = vmatprep.subr.mxu0 0.0
        %4486 = vmatpush2.xpose.msra.mxu0 0.0
        %4487 = vmatprep.subr.mxu0 0.0
        %4488 = vmatpush2.xpose.msra.mxu0 0.0
        %4489 = vmatprep.subr.mxu0 0.0
        %4490 = vmatpush2.xpose.msra.mxu0 0.0
        %4491 = vmatprep.subr.mxu0 0.0
        %4492 = vmatpush2.xpose.msra.mxu0 0.0
        %4493 = vmatprep.mubr.f32.mxu0 0.0
        %4494 = vmatmul.mubr.f32.gmra.mxu0 %v4423
        %v4495 = vpop.f32.mrf.mxu0
        %v4496 = vadd.f32 0.0, %v4495
        %v4497 = vpop.f32.mrf.mxu0
        %4498 = vdwg.mxu0
        %v4499 = vsel %vm1586, %v4268, -inf
        %4500 = vmax.xlane.f32.xlu0 %v4499
        %v4501 = vpop.xlane.xlu0 %4500
        %v4502 = vsel %vm1586, %v4344, -inf
        %4503 = vmax.xlane.f32.xlu0 %v4502
        %v4504 = vpop.xlane.xlu0 %4503
        %v4505 = vsel %vm1586, %v4420, -inf
        %4506 = vmax.xlane.f32.xlu0 %v4505
        %v4507 = vpop.xlane.xlu0 %4506
        %v4508 = vsel %vm1586, %v4496, -inf
        %4509 = vmax.xlane.f32.xlu0 %v4508
        %v4510 = vpop.xlane.xlu0 %4509
        %v4511 = vsub.f32 %v4268, %v4501
        %v4512 = vsub.f32 %v4344, %v4504
        %v4513 = vsub.f32 %v4420, %v4507
        %v4514 = vsub.f32 %v4496, %v4510
        %v4515 = vmul.f32 %v4511, 1.442695
        %v4516 = vpow.pop %v4515
        %v4517 = vmul.f32 %v4512, 1.442695
        %v4518 = vpow.pop %v4517
        %v4519 = vmul.f32 %v4513, 1.442695
        %v4520 = vpow.pop %v4519
        %v4521 = vmul.f32 %v4514, 1.442695
        %v4522 = vpow.pop %v4521
        %v4523 = vsel %vm1586, %v4516, 0.0
        %4524 = vadd.xlane.f32.xlu0 %v4523
        %v4525 = vpop.xlane.xlu0 %4524
        %v4526 = vsel %vm1586, %v4518, 0.0
        %4527 = vadd.xlane.f32.xlu0 %v4526
        %v4528 = vpop.xlane.xlu0 %4527
        %v4529 = vsel %vm1586, %v4520, 0.0
        %4530 = vadd.xlane.f32.xlu0 %v4529
        %v4531 = vpop.xlane.xlu0 %4530
        %v4532 = vsel %vm1586, %v4522, 0.0
        %4533 = vadd.xlane.f32.xlu0 %v4532
        %v4534 = vpop.xlane.xlu0 %4533
        %v4535 = vrcp.pop %v4525
        %v4536 = vrcp.pop %v4528
        %v4537 = vrcp.pop %v4531
        %v4538 = vrcp.pop %v4534
        %v4539 = vmul.f32 %v4516, %v4535
        %v4540 = vmul.f32 %v4518, %v4536
        %v4541 = vmul.f32 %v4520, %v4537
        %v4542 = vmul.f32 %v4522, %v4538
        %v4544 = vsel %vm1586, %v4539, 0
        %4546 = vmatprep.subr.mxu0 0.0
        %4547 = vmatpush1.msra.mxu0 0.0
        %4548 = vmatprep.subr.mxu0 0.0
        %4549 = vmatpush1.msra.mxu0 0.0
        %4550 = vmatprep.subr.mxu0 0.0
        %4551 = vmatpush1.msra.mxu0 0.0
        %4552 = vmatprep.subr.mxu0 0.0
        %4553 = vmatpush1.msra.mxu0 0.0
        %4554 = vmatprep.subr.mxu0 0.0
        %4555 = vmatpush1.msra.mxu0 0.0
        %4556 = vmatprep.subr.mxu0 0.0
        %4557 = vmatpush1.msra.mxu0 0.0
        %4558 = vmatprep.subr.mxu0 0.0
        %4559 = vmatpush1.msra.mxu0 0.0
        %4560 = vmatprep.subr.mxu0 0.0
        %4561 = vmatpush1.msra.mxu0 0.0
        %4562 = vmatprep.subr.mxu0 0.0
        %4563 = vmatpush1.msra.mxu0 0.0
        %4564 = vmatprep.subr.mxu0 0.0
        %4565 = vmatpush1.msra.mxu0 0.0
        %4566 = vmatprep.subr.mxu0 0.0
        %4567 = vmatpush1.msra.mxu0 0.0
        %4568 = vmatprep.subr.mxu0 0.0
        %4569 = vmatpush1.msra.mxu0 0.0
        %4570 = vmatprep.subr.mxu0 0.0
        %4571 = vmatpush1.msra.mxu0 0.0
        %4572 = vmatprep.subr.mxu0 0.0
        %4573 = vmatpush1.msra.mxu0 0.0
        %4574 = vmatprep.subr.mxu0 0.0
        %4575 = vmatpush1.msra.mxu0 %v4146
        %4576 = vmatprep.subr.mxu0 0.0
        %4577 = vmatpush1.msra.mxu0 %v4141
        %4578 = vmatprep.subr.mxu0 0.0
        %4579 = vmatpush2.msra.mxu0 0.0
        %4580 = vmatprep.subr.mxu0 0.0
        %4581 = vmatpush2.msra.mxu0 0.0
        %4582 = vmatprep.subr.mxu0 0.0
        %4583 = vmatpush2.msra.mxu0 0.0
        %4584 = vmatprep.subr.mxu0 0.0
        %4585 = vmatpush2.msra.mxu0 0.0
        %4586 = vmatprep.subr.mxu0 0.0
        %4587 = vmatpush2.msra.mxu0 0.0
        %4588 = vmatprep.subr.mxu0 0.0
        %4589 = vmatpush2.msra.mxu0 0.0
        %4590 = vmatprep.subr.mxu0 0.0
        %4591 = vmatpush2.msra.mxu0 0.0
        %4592 = vmatprep.subr.mxu0 0.0
        %4593 = vmatpush2.msra.mxu0 0.0
        %4594 = vmatprep.subr.mxu0 0.0
        %4595 = vmatpush2.msra.mxu0 0.0
        %4596 = vmatprep.subr.mxu0 0.0
        %4597 = vmatpush2.msra.mxu0 0.0
        %4598 = vmatprep.subr.mxu0 0.0
        %4599 = vmatpush2.msra.mxu0 0.0
        %4600 = vmatprep.subr.mxu0 0.0
        %4601 = vmatpush2.msra.mxu0 0.0
        %4602 = vmatprep.subr.mxu0 0.0
        %4603 = vmatpush2.msra.mxu0 0.0
        %4604 = vmatprep.subr.mxu0 0.0
        %4605 = vmatpush2.msra.mxu0 0.0
        %4606 = vmatprep.subr.mxu0 0.0
        %4607 = vmatpush2.msra.mxu0 0.0
        %4608 = vmatprep.subr.mxu0 0.0
        %4609 = vmatpush2.msra.mxu0 0.0
        %4610 = vmatprep.mubr.f32.mxu0 0.0
        %4611 = vmatmul.mubr.f32.gmra.mxu0 %v4544
        %v4612 = vpop.f32.mrf.mxu0
        %v4613 = vadd.f32 0.0, %v4612
        %v4614 = vpop.f32.mrf.mxu0
        %4615 = vdwg.mxu0
        %v4617 = vsel %vm1586, %v4540, 0
        %4619 = vmatprep.subr.mxu0 0.0
        %4620 = vmatpush1.msra.mxu0 0.0
        %4621 = vmatprep.subr.mxu0 0.0
        %4622 = vmatpush1.msra.mxu0 0.0
        %4623 = vmatprep.subr.mxu0 0.0
        %4624 = vmatpush1.msra.mxu0 0.0
        %4625 = vmatprep.subr.mxu0 0.0
        %4626 = vmatpush1.msra.mxu0 0.0
        %4627 = vmatprep.subr.mxu0 0.0
        %4628 = vmatpush1.msra.mxu0 0.0
        %4629 = vmatprep.subr.mxu0 0.0
        %4630 = vmatpush1.msra.mxu0 0.0
        %4631 = vmatprep.subr.mxu0 0.0
        %4632 = vmatpush1.msra.mxu0 0.0
        %4633 = vmatprep.subr.mxu0 0.0
        %4634 = vmatpush1.msra.mxu0 0.0
        %4635 = vmatprep.subr.mxu0 0.0
        %4636 = vmatpush1.msra.mxu0 0.0
        %4637 = vmatprep.subr.mxu0 0.0
        %4638 = vmatpush1.msra.mxu0 0.0
        %4639 = vmatprep.subr.mxu0 0.0
        %4640 = vmatpush1.msra.mxu0 0.0
        %4641 = vmatprep.subr.mxu0 0.0
        %4642 = vmatpush1.msra.mxu0 0.0
        %4643 = vmatprep.subr.mxu0 0.0
        %4644 = vmatpush1.msra.mxu0 0.0
        %4645 = vmatprep.subr.mxu0 0.0
        %4646 = vmatpush1.msra.mxu0 0.0
        %4647 = vmatprep.subr.mxu0 0.0
        %4648 = vmatpush1.msra.mxu0 %v4180
        %4649 = vmatprep.subr.mxu0 0.0
        %4650 = vmatpush1.msra.mxu0 %v4178
        %4651 = vmatprep.subr.mxu0 0.0
        %4652 = vmatpush2.msra.mxu0 0.0
        %4653 = vmatprep.subr.mxu0 0.0
        %4654 = vmatpush2.msra.mxu0 0.0
        %4655 = vmatprep.subr.mxu0 0.0
        %4656 = vmatpush2.msra.mxu0 0.0
        %4657 = vmatprep.subr.mxu0 0.0
        %4658 = vmatpush2.msra.mxu0 0.0
        %4659 = vmatprep.subr.mxu0 0.0
        %4660 = vmatpush2.msra.mxu0 0.0
        %4661 = vmatprep.subr.mxu0 0.0
        %4662 = vmatpush2.msra.mxu0 0.0
        %4663 = vmatprep.subr.mxu0 0.0
        %4664 = vmatpush2.msra.mxu0 0.0
        %4665 = vmatprep.subr.mxu0 0.0
        %4666 = vmatpush2.msra.mxu0 0.0
        %4667 = vmatprep.subr.mxu0 0.0
        %4668 = vmatpush2.msra.mxu0 0.0
        %4669 = vmatprep.subr.mxu0 0.0
        %4670 = vmatpush2.msra.mxu0 0.0
        %4671 = vmatprep.subr.mxu0 0.0
        %4672 = vmatpush2.msra.mxu0 0.0
        %4673 = vmatprep.subr.mxu0 0.0
        %4674 = vmatpush2.msra.mxu0 0.0
        %4675 = vmatprep.subr.mxu0 0.0
        %4676 = vmatpush2.msra.mxu0 0.0
        %4677 = vmatprep.subr.mxu0 0.0
        %4678 = vmatpush2.msra.mxu0 0.0
        %4679 = vmatprep.subr.mxu0 0.0
        %4680 = vmatpush2.msra.mxu0 0.0
        %4681 = vmatprep.subr.mxu0 0.0
        %4682 = vmatpush2.msra.mxu0 0.0
        %4683 = vmatprep.mubr.f32.mxu0 0.0
        %4684 = vmatmul.mubr.f32.gmra.mxu0 %v4617
        %v4685 = vpop.f32.mrf.mxu0
        %v4686 = vadd.f32 0.0, %v4685
        %v4687 = vpop.f32.mrf.mxu0
        %4688 = vdwg.mxu0
        %v4690 = vsel %vm1586, %v4541, 0
        %4692 = vmatprep.subr.mxu0 0.0
        %4693 = vmatpush1.msra.mxu0 0.0
        %4694 = vmatprep.subr.mxu0 0.0
        %4695 = vmatpush1.msra.mxu0 0.0
        %4696 = vmatprep.subr.mxu0 0.0
        %4697 = vmatpush1.msra.mxu0 0.0
        %4698 = vmatprep.subr.mxu0 0.0
        %4699 = vmatpush1.msra.mxu0 0.0
        %4700 = vmatprep.subr.mxu0 0.0
        %4701 = vmatpush1.msra.mxu0 0.0
        %4702 = vmatprep.subr.mxu0 0.0
        %4703 = vmatpush1.msra.mxu0 0.0
        %4704 = vmatprep.subr.mxu0 0.0
        %4705 = vmatpush1.msra.mxu0 0.0
        %4706 = vmatprep.subr.mxu0 0.0
        %4707 = vmatpush1.msra.mxu0 0.0
        %4708 = vmatprep.subr.mxu0 0.0
        %4709 = vmatpush1.msra.mxu0 0.0
        %4710 = vmatprep.subr.mxu0 0.0
        %4711 = vmatpush1.msra.mxu0 0.0
        %4712 = vmatprep.subr.mxu0 0.0
        %4713 = vmatpush1.msra.mxu0 0.0
        %4714 = vmatprep.subr.mxu0 0.0
        %4715 = vmatpush1.msra.mxu0 0.0
        %4716 = vmatprep.subr.mxu0 0.0
        %4717 = vmatpush1.msra.mxu0 0.0
        %4718 = vmatprep.subr.mxu0 0.0
        %4719 = vmatpush1.msra.mxu0 0.0
        %4720 = vmatprep.subr.mxu0 0.0
        %4721 = vmatpush1.msra.mxu0 %v4186
        %4722 = vmatprep.subr.mxu0 0.0
        %4723 = vmatpush1.msra.mxu0 %v4184
        %4724 = vmatprep.subr.mxu0 0.0
        %4725 = vmatpush2.msra.mxu0 0.0
        %4726 = vmatprep.subr.mxu0 0.0
        %4727 = vmatpush2.msra.mxu0 0.0
        %4728 = vmatprep.subr.mxu0 0.0
        %4729 = vmatpush2.msra.mxu0 0.0
        %4730 = vmatprep.subr.mxu0 0.0
        %4731 = vmatpush2.msra.mxu0 0.0
        %4732 = vmatprep.subr.mxu0 0.0
        %4733 = vmatpush2.msra.mxu0 0.0
        %4734 = vmatprep.subr.mxu0 0.0
        %4735 = vmatpush2.msra.mxu0 0.0
        %4736 = vmatprep.subr.mxu0 0.0
        %4737 = vmatpush2.msra.mxu0 0.0
        %4738 = vmatprep.subr.mxu0 0.0
        %4739 = vmatpush2.msra.mxu0 0.0
        %4740 = vmatprep.subr.mxu0 0.0
        %4741 = vmatpush2.msra.mxu0 0.0
        %4742 = vmatprep.subr.mxu0 0.0
        %4743 = vmatpush2.msra.mxu0 0.0
        %4744 = vmatprep.subr.mxu0 0.0
        %4745 = vmatpush2.msra.mxu0 0.0
        %4746 = vmatprep.subr.mxu0 0.0
        %4747 = vmatpush2.msra.mxu0 0.0
        %4748 = vmatprep.subr.mxu0 0.0
        %4749 = vmatpush2.msra.mxu0 0.0
        %4750 = vmatprep.subr.mxu0 0.0
        %4751 = vmatpush2.msra.mxu0 0.0
        %4752 = vmatprep.subr.mxu0 0.0
        %4753 = vmatpush2.msra.mxu0 0.0
        %4754 = vmatprep.subr.mxu0 0.0
        %4755 = vmatpush2.msra.mxu0 0.0
        %4756 = vmatprep.mubr.f32.mxu0 0.0
        %4757 = vmatmul.mubr.f32.gmra.mxu0 %v4690
        %v4758 = vpop.f32.mrf.mxu0
        %v4759 = vadd.f32 0.0, %v4758
        %v4760 = vpop.f32.mrf.mxu0
        %4761 = vdwg.mxu0
        %v4763 = vsel %vm1586, %v4542, 0
        %4765 = vmatprep.subr.mxu0 0.0
        %4766 = vmatpush1.msra.mxu0 0.0
        %4767 = vmatprep.subr.mxu0 0.0
        %4768 = vmatpush1.msra.mxu0 0.0
        %4769 = vmatprep.subr.mxu0 0.0
        %4770 = vmatpush1.msra.mxu0 0.0
        %4771 = vmatprep.subr.mxu0 0.0
        %4772 = vmatpush1.msra.mxu0 0.0
        %4773 = vmatprep.subr.mxu0 0.0
        %4774 = vmatpush1.msra.mxu0 0.0
        %4775 = vmatprep.subr.mxu0 0.0
        %4776 = vmatpush1.msra.mxu0 0.0
        %4777 = vmatprep.subr.mxu0 0.0
        %4778 = vmatpush1.msra.mxu0 0.0
        %4779 = vmatprep.subr.mxu0 0.0
        %4780 = vmatpush1.msra.mxu0 0.0
        %4781 = vmatprep.subr.mxu0 0.0
        %4782 = vmatpush1.msra.mxu0 0.0
        %4783 = vmatprep.subr.mxu0 0.0
        %4784 = vmatpush1.msra.mxu0 0.0
        %4785 = vmatprep.subr.mxu0 0.0
        %4786 = vmatpush1.msra.mxu0 0.0
        %4787 = vmatprep.subr.mxu0 0.0
        %4788 = vmatpush1.msra.mxu0 0.0
        %4789 = vmatprep.subr.mxu0 0.0
        %4790 = vmatpush1.msra.mxu0 0.0
        %4791 = vmatprep.subr.mxu0 0.0
        %4792 = vmatpush1.msra.mxu0 0.0
        %4793 = vmatprep.subr.mxu0 0.0
        %4794 = vmatpush1.msra.mxu0 %v4192
        %4795 = vmatprep.subr.mxu0 0.0
        %4796 = vmatpush1.msra.mxu0 %v4190
        %4797 = vmatprep.subr.mxu0 0.0
        %4798 = vmatpush2.msra.mxu0 0.0
        %4799 = vmatprep.subr.mxu0 0.0
        %4800 = vmatpush2.msra.mxu0 0.0
        %4801 = vmatprep.subr.mxu0 0.0
        %4802 = vmatpush2.msra.mxu0 0.0
        %4803 = vmatprep.subr.mxu0 0.0
        %4804 = vmatpush2.msra.mxu0 0.0
        %4805 = vmatprep.subr.mxu0 0.0
        %4806 = vmatpush2.msra.mxu0 0.0
        %4807 = vmatprep.subr.mxu0 0.0
        %4808 = vmatpush2.msra.mxu0 0.0
        %4809 = vmatprep.subr.mxu0 0.0
        %4810 = vmatpush2.msra.mxu0 0.0
        %4811 = vmatprep.subr.mxu0 0.0
        %4812 = vmatpush2.msra.mxu0 0.0
        %4813 = vmatprep.subr.mxu0 0.0
        %4814 = vmatpush2.msra.mxu0 0.0
        %4815 = vmatprep.subr.mxu0 0.0
        %4816 = vmatpush2.msra.mxu0 0.0
        %4817 = vmatprep.subr.mxu0 0.0
        %4818 = vmatpush2.msra.mxu0 0.0
        %4819 = vmatprep.subr.mxu0 0.0
        %4820 = vmatpush2.msra.mxu0 0.0
        %4821 = vmatprep.subr.mxu0 0.0
        %4822 = vmatpush2.msra.mxu0 0.0
        %4823 = vmatprep.subr.mxu0 0.0
        %4824 = vmatpush2.msra.mxu0 0.0
        %4825 = vmatprep.subr.mxu0 0.0
        %4826 = vmatpush2.msra.mxu0 0.0
        %4827 = vmatprep.subr.mxu0 0.0
        %4828 = vmatpush2.msra.mxu0 0.0
        %4829 = vmatprep.mubr.f32.mxu0 0.0
        %4830 = vmatmul.mubr.f32.gmra.mxu0 %v4763
        %v4831 = vpop.f32.mrf.mxu0
        %v4832 = vadd.f32 0.0, %v4831
        %v4833 = vpop.f32.mrf.mxu0
        %4834 = vdwg.mxu0
        %4836 = vrot.lane.b32.xlu0 %v4686, 8
        %v4837 = vpop.permute.xlu0 %4836
        %4840 = vrot.lane.b32.xlu0 %v4759, 16
        %v4841 = vpop.permute.xlu0 %4840
        %4844 = vrot.lane.b32.xlu0 %v4832, 24
        %v4845 = vpop.permute.xlu0 %4844
        %v4847 = vsel %vm934, %v4613, %v4837
        %v4848 = vsel %vm1586, %v4847, %v4841
        %v4849 = vsel %vm1588, %v4848, %v4845
        %v4850 = vlaneseq
        %v4851 = vshrl.u32 %v4850, 7
        %v4852 = vsub.s32 5, %v4851
        %v4853 = vrot.slane %v2949, %v4852
        %v4855 = vsel %vm756, %v4849, 0
        %4857 = vmatprep.subr.mxu0 0.0
        %4858 = vmatpush1.msra.mxu0 0.0
        %4859 = vmatprep.subr.mxu0 0.0
        %4860 = vmatpush1.msra.mxu0 0.0
        %4861 = vmatprep.subr.mxu0 0.0
        %4862 = vmatpush1.msra.mxu0 0.0
        %4863 = vmatprep.subr.mxu0 0.0
        %4864 = vmatpush1.msra.mxu0 0.0
        %4865 = vmatprep.subr.mxu0 0.0
        %4866 = vmatpush1.msra.mxu0 0.0
        %4867 = vmatprep.subr.mxu0 0.0
        %4868 = vmatpush1.msra.mxu0 0.0
        %4869 = vmatprep.subr.mxu0 0.0
        %4870 = vmatpush1.msra.mxu0 0.0
        %4871 = vmatprep.subr.mxu0 0.0
        %4872 = vmatpush1.msra.mxu0 0.0
        %4873 = vmatprep.subr.mxu0 0.0
        %4874 = vmatpush1.msra.mxu0 0.0
        %4875 = vmatprep.subr.mxu0 0.0
        %4876 = vmatpush1.msra.mxu0 0.0
        %4877 = vmatprep.subr.mxu0 0.0
        %4878 = vmatpush1.msra.mxu0 0.0
        %4879 = vmatprep.subr.mxu0 0.0
        %4880 = vmatpush1.msra.mxu0 0.0
        %4881 = vmatprep.subr.mxu0 0.0
        %4882 = vmatpush1.msra.mxu0 %v4153
        %4883 = vmatprep.subr.mxu0 0.0
        %4884 = vmatpush1.msra.mxu0 %v4152
        %4885 = vmatprep.subr.mxu0 0.0
        %4886 = vmatpush1.msra.mxu0 %v4151
        %4887 = vmatprep.subr.mxu0 0.0
        %4888 = vmatpush1.msra.mxu0 %v4150
        %4889 = vmatprep.subr.mxu0 0.0
        %4890 = vmatpush2.msra.mxu0 0.0
        %4891 = vmatprep.subr.mxu0 0.0
        %4892 = vmatpush2.msra.mxu0 0.0
        %4893 = vmatprep.subr.mxu0 0.0
        %4894 = vmatpush2.msra.mxu0 0.0
        %4895 = vmatprep.subr.mxu0 0.0
        %4896 = vmatpush2.msra.mxu0 0.0
        %4897 = vmatprep.subr.mxu0 0.0
        %4898 = vmatpush2.msra.mxu0 0.0
        %4899 = vmatprep.subr.mxu0 0.0
        %4900 = vmatpush2.msra.mxu0 0.0
        %4901 = vmatprep.subr.mxu0 0.0
        %4902 = vmatpush2.msra.mxu0 0.0
        %4903 = vmatprep.subr.mxu0 0.0
        %4904 = vmatpush2.msra.mxu0 0.0
        %4905 = vmatprep.subr.mxu0 0.0
        %4906 = vmatpush2.msra.mxu0 0.0
        %4907 = vmatprep.subr.mxu0 0.0
        %4908 = vmatpush2.msra.mxu0 0.0
        %4909 = vmatprep.subr.mxu0 0.0
        %4910 = vmatpush2.msra.mxu0 0.0
        %4911 = vmatprep.subr.mxu0 0.0
        %4912 = vmatpush2.msra.mxu0 0.0
        %4913 = vmatprep.subr.mxu0 0.0
        %4914 = vmatpush2.msra.mxu0 0.0
        %4915 = vmatprep.subr.mxu0 0.0
        %4916 = vmatpush2.msra.mxu0 0.0
        %4917 = vmatprep.subr.mxu0 0.0
        %4918 = vmatpush2.msra.mxu0 0.0
        %4919 = vmatprep.subr.mxu0 0.0
        %4920 = vmatpush2.msra.mxu0 0.0
        %4921 = vmatprep.mubr.f32.mxu0 0.0
        %4922 = vmatmul.mubr.f32.gmra.mxu0 %v4855
        %v4923 = vpop.f32.mrf.mxu0
        %v4924 = vadd.f32 %v4853, %v4923
        %v4925 = vpop.f32.mrf.mxu0
        %4926 = vdwg.mxu0
        %v4927 = vadd.f32 %v3897, %v4924
        %v4928 = vsel %vm756, %v4927, 0.0
        %4929 = vadd.xlane.f32.xlu0 %v4928
        %v4930 = vpop.xlane.xlu0 %4929
        %v4931 = vmul.f32 %v4930, %v1671
        %v4932 = vsub.f32 %v4927, %v4931
        %v4933 = vmul.f32 %v4932, %v4932
        %v4934 = vsel %vm756, %v4933, 0.0
        %4935 = vadd.xlane.f32.xlu0 %v4934
        %v4936 = vpop.xlane.xlu0 %4935
        %v4937 = vmul.f32 %v4936, %v1671
        %v4938 = vadd.f32 %v4937, 1e-05
        %v4939 = vrsqrt.pop %v4938
        %v4940 = vmul.f32 %v4932, %v4939
        %v4941 = vlaneseq
        %v4942 = vshrl.u32 %v4941, 7
        %v4943 = vsub.s32 1, %v4942
        %v4944 = vrot.slane %v2950, %v4943
        %v4945 = vmul.f32 %v4940, %v4944
        %v4946 = vlaneseq
        %v4947 = vshrl.u32 %v4946, 7
        %v4948 = vsub.s32 2, %v4947
        %v4949 = vrot.slane %v2950, %v4948
        %v4950 = vadd.f32 %v4945, %v4949
        %s4951 = scalar_lea.vmem [#allocation14], 32
        %v4952 = vld [vmem:[%s4951] sm:$0xff]
        %v4953 = vld [vmem:[%s4951 + $0x8] sm:$0xff]
        %v4954 = vld [vmem:[%s4951 + $0x10] sm:$0xff]
        %v4955 = vld [vmem:[%s4951 + $0x18] sm:$0xff]
        %s4956 = scalar_lea.vmem %s14, 1
        %v4957 = vld [vmem:[%s4956] sm:$0x1]
        %v4959 = vlaneseq
        %v4960 = vshrl.u32 %v4959, 7
        %v4961 = vsub.s32 0, %v4960
        %v4962 = vrot.slane %v4957, %v4961
        %v4965 = vsel %vm756, %v4950, 0
        %4967 = vmatprep.subr.mxu0 0.0
        %4968 = vmatpush1.msra.mxu0 0.0
        %4969 = vmatprep.subr.mxu0 0.0
        %4970 = vmatpush1.msra.mxu0 0.0
        %4971 = vmatprep.subr.mxu0 0.0
        %4972 = vmatpush1.msra.mxu0 0.0
        %4973 = vmatprep.subr.mxu0 0.0
        %4974 = vmatpush1.msra.mxu0 0.0
        %4975 = vmatprep.subr.mxu0 0.0
        %4976 = vmatpush1.msra.mxu0 0.0
        %4977 = vmatprep.subr.mxu0 0.0
        %4978 = vmatpush1.msra.mxu0 0.0
        %4979 = vmatprep.subr.mxu0 0.0
        %4980 = vmatpush1.msra.mxu0 0.0
        %4981 = vmatprep.subr.mxu0 0.0
        %4982 = vmatpush1.msra.mxu0 0.0
        %4983 = vmatprep.subr.mxu0 0.0
        %4984 = vmatpush1.msra.mxu0 0.0
        %4985 = vmatprep.subr.mxu0 0.0
        %4986 = vmatpush1.msra.mxu0 0.0
        %4987 = vmatprep.subr.mxu0 0.0
        %4988 = vmatpush1.msra.mxu0 0.0
        %4989 = vmatprep.subr.mxu0 0.0
        %4990 = vmatpush1.msra.mxu0 0.0
        %4991 = vmatprep.subr.mxu0 0.0
        %4992 = vmatpush1.msra.mxu0 %v4955
        %4993 = vmatprep.subr.mxu0 0.0
        %4994 = vmatpush1.msra.mxu0 %v4954
        %4995 = vmatprep.subr.mxu0 0.0
        %4996 = vmatpush1.msra.mxu0 %v4953
        %4997 = vmatprep.subr.mxu0 0.0
        %4998 = vmatpush1.msra.mxu0 %v4952
        %4999 = vmatprep.subr.mxu0 0.0
        %5000 = vmatpush2.msra.mxu0 0.0
        %5001 = vmatprep.subr.mxu0 0.0
        %5002 = vmatpush2.msra.mxu0 0.0
        %5003 = vmatprep.subr.mxu0 0.0
        %5004 = vmatpush2.msra.mxu0 0.0
        %5005 = vmatprep.subr.mxu0 0.0
        %5006 = vmatpush2.msra.mxu0 0.0
        %5007 = vmatprep.subr.mxu0 0.0
        %5008 = vmatpush2.msra.mxu0 0.0
        %5009 = vmatprep.subr.mxu0 0.0
        %5010 = vmatpush2.msra.mxu0 0.0
        %5011 = vmatprep.subr.mxu0 0.0
        %5012 = vmatpush2.msra.mxu0 0.0
        %5013 = vmatprep.subr.mxu0 0.0
        %5014 = vmatpush2.msra.mxu0 0.0
        %5015 = vmatprep.subr.mxu0 0.0
        %5016 = vmatpush2.msra.mxu0 0.0
        %5017 = vmatprep.subr.mxu0 0.0
        %5018 = vmatpush2.msra.mxu0 0.0
        %5019 = vmatprep.subr.mxu0 0.0
        %5020 = vmatpush2.msra.mxu0 0.0
        %5021 = vmatprep.subr.mxu0 0.0
        %5022 = vmatpush2.msra.mxu0 0.0
        %5023 = vmatprep.subr.mxu0 0.0
        %5024 = vmatpush2.msra.mxu0 0.0
        %5025 = vmatprep.subr.mxu0 0.0
        %5026 = vmatpush2.msra.mxu0 0.0
        %5027 = vmatprep.subr.mxu0 0.0
        %5028 = vmatpush2.msra.mxu0 0.0
        %5029 = vmatprep.subr.mxu0 0.0
        %5030 = vmatpush2.msra.mxu0 0.0
        %5031 = vmatprep.mubr.f32.mxu0 0.0
        %5032 = vmatmul.mubr.f32.gmra.mxu0 %v4965
        %v5033 = vpop.f32.mrf.mxu0
        %v5034 = vadd.f32 %v4962, %v5033
        %v5035 = vpop.f32.mrf.mxu0
        %5036 = vdwg.mxu0
        %v5037 = vmax.f32 %v5034, 0.0
        %s5038 = scalar_lea.vmem %s12, 64
        %v5039 = vld [vmem:[%s5038] sm:$0xff]
        %v5040 = vld [vmem:[%s5038 + $0x8] sm:$0xff]
        %v5041 = vld [vmem:[%s5038 + $0x10] sm:$0xff]
        %v5042 = vld [vmem:[%s5038 + $0x18] sm:$0xff]
        %v5043 = vld [vmem:[%s5038 + $0x20] sm:$0xff]
        %v5044 = vld [vmem:[%s5038 + $0x28] sm:$0xff]
        %v5045 = vld [vmem:[%s5038 + $0x30] sm:$0xff]
        %v5046 = vld [vmem:[%s5038 + $0x38] sm:$0xff]
        %v5047 = vlaneseq
        %v5048 = vshrl.u32 %v5047, 7
        %v5049 = vsub.s32 6, %v5048
        %v5050 = vrot.slane %v2949, %v5049
        %v5052 = vsel %vm2850, %v5037, 0
        %5054 = vmatprep.subr.mxu0 0.0
        %5055 = vmatpush1.msra.mxu0 0.0
        %5056 = vmatprep.subr.mxu0 0.0
        %5057 = vmatpush1.msra.mxu0 0.0
        %5058 = vmatprep.subr.mxu0 0.0
        %5059 = vmatpush1.msra.mxu0 0.0
        %5060 = vmatprep.subr.mxu0 0.0
        %5061 = vmatpush1.msra.mxu0 0.0
        %5062 = vmatprep.subr.mxu0 0.0
        %5063 = vmatpush1.msra.mxu0 0.0
        %5064 = vmatprep.subr.mxu0 0.0
        %5065 = vmatpush1.msra.mxu0 0.0
        %5066 = vmatprep.subr.mxu0 0.0
        %5067 = vmatpush1.msra.mxu0 0.0
        %5068 = vmatprep.subr.mxu0 0.0
        %5069 = vmatpush1.msra.mxu0 0.0
        %5070 = vmatprep.subr.mxu0 0.0
        %5071 = vmatpush1.msra.mxu0 %v5046
        %5072 = vmatprep.subr.mxu0 0.0
        %5073 = vmatpush1.msra.mxu0 %v5045
        %5074 = vmatprep.subr.mxu0 0.0
        %5075 = vmatpush1.msra.mxu0 %v5044
        %5076 = vmatprep.subr.mxu0 0.0
        %5077 = vmatpush1.msra.mxu0 %v5043
        %5078 = vmatprep.subr.mxu0 0.0
        %5079 = vmatpush1.msra.mxu0 %v5042
        %5080 = vmatprep.subr.mxu0 0.0
        %5081 = vmatpush1.msra.mxu0 %v5041
        %5082 = vmatprep.subr.mxu0 0.0
        %5083 = vmatpush1.msra.mxu0 %v5040
        %5084 = vmatprep.subr.mxu0 0.0
        %5085 = vmatpush1.msra.mxu0 %v5039
        %5086 = vmatprep.subr.mxu0 0.0
        %5087 = vmatpush2.msra.mxu0 0.0
        %5088 = vmatprep.subr.mxu0 0.0
        %5089 = vmatpush2.msra.mxu0 0.0
        %5090 = vmatprep.subr.mxu0 0.0
        %5091 = vmatpush2.msra.mxu0 0.0
        %5092 = vmatprep.subr.mxu0 0.0
        %5093 = vmatpush2.msra.mxu0 0.0
        %5094 = vmatprep.subr.mxu0 0.0
        %5095 = vmatpush2.msra.mxu0 0.0
        %5096 = vmatprep.subr.mxu0 0.0
        %5097 = vmatpush2.msra.mxu0 0.0
        %5098 = vmatprep.subr.mxu0 0.0
        %5099 = vmatpush2.msra.mxu0 0.0
        %5100 = vmatprep.subr.mxu0 0.0
        %5101 = vmatpush2.msra.mxu0 0.0
        %5102 = vmatprep.subr.mxu0 0.0
        %5103 = vmatpush2.msra.mxu0 0.0
        %5104 = vmatprep.subr.mxu0 0.0
        %5105 = vmatpush2.msra.mxu0 0.0
        %5106 = vmatprep.subr.mxu0 0.0
        %5107 = vmatpush2.msra.mxu0 0.0
        %5108 = vmatprep.subr.mxu0 0.0
        %5109 = vmatpush2.msra.mxu0 0.0
        %5110 = vmatprep.subr.mxu0 0.0
        %5111 = vmatpush2.msra.mxu0 0.0
        %5112 = vmatprep.subr.mxu0 0.0
        %5113 = vmatpush2.msra.mxu0 0.0
        %5114 = vmatprep.subr.mxu0 0.0
        %5115 = vmatpush2.msra.mxu0 0.0
        %5116 = vmatprep.subr.mxu0 0.0
        %5117 = vmatpush2.msra.mxu0 0.0
        %5118 = vmatprep.mubr.f32.mxu0 0.0
        %5119 = vmatmul.mubr.f32.gmra.mxu0 %v5052
        %v5120 = vpop.f32.mrf.mxu0
        %v5121 = vadd.f32 %v5050, %v5120
        %v5122 = vpop.f32.mrf.mxu0
        %5123 = vdwg.mxu0
        %v5124 = vadd.f32 %v4950, %v5121
        %v5125 = vsel %vm756, %v5124, 0.0
        %5126 = vadd.xlane.f32.xlu0 %v5125
        %v5127 = vpop.xlane.xlu0 %5126
        %v5128 = vmul.f32 %v5127, %v1671
        %v5129 = vsub.f32 %v5124, %v5128
        %v5130 = vmul.f32 %v5129, %v5129
        %v5131 = vsel %vm756, %v5130, 0.0
        %5132 = vadd.xlane.f32.xlu0 %v5131
        %v5133 = vpop.xlane.xlu0 %5132
        %v5134 = vmul.f32 %v5133, %v1671
        %v5135 = vadd.f32 %v5134, 1e-05
        %v5136 = vrsqrt.pop %v5135
        %v5137 = vmul.f32 %v5129, %v5136
        %v5138 = vlaneseq
        %v5139 = vshrl.u32 %v5138, 7
        %v5140 = vsub.s32 3, %v5139
        %v5141 = vrot.slane %v2950, %v5140
        %v5142 = vmul.f32 %v5137, %v5141
        %v5143 = vlaneseq
        %v5144 = vshrl.u32 %v5143, 7
        %v5145 = vsub.s32 4, %v5144
        %v5146 = vrot.slane %v2950, %v5145
        %v5147 = vadd.f32 %v5142, %v5146
        %v5148 = vld [vmem:[%s16] sm:$0x1]
        %v5149 = vld [vmem:[%s16 + $0x1] sm:$0x1]
        %v5150 = vsel %vm756, %v5147, 0.0
        %5151 = vadd.xlane.f32.xlu0 %v5150
        %v5152 = vpop.xlane.xlu0 %5151
        %v5153 = vmul.f32 %v5152, %v1671
        %v5154 = vsub.f32 %v5147, %v5153
        %v5155 = vmul.f32 %v5154, %v5154
        %v5156 = vsel %vm756, %v5155, 0.0
        %5157 = vadd.xlane.f32.xlu0 %v5156
        %v5158 = vpop.xlane.xlu0 %5157
        %v5159 = vmul.f32 %v5158, %v1671
        %v5160 = vadd.f32 %v5159, 1e-05
        %v5161 = vrsqrt.pop %v5160
        %v5162 = vmul.f32 %v5154, %v5161
        %v5163 = vlaneseq
        %v5164 = vshrl.u32 %v5163, 7
        %v5165 = vsub.s32 0, %v5164
        %v5166 = vrot.slane %v5148, %v5165
        %v5167 = vmul.f32 %v5162, %v5166
        %v5168 = vlaneseq
        %v5169 = vshrl.u32 %v5168, 7
        %v5170 = vsub.s32 0, %v5169
        %v5171 = vrot.slane %v5149, %v5170
        %v5172 = vadd.f32 %v5167, %v5171
        %5173 = vst.msk [vmem:[%s735] sm:$0xff] %vm756, %v5172
        %s5174 = sand.u32 %s427, 1
        %s5175 = scalar_lea.sflag [#allocation4], %s5174
        %s5176 = sand.u32 %s427, 1
        %s5177 = smul.addr %s5176, 8
        %s5178 = scalar_lea.vmem [#allocation16], %s5177
        // Predicated region
        $region121: #{tpu_custom_call.1} parent=87 // pred_check
          %p5179 = pneg %p437
        $region122: #{tpu_custom_call.1} parent=87 // pred_check_branch
          %5181 = sbr.rel (%p5179) target = $region124
        $region123: #{tpu_custom_call.1} parent=87 // pred_region
          %s5183 = ssub.s32 128, 128
          %5184 = vsyncadd %s5175, %s5183
          %s5185 = smul.addr %s42, 128
          %s5186 = scalar_lea.hbm %s17, %s5185
          %s5188 = sshll.u32 %s5178, 4
          %s5189 = int_to_ptr.vmem [resolvable:$true] %s5188
          %5191 = dma.vmem_to_hbm [thread:$0]  %s5189, 128, %s5186, %s5175
        $region124: #{tpu_custom_call.1} parent=87 // pred_fallthru
          _
      $region88: #{tpu_custom_call.1} parent=5 // pred_fallthru
        _
      %p5192 = scmp.le.s32.totalorder 2, %s37
      // Predicated region
      $region125: #{tpu_custom_call.1} parent=5 // pred_check
        %p5193 = pneg %p5192
      $region126: #{tpu_custom_call.1} parent=5 // pred_check_branch
        %5195 = sbr.rel (%p5193) target = $region128
      $region127: #{tpu_custom_call.1} parent=5 // pred_region
        %s5196 = ssub.s32 %s37, 2
        // Predicated region
        $region129: #{tpu_custom_call.1} parent=127 // pred_check
          %p5197 = pneg %p443
        $region130: #{tpu_custom_call.1} parent=127 // pred_check_branch
          %5199 = sbr.rel (%p5197) target = $region132
        $region131: #{tpu_custom_call.1} parent=127 // pred_region
          %s5200 = sand.u32 %s428, 1
          %s5201 = scalar_lea.sflag [#allocation4], %s5200
          %s5202 = sand.u32 %s428, 1
          %s5203 = smul.addr %s5202, 8
          %s5204 = scalar_lea.vmem [#allocation16], %s5203
          %5205 = dma.done %s5201, 128
        $region132: #{tpu_custom_call.1} parent=127 // pred_fallthru
          _
      $region128: #{tpu_custom_call.1} parent=5 // pred_fallthru
        _
    $region6: #{tpu_custom_call.1} parent=1 // loop_footer
      %s41 = sadd.s32 1, %s37
    $region7: #{tpu_custom_call.1} parent=1 // loop_footer_branch
      %36 = sbr.rel target = $region3
    $region8: #{tpu_custom_call.1} parent=1 // loop_exit
      _
    %5206 = vsyncpa [#allocation3], 1
    %s5207 = scalar_lea.sflag [#allocation3], 1
    %5208 = vsyncpa %s5207, 1
    %5209 = vsyncpa [#allocation6], 1
    %s5210 = scalar_lea.sflag [#allocation6], 1
    %5211 = vsyncpa %s5210, 1
    %5212 = vsyncpa [#allocation9], 1
    %s5213 = scalar_lea.sflag [#allocation9], 1
    %5214 = vsyncpa %s5213, 1
    %5215 = vsyncpa [#allocation12], 1
    %5216 = vsyncpa [#allocation15], 1
    %5217 = vsyncpa [#allocation4], 1
    %s5218 = scalar_lea.sflag [#allocation4], 1
    %5219 = vsyncpa %s5218, 1

</llo_original>
